<compile_context>
chip_gen: v5e
topology: v5e:2x2
jax: 0.10.0
libtpu: 0.0.40
codegen_flags: <defaults>
</compile_context>

<pallas_src>
import jax
import jax.numpy as jnp
from jax.experimental import pallas as pl
from jax.experimental.pallas import tpu as pltpu


def _double_conv_kernel(x_ref, w1_ref, b1_ref, w2_ref, b2_ref, o_ref,
                        xpad_ref, patches1_ref, midpad_ref, patches2_ref):
    """Fused (conv3x3 -> folded-BN -> ReLU) x 2 for one batch image.

    x_ref:        (H, W, Cin)        bf16   input image (one batch element)
    w1_ref:       (9*Cin, Cmid)      bf16   layer-1 im2col weights, BN1 scale folded
    b1_ref:       (1, Cmid)          f32    layer-1 folded BN bias
    w2_ref:       (9*Cmid, Cout)     bf16   layer-2 im2col weights, BN2 scale folded
    b2_ref:       (1, Cout)          f32    layer-2 folded BN bias
    o_ref:        (H, W, Cout)       f32    output
    xpad_ref:     (H+2, W+2, Cin)    bf16   VMEM scratch: zero-halo padded input
    patches1_ref: (H, W, 9*Cin)      bf16   VMEM scratch: layer-1 im2col patches
    midpad_ref:   (H+2, W+2, Cmid)   bf16   VMEM scratch: padded intermediate
    patches2_ref: (H, W, 9*Cmid)     bf16   VMEM scratch: layer-2 im2col patches
    """
    H, W, _ = x_ref.shape

    def conv3x3_bias_relu(pad_ref, patches_ref, w_ref, b_ref):
        c = pad_ref.shape[-1]
        cout = w_ref.shape[-1]
        # Build the im2col patch tensor in VMEM scratch: lane-block i holds tap
        # (ky, kx) = (i // 3, i % 3), matching the (ky, kx, cin) row order of
        # the pre-reshaped weight matrix.
        for ky in range(3):
            for kx in range(3):
                i = ky * 3 + kx
                patches_ref[:, :, pl.ds(i * c, c)] = (
                    pad_ref[pl.ds(ky, H), pl.ds(kx, W), :])
        # One K = 9*c MXU contraction (bf16 operands, f32 accumulation) instead
        # of 9 tiny K=c matmuls.
        acc = jax.lax.dot_general(
            patches_ref[...], w_ref[...],
            dimension_numbers=(((2,), (0,)), ((), ())),
            preferred_element_type=jnp.float32)              # (H, W, cout) f32
        # BN scale is folded into the weights; epilogue is bias + ReLU only.
        return jnp.maximum(acc + b_ref[...].reshape(1, 1, cout), 0.0)

    # ---- Layer 1: zero-halo pad the input inside VMEM (no jnp.pad, no extra
    # HBM copy of the activation). ----
    xpad_ref[...] = jnp.zeros_like(xpad_ref)
    xpad_ref[pl.ds(1, H), pl.ds(1, W), :] = x_ref[...].astype(xpad_ref.dtype)
    y1 = conv3x3_bias_relu(xpad_ref, patches1_ref, w1_ref, b1_ref)   # (H,W,Cmid) f32

    # ---- Intermediate activation stays in VMEM scratch: no HBM round trip
    # between the two layers. ----
    midpad_ref[...] = jnp.zeros_like(midpad_ref)
    midpad_ref[pl.ds(1, H), pl.ds(1, W), :] = y1.astype(midpad_ref.dtype)

    # ---- Layer 2. ----
    y2 = conv3x3_bias_relu(midpad_ref, patches2_ref, w2_ref, b2_ref)  # (H,W,Cout) f32

    o_ref[...] = y2.astype(o_ref.dtype)


def _prep_layer(w_oihw, scale, bias):
    """OIHW conv weight + folded-BN (scale, bias) -> (im2col bf16 weight, f32 bias).

    Row order of the returned (9*Cin, Cout) matrix is (ky, kx, cin), matching
    the tap order the kernel uses to build its im2col patch tensor.
    """
    w_hwio = jnp.transpose(w_oihw, (2, 3, 1, 0)) * scale       # (3,3,Cin,Cout), scale folded
    kh, kw, cin, cout = w_hwio.shape
    w_mat = w_hwio.reshape(kh * kw * cin, cout).astype(jnp.bfloat16)
    return w_mat, bias.reshape(1, cout).astype(jnp.float32)


def double_conv(x_nchw, params):
    """DoubleConv forward. Input/output are NCHW float32 (PyTorch convention)."""
    B, Cin, H, W = x_nchw.shape
    w1, b1 = _prep_layer(params["w1"], params["s1"], params["b1"])
    w2, b2 = _prep_layer(params["w2"], params["s2"], params["b2"])
    Cmid, Cout = w1.shape[1], w2.shape[1]

    # Boundary glue only: NCHW -> NHWC, bf16 activations (halves input DMA bytes).
    x = jnp.transpose(x_nchw, (0, 2, 3, 1)).astype(jnp.bfloat16)

    flops = 2 * B * H * W * 9 * (Cin * Cmid + Cmid * Cout)
    bytes_accessed = (B * H * W * Cin * 2 + B * H * W * Cout * 4
                      + w1.size * 2 + w2.size * 2 + b1.size * 4 + b2.size * 4)

    y = pl.pallas_call(
        _double_conv_kernel,
        out_shape=jax.ShapeDtypeStruct((B, H, W, Cout), jnp.float32),
        grid=(B,),
        in_specs=[
            pl.BlockSpec((None, H, W, Cin), lambda b: (b, 0, 0, 0)),
            pl.BlockSpec((9 * Cin, Cmid), lambda b: (0, 0)),
            pl.BlockSpec((1, Cmid), lambda b: (0, 0)),
            pl.BlockSpec((9 * Cmid, Cout), lambda b: (0, 0)),
            pl.BlockSpec((1, Cout), lambda b: (0, 0)),
        ],
        out_specs=pl.BlockSpec((None, H, W, Cout), lambda b: (b, 0, 0, 0)),
        scratch_shapes=[
            pltpu.VMEM((H + 2, W + 2, Cin), jnp.bfloat16),    # padded input
            pltpu.VMEM((H, W, 9 * Cin), jnp.bfloat16),        # layer-1 im2col patches
            pltpu.VMEM((H + 2, W + 2, Cmid), jnp.bfloat16),   # padded intermediate
            pltpu.VMEM((H, W, 9 * Cmid), jnp.bfloat16),       # layer-2 im2col patches
        ],
        compiler_params=pltpu.CompilerParams(
            dimension_semantics=("parallel",)),
        cost_estimate=pl.CostEstimate(
            flops=flops, transcendentals=0, bytes_accessed=bytes_accessed),
    )(x, w1, b1, w2, b2)

    return jnp.transpose(y, (0, 3, 1, 2))                     # NHWC -> NCHW


def init_double_conv_params(key, in_channels, out_channels, mid_channels=None):
    if not mid_channels:
        mid_channels = out_channels
    k1, k2 = jax.random.split(key)
    # Conv2d weights, PyTorch OIHW shape: (out, in, 3, 3).
    w1 = jax.random.normal(k1, (mid_channels, in_channels, 3, 3), jnp.float32) * 0.1
    w2 = jax.random.normal(k2, (out_channels, mid_channels, 3, 3), jnp.float32) * 0.1
    eps = 1e-5
    # Fresh BatchNorm2d defaults: gamma=1, beta=0, running_mean=0, running_var=1.
    def bn_fold(c):
        gamma = jnp.ones((c,), jnp.float32)
        beta = jnp.zeros((c,), jnp.float32)
        mean = jnp.zeros((c,), jnp.float32)
        var = jnp.ones((c,), jnp.float32)
        scale = gamma / jnp.sqrt(var + eps)
        bias = beta - mean * scale
        return scale, bias
    s1, b1 = bn_fold(mid_channels)
    s2, b2 = bn_fold(out_channels)
    return {"w1": w1, "s1": s1, "b1": b1, "w2": w2, "s2": s2, "b2": b2}


def _reference_double_conv(x_nchw, params):
    """Pure-JAX reference (lax.conv, f32) for correctness checking."""
    def block(x, w, scale, bias):
        y = jax.lax.conv_general_dilated(
            x, w, window_strides=(1, 1), padding="SAME",
            dimension_numbers=("NCHW", "OIHW", "NCHW"))
        y = y * scale.reshape(1, -1, 1, 1) + bias.reshape(1, -1, 1, 1)
        return jnp.maximum(y, 0.0)
    y = block(x_nchw, params["w1"], params["s1"], params["b1"])
    return block(y, params["w2"], params["s2"], params["b2"])


if __name__ == "__main__":
    B, C_in, H, W = 2, 4, 16, 16
    C_out = 8

    key = jax.random.PRNGKey(0)
    kx, kp = jax.random.split(key)
    x = jax.random.normal(kx, (B, C_in, H, W), jnp.float32)
    params = init_double_conv_params(kp, C_in, C_out)

    out = jax.jit(double_conv)(x, params)
    out = jax.block_until_ready(out)

    ref = _reference_double_conv(x, params)
    assert out.shape == (B, C_out, H, W)
    # bf16 MXU operands (f32 accumulation) vs f32 reference => loosened tolerance.
    assert jnp.allclose(out, ref, atol=3e-2, rtol=3e-2), "mismatch vs reference"
    print("KERNEL_OK")
</pallas_src>

<mosaic_0001>
module attributes {stable_mosaic.version = 11 : i64} {
  func.func @_double_conv_kernel(%arg0: i32, %arg1: memref<1x16x16x4xbf16, #tpu.memory_space<vmem>>, %arg2: memref<36x8xbf16, #tpu.memory_space<vmem>>, %arg3: memref<1x8xf32, #tpu.memory_space<vmem>>, %arg4: memref<72x8xbf16, #tpu.memory_space<vmem>>, %arg5: memref<1x8xf32, #tpu.memory_space<vmem>>, %arg6: memref<1x16x16x8xf32, #tpu.memory_space<vmem>>, %arg7: memref<18x18x4xbf16, #tpu.memory_space<vmem>>, %arg8: memref<16x16x36xbf16, #tpu.memory_space<vmem>>, %arg9: memref<18x18x8xbf16, #tpu.memory_space<vmem>>, %arg10: memref<16x16x72xbf16, #tpu.memory_space<vmem>>) attributes {dimension_semantics = [#tpu.dimension_semantics<parallel>], iteration_bounds = array<i64: 2>, scalar_prefetch = 0 : i64, scratch_operands = 4 : i64, tpu.core_type = #tpu.core_type<tc>, window_params = [{transform_indices = @transform_0, window_bounds = array<i64: 1, 16, 16, 4>}, {pipeline_mode = #tpu.pipeline_mode<synchronous>, transform_indices = @transform_1, window_bounds = array<i64: 36, 8>}, {pipeline_mode = #tpu.pipeline_mode<synchronous>, transform_indices = @transform_2, window_bounds = array<i64: 1, 8>}, {pipeline_mode = #tpu.pipeline_mode<synchronous>, transform_indices = @transform_3, window_bounds = array<i64: 72, 8>}, {pipeline_mode = #tpu.pipeline_mode<synchronous>, transform_indices = @transform_4, window_bounds = array<i64: 1, 8>}, {transform_indices = @transform_5, window_bounds = array<i64: 1, 16, 16, 8>}]} {
    %cst = arith.constant 0.000000e+00 : bf16
    %0 = vector.broadcast %cst : bf16 to vector<18x18x4xbf16>
    %c0 = arith.constant 0 : index
    %c0_0 = arith.constant 0 : index
    %c0_1 = arith.constant 0 : index
    %1 = vector.load %arg7[%c0, %c0_0, %c0_1] : memref<18x18x4xbf16, #tpu.memory_space<vmem>>, vector<18x18x4xbf16>
    tpu.vector_store %arg7[%c0, %c0_0, %c0_1], %0 {strides = array<i32>} : memref<18x18x4xbf16, #tpu.memory_space<vmem>>, vector<18x18x4xbf16>,
    %c0_2 = arith.constant 0 : index
    %c0_3 = arith.constant 0 : index
    %c0_4 = arith.constant 0 : index
    %c0_5 = arith.constant 0 : index
    %2 = vector.load %arg1[%c0_2, %c0_3, %c0_4, %c0_5] : memref<1x16x16x4xbf16, #tpu.memory_space<vmem>>, vector<1x16x16x4xbf16>
    %3 = vector.shape_cast %2 : vector<1x16x16x4xbf16> to vector<16x16x4xbf16>
    %c1 = arith.constant 1 : index
    %c1_6 = arith.constant 1 : index
    %c0_7 = arith.constant 0 : index
    %4 = vector.load %arg7[%c1, %c1_6, %c0_7] : memref<18x18x4xbf16, #tpu.memory_space<vmem>>, vector<16x16x4xbf16>
    tpu.vector_store %arg7[%c1, %c1_6, %c0_7], %3 {strides = array<i32>} : memref<18x18x4xbf16, #tpu.memory_space<vmem>>, vector<16x16x4xbf16>,
    %c0_8 = arith.constant 0 : index
    %c0_9 = arith.constant 0 : index
    %c0_10 = arith.constant 0 : index
    %5 = vector.load %arg7[%c0_8, %c0_9, %c0_10] : memref<18x18x4xbf16, #tpu.memory_space<vmem>>, vector<16x16x4xbf16>
    %c0_11 = arith.constant 0 : index
    %c0_12 = arith.constant 0 : index
    %c0_13 = arith.constant 0 : index
    %6 = vector.load %arg8[%c0_11, %c0_12, %c0_13] : memref<16x16x36xbf16, #tpu.memory_space<vmem>>, vector<16x16x4xbf16>
    tpu.vector_store %arg8[%c0_11, %c0_12, %c0_13], %5 {strides = array<i32>} : memref<16x16x36xbf16, #tpu.memory_space<vmem>>, vector<16x16x4xbf16>,
    %c0_14 = arith.constant 0 : index
    %c1_15 = arith.constant 1 : index
    %c0_16 = arith.constant 0 : index
    %7 = vector.load %arg7[%c0_14, %c1_15, %c0_16] : memref<18x18x4xbf16, #tpu.memory_space<vmem>>, vector<16x16x4xbf16>
    %c0_17 = arith.constant 0 : index
    %c0_18 = arith.constant 0 : index
    %c4 = arith.constant 4 : index
    %8 = vector.load %arg8[%c0_17, %c0_18, %c4] : memref<16x16x36xbf16, #tpu.memory_space<vmem>>, vector<16x16x4xbf16>
    tpu.vector_store %arg8[%c0_17, %c0_18, %c4], %7 {strides = array<i32>} : memref<16x16x36xbf16, #tpu.memory_space<vmem>>, vector<16x16x4xbf16>,
    %c0_19 = arith.constant 0 : index
    %c2 = arith.constant 2 : index
    %c0_20 = arith.constant 0 : index
    %9 = vector.load %arg7[%c0_19, %c2, %c0_20] : memref<18x18x4xbf16, #tpu.memory_space<vmem>>, vector<16x16x4xbf16>
    %c0_21 = arith.constant 0 : index
    %c0_22 = arith.constant 0 : index
    %c8 = arith.constant 8 : index
    %10 = vector.load %arg8[%c0_21, %c0_22, %c8] : memref<16x16x36xbf16, #tpu.memory_space<vmem>>, vector<16x16x4xbf16>
    tpu.vector_store %arg8[%c0_21, %c0_22, %c8], %9 {strides = array<i32>} : memref<16x16x36xbf16, #tpu.memory_space<vmem>>, vector<16x16x4xbf16>,
    %c1_23 = arith.constant 1 : index
    %c0_24 = arith.constant 0 : index
    %c0_25 = arith.constant 0 : index
    %11 = vector.load %arg7[%c1_23, %c0_24, %c0_25] : memref<18x18x4xbf16, #tpu.memory_space<vmem>>, vector<16x16x4xbf16>
    %c0_26 = arith.constant 0 : index
    %c0_27 = arith.constant 0 : index
    %c12 = arith.constant 12 : index
    %12 = vector.load %arg8[%c0_26, %c0_27, %c12] : memref<16x16x36xbf16, #tpu.memory_space<vmem>>, vector<16x16x4xbf16>
    tpu.vector_store %arg8[%c0_26, %c0_27, %c12], %11 {strides = array<i32>} : memref<16x16x36xbf16, #tpu.memory_space<vmem>>, vector<16x16x4xbf16>,
    %c1_28 = arith.constant 1 : index
    %c1_29 = arith.constant 1 : index
    %c0_30 = arith.constant 0 : index
    %13 = vector.load %arg7[%c1_28, %c1_29, %c0_30] : memref<18x18x4xbf16, #tpu.memory_space<vmem>>, vector<16x16x4xbf16>
    %c0_31 = arith.constant 0 : index
    %c0_32 = arith.constant 0 : index
    %c16 = arith.constant 16 : index
    %14 = vector.load %arg8[%c0_31, %c0_32, %c16] : memref<16x16x36xbf16, #tpu.memory_space<vmem>>, vector<16x16x4xbf16>
    tpu.vector_store %arg8[%c0_31, %c0_32, %c16], %13 {strides = array<i32>} : memref<16x16x36xbf16, #tpu.memory_space<vmem>>, vector<16x16x4xbf16>,
    %c1_33 = arith.constant 1 : index
    %c2_34 = arith.constant 2 : index
    %c0_35 = arith.constant 0 : index
    %15 = vector.load %arg7[%c1_33, %c2_34, %c0_35] : memref<18x18x4xbf16, #tpu.memory_space<vmem>>, vector<16x16x4xbf16>
    %c0_36 = arith.constant 0 : index
    %c0_37 = arith.constant 0 : index
    %c20 = arith.constant 20 : index
    %16 = vector.load %arg8[%c0_36, %c0_37, %c20] : memref<16x16x36xbf16, #tpu.memory_space<vmem>>, vector<16x16x4xbf16>
    tpu.vector_store %arg8[%c0_36, %c0_37, %c20], %15 {strides = array<i32>} : memref<16x16x36xbf16, #tpu.memory_space<vmem>>, vector<16x16x4xbf16>,
    %c2_38 = arith.constant 2 : index
    %c0_39 = arith.constant 0 : index
    %c0_40 = arith.constant 0 : index
    %17 = vector.load %arg7[%c2_38, %c0_39, %c0_40] : memref<18x18x4xbf16, #tpu.memory_space<vmem>>, vector<16x16x4xbf16>
    %c0_41 = arith.constant 0 : index
    %c0_42 = arith.constant 0 : index
    %c24 = arith.constant 24 : index
    %18 = vector.load %arg8[%c0_41, %c0_42, %c24] : memref<16x16x36xbf16, #tpu.memory_space<vmem>>, vector<16x16x4xbf16>
    tpu.vector_store %arg8[%c0_41, %c0_42, %c24], %17 {strides = array<i32>} : memref<16x16x36xbf16, #tpu.memory_space<vmem>>, vector<16x16x4xbf16>,
    %c2_43 = arith.constant 2 : index
    %c1_44 = arith.constant 1 : index
    %c0_45 = arith.constant 0 : index
    %19 = vector.load %arg7[%c2_43, %c1_44, %c0_45] : memref<18x18x4xbf16, #tpu.memory_space<vmem>>, vector<16x16x4xbf16>
    %c0_46 = arith.constant 0 : index
    %c0_47 = arith.constant 0 : index
    %c28 = arith.constant 28 : index
    %20 = vector.load %arg8[%c0_46, %c0_47, %c28] : memref<16x16x36xbf16, #tpu.memory_space<vmem>>, vector<16x16x4xbf16>
    tpu.vector_store %arg8[%c0_46, %c0_47, %c28], %19 {strides = array<i32>} : memref<16x16x36xbf16, #tpu.memory_space<vmem>>, vector<16x16x4xbf16>,
    %c2_48 = arith.constant 2 : index
    %c2_49 = arith.constant 2 : index
    %c0_50 = arith.constant 0 : index
    %21 = vector.load %arg7[%c2_48, %c2_49, %c0_50] : memref<18x18x4xbf16, #tpu.memory_space<vmem>>, vector<16x16x4xbf16>
    %c0_51 = arith.constant 0 : index
    %c0_52 = arith.constant 0 : index
    %c32 = arith.constant 32 : index
    %22 = vector.load %arg8[%c0_51, %c0_52, %c32] : memref<16x16x36xbf16, #tpu.memory_space<vmem>>, vector<16x16x4xbf16>
    tpu.vector_store %arg8[%c0_51, %c0_52, %c32], %21 {strides = array<i32>} : memref<16x16x36xbf16, #tpu.memory_space<vmem>>, vector<16x16x4xbf16>,
    %c0_53 = arith.constant 0 : index
    %c0_54 = arith.constant 0 : index
    %c0_55 = arith.constant 0 : index
    %23 = vector.load %arg8[%c0_53, %c0_54, %c0_55] : memref<16x16x36xbf16, #tpu.memory_space<vmem>>, vector<16x16x36xbf16>
    %c0_56 = arith.constant 0 : index
    %c0_57 = arith.constant 0 : index
    %24 = vector.load %arg2[%c0_56, %c0_57] : memref<36x8xbf16, #tpu.memory_space<vmem>>, vector<36x8xbf16>
    %cst_58 = arith.constant dense<0.000000e+00> : vector<16x16x8xf32>
    %25 = tpu.matmul %23, %24, %cst_58 {dimension_numbers = #tpu.dot_dimension_numbers<[2], [0], [0, 1], [1], [0, 0, 0, 1, 1, 1], [], []>} : vector<16x16x36xbf16>, vector<36x8xbf16>, vector<16x16x8xf32> -> vector<16x16x8xf32>
    %c0_59 = arith.constant 0 : index
    %c0_60 = arith.constant 0 : index
    %26 = vector.load %arg3[%c0_59, %c0_60] : memref<1x8xf32, #tpu.memory_space<vmem>>, vector<1x8xf32>
    %27 = vector.shape_cast %26 : vector<1x8xf32> to vector<1x1x8xf32>
    %28 = vector.broadcast %27 : vector<1x1x8xf32> to vector<16x16x8xf32>
    %29 = arith.addf %25, %28 : vector<16x16x8xf32>
    %cst_61 = arith.constant 0.000000e+00 : f32
    %30 = vector.broadcast %cst_61 : f32 to vector<16x16x8xf32>
    %31 = arith.maximumf %29, %30 : vector<16x16x8xf32>
    %cst_62 = arith.constant 0.000000e+00 : bf16
    %32 = vector.broadcast %cst_62 : bf16 to vector<18x18x8xbf16>
    %c0_63 = arith.constant 0 : index
    %c0_64 = arith.constant 0 : index
    %c0_65 = arith.constant 0 : index
    %33 = vector.load %arg9[%c0_63, %c0_64, %c0_65] : memref<18x18x8xbf16, #tpu.memory_space<vmem>>, vector<18x18x8xbf16>
    tpu.vector_store %arg9[%c0_63, %c0_64, %c0_65], %32 {strides = array<i32>} : memref<18x18x8xbf16, #tpu.memory_space<vmem>>, vector<18x18x8xbf16>,
    %34 = arith.truncf %31 : vector<16x16x8xf32> to vector<16x16x8xbf16>
    %c1_66 = arith.constant 1 : index
    %c1_67 = arith.constant 1 : index
    %c0_68 = arith.constant 0 : index
    %35 = vector.load %arg9[%c1_66, %c1_67, %c0_68] : memref<18x18x8xbf16, #tpu.memory_space<vmem>>, vector<16x16x8xbf16>
    tpu.vector_store %arg9[%c1_66, %c1_67, %c0_68], %34 {strides = array<i32>} : memref<18x18x8xbf16, #tpu.memory_space<vmem>>, vector<16x16x8xbf16>,
    %c0_69 = arith.constant 0 : index
    %c0_70 = arith.constant 0 : index
    %c0_71 = arith.constant 0 : index
    %36 = vector.load %arg9[%c0_69, %c0_70, %c0_71] : memref<18x18x8xbf16, #tpu.memory_space<vmem>>, vector<16x16x8xbf16>
    %c0_72 = arith.constant 0 : index
    %c0_73 = arith.constant 0 : index
    %c0_74 = arith.constant 0 : index
    %37 = vector.load %arg10[%c0_72, %c0_73, %c0_74] : memref<16x16x72xbf16, #tpu.memory_space<vmem>>, vector<16x16x8xbf16>
    tpu.vector_store %arg10[%c0_72, %c0_73, %c0_74], %36 {strides = array<i32>} : memref<16x16x72xbf16, #tpu.memory_space<vmem>>, vector<16x16x8xbf16>,
    %c0_75 = arith.constant 0 : index
    %c1_76 = arith.constant 1 : index
    %c0_77 = arith.constant 0 : index
    %38 = vector.load %arg9[%c0_75, %c1_76, %c0_77] : memref<18x18x8xbf16, #tpu.memory_space<vmem>>, vector<16x16x8xbf16>
    %c0_78 = arith.constant 0 : index
    %c0_79 = arith.constant 0 : index
    %c8_80 = arith.constant 8 : index
    %39 = vector.load %arg10[%c0_78, %c0_79, %c8_80] : memref<16x16x72xbf16, #tpu.memory_space<vmem>>, vector<16x16x8xbf16>
    tpu.vector_store %arg10[%c0_78, %c0_79, %c8_80], %38 {strides = array<i32>} : memref<16x16x72xbf16, #tpu.memory_space<vmem>>, vector<16x16x8xbf16>,
    %c0_81 = arith.constant 0 : index
    %c2_82 = arith.constant 2 : index
    %c0_83 = arith.constant 0 : index
    %40 = vector.load %arg9[%c0_81, %c2_82, %c0_83] : memref<18x18x8xbf16, #tpu.memory_space<vmem>>, vector<16x16x8xbf16>
    %c0_84 = arith.constant 0 : index
    %c0_85 = arith.constant 0 : index
    %c16_86 = arith.constant 16 : index
    %41 = vector.load %arg10[%c0_84, %c0_85, %c16_86] : memref<16x16x72xbf16, #tpu.memory_space<vmem>>, vector<16x16x8xbf16>
    tpu.vector_store %arg10[%c0_84, %c0_85, %c16_86], %40 {strides = array<i32>} : memref<16x16x72xbf16, #tpu.memory_space<vmem>>, vector<16x16x8xbf16>,
    %c1_87 = arith.constant 1 : index
    %c0_88 = arith.constant 0 : index
    %c0_89 = arith.constant 0 : index
    %42 = vector.load %arg9[%c1_87, %c0_88, %c0_89] : memref<18x18x8xbf16, #tpu.memory_space<vmem>>, vector<16x16x8xbf16>
    %c0_90 = arith.constant 0 : index
    %c0_91 = arith.constant 0 : index
    %c24_92 = arith.constant 24 : index
    %43 = vector.load %arg10[%c0_90, %c0_91, %c24_92] : memref<16x16x72xbf16, #tpu.memory_space<vmem>>, vector<16x16x8xbf16>
    tpu.vector_store %arg10[%c0_90, %c0_91, %c24_92], %42 {strides = array<i32>} : memref<16x16x72xbf16, #tpu.memory_space<vmem>>, vector<16x16x8xbf16>,
    %c1_93 = arith.constant 1 : index
    %c1_94 = arith.constant 1 : index
    %c0_95 = arith.constant 0 : index
    %44 = vector.load %arg9[%c1_93, %c1_94, %c0_95] : memref<18x18x8xbf16, #tpu.memory_space<vmem>>, vector<16x16x8xbf16>
    %c0_96 = arith.constant 0 : index
    %c0_97 = arith.constant 0 : index
    %c32_98 = arith.constant 32 : index
    %45 = vector.load %arg10[%c0_96, %c0_97, %c32_98] : memref<16x16x72xbf16, #tpu.memory_space<vmem>>, vector<16x16x8xbf16>
    tpu.vector_store %arg10[%c0_96, %c0_97, %c32_98], %44 {strides = array<i32>} : memref<16x16x72xbf16, #tpu.memory_space<vmem>>, vector<16x16x8xbf16>,
    %c1_99 = arith.constant 1 : index
    %c2_100 = arith.constant 2 : index
    %c0_101 = arith.constant 0 : index
    %46 = vector.load %arg9[%c1_99, %c2_100, %c0_101] : memref<18x18x8xbf16, #tpu.memory_space<vmem>>, vector<16x16x8xbf16>
    %c0_102 = arith.constant 0 : index
    %c0_103 = arith.constant 0 : index
    %c40 = arith.constant 40 : index
    %47 = vector.load %arg10[%c0_102, %c0_103, %c40] : memref<16x16x72xbf16, #tpu.memory_space<vmem>>, vector<16x16x8xbf16>
    tpu.vector_store %arg10[%c0_102, %c0_103, %c40], %46 {strides = array<i32>} : memref<16x16x72xbf16, #tpu.memory_space<vmem>>, vector<16x16x8xbf16>,
    %c2_104 = arith.constant 2 : index
    %c0_105 = arith.constant 0 : index
    %c0_106 = arith.constant 0 : index
    %48 = vector.load %arg9[%c2_104, %c0_105, %c0_106] : memref<18x18x8xbf16, #tpu.memory_space<vmem>>, vector<16x16x8xbf16>
    %c0_107 = arith.constant 0 : index
    %c0_108 = arith.constant 0 : index
    %c48 = arith.constant 48 : index
    %49 = vector.load %arg10[%c0_107, %c0_108, %c48] : memref<16x16x72xbf16, #tpu.memory_space<vmem>>, vector<16x16x8xbf16>
    tpu.vector_store %arg10[%c0_107, %c0_108, %c48], %48 {strides = array<i32>} : memref<16x16x72xbf16, #tpu.memory_space<vmem>>, vector<16x16x8xbf16>,
    %c2_109 = arith.constant 2 : index
    %c1_110 = arith.constant 1 : index
    %c0_111 = arith.constant 0 : index
    %50 = vector.load %arg9[%c2_109, %c1_110, %c0_111] : memref<18x18x8xbf16, #tpu.memory_space<vmem>>, vector<16x16x8xbf16>
    %c0_112 = arith.constant 0 : index
    %c0_113 = arith.constant 0 : index
    %c56 = arith.constant 56 : index
    %51 = vector.load %arg10[%c0_112, %c0_113, %c56] : memref<16x16x72xbf16, #tpu.memory_space<vmem>>, vector<16x16x8xbf16>
    tpu.vector_store %arg10[%c0_112, %c0_113, %c56], %50 {strides = array<i32>} : memref<16x16x72xbf16, #tpu.memory_space<vmem>>, vector<16x16x8xbf16>,
    %c2_114 = arith.constant 2 : index
    %c2_115 = arith.constant 2 : index
    %c0_116 = arith.constant 0 : index
    %52 = vector.load %arg9[%c2_114, %c2_115, %c0_116] : memref<18x18x8xbf16, #tpu.memory_space<vmem>>, vector<16x16x8xbf16>
    %c0_117 = arith.constant 0 : index
    %c0_118 = arith.constant 0 : index
    %c64 = arith.constant 64 : index
    %53 = vector.load %arg10[%c0_117, %c0_118, %c64] : memref<16x16x72xbf16, #tpu.memory_space<vmem>>, vector<16x16x8xbf16>
    tpu.vector_store %arg10[%c0_117, %c0_118, %c64], %52 {strides = array<i32>} : memref<16x16x72xbf16, #tpu.memory_space<vmem>>, vector<16x16x8xbf16>,
    %c0_119 = arith.constant 0 : index
    %c0_120 = arith.constant 0 : index
    %c0_121 = arith.constant 0 : index
    %54 = vector.load %arg10[%c0_119, %c0_120, %c0_121] : memref<16x16x72xbf16, #tpu.memory_space<vmem>>, vector<16x16x72xbf16>
    %c0_122 = arith.constant 0 : index
    %c0_123 = arith.constant 0 : index
    %55 = vector.load %arg4[%c0_122, %c0_123] : memref<72x8xbf16, #tpu.memory_space<vmem>>, vector<72x8xbf16>
    %cst_124 = arith.constant dense<0.000000e+00> : vector<16x16x8xf32>
    %56 = tpu.matmul %54, %55, %cst_124 {dimension_numbers = #tpu.dot_dimension_numbers<[2], [0], [0, 1], [1], [0, 0, 0, 1, 1, 1], [], []>} : vector<16x16x72xbf16>, vector<72x8xbf16>, vector<16x16x8xf32> -> vector<16x16x8xf32>
    %c0_125 = arith.constant 0 : index
    %c0_126 = arith.constant 0 : index
    %57 = vector.load %arg5[%c0_125, %c0_126] : memref<1x8xf32, #tpu.memory_space<vmem>>, vector<1x8xf32>
    %58 = vector.shape_cast %57 : vector<1x8xf32> to vector<1x1x8xf32>
    %59 = vector.broadcast %58 : vector<1x1x8xf32> to vector<16x16x8xf32>
    %60 = arith.addf %56, %59 : vector<16x16x8xf32>
    %cst_127 = arith.constant 0.000000e+00 : f32
    %61 = vector.broadcast %cst_127 : f32 to vector<16x16x8xf32>
    %62 = arith.maximumf %60, %61 : vector<16x16x8xf32>
    %c0_128 = arith.constant 0 : index
    %c0_129 = arith.constant 0 : index
    %c0_130 = arith.constant 0 : index
    %c0_131 = arith.constant 0 : index
    %63 = vector.load %arg6[%c0_128, %c0_129, %c0_130, %c0_131] : memref<1x16x16x8xf32, #tpu.memory_space<vmem>>, vector<1x16x16x8xf32>
    %64 = vector.shape_cast %63 : vector<1x16x16x8xf32> to vector<16x16x8xf32>
    %65 = vector.shape_cast %62 : vector<16x16x8xf32> to vector<1x16x16x8xf32>
    tpu.vector_store %arg6[%c0_128, %c0_129, %c0_130, %c0_131], %65 {strides = array<i32>} : memref<1x16x16x8xf32, #tpu.memory_space<vmem>>, vector<1x16x16x8xf32>,
    return
  }
  func.func @transform_0(%arg0: i32) -> (i32, i32, i32, i32) {
    %c0_i32 = arith.constant 0 : i32
    %c0_i32_0 = arith.constant 0 : i32
    %c0_i32_1 = arith.constant 0 : i32
    %c0_i32_2 = arith.constant 0 : i32
    return %arg0, %c0_i32, %c0_i32_0, %c0_i32_1 : i32, i32, i32, i32
  }
  func.func @transform_1(%arg0: i32) -> (i32, i32) {
    %c0_i32 = arith.constant 0 : i32
    %c0_i32_0 = arith.constant 0 : i32
    %c0_i32_1 = arith.constant 0 : i32
    return %c0_i32, %c0_i32_0 : i32, i32
  }
  func.func @transform_2(%arg0: i32) -> (i32, i32) {
    %c0_i32 = arith.constant 0 : i32
    %c0_i32_0 = arith.constant 0 : i32
    %c0_i32_1 = arith.constant 0 : i32
    return %c0_i32, %c0_i32_0 : i32, i32
  }
  func.func @transform_3(%arg0: i32) -> (i32, i32) {
    %c0_i32 = arith.constant 0 : i32
    %c0_i32_0 = arith.constant 0 : i32
    %c0_i32_1 = arith.constant 0 : i32
    return %c0_i32, %c0_i32_0 : i32, i32
  }
  func.func @transform_4(%arg0: i32) -> (i32, i32) {
    %c0_i32 = arith.constant 0 : i32
    %c0_i32_0 = arith.constant 0 : i32
    %c0_i32_1 = arith.constant 0 : i32
    return %c0_i32, %c0_i32_0 : i32, i32
  }
  func.func @transform_5(%arg0: i32) -> (i32, i32, i32, i32) {
    %c0_i32 = arith.constant 0 : i32
    %c0_i32_0 = arith.constant 0 : i32
    %c0_i32_1 = arith.constant 0 : i32
    %c0_i32_2 = arith.constant 0 : i32
    return %arg0, %c0_i32, %c0_i32_0, %c0_i32_1 : i32, i32, i32, i32
  }
}

</mosaic_0001>

<llo_original>
// kernel: double_conv.1
$region0: #{double_conv.1}
  #allocation0 [shape = 'u32[]', space=smem, size = 0x4, offset = 0x4, fixed_abs, tag = 'smem constant byte address 0x4 - core index']
  #allocation1 [shape = 'u32[72,128]{1,0:T(1,128)}', space=vmem, size = 0x9000, scoped, tag = 'internal scratch']
  #allocation2 [shape = 'bf16[18,18,4]{2,1,0:T(8,128)(2,1)}', space=vmem, size = 0x1b000, scoped, tag = 'scratch operand']
  #allocation3 [shape = 'bf16[16,16,36]{2,1,0:T(8,128)(2,1)}', space=vmem, size = 0x10000, scoped, tag = 'scratch operand']
  #allocation4 [shape = 'bf16[18,18,8]{2,1,0:T(8,128)(2,1)}', space=vmem, size = 0x1b000, scoped, tag = 'scratch operand']
  #allocation5 [shape = 'bf16[16,16,72]{2,1,0:T(8,128)(2,1)}', space=vmem, size = 0x10000, scoped, tag = 'scratch operand']
  %s0 = inlined_call_operand.vmem [shape: bf16[2,16,16,4], index: 0, kind: input, shape index: {}]
  %s1 = inlined_call_operand.vmem [shape: bf16[36,8], index: 1, kind: input, shape index: {}]
  %s2 = inlined_call_operand.vmem [shape: f32[1,8], index: 2, kind: input, shape index: {}]
  %s3 = inlined_call_operand.vmem [shape: bf16[72,8], index: 3, kind: input, shape index: {}]
  %s4 = inlined_call_operand.vmem [shape: f32[1,8], index: 4, kind: input, shape index: {}]
  %s5 = inlined_call_operand.vmem [shape: f32[2,16,16,8], index: 5, kind: output, shape index: {}]
  %s6 = sld [smem:[#allocation0]]
  $region53: #{double_conv.1} parent=0
    _
  %s8 = ssub.s32 1, %s6
  %s9 = scalar_select 0, %s8, %s6
  loop: start=0, step=1, limit=4
  $region2: #{double_conv.1} parent=0 // loop_pre_header
    _
  $region3: #{double_conv.1} parent=0 // loop_header
    %s11 = sphi 0, %s15
    %p12 = scmp.ge.s32.totalorder %s11, 4
    %s21 = sphi 0, %s23
    %s24 = sphi 0, %s21
    %s25 = sphi 0, %s24
    %s41 = sphi 0, %s25
    %s45 = sphi 0, %s45
    %s47 = sphi 0, %s45
    %s48 = sphi 0, %s47
    %s62 = sphi 0, %s48
    %s66 = sphi 0, %s66
    %s68 = sphi 0, %s66
    %s69 = sphi 0, %s68
    %s83 = sphi 0, %s69
    %s87 = sphi 0, %s87
    %s89 = sphi 0, %s87
    %s90 = sphi 0, %s89
    %s104 = sphi 0, %s90
    %s108 = sphi 0, %s108
    %s110 = sphi 0, %s108
    %s111 = sphi 0, %s110
    %s125 = sphi 0, %s111
    %s131 = sphi 0, %s133
    %s134 = sphi 0, %s131
    %s135 = sphi 0, %s134
    %s151 = sphi 0, %s135
  $region4: #{double_conv.1} parent=0 // loop_header_branch
    %14 = sbr.rel (%p12) target = $region8
  $region5: #{double_conv.1} parent=0 // loop_body
    %s16 = ssub.s32 %s11, 1
    %s17 = ssub.s32 %s11, 2
    %s18 = sadd.s32 %s11, 1
    %s19 = ssub.s32 %s11, %s18
    %p20 = scmp.eq.s32.totalorder %s19, 0
    %s22 = sadd.s32 %s21, 1
    %s23 = scalar_select %p20, %s21, %s22
    %p26 = pneg %p20
    %p27 = scmp.eq.s32.totalorder %s11, 1
    %p28 = por %p26, %p27
    %p29 = scmp.ne.s32.totalorder %s21, %s24
    %p30 = scmp.eq.s32.totalorder %s11, 0
    %p31 = por %p29, %p30
    %p32 = scmp.ne.s32.totalorder %s21, %s24
    %p33 = scmp.eq.s32.totalorder %s16, 1
    %p34 = por %p32, %p33
    %p35 = scmp.ne.s32.totalorder %s24, %s25
    %p36 = scmp.eq.s32.totalorder %s16, 0
    %p37 = por %p35, %p36
    %p38 = scmp.ne.s32.totalorder %s24, %s25
    %p39 = scmp.eq.s32.totalorder %s17, 1
    %p40 = por %p38, %p39
    %p42 = scmp.ne.s32.totalorder %s25, %s41
    %p43 = scmp.eq.s32.totalorder %s17, 0
    %p44 = por %p42, %p43
    %s46 = sadd.s32 %s45, 1
    %p49 = scmp.eq.s32.totalorder %s11, 1
    %p50 = scmp.ne.s32.totalorder %s45, %s47
    %p51 = scmp.eq.s32.totalorder %s11, 0
    %p52 = por %p50, %p51
    %p53 = scmp.ne.s32.totalorder %s45, %s47
    %p54 = scmp.eq.s32.totalorder %s16, 1
    %p55 = por %p53, %p54
    %p56 = scmp.ne.s32.totalorder %s47, %s48
    %p57 = scmp.eq.s32.totalorder %s16, 0
    %p58 = por %p56, %p57
    %p59 = scmp.ne.s32.totalorder %s47, %s48
    %p60 = scmp.eq.s32.totalorder %s17, 1
    %p61 = por %p59, %p60
    %p63 = scmp.ne.s32.totalorder %s48, %s62
    %p64 = scmp.eq.s32.totalorder %s17, 0
    %p65 = por %p63, %p64
    %s67 = sadd.s32 %s66, 1
    %p70 = scmp.eq.s32.totalorder %s11, 1
    %p71 = scmp.ne.s32.totalorder %s66, %s68
    %p72 = scmp.eq.s32.totalorder %s11, 0
    %p73 = por %p71, %p72
    %p74 = scmp.ne.s32.totalorder %s66, %s68
    %p75 = scmp.eq.s32.totalorder %s16, 1
    %p76 = por %p74, %p75
    %p77 = scmp.ne.s32.totalorder %s68, %s69
    %p78 = scmp.eq.s32.totalorder %s16, 0
    %p79 = por %p77, %p78
    %p80 = scmp.ne.s32.totalorder %s68, %s69
    %p81 = scmp.eq.s32.totalorder %s17, 1
    %p82 = por %p80, %p81
    %p84 = scmp.ne.s32.totalorder %s69, %s83
    %p85 = scmp.eq.s32.totalorder %s17, 0
    %p86 = por %p84, %p85
    %s88 = sadd.s32 %s87, 1
    %p91 = scmp.eq.s32.totalorder %s11, 1
    %p92 = scmp.ne.s32.totalorder %s87, %s89
    %p93 = scmp.eq.s32.totalorder %s11, 0
    %p94 = por %p92, %p93
    %p95 = scmp.ne.s32.totalorder %s87, %s89
    %p96 = scmp.eq.s32.totalorder %s16, 1
    %p97 = por %p95, %p96
    %p98 = scmp.ne.s32.totalorder %s89, %s90
    %p99 = scmp.eq.s32.totalorder %s16, 0
    %p100 = por %p98, %p99
    %p101 = scmp.ne.s32.totalorder %s89, %s90
    %p102 = scmp.eq.s32.totalorder %s17, 1
    %p103 = por %p101, %p102
    %p105 = scmp.ne.s32.totalorder %s90, %s104
    %p106 = scmp.eq.s32.totalorder %s17, 0
    %p107 = por %p105, %p106
    %s109 = sadd.s32 %s108, 1
    %p112 = scmp.eq.s32.totalorder %s11, 1
    %p113 = scmp.ne.s32.totalorder %s108, %s110
    %p114 = scmp.eq.s32.totalorder %s11, 0
    %p115 = por %p113, %p114
    %p116 = scmp.ne.s32.totalorder %s108, %s110
    %p117 = scmp.eq.s32.totalorder %s16, 1
    %p118 = por %p116, %p117
    %p119 = scmp.ne.s32.totalorder %s110, %s111
    %p120 = scmp.eq.s32.totalorder %s16, 0
    %p121 = por %p119, %p120
    %p122 = scmp.ne.s32.totalorder %s110, %s111
    %p123 = scmp.eq.s32.totalorder %s17, 1
    %p124 = por %p122, %p123
    %p126 = scmp.ne.s32.totalorder %s111, %s125
    %p127 = scmp.eq.s32.totalorder %s17, 0
    %p128 = por %p126, %p127
    %s129 = ssub.s32 %s11, %s18
    %p130 = scmp.eq.s32.totalorder %s129, 0
    %s132 = sadd.s32 %s131, 1
    %s133 = scalar_select %p130, %s131, %s132
    %p136 = pneg %p130
    %p137 = scmp.eq.s32.totalorder %s11, 1
    %p138 = por %p136, %p137
    %p139 = scmp.ne.s32.totalorder %s131, %s134
    %p140 = scmp.eq.s32.totalorder %s11, 0
    %p141 = por %p139, %p140
    %p142 = scmp.ne.s32.totalorder %s131, %s134
    %p143 = scmp.eq.s32.totalorder %s16, 1
    %p144 = por %p142, %p143
    %p145 = scmp.ne.s32.totalorder %s134, %s135
    %p146 = scmp.eq.s32.totalorder %s16, 0
    %p147 = por %p145, %p146
    %p148 = scmp.ne.s32.totalorder %s134, %s135
    %p149 = scmp.eq.s32.totalorder %s17, 1
    %p150 = por %p148, %p149
    %p152 = scmp.ne.s32.totalorder %s135, %s151
    %p153 = scmp.eq.s32.totalorder %s17, 0
    %p154 = por %p152, %p153
    %p155 = scmp.le.s32.totalorder 1, %s11
    %p156 = scmp.lt.s32.totalorder %s11, 3
    %p157 = pnand %p155, %p156
    %p158 = pneg %p157
    // Predicated region
    $region9: #{double_conv.1} parent=5 // pred_check
      _
    $region10: #{double_conv.1} parent=5 // pred_check_branch
      %160 = sbr.rel (%p157) target = $region12
    $region11: #{double_conv.1} parent=5 // pred_region
      %s161 = ssub.s32 %s11, 1
      // Predicated region
      $region13: #{double_conv.1} parent=11 // pred_check
        %p162 = pneg %p58
      $region14: #{double_conv.1} parent=11 // pred_check_branch
        %164 = sbr.rel (%p162) target = $region16
      $region15: #{double_conv.1} parent=11 // pred_region
        _
      $region16: #{double_conv.1} parent=11 // pred_fallthru
        _
      // Predicated region
      $region17: #{double_conv.1} parent=11 // pred_check
        %p165 = pneg %p79
      $region18: #{double_conv.1} parent=11 // pred_check_branch
        %167 = sbr.rel (%p165) target = $region20
      $region19: #{double_conv.1} parent=11 // pred_region
        _
      $region20: #{double_conv.1} parent=11 // pred_fallthru
        _
      // Predicated region
      $region21: #{double_conv.1} parent=11 // pred_check
        %p168 = pneg %p100
      $region22: #{double_conv.1} parent=11 // pred_check_branch
        %170 = sbr.rel (%p168) target = $region24
      $region23: #{double_conv.1} parent=11 // pred_region
        _
      $region24: #{double_conv.1} parent=11 // pred_fallthru
        _
      // Predicated region
      $region25: #{double_conv.1} parent=11 // pred_check
        %p171 = pneg %p121
      $region26: #{double_conv.1} parent=11 // pred_check_branch
        %173 = sbr.rel (%p171) target = $region28
      $region27: #{double_conv.1} parent=11 // pred_region
        _
      $region28: #{double_conv.1} parent=11 // pred_fallthru
        _
    $region12: #{double_conv.1} parent=5 // pred_fallthru
      _
    %p174 = scmp.lt.s32.totalorder %s11, 2
    // Predicated region
    $region29: #{double_conv.1} parent=5 // pred_check
      %p175 = pneg %p174
    $region30: #{double_conv.1} parent=5 // pred_check_branch
      %177 = sbr.rel (%p175) target = $region32
    $region31: #{double_conv.1} parent=5 // pred_region
      // Predicated region
      $region33: #{double_conv.1} parent=31 // pred_check
        %p178 = pneg %p31
      $region34: #{double_conv.1} parent=31 // pred_check_branch
        %180 = sbr.rel (%p178) target = $region36
      $region35: #{double_conv.1} parent=31 // pred_region
        %p181 = scmp.lt.s32.totalorder %s11, 1
        %s182 = scalar_select %p181, %s11, 1
        %s183 = smul.addr %s182, 32
        %s184 = smul.addr %s183, 4
        %s185 = scalar_lea.vmem %s0, %s184
      $region36: #{double_conv.1} parent=31 // pred_fallthru
        _
    $region32: #{double_conv.1} parent=5 // pred_fallthru
      _
    %p186 = scmp.le.s32.totalorder 1, %s11
    %p187 = scmp.lt.s32.totalorder %s11, 3
    %p188 = pnand %p186, %p187
    %p189 = pneg %p188
    // Predicated region
    $region37: #{double_conv.1} parent=5 // pred_check
      _
    $region38: #{double_conv.1} parent=5 // pred_check_branch
      %191 = sbr.rel (%p188) target = $region40
    $region39: #{double_conv.1} parent=5 // pred_region
      %s192 = ssub.s32 %s11, 1
      %p193 = scmp.lt.s32.totalorder %s16, 1
      %s194 = scalar_select %p193, %s16, 1
      %s195 = smul.addr %s194, 32
      %s196 = smul.addr %s195, 4
      %s197 = scalar_lea.vmem %s0, %s196
      %p198 = pneg %p37
      %p199 = pneg %p34
      %p200 = pneg %p58
      %p201 = pneg %p55
      %p202 = pneg %p79
      %p203 = pneg %p76
      %p204 = pneg %p100
      %p205 = pneg %p97
      %p206 = pneg %p121
      %p207 = pneg %p118
      %p208 = pneg %p147
      %p209 = pneg %p144
      %p210 = scmp.lt.s32.totalorder %s16, 1
      %s211 = scalar_select %p210, %s16, 1
      %s212 = smul.addr %s211, 32
      %s213 = smul.addr %s212, 8
      %s214 = scalar_lea.vmem %s5, %s213
      %p215 = scmp.lt.s32.totalorder %s16, 1
      %s216 = scalar_select %p215, %s16, 1
      %s217 = smul.addr %s216, 32
      %s218 = smul.addr %s217, 4
      %s219 = scalar_lea.vmem %s0, %s218
      %p220 = scmp.lt.s32.totalorder %s16, 1
      %s221 = scalar_select %p220, %s16, 1
      %s222 = smul.addr %s221, 32
      %s223 = smul.addr %s222, 8
      %s224 = scalar_lea.vmem %s5, %s223
      %vm226 = vcmask 27648
      %227 = vst.msk [vmem:[#allocation2] sm:$0xf] %vm226, 0
      %228 = vst.msk [vmem:[#allocation2 + $0x4] sm:$0xf] %vm226, 0
      %vm229 = vcmask 24576
      %230 = vst.msk [vmem:[#allocation2 + $0x8] sm:$0x1] %vm229, 0
      %231 = vst.msk [vmem:[#allocation2 + $0xc] sm:$0xf] %vm226, 0
      %232 = vst.msk [vmem:[#allocation2 + $0x10] sm:$0xf] %vm226, 0
      %233 = vst.msk [vmem:[#allocation2 + $0x14] sm:$0x1] %vm229, 0
      %234 = vst.msk [vmem:[#allocation2 + $0x18] sm:$0xf] %vm226, 0
      %235 = vst.msk [vmem:[#allocation2 + $0x1c] sm:$0xf] %vm226, 0
      %236 = vst.msk [vmem:[#allocation2 + $0x20] sm:$0x1] %vm229, 0
      %237 = vst.msk [vmem:[#allocation2 + $0x24] sm:$0xf] %vm226, 0
      %238 = vst.msk [vmem:[#allocation2 + $0x28] sm:$0xf] %vm226, 0
      %239 = vst.msk [vmem:[#allocation2 + $0x2c] sm:$0x1] %vm229, 0
      %240 = vst.msk [vmem:[#allocation2 + $0x30] sm:$0xf] %vm226, 0
      %241 = vst.msk [vmem:[#allocation2 + $0x34] sm:$0xf] %vm226, 0
      %242 = vst.msk [vmem:[#allocation2 + $0x38] sm:$0x1] %vm229, 0
      %243 = vst.msk [vmem:[#allocation2 + $0x3c] sm:$0xf] %vm226, 0
      %244 = vst.msk [vmem:[#allocation2 + $0x40] sm:$0xf] %vm226, 0
      %245 = vst.msk [vmem:[#allocation2 + $0x44] sm:$0x1] %vm229, 0
      %246 = vst.msk [vmem:[#allocation2 + $0x48] sm:$0xf] %vm226, 0
      %247 = vst.msk [vmem:[#allocation2 + $0x4c] sm:$0xf] %vm226, 0
      %248 = vst.msk [vmem:[#allocation2 + $0x50] sm:$0x1] %vm229, 0
      %249 = vst.msk [vmem:[#allocation2 + $0x54] sm:$0xf] %vm226, 0
      %250 = vst.msk [vmem:[#allocation2 + $0x58] sm:$0xf] %vm226, 0
      %251 = vst.msk [vmem:[#allocation2 + $0x5c] sm:$0x1] %vm229, 0
      %252 = vst.msk [vmem:[#allocation2 + $0x60] sm:$0xf] %vm226, 0
      %253 = vst.msk [vmem:[#allocation2 + $0x64] sm:$0xf] %vm226, 0
      %254 = vst.msk [vmem:[#allocation2 + $0x68] sm:$0x1] %vm229, 0
      %255 = vst.msk [vmem:[#allocation2 + $0x6c] sm:$0xf] %vm226, 0
      %256 = vst.msk [vmem:[#allocation2 + $0x70] sm:$0xf] %vm226, 0
      %257 = vst.msk [vmem:[#allocation2 + $0x74] sm:$0x1] %vm229, 0
      %258 = vst.msk [vmem:[#allocation2 + $0x78] sm:$0xf] %vm226, 0
      %259 = vst.msk [vmem:[#allocation2 + $0x7c] sm:$0xf] %vm226, 0
      %260 = vst.msk [vmem:[#allocation2 + $0x80] sm:$0x1] %vm229, 0
      %261 = vst.msk [vmem:[#allocation2 + $0x84] sm:$0xf] %vm226, 0
      %262 = vst.msk [vmem:[#allocation2 + $0x88] sm:$0xf] %vm226, 0
      %263 = vst.msk [vmem:[#allocation2 + $0x8c] sm:$0x1] %vm229, 0
      %264 = vst.msk [vmem:[#allocation2 + $0x90] sm:$0xf] %vm226, 0
      %265 = vst.msk [vmem:[#allocation2 + $0x94] sm:$0xf] %vm226, 0
      %266 = vst.msk [vmem:[#allocation2 + $0x98] sm:$0x1] %vm229, 0
      %267 = vst.msk [vmem:[#allocation2 + $0x9c] sm:$0xf] %vm226, 0
      %268 = vst.msk [vmem:[#allocation2 + $0xa0] sm:$0xf] %vm226, 0
      %269 = vst.msk [vmem:[#allocation2 + $0xa4] sm:$0x1] %vm229, 0
      %270 = vst.msk [vmem:[#allocation2 + $0xa8] sm:$0xf] %vm226, 0
      %271 = vst.msk [vmem:[#allocation2 + $0xac] sm:$0xf] %vm226, 0
      %272 = vst.msk [vmem:[#allocation2 + $0xb0] sm:$0x1] %vm229, 0
      %273 = vst.msk [vmem:[#allocation2 + $0xb4] sm:$0xf] %vm226, 0
      %274 = vst.msk [vmem:[#allocation2 + $0xb8] sm:$0xf] %vm226, 0
      %275 = vst.msk [vmem:[#allocation2 + $0xbc] sm:$0x1] %vm229, 0
      %276 = vst.msk [vmem:[#allocation2 + $0xc0] sm:$0xf] %vm226, 0
      %277 = vst.msk [vmem:[#allocation2 + $0xc4] sm:$0xf] %vm226, 0
      %278 = vst.msk [vmem:[#allocation2 + $0xc8] sm:$0x1] %vm229, 0
      %279 = vst.msk [vmem:[#allocation2 + $0xcc] sm:$0xf] %vm226, 0
      %280 = vst.msk [vmem:[#allocation2 + $0xd0] sm:$0xf] %vm226, 0
      %281 = vst.msk [vmem:[#allocation2 + $0xd4] sm:$0x1] %vm229, 0
      %v282 = vld [vmem:[%s219] sm:$0xf]
      %v283 = vld [vmem:[%s219 + $0x4] sm:$0xf]
      %v284 = vld [vmem:[%s219 + $0x8] sm:$0xf]
      %v285 = vld [vmem:[%s219 + $0xc] sm:$0xf]
      %v286 = vld [vmem:[%s219 + $0x10] sm:$0xf]
      %v287 = vld [vmem:[%s219 + $0x14] sm:$0xf]
      %v288 = vld [vmem:[%s219 + $0x18] sm:$0xf]
      %v289 = vld [vmem:[%s219 + $0x1c] sm:$0xf]
      %v290 = vld [vmem:[%s219 + $0x20] sm:$0xf]
      %v291 = vld [vmem:[%s219 + $0x24] sm:$0xf]
      %v292 = vld [vmem:[%s219 + $0x28] sm:$0xf]
      %v293 = vld [vmem:[%s219 + $0x2c] sm:$0xf]
      %v294 = vld [vmem:[%s219 + $0x30] sm:$0xf]
      %v295 = vld [vmem:[%s219 + $0x34] sm:$0xf]
      %v296 = vld [vmem:[%s219 + $0x38] sm:$0xf]
      %v297 = vld [vmem:[%s219 + $0x3c] sm:$0xf]
      %v298 = vld [vmem:[%s219 + $0x40] sm:$0xf]
      %v299 = vld [vmem:[%s219 + $0x44] sm:$0xf]
      %v300 = vld [vmem:[%s219 + $0x48] sm:$0xf]
      %v301 = vld [vmem:[%s219 + $0x4c] sm:$0xf]
      %v302 = vld [vmem:[%s219 + $0x50] sm:$0xf]
      %v303 = vld [vmem:[%s219 + $0x54] sm:$0xf]
      %v304 = vld [vmem:[%s219 + $0x58] sm:$0xf]
      %v305 = vld [vmem:[%s219 + $0x5c] sm:$0xf]
      %v306 = vld [vmem:[%s219 + $0x60] sm:$0xf]
      %v307 = vld [vmem:[%s219 + $0x64] sm:$0xf]
      %v308 = vld [vmem:[%s219 + $0x68] sm:$0xf]
      %v309 = vld [vmem:[%s219 + $0x6c] sm:$0xf]
      %v310 = vld [vmem:[%s219 + $0x70] sm:$0xf]
      %v311 = vld [vmem:[%s219 + $0x74] sm:$0xf]
      %v312 = vld [vmem:[%s219 + $0x78] sm:$0xf]
      %v313 = vld [vmem:[%s219 + $0x7c] sm:$0xf]
      %vm314 = vsmask.f32 256
      %vm315 = vsmask.f32 4368
      %vm316 = vmor %vm314, %vm315
      %v318 = vshrl.u32 %v282, 16
      %v320 = vrot.slane %v318, 7
      %v321 = vshll.u32 %v282, 16
      %v323 = vor.u32 %v320, %v321
      %v324 = vrot.slane %v320, 4
      %v326 = vshrl.u32 %v283, 16
      %v328 = vrot.slane %v326, 7
      %v329 = vshll.u32 %v283, 16
      %v331 = vor.u32 %v328, %v329
      %v332 = vsel %vm316, %v324, %v331
      %v333 = vrot.slane %v328, 4
      %v335 = vshrl.u32 %v284, 16
      %v337 = vrot.slane %v335, 7
      %v338 = vshll.u32 %v284, 16
      %v340 = vor.u32 %v337, %v338
      %v341 = vrot.slane %v337, 4
      %v343 = vshrl.u32 %v285, 16
      %v345 = vrot.slane %v343, 7
      %v346 = vshll.u32 %v285, 16
      %v348 = vor.u32 %v345, %v346
      %v349 = vsel %vm316, %v341, %v348
      %v350 = vrot.slane %v345, 4
      %v352 = vshrl.u32 %v286, 16
      %v354 = vrot.slane %v352, 7
      %v355 = vshll.u32 %v286, 16
      %v357 = vor.u32 %v354, %v355
      %v358 = vrot.slane %v354, 4
      %v360 = vshrl.u32 %v287, 16
      %v362 = vrot.slane %v360, 7
      %v363 = vshll.u32 %v287, 16
      %v365 = vor.u32 %v362, %v363
      %v366 = vsel %vm316, %v358, %v365
      %v367 = vrot.slane %v362, 4
      %v369 = vshrl.u32 %v288, 16
      %v371 = vrot.slane %v369, 7
      %v372 = vshll.u32 %v288, 16
      %v374 = vor.u32 %v371, %v372
      %v375 = vrot.slane %v371, 4
      %v377 = vshrl.u32 %v289, 16
      %v379 = vrot.slane %v377, 7
      %v380 = vshll.u32 %v289, 16
      %v382 = vor.u32 %v379, %v380
      %v383 = vsel %vm316, %v375, %v382
      %v384 = vrot.slane %v379, 4
      %v386 = vshrl.u32 %v290, 16
      %v388 = vrot.slane %v386, 7
      %v389 = vshll.u32 %v290, 16
      %v391 = vor.u32 %v388, %v389
      %v392 = vrot.slane %v388, 4
      %v394 = vshrl.u32 %v291, 16
      %v396 = vrot.slane %v394, 7
      %v397 = vshll.u32 %v291, 16
      %v399 = vor.u32 %v396, %v397
      %v400 = vsel %vm316, %v392, %v399
      %v401 = vrot.slane %v396, 4
      %v403 = vshrl.u32 %v292, 16
      %v405 = vrot.slane %v403, 7
      %v406 = vshll.u32 %v292, 16
      %v408 = vor.u32 %v405, %v406
      %v409 = vrot.slane %v405, 4
      %v411 = vshrl.u32 %v293, 16
      %v413 = vrot.slane %v411, 7
      %v414 = vshll.u32 %v293, 16
      %v416 = vor.u32 %v413, %v414
      %v417 = vsel %vm316, %v409, %v416
      %v418 = vrot.slane %v413, 4
      %v420 = vshrl.u32 %v294, 16
      %v422 = vrot.slane %v420, 7
      %v423 = vshll.u32 %v294, 16
      %v425 = vor.u32 %v422, %v423
      %v426 = vrot.slane %v422, 4
      %v428 = vshrl.u32 %v295, 16
      %v430 = vrot.slane %v428, 7
      %v431 = vshll.u32 %v295, 16
      %v433 = vor.u32 %v430, %v431
      %v434 = vsel %vm316, %v426, %v433
      %v435 = vrot.slane %v430, 4
      %v437 = vshrl.u32 %v296, 16
      %v439 = vrot.slane %v437, 7
      %v440 = vshll.u32 %v296, 16
      %v442 = vor.u32 %v439, %v440
      %v443 = vrot.slane %v439, 4
      %v445 = vshrl.u32 %v297, 16
      %v447 = vrot.slane %v445, 7
      %v448 = vshll.u32 %v297, 16
      %v450 = vor.u32 %v447, %v448
      %v451 = vsel %vm316, %v443, %v450
      %v452 = vrot.slane %v447, 4
      %v454 = vshrl.u32 %v298, 16
      %v456 = vrot.slane %v454, 7
      %v457 = vshll.u32 %v298, 16
      %v459 = vor.u32 %v456, %v457
      %v460 = vrot.slane %v456, 4
      %v462 = vshrl.u32 %v299, 16
      %v464 = vrot.slane %v462, 7
      %v465 = vshll.u32 %v299, 16
      %v467 = vor.u32 %v464, %v465
      %v468 = vsel %vm316, %v460, %v467
      %v469 = vrot.slane %v464, 4
      %v471 = vshrl.u32 %v300, 16
      %v473 = vrot.slane %v471, 7
      %v474 = vshll.u32 %v300, 16
      %v476 = vor.u32 %v473, %v474
      %v477 = vrot.slane %v473, 4
      %v479 = vshrl.u32 %v301, 16
      %v481 = vrot.slane %v479, 7
      %v482 = vshll.u32 %v301, 16
      %v484 = vor.u32 %v481, %v482
      %v485 = vsel %vm316, %v477, %v484
      %v486 = vrot.slane %v481, 4
      %v488 = vshrl.u32 %v302, 16
      %v490 = vrot.slane %v488, 7
      %v491 = vshll.u32 %v302, 16
      %v493 = vor.u32 %v490, %v491
      %v494 = vrot.slane %v490, 4
      %v496 = vshrl.u32 %v303, 16
      %v498 = vrot.slane %v496, 7
      %v499 = vshll.u32 %v303, 16
      %v501 = vor.u32 %v498, %v499
      %v502 = vsel %vm316, %v494, %v501
      %v503 = vrot.slane %v498, 4
      %v505 = vshrl.u32 %v304, 16
      %v507 = vrot.slane %v505, 7
      %v508 = vshll.u32 %v304, 16
      %v510 = vor.u32 %v507, %v508
      %v511 = vrot.slane %v507, 4
      %v513 = vshrl.u32 %v305, 16
      %v515 = vrot.slane %v513, 7
      %v516 = vshll.u32 %v305, 16
      %v518 = vor.u32 %v515, %v516
      %v519 = vsel %vm316, %v511, %v518
      %v520 = vrot.slane %v515, 4
      %v522 = vshrl.u32 %v306, 16
      %v524 = vrot.slane %v522, 7
      %v525 = vshll.u32 %v306, 16
      %v527 = vor.u32 %v524, %v525
      %v528 = vrot.slane %v524, 4
      %v530 = vshrl.u32 %v307, 16
      %v532 = vrot.slane %v530, 7
      %v533 = vshll.u32 %v307, 16
      %v535 = vor.u32 %v532, %v533
      %v536 = vsel %vm316, %v528, %v535
      %v537 = vrot.slane %v532, 4
      %v539 = vshrl.u32 %v308, 16
      %v541 = vrot.slane %v539, 7
      %v542 = vshll.u32 %v308, 16
      %v544 = vor.u32 %v541, %v542
      %v545 = vrot.slane %v541, 4
      %v547 = vshrl.u32 %v309, 16
      %v549 = vrot.slane %v547, 7
      %v550 = vshll.u32 %v309, 16
      %v552 = vor.u32 %v549, %v550
      %v553 = vsel %vm316, %v545, %v552
      %v554 = vrot.slane %v549, 4
      %v556 = vshrl.u32 %v310, 16
      %v558 = vrot.slane %v556, 7
      %v559 = vshll.u32 %v310, 16
      %v561 = vor.u32 %v558, %v559
      %v562 = vrot.slane %v558, 4
      %v564 = vshrl.u32 %v311, 16
      %v566 = vrot.slane %v564, 7
      %v567 = vshll.u32 %v311, 16
      %v569 = vor.u32 %v566, %v567
      %v570 = vsel %vm316, %v562, %v569
      %v571 = vrot.slane %v566, 4
      %v573 = vshrl.u32 %v312, 16
      %v575 = vrot.slane %v573, 7
      %v576 = vshll.u32 %v312, 16
      %v578 = vor.u32 %v575, %v576
      %v579 = vrot.slane %v575, 4
      %v581 = vshrl.u32 %v313, 16
      %v583 = vrot.slane %v581, 7
      %v584 = vshll.u32 %v313, 16
      %v586 = vor.u32 %v583, %v584
      %v587 = vsel %vm316, %v579, %v586
      %v588 = vrot.slane %v583, 4
      %s637 = scalar_lea.vmem [#allocation2], 12
      %vm638 = vcmask 27648
      %vm639 = vsmask.f32 7938
      %vm640 = vmand %vm638, %vm639
      %v641 = vld [vmem:[%s637] sm:$0xf]
      %v642 = vsel %vm640, %v323, %v641
      %643 = vst [vmem:[%s637] sm:$0xf] %v642
      %644 = vst.msk [vmem:[%s637 + $0x4] sm:$0xf] %vm226, %v332
      %vm645 = vcmask 24576
      %vm646 = vmand %vm645, %vm314
      %v647 = vld [vmem:[%s637 + $0x8] sm:$0x1]
      %v648 = vsel %vm646, %v333, %v647
      %649 = vst [vmem:[%s637 + $0x8] sm:$0x1] %v648
      %v650 = vld [vmem:[%s637 + $0xc] sm:$0xf]
      %v651 = vsel %vm640, %v340, %v650
      %652 = vst [vmem:[%s637 + $0xc] sm:$0xf] %v651
      %653 = vst.msk [vmem:[%s637 + $0x10] sm:$0xf] %vm226, %v349
      %v654 = vld [vmem:[%s637 + $0x14] sm:$0x1]
      %v655 = vsel %vm646, %v350, %v654
      %656 = vst [vmem:[%s637 + $0x14] sm:$0x1] %v655
      %v657 = vld [vmem:[%s637 + $0x18] sm:$0xf]
      %v658 = vsel %vm640, %v357, %v657
      %659 = vst [vmem:[%s637 + $0x18] sm:$0xf] %v658
      %660 = vst.msk [vmem:[%s637 + $0x1c] sm:$0xf] %vm226, %v366
      %v661 = vld [vmem:[%s637 + $0x20] sm:$0x1]
      %v662 = vsel %vm646, %v367, %v661
      %663 = vst [vmem:[%s637 + $0x20] sm:$0x1] %v662
      %v664 = vld [vmem:[%s637 + $0x24] sm:$0xf]
      %v665 = vsel %vm640, %v374, %v664
      %666 = vst [vmem:[%s637 + $0x24] sm:$0xf] %v665
      %667 = vst.msk [vmem:[%s637 + $0x28] sm:$0xf] %vm226, %v383
      %v668 = vld [vmem:[%s637 + $0x2c] sm:$0x1]
      %v669 = vsel %vm646, %v384, %v668
      %670 = vst [vmem:[%s637 + $0x2c] sm:$0x1] %v669
      %v671 = vld [vmem:[%s637 + $0x30] sm:$0xf]
      %v672 = vsel %vm640, %v391, %v671
      %673 = vst [vmem:[%s637 + $0x30] sm:$0xf] %v672
      %674 = vst.msk [vmem:[%s637 + $0x34] sm:$0xf] %vm226, %v400
      %v675 = vld [vmem:[%s637 + $0x38] sm:$0x1]
      %v676 = vsel %vm646, %v401, %v675
      %677 = vst [vmem:[%s637 + $0x38] sm:$0x1] %v676
      %v678 = vld [vmem:[%s637 + $0x3c] sm:$0xf]
      %v679 = vsel %vm640, %v408, %v678
      %680 = vst [vmem:[%s637 + $0x3c] sm:$0xf] %v679
      %681 = vst.msk [vmem:[%s637 + $0x40] sm:$0xf] %vm226, %v417
      %v682 = vld [vmem:[%s637 + $0x44] sm:$0x1]
      %v683 = vsel %vm646, %v418, %v682
      %684 = vst [vmem:[%s637 + $0x44] sm:$0x1] %v683
      %v685 = vld [vmem:[%s637 + $0x48] sm:$0xf]
      %v686 = vsel %vm640, %v425, %v685
      %687 = vst [vmem:[%s637 + $0x48] sm:$0xf] %v686
      %688 = vst.msk [vmem:[%s637 + $0x4c] sm:$0xf] %vm226, %v434
      %v689 = vld [vmem:[%s637 + $0x50] sm:$0x1]
      %v690 = vsel %vm646, %v435, %v689
      %691 = vst [vmem:[%s637 + $0x50] sm:$0x1] %v690
      %v692 = vld [vmem:[%s637 + $0x54] sm:$0xf]
      %v693 = vsel %vm640, %v442, %v692
      %694 = vst [vmem:[%s637 + $0x54] sm:$0xf] %v693
      %695 = vst.msk [vmem:[%s637 + $0x58] sm:$0xf] %vm226, %v451
      %v696 = vld [vmem:[%s637 + $0x5c] sm:$0x1]
      %v697 = vsel %vm646, %v452, %v696
      %698 = vst [vmem:[%s637 + $0x5c] sm:$0x1] %v697
      %v699 = vld [vmem:[%s637 + $0x60] sm:$0xf]
      %v700 = vsel %vm640, %v459, %v699
      %701 = vst [vmem:[%s637 + $0x60] sm:$0xf] %v700
      %702 = vst.msk [vmem:[%s637 + $0x64] sm:$0xf] %vm226, %v468
      %v703 = vld [vmem:[%s637 + $0x68] sm:$0x1]
      %v704 = vsel %vm646, %v469, %v703
      %705 = vst [vmem:[%s637 + $0x68] sm:$0x1] %v704
      %v706 = vld [vmem:[%s637 + $0x6c] sm:$0xf]
      %v707 = vsel %vm640, %v476, %v706
      %708 = vst [vmem:[%s637 + $0x6c] sm:$0xf] %v707
      %709 = vst.msk [vmem:[%s637 + $0x70] sm:$0xf] %vm226, %v485
      %v710 = vld [vmem:[%s637 + $0x74] sm:$0x1]
      %v711 = vsel %vm646, %v486, %v710
      %712 = vst [vmem:[%s637 + $0x74] sm:$0x1] %v711
      %v713 = vld [vmem:[%s637 + $0x78] sm:$0xf]
      %v714 = vsel %vm640, %v493, %v713
      %715 = vst [vmem:[%s637 + $0x78] sm:$0xf] %v714
      %716 = vst.msk [vmem:[%s637 + $0x7c] sm:$0xf] %vm226, %v502
      %v717 = vld [vmem:[%s637 + $0x80] sm:$0x1]
      %v718 = vsel %vm646, %v503, %v717
      %719 = vst [vmem:[%s637 + $0x80] sm:$0x1] %v718
      %v720 = vld [vmem:[%s637 + $0x84] sm:$0xf]
      %v721 = vsel %vm640, %v510, %v720
      %722 = vst [vmem:[%s637 + $0x84] sm:$0xf] %v721
      %723 = vst.msk [vmem:[%s637 + $0x88] sm:$0xf] %vm226, %v519
      %v724 = vld [vmem:[%s637 + $0x8c] sm:$0x1]
      %v725 = vsel %vm646, %v520, %v724
      %726 = vst [vmem:[%s637 + $0x8c] sm:$0x1] %v725
      %v727 = vld [vmem:[%s637 + $0x90] sm:$0xf]
      %v728 = vsel %vm640, %v527, %v727
      %729 = vst [vmem:[%s637 + $0x90] sm:$0xf] %v728
      %730 = vst.msk [vmem:[%s637 + $0x94] sm:$0xf] %vm226, %v536
      %v731 = vld [vmem:[%s637 + $0x98] sm:$0x1]
      %v732 = vsel %vm646, %v537, %v731
      %733 = vst [vmem:[%s637 + $0x98] sm:$0x1] %v732
      %v734 = vld [vmem:[%s637 + $0x9c] sm:$0xf]
      %v735 = vsel %vm640, %v544, %v734
      %736 = vst [vmem:[%s637 + $0x9c] sm:$0xf] %v735
      %737 = vst.msk [vmem:[%s637 + $0xa0] sm:$0xf] %vm226, %v553
      %v738 = vld [vmem:[%s637 + $0xa4] sm:$0x1]
      %v739 = vsel %vm646, %v554, %v738
      %740 = vst [vmem:[%s637 + $0xa4] sm:$0x1] %v739
      %v741 = vld [vmem:[%s637 + $0xa8] sm:$0xf]
      %v742 = vsel %vm640, %v561, %v741
      %743 = vst [vmem:[%s637 + $0xa8] sm:$0xf] %v742
      %744 = vst.msk [vmem:[%s637 + $0xac] sm:$0xf] %vm226, %v570
      %v745 = vld [vmem:[%s637 + $0xb0] sm:$0x1]
      %v746 = vsel %vm646, %v571, %v745
      %747 = vst [vmem:[%s637 + $0xb0] sm:$0x1] %v746
      %v748 = vld [vmem:[%s637 + $0xb4] sm:$0xf]
      %v749 = vsel %vm640, %v578, %v748
      %750 = vst [vmem:[%s637 + $0xb4] sm:$0xf] %v749
      %751 = vst.msk [vmem:[%s637 + $0xb8] sm:$0xf] %vm226, %v587
      %v752 = vld [vmem:[%s637 + $0xbc] sm:$0x1]
      %v753 = vsel %vm646, %v588, %v752
      %754 = vst [vmem:[%s637 + $0xbc] sm:$0x1] %v753
      %v755 = vld [vmem:[#allocation2] sm:$0xf]
      %v756 = vld [vmem:[#allocation2 + $0x4] sm:$0xf]
      %v757 = vld [vmem:[#allocation2 + $0xc] sm:$0xf]
      %v758 = vld [vmem:[#allocation2 + $0x10] sm:$0xf]
      %v759 = vld [vmem:[#allocation2 + $0x18] sm:$0xf]
      %v760 = vld [vmem:[#allocation2 + $0x1c] sm:$0xf]
      %v761 = vld [vmem:[#allocation2 + $0x24] sm:$0xf]
      %v762 = vld [vmem:[#allocation2 + $0x28] sm:$0xf]
      %v763 = vld [vmem:[#allocation2 + $0x30] sm:$0xf]
      %v764 = vld [vmem:[#allocation2 + $0x34] sm:$0xf]
      %v765 = vld [vmem:[#allocation2 + $0x3c] sm:$0xf]
      %v766 = vld [vmem:[#allocation2 + $0x40] sm:$0xf]
      %v767 = vld [vmem:[#allocation2 + $0x48] sm:$0xf]
      %v768 = vld [vmem:[#allocation2 + $0x4c] sm:$0xf]
      %v769 = vld [vmem:[#allocation2 + $0x54] sm:$0xf]
      %v770 = vld [vmem:[#allocation2 + $0x58] sm:$0xf]
      %v771 = vld [vmem:[#allocation2 + $0x60] sm:$0xf]
      %v772 = vld [vmem:[#allocation2 + $0x64] sm:$0xf]
      %v773 = vld [vmem:[#allocation2 + $0x6c] sm:$0xf]
      %v774 = vld [vmem:[#allocation2 + $0x70] sm:$0xf]
      %v775 = vld [vmem:[#allocation2 + $0x78] sm:$0xf]
      %v776 = vld [vmem:[#allocation2 + $0x7c] sm:$0xf]
      %v777 = vld [vmem:[#allocation2 + $0x84] sm:$0xf]
      %v778 = vld [vmem:[#allocation2 + $0x88] sm:$0xf]
      %v779 = vld [vmem:[#allocation2 + $0x90] sm:$0xf]
      %v780 = vld [vmem:[#allocation2 + $0x94] sm:$0xf]
      %v781 = vld [vmem:[#allocation2 + $0x9c] sm:$0xf]
      %v782 = vld [vmem:[#allocation2 + $0xa0] sm:$0xf]
      %v783 = vld [vmem:[#allocation2 + $0xa8] sm:$0xf]
      %v784 = vld [vmem:[#allocation2 + $0xac] sm:$0xf]
      %v785 = vld [vmem:[#allocation2 + $0xb4] sm:$0xf]
      %v786 = vld [vmem:[#allocation2 + $0xb8] sm:$0xf]
      %787 = vst.msk [vmem:[#allocation3] sm:$0xf] %vm226, %v755
      %788 = vst.msk [vmem:[#allocation3 + $0x4] sm:$0xf] %vm226, %v756
      %789 = vst.msk [vmem:[#allocation3 + $0x8] sm:$0xf] %vm226, %v757
      %790 = vst.msk [vmem:[#allocation3 + $0xc] sm:$0xf] %vm226, %v758
      %791 = vst.msk [vmem:[#allocation3 + $0x10] sm:$0xf] %vm226, %v759
      %792 = vst.msk [vmem:[#allocation3 + $0x14] sm:$0xf] %vm226, %v760
      %793 = vst.msk [vmem:[#allocation3 + $0x18] sm:$0xf] %vm226, %v761
      %794 = vst.msk [vmem:[#allocation3 + $0x1c] sm:$0xf] %vm226, %v762
      %795 = vst.msk [vmem:[#allocation3 + $0x20] sm:$0xf] %vm226, %v763
      %796 = vst.msk [vmem:[#allocation3 + $0x24] sm:$0xf] %vm226, %v764
      %797 = vst.msk [vmem:[#allocation3 + $0x28] sm:$0xf] %vm226, %v765
      %798 = vst.msk [vmem:[#allocation3 + $0x2c] sm:$0xf] %vm226, %v766
      %799 = vst.msk [vmem:[#allocation3 + $0x30] sm:$0xf] %vm226, %v767
      %800 = vst.msk [vmem:[#allocation3 + $0x34] sm:$0xf] %vm226, %v768
      %801 = vst.msk [vmem:[#allocation3 + $0x38] sm:$0xf] %vm226, %v769
      %802 = vst.msk [vmem:[#allocation3 + $0x3c] sm:$0xf] %vm226, %v770
      %803 = vst.msk [vmem:[#allocation3 + $0x40] sm:$0xf] %vm226, %v771
      %804 = vst.msk [vmem:[#allocation3 + $0x44] sm:$0xf] %vm226, %v772
      %805 = vst.msk [vmem:[#allocation3 + $0x48] sm:$0xf] %vm226, %v773
      %806 = vst.msk [vmem:[#allocation3 + $0x4c] sm:$0xf] %vm226, %v774
      %807 = vst.msk [vmem:[#allocation3 + $0x50] sm:$0xf] %vm226, %v775
      %808 = vst.msk [vmem:[#allocation3 + $0x54] sm:$0xf] %vm226, %v776
      %809 = vst.msk [vmem:[#allocation3 + $0x58] sm:$0xf] %vm226, %v777
      %810 = vst.msk [vmem:[#allocation3 + $0x5c] sm:$0xf] %vm226, %v778
      %811 = vst.msk [vmem:[#allocation3 + $0x60] sm:$0xf] %vm226, %v779
      %812 = vst.msk [vmem:[#allocation3 + $0x64] sm:$0xf] %vm226, %v780
      %813 = vst.msk [vmem:[#allocation3 + $0x68] sm:$0xf] %vm226, %v781
      %814 = vst.msk [vmem:[#allocation3 + $0x6c] sm:$0xf] %vm226, %v782
      %815 = vst.msk [vmem:[#allocation3 + $0x70] sm:$0xf] %vm226, %v783
      %816 = vst.msk [vmem:[#allocation3 + $0x74] sm:$0xf] %vm226, %v784
      %817 = vst.msk [vmem:[#allocation3 + $0x78] sm:$0xf] %vm226, %v785
      %818 = vst.msk [vmem:[#allocation3 + $0x7c] sm:$0xf] %vm226, %v786
      %v819 = vld [vmem:[#allocation2] sm:$0xf]
      %v820 = vld [vmem:[#allocation2 + $0x4] sm:$0xf]
      %v821 = vld [vmem:[#allocation2 + $0x8] sm:$0x1]
      %v822 = vld [vmem:[#allocation2 + $0xc] sm:$0xf]
      %v823 = vld [vmem:[#allocation2 + $0x10] sm:$0xf]
      %v824 = vld [vmem:[#allocation2 + $0x14] sm:$0x1]
      %v825 = vld [vmem:[#allocation2 + $0x18] sm:$0xf]
      %v826 = vld [vmem:[#allocation2 + $0x1c] sm:$0xf]
      %v827 = vld [vmem:[#allocation2 + $0x20] sm:$0x1]
      %v828 = vld [vmem:[#allocation2 + $0x24] sm:$0xf]
      %v829 = vld [vmem:[#allocation2 + $0x28] sm:$0xf]
      %v830 = vld [vmem:[#allocation2 + $0x2c] sm:$0x1]
      %v831 = vld [vmem:[#allocation2 + $0x30] sm:$0xf]
      %v832 = vld [vmem:[#allocation2 + $0x34] sm:$0xf]
      %v833 = vld [vmem:[#allocation2 + $0x38] sm:$0x1]
      %v834 = vld [vmem:[#allocation2 + $0x3c] sm:$0xf]
      %v835 = vld [vmem:[#allocation2 + $0x40] sm:$0xf]
      %v836 = vld [vmem:[#allocation2 + $0x44] sm:$0x1]
      %v837 = vld [vmem:[#allocation2 + $0x48] sm:$0xf]
      %v838 = vld [vmem:[#allocation2 + $0x4c] sm:$0xf]
      %v839 = vld [vmem:[#allocation2 + $0x50] sm:$0x1]
      %v840 = vld [vmem:[#allocation2 + $0x54] sm:$0xf]
      %v841 = vld [vmem:[#allocation2 + $0x58] sm:$0xf]
      %v842 = vld [vmem:[#allocation2 + $0x5c] sm:$0x1]
      %v843 = vld [vmem:[#allocation2 + $0x60] sm:$0xf]
      %v844 = vld [vmem:[#allocation2 + $0x64] sm:$0xf]
      %v845 = vld [vmem:[#allocation2 + $0x68] sm:$0x1]
      %v846 = vld [vmem:[#allocation2 + $0x6c] sm:$0xf]
      %v847 = vld [vmem:[#allocation2 + $0x70] sm:$0xf]
      %v848 = vld [vmem:[#allocation2 + $0x74] sm:$0x1]
      %v849 = vld [vmem:[#allocation2 + $0x78] sm:$0xf]
      %v850 = vld [vmem:[#allocation2 + $0x7c] sm:$0xf]
      %v851 = vld [vmem:[#allocation2 + $0x80] sm:$0x1]
      %v852 = vld [vmem:[#allocation2 + $0x84] sm:$0xf]
      %v853 = vld [vmem:[#allocation2 + $0x88] sm:$0xf]
      %v854 = vld [vmem:[#allocation2 + $0x8c] sm:$0x1]
      %v855 = vld [vmem:[#allocation2 + $0x90] sm:$0xf]
      %v856 = vld [vmem:[#allocation2 + $0x94] sm:$0xf]
      %v857 = vld [vmem:[#allocation2 + $0x98] sm:$0x1]
      %v858 = vld [vmem:[#allocation2 + $0x9c] sm:$0xf]
      %v859 = vld [vmem:[#allocation2 + $0xa0] sm:$0xf]
      %v860 = vld [vmem:[#allocation2 + $0xa4] sm:$0x1]
      %v861 = vld [vmem:[#allocation2 + $0xa8] sm:$0xf]
      %v862 = vld [vmem:[#allocation2 + $0xac] sm:$0xf]
      %v863 = vld [vmem:[#allocation2 + $0xb0] sm:$0x1]
      %v864 = vld [vmem:[#allocation2 + $0xb4] sm:$0xf]
      %v865 = vld [vmem:[#allocation2 + $0xb8] sm:$0xf]
      %v866 = vld [vmem:[#allocation2 + $0xbc] sm:$0x1]
      %vm867 = vsmask.f32 3328
      %vm868 = vsmask.f32 7440
      %vm869 = vmor %vm867, %vm868
      %v871 = vshrl.u32 %v819, 16
      %v873 = vrot.slane %v871, 4
      %v874 = vshll.u32 %v819, 16
      %v876 = vrot.slane %v874, 5
      %v877 = vor.u32 %v873, %v876
      %v878 = vrot.slane %v877, 4
      %v880 = vshll.u32 %v820, 16
      %v882 = vrot.slane %v880, 5
      %v883 = vsel %vm869, %v878, %v882
      %v884 = vshrl.u32 %v820, 16
      %v886 = vrot.slane %v884, 4
      %v887 = vor.u32 %v886, %v882
      %v888 = vrot.slane %v887, 4
      %v890 = vshll.u32 %v821, 16
      %v892 = vrot.slane %v890, 5
      %v893 = vsel %vm869, %v888, %v892
      %v895 = vshrl.u32 %v822, 16
      %v897 = vrot.slane %v895, 4
      %v898 = vshll.u32 %v822, 16
      %v900 = vrot.slane %v898, 5
      %v901 = vor.u32 %v897, %v900
      %v902 = vrot.slane %v901, 4
      %v904 = vshll.u32 %v823, 16
      %v906 = vrot.slane %v904, 5
      %v907 = vsel %vm869, %v902, %v906
      %v908 = vshrl.u32 %v823, 16
      %v910 = vrot.slane %v908, 4
      %v911 = vor.u32 %v910, %v906
      %v912 = vrot.slane %v911, 4
      %v914 = vshll.u32 %v824, 16
      %v916 = vrot.slane %v914, 5
      %v917 = vsel %vm869, %v912, %v916
      %v919 = vshrl.u32 %v825, 16
      %v921 = vrot.slane %v919, 4
      %v922 = vshll.u32 %v825, 16
      %v924 = vrot.slane %v922, 5
      %v925 = vor.u32 %v921, %v924
      %v926 = vrot.slane %v925, 4
      %v928 = vshll.u32 %v826, 16
      %v930 = vrot.slane %v928, 5
      %v931 = vsel %vm869, %v926, %v930
      %v932 = vshrl.u32 %v826, 16
      %v934 = vrot.slane %v932, 4
      %v935 = vor.u32 %v934, %v930
      %v936 = vrot.slane %v935, 4
      %v938 = vshll.u32 %v827, 16
      %v940 = vrot.slane %v938, 5
      %v941 = vsel %vm869, %v936, %v940
      %v943 = vshrl.u32 %v828, 16
      %v945 = vrot.slane %v943, 4
      %v946 = vshll.u32 %v828, 16
      %v948 = vrot.slane %v946, 5
      %v949 = vor.u32 %v945, %v948
      %v950 = vrot.slane %v949, 4
      %v952 = vshll.u32 %v829, 16
      %v954 = vrot.slane %v952, 5
      %v955 = vsel %vm869, %v950, %v954
      %v956 = vshrl.u32 %v829, 16
      %v958 = vrot.slane %v956, 4
      %v959 = vor.u32 %v958, %v954
      %v960 = vrot.slane %v959, 4
      %v962 = vshll.u32 %v830, 16
      %v964 = vrot.slane %v962, 5
      %v965 = vsel %vm869, %v960, %v964
      %v967 = vshrl.u32 %v831, 16
      %v969 = vrot.slane %v967, 4
      %v970 = vshll.u32 %v831, 16
      %v972 = vrot.slane %v970, 5
      %v973 = vor.u32 %v969, %v972
      %v974 = vrot.slane %v973, 4
      %v976 = vshll.u32 %v832, 16
      %v978 = vrot.slane %v976, 5
      %v979 = vsel %vm869, %v974, %v978
      %v980 = vshrl.u32 %v832, 16
      %v982 = vrot.slane %v980, 4
      %v983 = vor.u32 %v982, %v978
      %v984 = vrot.slane %v983, 4
      %v986 = vshll.u32 %v833, 16
      %v988 = vrot.slane %v986, 5
      %v989 = vsel %vm869, %v984, %v988
      %v991 = vshrl.u32 %v834, 16
      %v993 = vrot.slane %v991, 4
      %v994 = vshll.u32 %v834, 16
      %v996 = vrot.slane %v994, 5
      %v997 = vor.u32 %v993, %v996
      %v998 = vrot.slane %v997, 4
      %v1000 = vshll.u32 %v835, 16
      %v1002 = vrot.slane %v1000, 5
      %v1003 = vsel %vm869, %v998, %v1002
      %v1004 = vshrl.u32 %v835, 16
      %v1006 = vrot.slane %v1004, 4
      %v1007 = vor.u32 %v1006, %v1002
      %v1008 = vrot.slane %v1007, 4
      %v1010 = vshll.u32 %v836, 16
      %v1012 = vrot.slane %v1010, 5
      %v1013 = vsel %vm869, %v1008, %v1012
      %v1015 = vshrl.u32 %v837, 16
      %v1017 = vrot.slane %v1015, 4
      %v1018 = vshll.u32 %v837, 16
      %v1020 = vrot.slane %v1018, 5
      %v1021 = vor.u32 %v1017, %v1020
      %v1022 = vrot.slane %v1021, 4
      %v1024 = vshll.u32 %v838, 16
      %v1026 = vrot.slane %v1024, 5
      %v1027 = vsel %vm869, %v1022, %v1026
      %v1028 = vshrl.u32 %v838, 16
      %v1030 = vrot.slane %v1028, 4
      %v1031 = vor.u32 %v1030, %v1026
      %v1032 = vrot.slane %v1031, 4
      %v1034 = vshll.u32 %v839, 16
      %v1036 = vrot.slane %v1034, 5
      %v1037 = vsel %vm869, %v1032, %v1036
      %v1039 = vshrl.u32 %v840, 16
      %v1041 = vrot.slane %v1039, 4
      %v1042 = vshll.u32 %v840, 16
      %v1044 = vrot.slane %v1042, 5
      %v1045 = vor.u32 %v1041, %v1044
      %v1046 = vrot.slane %v1045, 4
      %v1048 = vshll.u32 %v841, 16
      %v1050 = vrot.slane %v1048, 5
      %v1051 = vsel %vm869, %v1046, %v1050
      %v1052 = vshrl.u32 %v841, 16
      %v1054 = vrot.slane %v1052, 4
      %v1055 = vor.u32 %v1054, %v1050
      %v1056 = vrot.slane %v1055, 4
      %v1058 = vshll.u32 %v842, 16
      %v1060 = vrot.slane %v1058, 5
      %v1061 = vsel %vm869, %v1056, %v1060
      %v1063 = vshrl.u32 %v843, 16
      %v1065 = vrot.slane %v1063, 4
      %v1066 = vshll.u32 %v843, 16
      %v1068 = vrot.slane %v1066, 5
      %v1069 = vor.u32 %v1065, %v1068
      %v1070 = vrot.slane %v1069, 4
      %v1072 = vshll.u32 %v844, 16
      %v1074 = vrot.slane %v1072, 5
      %v1075 = vsel %vm869, %v1070, %v1074
      %v1076 = vshrl.u32 %v844, 16
      %v1078 = vrot.slane %v1076, 4
      %v1079 = vor.u32 %v1078, %v1074
      %v1080 = vrot.slane %v1079, 4
      %v1082 = vshll.u32 %v845, 16
      %v1084 = vrot.slane %v1082, 5
      %v1085 = vsel %vm869, %v1080, %v1084
      %v1087 = vshrl.u32 %v846, 16
      %v1089 = vrot.slane %v1087, 4
      %v1090 = vshll.u32 %v846, 16
      %v1092 = vrot.slane %v1090, 5
      %v1093 = vor.u32 %v1089, %v1092
      %v1094 = vrot.slane %v1093, 4
      %v1096 = vshll.u32 %v847, 16
      %v1098 = vrot.slane %v1096, 5
      %v1099 = vsel %vm869, %v1094, %v1098
      %v1100 = vshrl.u32 %v847, 16
      %v1102 = vrot.slane %v1100, 4
      %v1103 = vor.u32 %v1102, %v1098
      %v1104 = vrot.slane %v1103, 4
      %v1106 = vshll.u32 %v848, 16
      %v1108 = vrot.slane %v1106, 5
      %v1109 = vsel %vm869, %v1104, %v1108
      %v1111 = vshrl.u32 %v849, 16
      %v1113 = vrot.slane %v1111, 4
      %v1114 = vshll.u32 %v849, 16
      %v1116 = vrot.slane %v1114, 5
      %v1117 = vor.u32 %v1113, %v1116
      %v1118 = vrot.slane %v1117, 4
      %v1120 = vshll.u32 %v850, 16
      %v1122 = vrot.slane %v1120, 5
      %v1123 = vsel %vm869, %v1118, %v1122
      %v1124 = vshrl.u32 %v850, 16
      %v1126 = vrot.slane %v1124, 4
      %v1127 = vor.u32 %v1126, %v1122
      %v1128 = vrot.slane %v1127, 4
      %v1130 = vshll.u32 %v851, 16
      %v1132 = vrot.slane %v1130, 5
      %v1133 = vsel %vm869, %v1128, %v1132
      %v1135 = vshrl.u32 %v852, 16
      %v1137 = vrot.slane %v1135, 4
      %v1138 = vshll.u32 %v852, 16
      %v1140 = vrot.slane %v1138, 5
      %v1141 = vor.u32 %v1137, %v1140
      %v1142 = vrot.slane %v1141, 4
      %v1144 = vshll.u32 %v853, 16
      %v1146 = vrot.slane %v1144, 5
      %v1147 = vsel %vm869, %v1142, %v1146
      %v1148 = vshrl.u32 %v853, 16
      %v1150 = vrot.slane %v1148, 4
      %v1151 = vor.u32 %v1150, %v1146
      %v1152 = vrot.slane %v1151, 4
      %v1154 = vshll.u32 %v854, 16
      %v1156 = vrot.slane %v1154, 5
      %v1157 = vsel %vm869, %v1152, %v1156
      %v1159 = vshrl.u32 %v855, 16
      %v1161 = vrot.slane %v1159, 4
      %v1162 = vshll.u32 %v855, 16
      %v1164 = vrot.slane %v1162, 5
      %v1165 = vor.u32 %v1161, %v1164
      %v1166 = vrot.slane %v1165, 4
      %v1168 = vshll.u32 %v856, 16
      %v1170 = vrot.slane %v1168, 5
      %v1171 = vsel %vm869, %v1166, %v1170
      %v1172 = vshrl.u32 %v856, 16
      %v1174 = vrot.slane %v1172, 4
      %v1175 = vor.u32 %v1174, %v1170
      %v1176 = vrot.slane %v1175, 4
      %v1178 = vshll.u32 %v857, 16
      %v1180 = vrot.slane %v1178, 5
      %v1181 = vsel %vm869, %v1176, %v1180
      %v1183 = vshrl.u32 %v858, 16
      %v1185 = vrot.slane %v1183, 4
      %v1186 = vshll.u32 %v858, 16
      %v1188 = vrot.slane %v1186, 5
      %v1189 = vor.u32 %v1185, %v1188
      %v1190 = vrot.slane %v1189, 4
      %v1192 = vshll.u32 %v859, 16
      %v1194 = vrot.slane %v1192, 5
      %v1195 = vsel %vm869, %v1190, %v1194
      %v1196 = vshrl.u32 %v859, 16
      %v1198 = vrot.slane %v1196, 4
      %v1199 = vor.u32 %v1198, %v1194
      %v1200 = vrot.slane %v1199, 4
      %v1202 = vshll.u32 %v860, 16
      %v1204 = vrot.slane %v1202, 5
      %v1205 = vsel %vm869, %v1200, %v1204
      %v1207 = vshrl.u32 %v861, 16
      %v1209 = vrot.slane %v1207, 4
      %v1210 = vshll.u32 %v861, 16
      %v1212 = vrot.slane %v1210, 5
      %v1213 = vor.u32 %v1209, %v1212
      %v1214 = vrot.slane %v1213, 4
      %v1216 = vshll.u32 %v862, 16
      %v1218 = vrot.slane %v1216, 5
      %v1219 = vsel %vm869, %v1214, %v1218
      %v1220 = vshrl.u32 %v862, 16
      %v1222 = vrot.slane %v1220, 4
      %v1223 = vor.u32 %v1222, %v1218
      %v1224 = vrot.slane %v1223, 4
      %v1226 = vshll.u32 %v863, 16
      %v1228 = vrot.slane %v1226, 5
      %v1229 = vsel %vm869, %v1224, %v1228
      %v1231 = vshrl.u32 %v864, 16
      %v1233 = vrot.slane %v1231, 4
      %v1234 = vshll.u32 %v864, 16
      %v1236 = vrot.slane %v1234, 5
      %v1237 = vor.u32 %v1233, %v1236
      %v1238 = vrot.slane %v1237, 4
      %v1240 = vshll.u32 %v865, 16
      %v1242 = vrot.slane %v1240, 5
      %v1243 = vsel %vm869, %v1238, %v1242
      %v1244 = vshrl.u32 %v865, 16
      %v1246 = vrot.slane %v1244, 4
      %v1247 = vor.u32 %v1246, %v1242
      %v1248 = vrot.slane %v1247, 4
      %v1250 = vshll.u32 %v866, 16
      %v1252 = vrot.slane %v1250, 5
      %v1253 = vsel %vm869, %v1248, %v1252
      %1254 = vrot.lane.b32.xlu0 %v883, 4
      %v1255 = vpop.permute.xlu0 %1254
      %1256 = vrot.lane.b32.xlu0 %v893, 4
      %v1257 = vpop.permute.xlu0 %1256
      %1258 = vrot.lane.b32.xlu0 %v907, 4
      %v1259 = vpop.permute.xlu0 %1258
      %1260 = vrot.lane.b32.xlu0 %v917, 4
      %v1261 = vpop.permute.xlu0 %1260
      %1262 = vrot.lane.b32.xlu0 %v931, 4
      %v1263 = vpop.permute.xlu0 %1262
      %1264 = vrot.lane.b32.xlu0 %v941, 4
      %v1265 = vpop.permute.xlu0 %1264
      %1266 = vrot.lane.b32.xlu0 %v955, 4
      %v1267 = vpop.permute.xlu0 %1266
      %1268 = vrot.lane.b32.xlu0 %v965, 4
      %v1269 = vpop.permute.xlu0 %1268
      %1270 = vrot.lane.b32.xlu0 %v979, 4
      %v1271 = vpop.permute.xlu0 %1270
      %1272 = vrot.lane.b32.xlu0 %v989, 4
      %v1273 = vpop.permute.xlu0 %1272
      %1274 = vrot.lane.b32.xlu0 %v1003, 4
      %v1275 = vpop.permute.xlu0 %1274
      %1276 = vrot.lane.b32.xlu0 %v1013, 4
      %v1277 = vpop.permute.xlu0 %1276
      %1278 = vrot.lane.b32.xlu0 %v1027, 4
      %v1279 = vpop.permute.xlu0 %1278
      %1280 = vrot.lane.b32.xlu0 %v1037, 4
      %v1281 = vpop.permute.xlu0 %1280
      %1282 = vrot.lane.b32.xlu0 %v1051, 4
      %v1283 = vpop.permute.xlu0 %1282
      %1284 = vrot.lane.b32.xlu0 %v1061, 4
      %v1285 = vpop.permute.xlu0 %1284
      %1286 = vrot.lane.b32.xlu0 %v1075, 4
      %v1287 = vpop.permute.xlu0 %1286
      %1288 = vrot.lane.b32.xlu0 %v1085, 4
      %v1289 = vpop.permute.xlu0 %1288
      %1290 = vrot.lane.b32.xlu0 %v1099, 4
      %v1291 = vpop.permute.xlu0 %1290
      %1292 = vrot.lane.b32.xlu0 %v1109, 4
      %v1293 = vpop.permute.xlu0 %1292
      %1294 = vrot.lane.b32.xlu0 %v1123, 4
      %v1295 = vpop.permute.xlu0 %1294
      %1296 = vrot.lane.b32.xlu0 %v1133, 4
      %v1297 = vpop.permute.xlu0 %1296
      %1298 = vrot.lane.b32.xlu0 %v1147, 4
      %v1299 = vpop.permute.xlu0 %1298
      %1300 = vrot.lane.b32.xlu0 %v1157, 4
      %v1301 = vpop.permute.xlu0 %1300
      %1302 = vrot.lane.b32.xlu0 %v1171, 4
      %v1303 = vpop.permute.xlu0 %1302
      %1304 = vrot.lane.b32.xlu0 %v1181, 4
      %v1305 = vpop.permute.xlu0 %1304
      %1306 = vrot.lane.b32.xlu0 %v1195, 4
      %v1307 = vpop.permute.xlu0 %1306
      %1308 = vrot.lane.b32.xlu0 %v1205, 4
      %v1309 = vpop.permute.xlu0 %1308
      %1310 = vrot.lane.b32.xlu0 %v1219, 4
      %v1311 = vpop.permute.xlu0 %1310
      %1312 = vrot.lane.b32.xlu0 %v1229, 4
      %v1313 = vpop.permute.xlu0 %1312
      %1314 = vrot.lane.b32.xlu0 %v1243, 4
      %v1315 = vpop.permute.xlu0 %1314
      %1316 = vrot.lane.b32.xlu0 %v1253, 4
      %v1317 = vpop.permute.xlu0 %1316
      %vm1350 = vcmask 60448
      %1351 = vst.msk [vmem:[#allocation3] sm:$0xf] %vm1350, %v1255
      %1352 = vst.msk [vmem:[#allocation3 + $0x4] sm:$0xf] %vm1350, %v1257
      %1353 = vst.msk [vmem:[#allocation3 + $0x8] sm:$0xf] %vm1350, %v1259
      %1354 = vst.msk [vmem:[#allocation3 + $0xc] sm:$0xf] %vm1350, %v1261
      %1355 = vst.msk [vmem:[#allocation3 + $0x10] sm:$0xf] %vm1350, %v1263
      %1356 = vst.msk [vmem:[#allocation3 + $0x14] sm:$0xf] %vm1350, %v1265
      %1357 = vst.msk [vmem:[#allocation3 + $0x18] sm:$0xf] %vm1350, %v1267
      %1358 = vst.msk [vmem:[#allocation3 + $0x1c] sm:$0xf] %vm1350, %v1269
      %1359 = vst.msk [vmem:[#allocation3 + $0x20] sm:$0xf] %vm1350, %v1271
      %1360 = vst.msk [vmem:[#allocation3 + $0x24] sm:$0xf] %vm1350, %v1273
      %1361 = vst.msk [vmem:[#allocation3 + $0x28] sm:$0xf] %vm1350, %v1275
      %1362 = vst.msk [vmem:[#allocation3 + $0x2c] sm:$0xf] %vm1350, %v1277
      %1363 = vst.msk [vmem:[#allocation3 + $0x30] sm:$0xf] %vm1350, %v1279
      %1364 = vst.msk [vmem:[#allocation3 + $0x34] sm:$0xf] %vm1350, %v1281
      %1365 = vst.msk [vmem:[#allocation3 + $0x38] sm:$0xf] %vm1350, %v1283
      %1366 = vst.msk [vmem:[#allocation3 + $0x3c] sm:$0xf] %vm1350, %v1285
      %1367 = vst.msk [vmem:[#allocation3 + $0x40] sm:$0xf] %vm1350, %v1287
      %1368 = vst.msk [vmem:[#allocation3 + $0x44] sm:$0xf] %vm1350, %v1289
      %1369 = vst.msk [vmem:[#allocation3 + $0x48] sm:$0xf] %vm1350, %v1291
      %1370 = vst.msk [vmem:[#allocation3 + $0x4c] sm:$0xf] %vm1350, %v1293
      %1371 = vst.msk [vmem:[#allocation3 + $0x50] sm:$0xf] %vm1350, %v1295
      %1372 = vst.msk [vmem:[#allocation3 + $0x54] sm:$0xf] %vm1350, %v1297
      %1373 = vst.msk [vmem:[#allocation3 + $0x58] sm:$0xf] %vm1350, %v1299
      %1374 = vst.msk [vmem:[#allocation3 + $0x5c] sm:$0xf] %vm1350, %v1301
      %1375 = vst.msk [vmem:[#allocation3 + $0x60] sm:$0xf] %vm1350, %v1303
      %1376 = vst.msk [vmem:[#allocation3 + $0x64] sm:$0xf] %vm1350, %v1305
      %1377 = vst.msk [vmem:[#allocation3 + $0x68] sm:$0xf] %vm1350, %v1307
      %1378 = vst.msk [vmem:[#allocation3 + $0x6c] sm:$0xf] %vm1350, %v1309
      %1379 = vst.msk [vmem:[#allocation3 + $0x70] sm:$0xf] %vm1350, %v1311
      %1380 = vst.msk [vmem:[#allocation3 + $0x74] sm:$0xf] %vm1350, %v1313
      %1381 = vst.msk [vmem:[#allocation3 + $0x78] sm:$0xf] %vm1350, %v1315
      %1382 = vst.msk [vmem:[#allocation3 + $0x7c] sm:$0xf] %vm1350, %v1317
      %v1383 = vld [vmem:[#allocation2] sm:$0xe]
      %v1384 = vld [vmem:[#allocation2 + $0x4] sm:$0xf]
      %v1385 = vld [vmem:[#allocation2 + $0x8] sm:$0x1]
      %v1386 = vld [vmem:[#allocation2 + $0xc] sm:$0xe]
      %v1387 = vld [vmem:[#allocation2 + $0x10] sm:$0xf]
      %v1388 = vld [vmem:[#allocation2 + $0x14] sm:$0x1]
      %v1389 = vld [vmem:[#allocation2 + $0x18] sm:$0xe]
      %v1390 = vld [vmem:[#allocation2 + $0x1c] sm:$0xf]
      %v1391 = vld [vmem:[#allocation2 + $0x20] sm:$0x1]
      %v1392 = vld [vmem:[#allocation2 + $0x24] sm:$0xe]
      %v1393 = vld [vmem:[#allocation2 + $0x28] sm:$0xf]
      %v1394 = vld [vmem:[#allocation2 + $0x2c] sm:$0x1]
      %v1395 = vld [vmem:[#allocation2 + $0x30] sm:$0xe]
      %v1396 = vld [vmem:[#allocation2 + $0x34] sm:$0xf]
      %v1397 = vld [vmem:[#allocation2 + $0x38] sm:$0x1]
      %v1398 = vld [vmem:[#allocation2 + $0x3c] sm:$0xe]
      %v1399 = vld [vmem:[#allocation2 + $0x40] sm:$0xf]
      %v1400 = vld [vmem:[#allocation2 + $0x44] sm:$0x1]
      %v1401 = vld [vmem:[#allocation2 + $0x48] sm:$0xe]
      %v1402 = vld [vmem:[#allocation2 + $0x4c] sm:$0xf]
      %v1403 = vld [vmem:[#allocation2 + $0x50] sm:$0x1]
      %v1404 = vld [vmem:[#allocation2 + $0x54] sm:$0xe]
      %v1405 = vld [vmem:[#allocation2 + $0x58] sm:$0xf]
      %v1406 = vld [vmem:[#allocation2 + $0x5c] sm:$0x1]
      %v1407 = vld [vmem:[#allocation2 + $0x60] sm:$0xe]
      %v1408 = vld [vmem:[#allocation2 + $0x64] sm:$0xf]
      %v1409 = vld [vmem:[#allocation2 + $0x68] sm:$0x1]
      %v1410 = vld [vmem:[#allocation2 + $0x6c] sm:$0xe]
      %v1411 = vld [vmem:[#allocation2 + $0x70] sm:$0xf]
      %v1412 = vld [vmem:[#allocation2 + $0x74] sm:$0x1]
      %v1413 = vld [vmem:[#allocation2 + $0x78] sm:$0xe]
      %v1414 = vld [vmem:[#allocation2 + $0x7c] sm:$0xf]
      %v1415 = vld [vmem:[#allocation2 + $0x80] sm:$0x1]
      %v1416 = vld [vmem:[#allocation2 + $0x84] sm:$0xe]
      %v1417 = vld [vmem:[#allocation2 + $0x88] sm:$0xf]
      %v1418 = vld [vmem:[#allocation2 + $0x8c] sm:$0x1]
      %v1419 = vld [vmem:[#allocation2 + $0x90] sm:$0xe]
      %v1420 = vld [vmem:[#allocation2 + $0x94] sm:$0xf]
      %v1421 = vld [vmem:[#allocation2 + $0x98] sm:$0x1]
      %v1422 = vld [vmem:[#allocation2 + $0x9c] sm:$0xe]
      %v1423 = vld [vmem:[#allocation2 + $0xa0] sm:$0xf]
      %v1424 = vld [vmem:[#allocation2 + $0xa4] sm:$0x1]
      %v1425 = vld [vmem:[#allocation2 + $0xa8] sm:$0xe]
      %v1426 = vld [vmem:[#allocation2 + $0xac] sm:$0xf]
      %v1427 = vld [vmem:[#allocation2 + $0xb0] sm:$0x1]
      %v1428 = vld [vmem:[#allocation2 + $0xb4] sm:$0xe]
      %v1429 = vld [vmem:[#allocation2 + $0xb8] sm:$0xf]
      %v1430 = vld [vmem:[#allocation2 + $0xbc] sm:$0x1]
      %vm1479 = vcmask 1042432
      %vm1480 = vcmask 1046532
      %vm1481 = vmor %vm1479, %vm1480
      %v1482 = vrot.slane %v1383, 5
      %v1483 = vrot.slane %v1482, 4
      %v1484 = vrot.slane %v1384, 5
      %v1485 = vsel %vm1481, %v1483, %v1484
      %v1486 = vrot.slane %v1484, 4
      %v1487 = vrot.slane %v1385, 5
      %v1488 = vsel %vm1481, %v1486, %v1487
      %v1489 = vrot.slane %v1386, 5
      %v1490 = vrot.slane %v1489, 4
      %v1491 = vrot.slane %v1387, 5
      %v1492 = vsel %vm1481, %v1490, %v1491
      %v1493 = vrot.slane %v1491, 4
      %v1494 = vrot.slane %v1388, 5
      %v1495 = vsel %vm1481, %v1493, %v1494
      %v1496 = vrot.slane %v1389, 5
      %v1497 = vrot.slane %v1496, 4
      %v1498 = vrot.slane %v1390, 5
      %v1499 = vsel %vm1481, %v1497, %v1498
      %v1500 = vrot.slane %v1498, 4
      %v1501 = vrot.slane %v1391, 5
      %v1502 = vsel %vm1481, %v1500, %v1501
      %v1503 = vrot.slane %v1392, 5
      %v1504 = vrot.slane %v1503, 4
      %v1505 = vrot.slane %v1393, 5
      %v1506 = vsel %vm1481, %v1504, %v1505
      %v1507 = vrot.slane %v1505, 4
      %v1508 = vrot.slane %v1394, 5
      %v1509 = vsel %vm1481, %v1507, %v1508
      %v1510 = vrot.slane %v1395, 5
      %v1511 = vrot.slane %v1510, 4
      %v1512 = vrot.slane %v1396, 5
      %v1513 = vsel %vm1481, %v1511, %v1512
      %v1514 = vrot.slane %v1512, 4
      %v1515 = vrot.slane %v1397, 5
      %v1516 = vsel %vm1481, %v1514, %v1515
      %v1517 = vrot.slane %v1398, 5
      %v1518 = vrot.slane %v1517, 4
      %v1519 = vrot.slane %v1399, 5
      %v1520 = vsel %vm1481, %v1518, %v1519
      %v1521 = vrot.slane %v1519, 4
      %v1522 = vrot.slane %v1400, 5
      %v1523 = vsel %vm1481, %v1521, %v1522
      %v1524 = vrot.slane %v1401, 5
      %v1525 = vrot.slane %v1524, 4
      %v1526 = vrot.slane %v1402, 5
      %v1527 = vsel %vm1481, %v1525, %v1526
      %v1528 = vrot.slane %v1526, 4
      %v1529 = vrot.slane %v1403, 5
      %v1530 = vsel %vm1481, %v1528, %v1529
      %v1531 = vrot.slane %v1404, 5
      %v1532 = vrot.slane %v1531, 4
      %v1533 = vrot.slane %v1405, 5
      %v1534 = vsel %vm1481, %v1532, %v1533
      %v1535 = vrot.slane %v1533, 4
      %v1536 = vrot.slane %v1406, 5
      %v1537 = vsel %vm1481, %v1535, %v1536
      %v1538 = vrot.slane %v1407, 5
      %v1539 = vrot.slane %v1538, 4
      %v1540 = vrot.slane %v1408, 5
      %v1541 = vsel %vm1481, %v1539, %v1540
      %v1542 = vrot.slane %v1540, 4
      %v1543 = vrot.slane %v1409, 5
      %v1544 = vsel %vm1481, %v1542, %v1543
      %v1545 = vrot.slane %v1410, 5
      %v1546 = vrot.slane %v1545, 4
      %v1547 = vrot.slane %v1411, 5
      %v1548 = vsel %vm1481, %v1546, %v1547
      %v1549 = vrot.slane %v1547, 4
      %v1550 = vrot.slane %v1412, 5
      %v1551 = vsel %vm1481, %v1549, %v1550
      %v1552 = vrot.slane %v1413, 5
      %v1553 = vrot.slane %v1552, 4
      %v1554 = vrot.slane %v1414, 5
      %v1555 = vsel %vm1481, %v1553, %v1554
      %v1556 = vrot.slane %v1554, 4
      %v1557 = vrot.slane %v1415, 5
      %v1558 = vsel %vm1481, %v1556, %v1557
      %v1559 = vrot.slane %v1416, 5
      %v1560 = vrot.slane %v1559, 4
      %v1561 = vrot.slane %v1417, 5
      %v1562 = vsel %vm1481, %v1560, %v1561
      %v1563 = vrot.slane %v1561, 4
      %v1564 = vrot.slane %v1418, 5
      %v1565 = vsel %vm1481, %v1563, %v1564
      %v1566 = vrot.slane %v1419, 5
      %v1567 = vrot.slane %v1566, 4
      %v1568 = vrot.slane %v1420, 5
      %v1569 = vsel %vm1481, %v1567, %v1568
      %v1570 = vrot.slane %v1568, 4
      %v1571 = vrot.slane %v1421, 5
      %v1572 = vsel %vm1481, %v1570, %v1571
      %v1573 = vrot.slane %v1422, 5
      %v1574 = vrot.slane %v1573, 4
      %v1575 = vrot.slane %v1423, 5
      %v1576 = vsel %vm1481, %v1574, %v1575
      %v1577 = vrot.slane %v1575, 4
      %v1578 = vrot.slane %v1424, 5
      %v1579 = vsel %vm1481, %v1577, %v1578
      %v1580 = vrot.slane %v1425, 5
      %v1581 = vrot.slane %v1580, 4
      %v1582 = vrot.slane %v1426, 5
      %v1583 = vsel %vm1481, %v1581, %v1582
      %v1584 = vrot.slane %v1582, 4
      %v1585 = vrot.slane %v1427, 5
      %v1586 = vsel %vm1481, %v1584, %v1585
      %v1587 = vrot.slane %v1428, 5
      %v1588 = vrot.slane %v1587, 4
      %v1589 = vrot.slane %v1429, 5
      %v1590 = vsel %vm1481, %v1588, %v1589
      %v1591 = vrot.slane %v1589, 4
      %v1592 = vrot.slane %v1430, 5
      %v1593 = vsel %vm1481, %v1591, %v1592
      %1594 = vrot.lane.b32.xlu0 %v1485, 8
      %v1595 = vpop.permute.xlu0 %1594
      %1596 = vrot.lane.b32.xlu0 %v1488, 8
      %v1597 = vpop.permute.xlu0 %1596
      %1598 = vrot.lane.b32.xlu0 %v1492, 8
      %v1599 = vpop.permute.xlu0 %1598
      %1600 = vrot.lane.b32.xlu0 %v1495, 8
      %v1601 = vpop.permute.xlu0 %1600
      %1602 = vrot.lane.b32.xlu0 %v1499, 8
      %v1603 = vpop.permute.xlu0 %1602
      %1604 = vrot.lane.b32.xlu0 %v1502, 8
      %v1605 = vpop.permute.xlu0 %1604
      %1606 = vrot.lane.b32.xlu0 %v1506, 8
      %v1607 = vpop.permute.xlu0 %1606
      %1608 = vrot.lane.b32.xlu0 %v1509, 8
      %v1609 = vpop.permute.xlu0 %1608
      %1610 = vrot.lane.b32.xlu0 %v1513, 8
      %v1611 = vpop.permute.xlu0 %1610
      %1612 = vrot.lane.b32.xlu0 %v1516, 8
      %v1613 = vpop.permute.xlu0 %1612
      %1614 = vrot.lane.b32.xlu0 %v1520, 8
      %v1615 = vpop.permute.xlu0 %1614
      %1616 = vrot.lane.b32.xlu0 %v1523, 8
      %v1617 = vpop.permute.xlu0 %1616
      %1618 = vrot.lane.b32.xlu0 %v1527, 8
      %v1619 = vpop.permute.xlu0 %1618
      %1620 = vrot.lane.b32.xlu0 %v1530, 8
      %v1621 = vpop.permute.xlu0 %1620
      %1622 = vrot.lane.b32.xlu0 %v1534, 8
      %v1623 = vpop.permute.xlu0 %1622
      %1624 = vrot.lane.b32.xlu0 %v1537, 8
      %v1625 = vpop.permute.xlu0 %1624
      %1626 = vrot.lane.b32.xlu0 %v1541, 8
      %v1627 = vpop.permute.xlu0 %1626
      %1628 = vrot.lane.b32.xlu0 %v1544, 8
      %v1629 = vpop.permute.xlu0 %1628
      %1630 = vrot.lane.b32.xlu0 %v1548, 8
      %v1631 = vpop.permute.xlu0 %1630
      %1632 = vrot.lane.b32.xlu0 %v1551, 8
      %v1633 = vpop.permute.xlu0 %1632
      %1634 = vrot.lane.b32.xlu0 %v1555, 8
      %v1635 = vpop.permute.xlu0 %1634
      %1636 = vrot.lane.b32.xlu0 %v1558, 8
      %v1637 = vpop.permute.xlu0 %1636
      %1638 = vrot.lane.b32.xlu0 %v1562, 8
      %v1639 = vpop.permute.xlu0 %1638
      %1640 = vrot.lane.b32.xlu0 %v1565, 8
      %v1641 = vpop.permute.xlu0 %1640
      %1642 = vrot.lane.b32.xlu0 %v1569, 8
      %v1643 = vpop.permute.xlu0 %1642
      %1644 = vrot.lane.b32.xlu0 %v1572, 8
      %v1645 = vpop.permute.xlu0 %1644
      %1646 = vrot.lane.b32.xlu0 %v1576, 8
      %v1647 = vpop.permute.xlu0 %1646
      %1648 = vrot.lane.b32.xlu0 %v1579, 8
      %v1649 = vpop.permute.xlu0 %1648
      %1650 = vrot.lane.b32.xlu0 %v1583, 8
      %v1651 = vpop.permute.xlu0 %1650
      %1652 = vrot.lane.b32.xlu0 %v1586, 8
      %v1653 = vpop.permute.xlu0 %1652
      %1654 = vrot.lane.b32.xlu0 %v1590, 8
      %v1655 = vpop.permute.xlu0 %1654
      %1656 = vrot.lane.b32.xlu0 %v1593, 8
      %v1657 = vpop.permute.xlu0 %1656
      %vm1690 = vcmask 93248
      %1691 = vst.msk [vmem:[#allocation3] sm:$0xf] %vm1690, %v1595
      %1692 = vst.msk [vmem:[#allocation3 + $0x4] sm:$0xf] %vm1690, %v1597
      %1693 = vst.msk [vmem:[#allocation3 + $0x8] sm:$0xf] %vm1690, %v1599
      %1694 = vst.msk [vmem:[#allocation3 + $0xc] sm:$0xf] %vm1690, %v1601
      %1695 = vst.msk [vmem:[#allocation3 + $0x10] sm:$0xf] %vm1690, %v1603
      %1696 = vst.msk [vmem:[#allocation3 + $0x14] sm:$0xf] %vm1690, %v1605
      %1697 = vst.msk [vmem:[#allocation3 + $0x18] sm:$0xf] %vm1690, %v1607
      %1698 = vst.msk [vmem:[#allocation3 + $0x1c] sm:$0xf] %vm1690, %v1609
      %1699 = vst.msk [vmem:[#allocation3 + $0x20] sm:$0xf] %vm1690, %v1611
      %1700 = vst.msk [vmem:[#allocation3 + $0x24] sm:$0xf] %vm1690, %v1613
      %1701 = vst.msk [vmem:[#allocation3 + $0x28] sm:$0xf] %vm1690, %v1615
      %1702 = vst.msk [vmem:[#allocation3 + $0x2c] sm:$0xf] %vm1690, %v1617
      %1703 = vst.msk [vmem:[#allocation3 + $0x30] sm:$0xf] %vm1690, %v1619
      %1704 = vst.msk [vmem:[#allocation3 + $0x34] sm:$0xf] %vm1690, %v1621
      %1705 = vst.msk [vmem:[#allocation3 + $0x38] sm:$0xf] %vm1690, %v1623
      %1706 = vst.msk [vmem:[#allocation3 + $0x3c] sm:$0xf] %vm1690, %v1625
      %1707 = vst.msk [vmem:[#allocation3 + $0x40] sm:$0xf] %vm1690, %v1627
      %1708 = vst.msk [vmem:[#allocation3 + $0x44] sm:$0xf] %vm1690, %v1629
      %1709 = vst.msk [vmem:[#allocation3 + $0x48] sm:$0xf] %vm1690, %v1631
      %1710 = vst.msk [vmem:[#allocation3 + $0x4c] sm:$0xf] %vm1690, %v1633
      %1711 = vst.msk [vmem:[#allocation3 + $0x50] sm:$0xf] %vm1690, %v1635
      %1712 = vst.msk [vmem:[#allocation3 + $0x54] sm:$0xf] %vm1690, %v1637
      %1713 = vst.msk [vmem:[#allocation3 + $0x58] sm:$0xf] %vm1690, %v1639
      %1714 = vst.msk [vmem:[#allocation3 + $0x5c] sm:$0xf] %vm1690, %v1641
      %1715 = vst.msk [vmem:[#allocation3 + $0x60] sm:$0xf] %vm1690, %v1643
      %1716 = vst.msk [vmem:[#allocation3 + $0x64] sm:$0xf] %vm1690, %v1645
      %1717 = vst.msk [vmem:[#allocation3 + $0x68] sm:$0xf] %vm1690, %v1647
      %1718 = vst.msk [vmem:[#allocation3 + $0x6c] sm:$0xf] %vm1690, %v1649
      %1719 = vst.msk [vmem:[#allocation3 + $0x70] sm:$0xf] %vm1690, %v1651
      %1720 = vst.msk [vmem:[#allocation3 + $0x74] sm:$0xf] %vm1690, %v1653
      %1721 = vst.msk [vmem:[#allocation3 + $0x78] sm:$0xf] %vm1690, %v1655
      %1722 = vst.msk [vmem:[#allocation3 + $0x7c] sm:$0xf] %vm1690, %v1657
      %v1723 = vld [vmem:[%s637] sm:$0xf]
      %v1724 = vld [vmem:[%s637 + $0x4] sm:$0xf]
      %v1725 = vld [vmem:[%s637 + $0xc] sm:$0xf]
      %v1726 = vld [vmem:[%s637 + $0x10] sm:$0xf]
      %v1727 = vld [vmem:[%s637 + $0x18] sm:$0xf]
      %v1728 = vld [vmem:[%s637 + $0x1c] sm:$0xf]
      %v1729 = vld [vmem:[%s637 + $0x24] sm:$0xf]
      %v1730 = vld [vmem:[%s637 + $0x28] sm:$0xf]
      %v1731 = vld [vmem:[%s637 + $0x30] sm:$0xf]
      %v1732 = vld [vmem:[%s637 + $0x34] sm:$0xf]
      %v1733 = vld [vmem:[%s637 + $0x3c] sm:$0xf]
      %v1734 = vld [vmem:[%s637 + $0x40] sm:$0xf]
      %v1735 = vld [vmem:[%s637 + $0x48] sm:$0xf]
      %v1736 = vld [vmem:[%s637 + $0x4c] sm:$0xf]
      %v1737 = vld [vmem:[%s637 + $0x54] sm:$0xf]
      %v1738 = vld [vmem:[%s637 + $0x58] sm:$0xf]
      %v1739 = vld [vmem:[%s637 + $0x60] sm:$0xf]
      %v1740 = vld [vmem:[%s637 + $0x64] sm:$0xf]
      %v1741 = vld [vmem:[%s637 + $0x6c] sm:$0xf]
      %v1742 = vld [vmem:[%s637 + $0x70] sm:$0xf]
      %v1743 = vld [vmem:[%s637 + $0x78] sm:$0xf]
      %v1744 = vld [vmem:[%s637 + $0x7c] sm:$0xf]
      %v1745 = vld [vmem:[%s637 + $0x84] sm:$0xf]
      %v1746 = vld [vmem:[%s637 + $0x88] sm:$0xf]
      %v1747 = vld [vmem:[%s637 + $0x90] sm:$0xf]
      %v1748 = vld [vmem:[%s637 + $0x94] sm:$0xf]
      %v1749 = vld [vmem:[%s637 + $0x9c] sm:$0xf]
      %v1750 = vld [vmem:[%s637 + $0xa0] sm:$0xf]
      %v1751 = vld [vmem:[%s637 + $0xa8] sm:$0xf]
      %v1752 = vld [vmem:[%s637 + $0xac] sm:$0xf]
      %v1753 = vld [vmem:[%s637 + $0xb4] sm:$0xf]
      %v1754 = vld [vmem:[%s637 + $0xb8] sm:$0xf]
      %1787 = vrot.lane.b32.xlu0 %v1723, 12
      %v1788 = vpop.permute.xlu0 %1787
      %1789 = vrot.lane.b32.xlu0 %v1724, 12
      %v1790 = vpop.permute.xlu0 %1789
      %1791 = vrot.lane.b32.xlu0 %v1725, 12
      %v1792 = vpop.permute.xlu0 %1791
      %1793 = vrot.lane.b32.xlu0 %v1726, 12
      %v1794 = vpop.permute.xlu0 %1793
      %1795 = vrot.lane.b32.xlu0 %v1727, 12
      %v1796 = vpop.permute.xlu0 %1795
      %1797 = vrot.lane.b32.xlu0 %v1728, 12
      %v1798 = vpop.permute.xlu0 %1797
      %1799 = vrot.lane.b32.xlu0 %v1729, 12
      %v1800 = vpop.permute.xlu0 %1799
      %1801 = vrot.lane.b32.xlu0 %v1730, 12
      %v1802 = vpop.permute.xlu0 %1801
      %1803 = vrot.lane.b32.xlu0 %v1731, 12
      %v1804 = vpop.permute.xlu0 %1803
      %1805 = vrot.lane.b32.xlu0 %v1732, 12
      %v1806 = vpop.permute.xlu0 %1805
      %1807 = vrot.lane.b32.xlu0 %v1733, 12
      %v1808 = vpop.permute.xlu0 %1807
      %1809 = vrot.lane.b32.xlu0 %v1734, 12
      %v1810 = vpop.permute.xlu0 %1809
      %1811 = vrot.lane.b32.xlu0 %v1735, 12
      %v1812 = vpop.permute.xlu0 %1811
      %1813 = vrot.lane.b32.xlu0 %v1736, 12
      %v1814 = vpop.permute.xlu0 %1813
      %1815 = vrot.lane.b32.xlu0 %v1737, 12
      %v1816 = vpop.permute.xlu0 %1815
      %1817 = vrot.lane.b32.xlu0 %v1738, 12
      %v1818 = vpop.permute.xlu0 %1817
      %1819 = vrot.lane.b32.xlu0 %v1739, 12
      %v1820 = vpop.permute.xlu0 %1819
      %1821 = vrot.lane.b32.xlu0 %v1740, 12
      %v1822 = vpop.permute.xlu0 %1821
      %1823 = vrot.lane.b32.xlu0 %v1741, 12
      %v1824 = vpop.permute.xlu0 %1823
      %1825 = vrot.lane.b32.xlu0 %v1742, 12
      %v1826 = vpop.permute.xlu0 %1825
      %1827 = vrot.lane.b32.xlu0 %v1743, 12
      %v1828 = vpop.permute.xlu0 %1827
      %1829 = vrot.lane.b32.xlu0 %v1744, 12
      %v1830 = vpop.permute.xlu0 %1829
      %1831 = vrot.lane.b32.xlu0 %v1745, 12
      %v1832 = vpop.permute.xlu0 %1831
      %1833 = vrot.lane.b32.xlu0 %v1746, 12
      %v1834 = vpop.permute.xlu0 %1833
      %1835 = vrot.lane.b32.xlu0 %v1747, 12
      %v1836 = vpop.permute.xlu0 %1835
      %1837 = vrot.lane.b32.xlu0 %v1748, 12
      %v1838 = vpop.permute.xlu0 %1837
      %1839 = vrot.lane.b32.xlu0 %v1749, 12
      %v1840 = vpop.permute.xlu0 %1839
      %1841 = vrot.lane.b32.xlu0 %v1750, 12
      %v1842 = vpop.permute.xlu0 %1841
      %1843 = vrot.lane.b32.xlu0 %v1751, 12
      %v1844 = vpop.permute.xlu0 %1843
      %1845 = vrot.lane.b32.xlu0 %v1752, 12
      %v1846 = vpop.permute.xlu0 %1845
      %1847 = vrot.lane.b32.xlu0 %v1753, 12
      %v1848 = vpop.permute.xlu0 %1847
      %1849 = vrot.lane.b32.xlu0 %v1754, 12
      %v1850 = vpop.permute.xlu0 %1849
      %vm1883 = vcmask 126048
      %1884 = vst.msk [vmem:[#allocation3] sm:$0xf] %vm1883, %v1788
      %1885 = vst.msk [vmem:[#allocation3 + $0x4] sm:$0xf] %vm1883, %v1790
      %1886 = vst.msk [vmem:[#allocation3 + $0x8] sm:$0xf] %vm1883, %v1792
      %1887 = vst.msk [vmem:[#allocation3 + $0xc] sm:$0xf] %vm1883, %v1794
      %1888 = vst.msk [vmem:[#allocation3 + $0x10] sm:$0xf] %vm1883, %v1796
      %1889 = vst.msk [vmem:[#allocation3 + $0x14] sm:$0xf] %vm1883, %v1798
      %1890 = vst.msk [vmem:[#allocation3 + $0x18] sm:$0xf] %vm1883, %v1800
      %1891 = vst.msk [vmem:[#allocation3 + $0x1c] sm:$0xf] %vm1883, %v1802
      %1892 = vst.msk [vmem:[#allocation3 + $0x20] sm:$0xf] %vm1883, %v1804
      %1893 = vst.msk [vmem:[#allocation3 + $0x24] sm:$0xf] %vm1883, %v1806
      %1894 = vst.msk [vmem:[#allocation3 + $0x28] sm:$0xf] %vm1883, %v1808
      %1895 = vst.msk [vmem:[#allocation3 + $0x2c] sm:$0xf] %vm1883, %v1810
      %1896 = vst.msk [vmem:[#allocation3 + $0x30] sm:$0xf] %vm1883, %v1812
      %1897 = vst.msk [vmem:[#allocation3 + $0x34] sm:$0xf] %vm1883, %v1814
      %1898 = vst.msk [vmem:[#allocation3 + $0x38] sm:$0xf] %vm1883, %v1816
      %1899 = vst.msk [vmem:[#allocation3 + $0x3c] sm:$0xf] %vm1883, %v1818
      %1900 = vst.msk [vmem:[#allocation3 + $0x40] sm:$0xf] %vm1883, %v1820
      %1901 = vst.msk [vmem:[#allocation3 + $0x44] sm:$0xf] %vm1883, %v1822
      %1902 = vst.msk [vmem:[#allocation3 + $0x48] sm:$0xf] %vm1883, %v1824
      %1903 = vst.msk [vmem:[#allocation3 + $0x4c] sm:$0xf] %vm1883, %v1826
      %1904 = vst.msk [vmem:[#allocation3 + $0x50] sm:$0xf] %vm1883, %v1828
      %1905 = vst.msk [vmem:[#allocation3 + $0x54] sm:$0xf] %vm1883, %v1830
      %1906 = vst.msk [vmem:[#allocation3 + $0x58] sm:$0xf] %vm1883, %v1832
      %1907 = vst.msk [vmem:[#allocation3 + $0x5c] sm:$0xf] %vm1883, %v1834
      %1908 = vst.msk [vmem:[#allocation3 + $0x60] sm:$0xf] %vm1883, %v1836
      %1909 = vst.msk [vmem:[#allocation3 + $0x64] sm:$0xf] %vm1883, %v1838
      %1910 = vst.msk [vmem:[#allocation3 + $0x68] sm:$0xf] %vm1883, %v1840
      %1911 = vst.msk [vmem:[#allocation3 + $0x6c] sm:$0xf] %vm1883, %v1842
      %1912 = vst.msk [vmem:[#allocation3 + $0x70] sm:$0xf] %vm1883, %v1844
      %1913 = vst.msk [vmem:[#allocation3 + $0x74] sm:$0xf] %vm1883, %v1846
      %1914 = vst.msk [vmem:[#allocation3 + $0x78] sm:$0xf] %vm1883, %v1848
      %1915 = vst.msk [vmem:[#allocation3 + $0x7c] sm:$0xf] %vm1883, %v1850
      %v1916 = vld [vmem:[%s637] sm:$0xf]
      %v1917 = vld [vmem:[%s637 + $0x4] sm:$0xf]
      %v1918 = vld [vmem:[%s637 + $0x8] sm:$0x1]
      %v1919 = vld [vmem:[%s637 + $0xc] sm:$0xf]
      %v1920 = vld [vmem:[%s637 + $0x10] sm:$0xf]
      %v1921 = vld [vmem:[%s637 + $0x14] sm:$0x1]
      %v1922 = vld [vmem:[%s637 + $0x18] sm:$0xf]
      %v1923 = vld [vmem:[%s637 + $0x1c] sm:$0xf]
      %v1924 = vld [vmem:[%s637 + $0x20] sm:$0x1]
      %v1925 = vld [vmem:[%s637 + $0x24] sm:$0xf]
      %v1926 = vld [vmem:[%s637 + $0x28] sm:$0xf]
      %v1927 = vld [vmem:[%s637 + $0x2c] sm:$0x1]
      %v1928 = vld [vmem:[%s637 + $0x30] sm:$0xf]
      %v1929 = vld [vmem:[%s637 + $0x34] sm:$0xf]
      %v1930 = vld [vmem:[%s637 + $0x38] sm:$0x1]
      %v1931 = vld [vmem:[%s637 + $0x3c] sm:$0xf]
      %v1932 = vld [vmem:[%s637 + $0x40] sm:$0xf]
      %v1933 = vld [vmem:[%s637 + $0x44] sm:$0x1]
      %v1934 = vld [vmem:[%s637 + $0x48] sm:$0xf]
      %v1935 = vld [vmem:[%s637 + $0x4c] sm:$0xf]
      %v1936 = vld [vmem:[%s637 + $0x50] sm:$0x1]
      %v1937 = vld [vmem:[%s637 + $0x54] sm:$0xf]
      %v1938 = vld [vmem:[%s637 + $0x58] sm:$0xf]
      %v1939 = vld [vmem:[%s637 + $0x5c] sm:$0x1]
      %v1940 = vld [vmem:[%s637 + $0x60] sm:$0xf]
      %v1941 = vld [vmem:[%s637 + $0x64] sm:$0xf]
      %v1942 = vld [vmem:[%s637 + $0x68] sm:$0x1]
      %v1943 = vld [vmem:[%s637 + $0x6c] sm:$0xf]
      %v1944 = vld [vmem:[%s637 + $0x70] sm:$0xf]
      %v1945 = vld [vmem:[%s637 + $0x74] sm:$0x1]
      %v1946 = vld [vmem:[%s637 + $0x78] sm:$0xf]
      %v1947 = vld [vmem:[%s637 + $0x7c] sm:$0xf]
      %v1948 = vld [vmem:[%s637 + $0x80] sm:$0x1]
      %v1949 = vld [vmem:[%s637 + $0x84] sm:$0xf]
      %v1950 = vld [vmem:[%s637 + $0x88] sm:$0xf]
      %v1951 = vld [vmem:[%s637 + $0x8c] sm:$0x1]
      %v1952 = vld [vmem:[%s637 + $0x90] sm:$0xf]
      %v1953 = vld [vmem:[%s637 + $0x94] sm:$0xf]
      %v1954 = vld [vmem:[%s637 + $0x98] sm:$0x1]
      %v1955 = vld [vmem:[%s637 + $0x9c] sm:$0xf]
      %v1956 = vld [vmem:[%s637 + $0xa0] sm:$0xf]
      %v1957 = vld [vmem:[%s637 + $0xa4] sm:$0x1]
      %v1958 = vld [vmem:[%s637 + $0xa8] sm:$0xf]
      %v1959 = vld [vmem:[%s637 + $0xac] sm:$0xf]
      %v1960 = vld [vmem:[%s637 + $0xb0] sm:$0x1]
      %v1961 = vld [vmem:[%s637 + $0xb4] sm:$0xf]
      %v1962 = vld [vmem:[%s637 + $0xb8] sm:$0xf]
      %v1963 = vld [vmem:[%s637 + $0xbc] sm:$0x1]
      %v1965 = vshrl.u32 %v1916, 16
      %v1967 = vrot.slane %v1965, 4
      %v1968 = vshll.u32 %v1916, 16
      %v1970 = vrot.slane %v1968, 5
      %v1971 = vor.u32 %v1967, %v1970
      %v1972 = vrot.slane %v1971, 4
      %v1974 = vshll.u32 %v1917, 16
      %v1976 = vrot.slane %v1974, 5
      %v1977 = vsel %vm869, %v1972, %v1976
      %v1978 = vshrl.u32 %v1917, 16
      %v1980 = vrot.slane %v1978, 4
      %v1981 = vor.u32 %v1980, %v1976
      %v1982 = vrot.slane %v1981, 4
      %v1984 = vshll.u32 %v1918, 16
      %v1986 = vrot.slane %v1984, 5
      %v1987 = vsel %vm869, %v1982, %v1986
      %v1989 = vshrl.u32 %v1919, 16
      %v1991 = vrot.slane %v1989, 4
      %v1992 = vshll.u32 %v1919, 16
      %v1994 = vrot.slane %v1992, 5
      %v1995 = vor.u32 %v1991, %v1994
      %v1996 = vrot.slane %v1995, 4
      %v1998 = vshll.u32 %v1920, 16
      %v2000 = vrot.slane %v1998, 5
      %v2001 = vsel %vm869, %v1996, %v2000
      %v2002 = vshrl.u32 %v1920, 16
      %v2004 = vrot.slane %v2002, 4
      %v2005 = vor.u32 %v2004, %v2000
      %v2006 = vrot.slane %v2005, 4
      %v2008 = vshll.u32 %v1921, 16
      %v2010 = vrot.slane %v2008, 5
      %v2011 = vsel %vm869, %v2006, %v2010
      %v2013 = vshrl.u32 %v1922, 16
      %v2015 = vrot.slane %v2013, 4
      %v2016 = vshll.u32 %v1922, 16
      %v2018 = vrot.slane %v2016, 5
      %v2019 = vor.u32 %v2015, %v2018
      %v2020 = vrot.slane %v2019, 4
      %v2022 = vshll.u32 %v1923, 16
      %v2024 = vrot.slane %v2022, 5
      %v2025 = vsel %vm869, %v2020, %v2024
      %v2026 = vshrl.u32 %v1923, 16
      %v2028 = vrot.slane %v2026, 4
      %v2029 = vor.u32 %v2028, %v2024
      %v2030 = vrot.slane %v2029, 4
      %v2032 = vshll.u32 %v1924, 16
      %v2034 = vrot.slane %v2032, 5
      %v2035 = vsel %vm869, %v2030, %v2034
      %v2037 = vshrl.u32 %v1925, 16
      %v2039 = vrot.slane %v2037, 4
      %v2040 = vshll.u32 %v1925, 16
      %v2042 = vrot.slane %v2040, 5
      %v2043 = vor.u32 %v2039, %v2042
      %v2044 = vrot.slane %v2043, 4
      %v2046 = vshll.u32 %v1926, 16
      %v2048 = vrot.slane %v2046, 5
      %v2049 = vsel %vm869, %v2044, %v2048
      %v2050 = vshrl.u32 %v1926, 16
      %v2052 = vrot.slane %v2050, 4
      %v2053 = vor.u32 %v2052, %v2048
      %v2054 = vrot.slane %v2053, 4
      %v2056 = vshll.u32 %v1927, 16
      %v2058 = vrot.slane %v2056, 5
      %v2059 = vsel %vm869, %v2054, %v2058
      %v2061 = vshrl.u32 %v1928, 16
      %v2063 = vrot.slane %v2061, 4
      %v2064 = vshll.u32 %v1928, 16
      %v2066 = vrot.slane %v2064, 5
      %v2067 = vor.u32 %v2063, %v2066
      %v2068 = vrot.slane %v2067, 4
      %v2070 = vshll.u32 %v1929, 16
      %v2072 = vrot.slane %v2070, 5
      %v2073 = vsel %vm869, %v2068, %v2072
      %v2074 = vshrl.u32 %v1929, 16
      %v2076 = vrot.slane %v2074, 4
      %v2077 = vor.u32 %v2076, %v2072
      %v2078 = vrot.slane %v2077, 4
      %v2080 = vshll.u32 %v1930, 16
      %v2082 = vrot.slane %v2080, 5
      %v2083 = vsel %vm869, %v2078, %v2082
      %v2085 = vshrl.u32 %v1931, 16
      %v2087 = vrot.slane %v2085, 4
      %v2088 = vshll.u32 %v1931, 16
      %v2090 = vrot.slane %v2088, 5
      %v2091 = vor.u32 %v2087, %v2090
      %v2092 = vrot.slane %v2091, 4
      %v2094 = vshll.u32 %v1932, 16
      %v2096 = vrot.slane %v2094, 5
      %v2097 = vsel %vm869, %v2092, %v2096
      %v2098 = vshrl.u32 %v1932, 16
      %v2100 = vrot.slane %v2098, 4
      %v2101 = vor.u32 %v2100, %v2096
      %v2102 = vrot.slane %v2101, 4
      %v2104 = vshll.u32 %v1933, 16
      %v2106 = vrot.slane %v2104, 5
      %v2107 = vsel %vm869, %v2102, %v2106
      %v2109 = vshrl.u32 %v1934, 16
      %v2111 = vrot.slane %v2109, 4
      %v2112 = vshll.u32 %v1934, 16
      %v2114 = vrot.slane %v2112, 5
      %v2115 = vor.u32 %v2111, %v2114
      %v2116 = vrot.slane %v2115, 4
      %v2118 = vshll.u32 %v1935, 16
      %v2120 = vrot.slane %v2118, 5
      %v2121 = vsel %vm869, %v2116, %v2120
      %v2122 = vshrl.u32 %v1935, 16
      %v2124 = vrot.slane %v2122, 4
      %v2125 = vor.u32 %v2124, %v2120
      %v2126 = vrot.slane %v2125, 4
      %v2128 = vshll.u32 %v1936, 16
      %v2130 = vrot.slane %v2128, 5
      %v2131 = vsel %vm869, %v2126, %v2130
      %v2133 = vshrl.u32 %v1937, 16
      %v2135 = vrot.slane %v2133, 4
      %v2136 = vshll.u32 %v1937, 16
      %v2138 = vrot.slane %v2136, 5
      %v2139 = vor.u32 %v2135, %v2138
      %v2140 = vrot.slane %v2139, 4
      %v2142 = vshll.u32 %v1938, 16
      %v2144 = vrot.slane %v2142, 5
      %v2145 = vsel %vm869, %v2140, %v2144
      %v2146 = vshrl.u32 %v1938, 16
      %v2148 = vrot.slane %v2146, 4
      %v2149 = vor.u32 %v2148, %v2144
      %v2150 = vrot.slane %v2149, 4
      %v2152 = vshll.u32 %v1939, 16
      %v2154 = vrot.slane %v2152, 5
      %v2155 = vsel %vm869, %v2150, %v2154
      %v2157 = vshrl.u32 %v1940, 16
      %v2159 = vrot.slane %v2157, 4
      %v2160 = vshll.u32 %v1940, 16
      %v2162 = vrot.slane %v2160, 5
      %v2163 = vor.u32 %v2159, %v2162
      %v2164 = vrot.slane %v2163, 4
      %v2166 = vshll.u32 %v1941, 16
      %v2168 = vrot.slane %v2166, 5
      %v2169 = vsel %vm869, %v2164, %v2168
      %v2170 = vshrl.u32 %v1941, 16
      %v2172 = vrot.slane %v2170, 4
      %v2173 = vor.u32 %v2172, %v2168
      %v2174 = vrot.slane %v2173, 4
      %v2176 = vshll.u32 %v1942, 16
      %v2178 = vrot.slane %v2176, 5
      %v2179 = vsel %vm869, %v2174, %v2178
      %v2181 = vshrl.u32 %v1943, 16
      %v2183 = vrot.slane %v2181, 4
      %v2184 = vshll.u32 %v1943, 16
      %v2186 = vrot.slane %v2184, 5
      %v2187 = vor.u32 %v2183, %v2186
      %v2188 = vrot.slane %v2187, 4
      %v2190 = vshll.u32 %v1944, 16
      %v2192 = vrot.slane %v2190, 5
      %v2193 = vsel %vm869, %v2188, %v2192
      %v2194 = vshrl.u32 %v1944, 16
      %v2196 = vrot.slane %v2194, 4
      %v2197 = vor.u32 %v2196, %v2192
      %v2198 = vrot.slane %v2197, 4
      %v2200 = vshll.u32 %v1945, 16
      %v2202 = vrot.slane %v2200, 5
      %v2203 = vsel %vm869, %v2198, %v2202
      %v2205 = vshrl.u32 %v1946, 16
      %v2207 = vrot.slane %v2205, 4
      %v2208 = vshll.u32 %v1946, 16
      %v2210 = vrot.slane %v2208, 5
      %v2211 = vor.u32 %v2207, %v2210
      %v2212 = vrot.slane %v2211, 4
      %v2214 = vshll.u32 %v1947, 16
      %v2216 = vrot.slane %v2214, 5
      %v2217 = vsel %vm869, %v2212, %v2216
      %v2218 = vshrl.u32 %v1947, 16
      %v2220 = vrot.slane %v2218, 4
      %v2221 = vor.u32 %v2220, %v2216
      %v2222 = vrot.slane %v2221, 4
      %v2224 = vshll.u32 %v1948, 16
      %v2226 = vrot.slane %v2224, 5
      %v2227 = vsel %vm869, %v2222, %v2226
      %v2229 = vshrl.u32 %v1949, 16
      %v2231 = vrot.slane %v2229, 4
      %v2232 = vshll.u32 %v1949, 16
      %v2234 = vrot.slane %v2232, 5
      %v2235 = vor.u32 %v2231, %v2234
      %v2236 = vrot.slane %v2235, 4
      %v2238 = vshll.u32 %v1950, 16
      %v2240 = vrot.slane %v2238, 5
      %v2241 = vsel %vm869, %v2236, %v2240
      %v2242 = vshrl.u32 %v1950, 16
      %v2244 = vrot.slane %v2242, 4
      %v2245 = vor.u32 %v2244, %v2240
      %v2246 = vrot.slane %v2245, 4
      %v2248 = vshll.u32 %v1951, 16
      %v2250 = vrot.slane %v2248, 5
      %v2251 = vsel %vm869, %v2246, %v2250
      %v2253 = vshrl.u32 %v1952, 16
      %v2255 = vrot.slane %v2253, 4
      %v2256 = vshll.u32 %v1952, 16
      %v2258 = vrot.slane %v2256, 5
      %v2259 = vor.u32 %v2255, %v2258
      %v2260 = vrot.slane %v2259, 4
      %v2262 = vshll.u32 %v1953, 16
      %v2264 = vrot.slane %v2262, 5
      %v2265 = vsel %vm869, %v2260, %v2264
      %v2266 = vshrl.u32 %v1953, 16
      %v2268 = vrot.slane %v2266, 4
      %v2269 = vor.u32 %v2268, %v2264
      %v2270 = vrot.slane %v2269, 4
      %v2272 = vshll.u32 %v1954, 16
      %v2274 = vrot.slane %v2272, 5
      %v2275 = vsel %vm869, %v2270, %v2274
      %v2277 = vshrl.u32 %v1955, 16
      %v2279 = vrot.slane %v2277, 4
      %v2280 = vshll.u32 %v1955, 16
      %v2282 = vrot.slane %v2280, 5
      %v2283 = vor.u32 %v2279, %v2282
      %v2284 = vrot.slane %v2283, 4
      %v2286 = vshll.u32 %v1956, 16
      %v2288 = vrot.slane %v2286, 5
      %v2289 = vsel %vm869, %v2284, %v2288
      %v2290 = vshrl.u32 %v1956, 16
      %v2292 = vrot.slane %v2290, 4
      %v2293 = vor.u32 %v2292, %v2288
      %v2294 = vrot.slane %v2293, 4
      %v2296 = vshll.u32 %v1957, 16
      %v2298 = vrot.slane %v2296, 5
      %v2299 = vsel %vm869, %v2294, %v2298
      %v2301 = vshrl.u32 %v1958, 16
      %v2303 = vrot.slane %v2301, 4
      %v2304 = vshll.u32 %v1958, 16
      %v2306 = vrot.slane %v2304, 5
      %v2307 = vor.u32 %v2303, %v2306
      %v2308 = vrot.slane %v2307, 4
      %v2310 = vshll.u32 %v1959, 16
      %v2312 = vrot.slane %v2310, 5
      %v2313 = vsel %vm869, %v2308, %v2312
      %v2314 = vshrl.u32 %v1959, 16
      %v2316 = vrot.slane %v2314, 4
      %v2317 = vor.u32 %v2316, %v2312
      %v2318 = vrot.slane %v2317, 4
      %v2320 = vshll.u32 %v1960, 16
      %v2322 = vrot.slane %v2320, 5
      %v2323 = vsel %vm869, %v2318, %v2322
      %v2325 = vshrl.u32 %v1961, 16
      %v2327 = vrot.slane %v2325, 4
      %v2328 = vshll.u32 %v1961, 16
      %v2330 = vrot.slane %v2328, 5
      %v2331 = vor.u32 %v2327, %v2330
      %v2332 = vrot.slane %v2331, 4
      %v2334 = vshll.u32 %v1962, 16
      %v2336 = vrot.slane %v2334, 5
      %v2337 = vsel %vm869, %v2332, %v2336
      %v2338 = vshrl.u32 %v1962, 16
      %v2340 = vrot.slane %v2338, 4
      %v2341 = vor.u32 %v2340, %v2336
      %v2342 = vrot.slane %v2341, 4
      %v2344 = vshll.u32 %v1963, 16
      %v2346 = vrot.slane %v2344, 5
      %v2347 = vsel %vm869, %v2342, %v2346
      %2348 = vrot.lane.b32.xlu0 %v1977, 16
      %v2349 = vpop.permute.xlu0 %2348
      %2350 = vrot.lane.b32.xlu0 %v1987, 16
      %v2351 = vpop.permute.xlu0 %2350
      %2352 = vrot.lane.b32.xlu0 %v2001, 16
      %v2353 = vpop.permute.xlu0 %2352
      %2354 = vrot.lane.b32.xlu0 %v2011, 16
      %v2355 = vpop.permute.xlu0 %2354
      %2356 = vrot.lane.b32.xlu0 %v2025, 16
      %v2357 = vpop.permute.xlu0 %2356
      %2358 = vrot.lane.b32.xlu0 %v2035, 16
      %v2359 = vpop.permute.xlu0 %2358
      %2360 = vrot.lane.b32.xlu0 %v2049, 16
      %v2361 = vpop.permute.xlu0 %2360
      %2362 = vrot.lane.b32.xlu0 %v2059, 16
      %v2363 = vpop.permute.xlu0 %2362
      %2364 = vrot.lane.b32.xlu0 %v2073, 16
      %v2365 = vpop.permute.xlu0 %2364
      %2366 = vrot.lane.b32.xlu0 %v2083, 16
      %v2367 = vpop.permute.xlu0 %2366
      %2368 = vrot.lane.b32.xlu0 %v2097, 16
      %v2369 = vpop.permute.xlu0 %2368
      %2370 = vrot.lane.b32.xlu0 %v2107, 16
      %v2371 = vpop.permute.xlu0 %2370
      %2372 = vrot.lane.b32.xlu0 %v2121, 16
      %v2373 = vpop.permute.xlu0 %2372
      %2374 = vrot.lane.b32.xlu0 %v2131, 16
      %v2375 = vpop.permute.xlu0 %2374
      %2376 = vrot.lane.b32.xlu0 %v2145, 16
      %v2377 = vpop.permute.xlu0 %2376
      %2378 = vrot.lane.b32.xlu0 %v2155, 16
      %v2379 = vpop.permute.xlu0 %2378
      %2380 = vrot.lane.b32.xlu0 %v2169, 16
      %v2381 = vpop.permute.xlu0 %2380
      %2382 = vrot.lane.b32.xlu0 %v2179, 16
      %v2383 = vpop.permute.xlu0 %2382
      %2384 = vrot.lane.b32.xlu0 %v2193, 16
      %v2385 = vpop.permute.xlu0 %2384
      %2386 = vrot.lane.b32.xlu0 %v2203, 16
      %v2387 = vpop.permute.xlu0 %2386
      %2388 = vrot.lane.b32.xlu0 %v2217, 16
      %v2389 = vpop.permute.xlu0 %2388
      %2390 = vrot.lane.b32.xlu0 %v2227, 16
      %v2391 = vpop.permute.xlu0 %2390
      %2392 = vrot.lane.b32.xlu0 %v2241, 16
      %v2393 = vpop.permute.xlu0 %2392
      %2394 = vrot.lane.b32.xlu0 %v2251, 16
      %v2395 = vpop.permute.xlu0 %2394
      %2396 = vrot.lane.b32.xlu0 %v2265, 16
      %v2397 = vpop.permute.xlu0 %2396
      %2398 = vrot.lane.b32.xlu0 %v2275, 16
      %v2399 = vpop.permute.xlu0 %2398
      %2400 = vrot.lane.b32.xlu0 %v2289, 16
      %v2401 = vpop.permute.xlu0 %2400
      %2402 = vrot.lane.b32.xlu0 %v2299, 16
      %v2403 = vpop.permute.xlu0 %2402
      %2404 = vrot.lane.b32.xlu0 %v2313, 16
      %v2405 = vpop.permute.xlu0 %2404
      %2406 = vrot.lane.b32.xlu0 %v2323, 16
      %v2407 = vpop.permute.xlu0 %2406
      %2408 = vrot.lane.b32.xlu0 %v2337, 16
      %v2409 = vpop.permute.xlu0 %2408
      %2410 = vrot.lane.b32.xlu0 %v2347, 16
      %v2411 = vpop.permute.xlu0 %2410
      %vm2444 = vcmask 158848
      %2445 = vst.msk [vmem:[#allocation3] sm:$0xf] %vm2444, %v2349
      %2446 = vst.msk [vmem:[#allocation3 + $0x4] sm:$0xf] %vm2444, %v2351
      %2447 = vst.msk [vmem:[#allocation3 + $0x8] sm:$0xf] %vm2444, %v2353
      %2448 = vst.msk [vmem:[#allocation3 + $0xc] sm:$0xf] %vm2444, %v2355
      %2449 = vst.msk [vmem:[#allocation3 + $0x10] sm:$0xf] %vm2444, %v2357
      %2450 = vst.msk [vmem:[#allocation3 + $0x14] sm:$0xf] %vm2444, %v2359
      %2451 = vst.msk [vmem:[#allocation3 + $0x18] sm:$0xf] %vm2444, %v2361
      %2452 = vst.msk [vmem:[#allocation3 + $0x1c] sm:$0xf] %vm2444, %v2363
      %2453 = vst.msk [vmem:[#allocation3 + $0x20] sm:$0xf] %vm2444, %v2365
      %2454 = vst.msk [vmem:[#allocation3 + $0x24] sm:$0xf] %vm2444, %v2367
      %2455 = vst.msk [vmem:[#allocation3 + $0x28] sm:$0xf] %vm2444, %v2369
      %2456 = vst.msk [vmem:[#allocation3 + $0x2c] sm:$0xf] %vm2444, %v2371
      %2457 = vst.msk [vmem:[#allocation3 + $0x30] sm:$0xf] %vm2444, %v2373
      %2458 = vst.msk [vmem:[#allocation3 + $0x34] sm:$0xf] %vm2444, %v2375
      %2459 = vst.msk [vmem:[#allocation3 + $0x38] sm:$0xf] %vm2444, %v2377
      %2460 = vst.msk [vmem:[#allocation3 + $0x3c] sm:$0xf] %vm2444, %v2379
      %2461 = vst.msk [vmem:[#allocation3 + $0x40] sm:$0xf] %vm2444, %v2381
      %2462 = vst.msk [vmem:[#allocation3 + $0x44] sm:$0xf] %vm2444, %v2383
      %2463 = vst.msk [vmem:[#allocation3 + $0x48] sm:$0xf] %vm2444, %v2385
      %2464 = vst.msk [vmem:[#allocation3 + $0x4c] sm:$0xf] %vm2444, %v2387
      %2465 = vst.msk [vmem:[#allocation3 + $0x50] sm:$0xf] %vm2444, %v2389
      %2466 = vst.msk [vmem:[#allocation3 + $0x54] sm:$0xf] %vm2444, %v2391
      %2467 = vst.msk [vmem:[#allocation3 + $0x58] sm:$0xf] %vm2444, %v2393
      %2468 = vst.msk [vmem:[#allocation3 + $0x5c] sm:$0xf] %vm2444, %v2395
      %2469 = vst.msk [vmem:[#allocation3 + $0x60] sm:$0xf] %vm2444, %v2397
      %2470 = vst.msk [vmem:[#allocation3 + $0x64] sm:$0xf] %vm2444, %v2399
      %2471 = vst.msk [vmem:[#allocation3 + $0x68] sm:$0xf] %vm2444, %v2401
      %2472 = vst.msk [vmem:[#allocation3 + $0x6c] sm:$0xf] %vm2444, %v2403
      %2473 = vst.msk [vmem:[#allocation3 + $0x70] sm:$0xf] %vm2444, %v2405
      %2474 = vst.msk [vmem:[#allocation3 + $0x74] sm:$0xf] %vm2444, %v2407
      %2475 = vst.msk [vmem:[#allocation3 + $0x78] sm:$0xf] %vm2444, %v2409
      %2476 = vst.msk [vmem:[#allocation3 + $0x7c] sm:$0xf] %vm2444, %v2411
      %v2477 = vld [vmem:[%s637] sm:$0xe]
      %v2478 = vld [vmem:[%s637 + $0x4] sm:$0xf]
      %v2479 = vld [vmem:[%s637 + $0x8] sm:$0x1]
      %v2480 = vld [vmem:[%s637 + $0xc] sm:$0xe]
      %v2481 = vld [vmem:[%s637 + $0x10] sm:$0xf]
      %v2482 = vld [vmem:[%s637 + $0x14] sm:$0x1]
      %v2483 = vld [vmem:[%s637 + $0x18] sm:$0xe]
      %v2484 = vld [vmem:[%s637 + $0x1c] sm:$0xf]
      %v2485 = vld [vmem:[%s637 + $0x20] sm:$0x1]
      %v2486 = vld [vmem:[%s637 + $0x24] sm:$0xe]
      %v2487 = vld [vmem:[%s637 + $0x28] sm:$0xf]
      %v2488 = vld [vmem:[%s637 + $0x2c] sm:$0x1]
      %v2489 = vld [vmem:[%s637 + $0x30] sm:$0xe]
      %v2490 = vld [vmem:[%s637 + $0x34] sm:$0xf]
      %v2491 = vld [vmem:[%s637 + $0x38] sm:$0x1]
      %v2492 = vld [vmem:[%s637 + $0x3c] sm:$0xe]
      %v2493 = vld [vmem:[%s637 + $0x40] sm:$0xf]
      %v2494 = vld [vmem:[%s637 + $0x44] sm:$0x1]
      %v2495 = vld [vmem:[%s637 + $0x48] sm:$0xe]
      %v2496 = vld [vmem:[%s637 + $0x4c] sm:$0xf]
      %v2497 = vld [vmem:[%s637 + $0x50] sm:$0x1]
      %v2498 = vld [vmem:[%s637 + $0x54] sm:$0xe]
      %v2499 = vld [vmem:[%s637 + $0x58] sm:$0xf]
      %v2500 = vld [vmem:[%s637 + $0x5c] sm:$0x1]
      %v2501 = vld [vmem:[%s637 + $0x60] sm:$0xe]
      %v2502 = vld [vmem:[%s637 + $0x64] sm:$0xf]
      %v2503 = vld [vmem:[%s637 + $0x68] sm:$0x1]
      %v2504 = vld [vmem:[%s637 + $0x6c] sm:$0xe]
      %v2505 = vld [vmem:[%s637 + $0x70] sm:$0xf]
      %v2506 = vld [vmem:[%s637 + $0x74] sm:$0x1]
      %v2507 = vld [vmem:[%s637 + $0x78] sm:$0xe]
      %v2508 = vld [vmem:[%s637 + $0x7c] sm:$0xf]
      %v2509 = vld [vmem:[%s637 + $0x80] sm:$0x1]
      %v2510 = vld [vmem:[%s637 + $0x84] sm:$0xe]
      %v2511 = vld [vmem:[%s637 + $0x88] sm:$0xf]
      %v2512 = vld [vmem:[%s637 + $0x8c] sm:$0x1]
      %v2513 = vld [vmem:[%s637 + $0x90] sm:$0xe]
      %v2514 = vld [vmem:[%s637 + $0x94] sm:$0xf]
      %v2515 = vld [vmem:[%s637 + $0x98] sm:$0x1]
      %v2516 = vld [vmem:[%s637 + $0x9c] sm:$0xe]
      %v2517 = vld [vmem:[%s637 + $0xa0] sm:$0xf]
      %v2518 = vld [vmem:[%s637 + $0xa4] sm:$0x1]
      %v2519 = vld [vmem:[%s637 + $0xa8] sm:$0xe]
      %v2520 = vld [vmem:[%s637 + $0xac] sm:$0xf]
      %v2521 = vld [vmem:[%s637 + $0xb0] sm:$0x1]
      %v2522 = vld [vmem:[%s637 + $0xb4] sm:$0xe]
      %v2523 = vld [vmem:[%s637 + $0xb8] sm:$0xf]
      %v2524 = vld [vmem:[%s637 + $0xbc] sm:$0x1]
      %v2573 = vrot.slane %v2477, 5
      %v2574 = vrot.slane %v2573, 4
      %v2575 = vrot.slane %v2478, 5
      %v2576 = vsel %vm1481, %v2574, %v2575
      %v2577 = vrot.slane %v2575, 4
      %v2578 = vrot.slane %v2479, 5
      %v2579 = vsel %vm1481, %v2577, %v2578
      %v2580 = vrot.slane %v2480, 5
      %v2581 = vrot.slane %v2580, 4
      %v2582 = vrot.slane %v2481, 5
      %v2583 = vsel %vm1481, %v2581, %v2582
      %v2584 = vrot.slane %v2582, 4
      %v2585 = vrot.slane %v2482, 5
      %v2586 = vsel %vm1481, %v2584, %v2585
      %v2587 = vrot.slane %v2483, 5
      %v2588 = vrot.slane %v2587, 4
      %v2589 = vrot.slane %v2484, 5
      %v2590 = vsel %vm1481, %v2588, %v2589
      %v2591 = vrot.slane %v2589, 4
      %v2592 = vrot.slane %v2485, 5
      %v2593 = vsel %vm1481, %v2591, %v2592
      %v2594 = vrot.slane %v2486, 5
      %v2595 = vrot.slane %v2594, 4
      %v2596 = vrot.slane %v2487, 5
      %v2597 = vsel %vm1481, %v2595, %v2596
      %v2598 = vrot.slane %v2596, 4
      %v2599 = vrot.slane %v2488, 5
      %v2600 = vsel %vm1481, %v2598, %v2599
      %v2601 = vrot.slane %v2489, 5
      %v2602 = vrot.slane %v2601, 4
      %v2603 = vrot.slane %v2490, 5
      %v2604 = vsel %vm1481, %v2602, %v2603
      %v2605 = vrot.slane %v2603, 4
      %v2606 = vrot.slane %v2491, 5
      %v2607 = vsel %vm1481, %v2605, %v2606
      %v2608 = vrot.slane %v2492, 5
      %v2609 = vrot.slane %v2608, 4
      %v2610 = vrot.slane %v2493, 5
      %v2611 = vsel %vm1481, %v2609, %v2610
      %v2612 = vrot.slane %v2610, 4
      %v2613 = vrot.slane %v2494, 5
      %v2614 = vsel %vm1481, %v2612, %v2613
      %v2615 = vrot.slane %v2495, 5
      %v2616 = vrot.slane %v2615, 4
      %v2617 = vrot.slane %v2496, 5
      %v2618 = vsel %vm1481, %v2616, %v2617
      %v2619 = vrot.slane %v2617, 4
      %v2620 = vrot.slane %v2497, 5
      %v2621 = vsel %vm1481, %v2619, %v2620
      %v2622 = vrot.slane %v2498, 5
      %v2623 = vrot.slane %v2622, 4
      %v2624 = vrot.slane %v2499, 5
      %v2625 = vsel %vm1481, %v2623, %v2624
      %v2626 = vrot.slane %v2624, 4
      %v2627 = vrot.slane %v2500, 5
      %v2628 = vsel %vm1481, %v2626, %v2627
      %v2629 = vrot.slane %v2501, 5
      %v2630 = vrot.slane %v2629, 4
      %v2631 = vrot.slane %v2502, 5
      %v2632 = vsel %vm1481, %v2630, %v2631
      %v2633 = vrot.slane %v2631, 4
      %v2634 = vrot.slane %v2503, 5
      %v2635 = vsel %vm1481, %v2633, %v2634
      %v2636 = vrot.slane %v2504, 5
      %v2637 = vrot.slane %v2636, 4
      %v2638 = vrot.slane %v2505, 5
      %v2639 = vsel %vm1481, %v2637, %v2638
      %v2640 = vrot.slane %v2638, 4
      %v2641 = vrot.slane %v2506, 5
      %v2642 = vsel %vm1481, %v2640, %v2641
      %v2643 = vrot.slane %v2507, 5
      %v2644 = vrot.slane %v2643, 4
      %v2645 = vrot.slane %v2508, 5
      %v2646 = vsel %vm1481, %v2644, %v2645
      %v2647 = vrot.slane %v2645, 4
      %v2648 = vrot.slane %v2509, 5
      %v2649 = vsel %vm1481, %v2647, %v2648
      %v2650 = vrot.slane %v2510, 5
      %v2651 = vrot.slane %v2650, 4
      %v2652 = vrot.slane %v2511, 5
      %v2653 = vsel %vm1481, %v2651, %v2652
      %v2654 = vrot.slane %v2652, 4
      %v2655 = vrot.slane %v2512, 5
      %v2656 = vsel %vm1481, %v2654, %v2655
      %v2657 = vrot.slane %v2513, 5
      %v2658 = vrot.slane %v2657, 4
      %v2659 = vrot.slane %v2514, 5
      %v2660 = vsel %vm1481, %v2658, %v2659
      %v2661 = vrot.slane %v2659, 4
      %v2662 = vrot.slane %v2515, 5
      %v2663 = vsel %vm1481, %v2661, %v2662
      %v2664 = vrot.slane %v2516, 5
      %v2665 = vrot.slane %v2664, 4
      %v2666 = vrot.slane %v2517, 5
      %v2667 = vsel %vm1481, %v2665, %v2666
      %v2668 = vrot.slane %v2666, 4
      %v2669 = vrot.slane %v2518, 5
      %v2670 = vsel %vm1481, %v2668, %v2669
      %v2671 = vrot.slane %v2519, 5
      %v2672 = vrot.slane %v2671, 4
      %v2673 = vrot.slane %v2520, 5
      %v2674 = vsel %vm1481, %v2672, %v2673
      %v2675 = vrot.slane %v2673, 4
      %v2676 = vrot.slane %v2521, 5
      %v2677 = vsel %vm1481, %v2675, %v2676
      %v2678 = vrot.slane %v2522, 5
      %v2679 = vrot.slane %v2678, 4
      %v2680 = vrot.slane %v2523, 5
      %v2681 = vsel %vm1481, %v2679, %v2680
      %v2682 = vrot.slane %v2680, 4
      %v2683 = vrot.slane %v2524, 5
      %v2684 = vsel %vm1481, %v2682, %v2683
      %2685 = vrot.lane.b32.xlu0 %v2576, 20
      %v2686 = vpop.permute.xlu0 %2685
      %2687 = vrot.lane.b32.xlu0 %v2579, 20
      %v2688 = vpop.permute.xlu0 %2687
      %2689 = vrot.lane.b32.xlu0 %v2583, 20
      %v2690 = vpop.permute.xlu0 %2689
      %2691 = vrot.lane.b32.xlu0 %v2586, 20
      %v2692 = vpop.permute.xlu0 %2691
      %2693 = vrot.lane.b32.xlu0 %v2590, 20
      %v2694 = vpop.permute.xlu0 %2693
      %2695 = vrot.lane.b32.xlu0 %v2593, 20
      %v2696 = vpop.permute.xlu0 %2695
      %2697 = vrot.lane.b32.xlu0 %v2597, 20
      %v2698 = vpop.permute.xlu0 %2697
      %2699 = vrot.lane.b32.xlu0 %v2600, 20
      %v2700 = vpop.permute.xlu0 %2699
      %2701 = vrot.lane.b32.xlu0 %v2604, 20
      %v2702 = vpop.permute.xlu0 %2701
      %2703 = vrot.lane.b32.xlu0 %v2607, 20
      %v2704 = vpop.permute.xlu0 %2703
      %2705 = vrot.lane.b32.xlu0 %v2611, 20
      %v2706 = vpop.permute.xlu0 %2705
      %2707 = vrot.lane.b32.xlu0 %v2614, 20
      %v2708 = vpop.permute.xlu0 %2707
      %2709 = vrot.lane.b32.xlu0 %v2618, 20
      %v2710 = vpop.permute.xlu0 %2709
      %2711 = vrot.lane.b32.xlu0 %v2621, 20
      %v2712 = vpop.permute.xlu0 %2711
      %2713 = vrot.lane.b32.xlu0 %v2625, 20
      %v2714 = vpop.permute.xlu0 %2713
      %2715 = vrot.lane.b32.xlu0 %v2628, 20
      %v2716 = vpop.permute.xlu0 %2715
      %2717 = vrot.lane.b32.xlu0 %v2632, 20
      %v2718 = vpop.permute.xlu0 %2717
      %2719 = vrot.lane.b32.xlu0 %v2635, 20
      %v2720 = vpop.permute.xlu0 %2719
      %2721 = vrot.lane.b32.xlu0 %v2639, 20
      %v2722 = vpop.permute.xlu0 %2721
      %2723 = vrot.lane.b32.xlu0 %v2642, 20
      %v2724 = vpop.permute.xlu0 %2723
      %2725 = vrot.lane.b32.xlu0 %v2646, 20
      %v2726 = vpop.permute.xlu0 %2725
      %2727 = vrot.lane.b32.xlu0 %v2649, 20
      %v2728 = vpop.permute.xlu0 %2727
      %2729 = vrot.lane.b32.xlu0 %v2653, 20
      %v2730 = vpop.permute.xlu0 %2729
      %2731 = vrot.lane.b32.xlu0 %v2656, 20
      %v2732 = vpop.permute.xlu0 %2731
      %2733 = vrot.lane.b32.xlu0 %v2660, 20
      %v2734 = vpop.permute.xlu0 %2733
      %2735 = vrot.lane.b32.xlu0 %v2663, 20
      %v2736 = vpop.permute.xlu0 %2735
      %2737 = vrot.lane.b32.xlu0 %v2667, 20
      %v2738 = vpop.permute.xlu0 %2737
      %2739 = vrot.lane.b32.xlu0 %v2670, 20
      %v2740 = vpop.permute.xlu0 %2739
      %2741 = vrot.lane.b32.xlu0 %v2674, 20
      %v2742 = vpop.permute.xlu0 %2741
      %2743 = vrot.lane.b32.xlu0 %v2677, 20
      %v2744 = vpop.permute.xlu0 %2743
      %2745 = vrot.lane.b32.xlu0 %v2681, 20
      %v2746 = vpop.permute.xlu0 %2745
      %2747 = vrot.lane.b32.xlu0 %v2684, 20
      %v2748 = vpop.permute.xlu0 %2747
      %vm2781 = vcmask 191648
      %2782 = vst.msk [vmem:[#allocation3] sm:$0xf] %vm2781, %v2686
      %2783 = vst.msk [vmem:[#allocation3 + $0x4] sm:$0xf] %vm2781, %v2688
      %2784 = vst.msk [vmem:[#allocation3 + $0x8] sm:$0xf] %vm2781, %v2690
      %2785 = vst.msk [vmem:[#allocation3 + $0xc] sm:$0xf] %vm2781, %v2692
      %2786 = vst.msk [vmem:[#allocation3 + $0x10] sm:$0xf] %vm2781, %v2694
      %2787 = vst.msk [vmem:[#allocation3 + $0x14] sm:$0xf] %vm2781, %v2696
      %2788 = vst.msk [vmem:[#allocation3 + $0x18] sm:$0xf] %vm2781, %v2698
      %2789 = vst.msk [vmem:[#allocation3 + $0x1c] sm:$0xf] %vm2781, %v2700
      %2790 = vst.msk [vmem:[#allocation3 + $0x20] sm:$0xf] %vm2781, %v2702
      %2791 = vst.msk [vmem:[#allocation3 + $0x24] sm:$0xf] %vm2781, %v2704
      %2792 = vst.msk [vmem:[#allocation3 + $0x28] sm:$0xf] %vm2781, %v2706
      %2793 = vst.msk [vmem:[#allocation3 + $0x2c] sm:$0xf] %vm2781, %v2708
      %2794 = vst.msk [vmem:[#allocation3 + $0x30] sm:$0xf] %vm2781, %v2710
      %2795 = vst.msk [vmem:[#allocation3 + $0x34] sm:$0xf] %vm2781, %v2712
      %2796 = vst.msk [vmem:[#allocation3 + $0x38] sm:$0xf] %vm2781, %v2714
      %2797 = vst.msk [vmem:[#allocation3 + $0x3c] sm:$0xf] %vm2781, %v2716
      %2798 = vst.msk [vmem:[#allocation3 + $0x40] sm:$0xf] %vm2781, %v2718
      %2799 = vst.msk [vmem:[#allocation3 + $0x44] sm:$0xf] %vm2781, %v2720
      %2800 = vst.msk [vmem:[#allocation3 + $0x48] sm:$0xf] %vm2781, %v2722
      %2801 = vst.msk [vmem:[#allocation3 + $0x4c] sm:$0xf] %vm2781, %v2724
      %2802 = vst.msk [vmem:[#allocation3 + $0x50] sm:$0xf] %vm2781, %v2726
      %2803 = vst.msk [vmem:[#allocation3 + $0x54] sm:$0xf] %vm2781, %v2728
      %2804 = vst.msk [vmem:[#allocation3 + $0x58] sm:$0xf] %vm2781, %v2730
      %2805 = vst.msk [vmem:[#allocation3 + $0x5c] sm:$0xf] %vm2781, %v2732
      %2806 = vst.msk [vmem:[#allocation3 + $0x60] sm:$0xf] %vm2781, %v2734
      %2807 = vst.msk [vmem:[#allocation3 + $0x64] sm:$0xf] %vm2781, %v2736
      %2808 = vst.msk [vmem:[#allocation3 + $0x68] sm:$0xf] %vm2781, %v2738
      %2809 = vst.msk [vmem:[#allocation3 + $0x6c] sm:$0xf] %vm2781, %v2740
      %2810 = vst.msk [vmem:[#allocation3 + $0x70] sm:$0xf] %vm2781, %v2742
      %2811 = vst.msk [vmem:[#allocation3 + $0x74] sm:$0xf] %vm2781, %v2744
      %2812 = vst.msk [vmem:[#allocation3 + $0x78] sm:$0xf] %vm2781, %v2746
      %2813 = vst.msk [vmem:[#allocation3 + $0x7c] sm:$0xf] %vm2781, %v2748
      %s2814 = scalar_lea.vmem [#allocation2], 24
      %v2815 = vld [vmem:[%s2814] sm:$0xf]
      %v2816 = vld [vmem:[%s2814 + $0x4] sm:$0xf]
      %v2817 = vld [vmem:[%s2814 + $0xc] sm:$0xf]
      %v2818 = vld [vmem:[%s2814 + $0x10] sm:$0xf]
      %v2819 = vld [vmem:[%s2814 + $0x18] sm:$0xf]
      %v2820 = vld [vmem:[%s2814 + $0x1c] sm:$0xf]
      %v2821 = vld [vmem:[%s2814 + $0x24] sm:$0xf]
      %v2822 = vld [vmem:[%s2814 + $0x28] sm:$0xf]
      %v2823 = vld [vmem:[%s2814 + $0x30] sm:$0xf]
      %v2824 = vld [vmem:[%s2814 + $0x34] sm:$0xf]
      %v2825 = vld [vmem:[%s2814 + $0x3c] sm:$0xf]
      %v2826 = vld [vmem:[%s2814 + $0x40] sm:$0xf]
      %v2827 = vld [vmem:[%s2814 + $0x48] sm:$0xf]
      %v2828 = vld [vmem:[%s2814 + $0x4c] sm:$0xf]
      %v2829 = vld [vmem:[%s2814 + $0x54] sm:$0xf]
      %v2830 = vld [vmem:[%s2814 + $0x58] sm:$0xf]
      %v2831 = vld [vmem:[%s2814 + $0x60] sm:$0xf]
      %v2832 = vld [vmem:[%s2814 + $0x64] sm:$0xf]
      %v2833 = vld [vmem:[%s2814 + $0x6c] sm:$0xf]
      %v2834 = vld [vmem:[%s2814 + $0x70] sm:$0xf]
      %v2835 = vld [vmem:[%s2814 + $0x78] sm:$0xf]
      %v2836 = vld [vmem:[%s2814 + $0x7c] sm:$0xf]
      %v2837 = vld [vmem:[%s2814 + $0x84] sm:$0xf]
      %v2838 = vld [vmem:[%s2814 + $0x88] sm:$0xf]
      %v2839 = vld [vmem:[%s2814 + $0x90] sm:$0xf]
      %v2840 = vld [vmem:[%s2814 + $0x94] sm:$0xf]
      %v2841 = vld [vmem:[%s2814 + $0x9c] sm:$0xf]
      %v2842 = vld [vmem:[%s2814 + $0xa0] sm:$0xf]
      %v2843 = vld [vmem:[%s2814 + $0xa8] sm:$0xf]
      %v2844 = vld [vmem:[%s2814 + $0xac] sm:$0xf]
      %v2845 = vld [vmem:[%s2814 + $0xb4] sm:$0xf]
      %v2846 = vld [vmem:[%s2814 + $0xb8] sm:$0xf]
      %2879 = vrot.lane.b32.xlu0 %v2815, 24
      %v2880 = vpop.permute.xlu0 %2879
      %2881 = vrot.lane.b32.xlu0 %v2816, 24
      %v2882 = vpop.permute.xlu0 %2881
      %2883 = vrot.lane.b32.xlu0 %v2817, 24
      %v2884 = vpop.permute.xlu0 %2883
      %2885 = vrot.lane.b32.xlu0 %v2818, 24
      %v2886 = vpop.permute.xlu0 %2885
      %2887 = vrot.lane.b32.xlu0 %v2819, 24
      %v2888 = vpop.permute.xlu0 %2887
      %2889 = vrot.lane.b32.xlu0 %v2820, 24
      %v2890 = vpop.permute.xlu0 %2889
      %2891 = vrot.lane.b32.xlu0 %v2821, 24
      %v2892 = vpop.permute.xlu0 %2891
      %2893 = vrot.lane.b32.xlu0 %v2822, 24
      %v2894 = vpop.permute.xlu0 %2893
      %2895 = vrot.lane.b32.xlu0 %v2823, 24
      %v2896 = vpop.permute.xlu0 %2895
      %2897 = vrot.lane.b32.xlu0 %v2824, 24
      %v2898 = vpop.permute.xlu0 %2897
      %2899 = vrot.lane.b32.xlu0 %v2825, 24
      %v2900 = vpop.permute.xlu0 %2899
      %2901 = vrot.lane.b32.xlu0 %v2826, 24
      %v2902 = vpop.permute.xlu0 %2901
      %2903 = vrot.lane.b32.xlu0 %v2827, 24
      %v2904 = vpop.permute.xlu0 %2903
      %2905 = vrot.lane.b32.xlu0 %v2828, 24
      %v2906 = vpop.permute.xlu0 %2905
      %2907 = vrot.lane.b32.xlu0 %v2829, 24
      %v2908 = vpop.permute.xlu0 %2907
      %2909 = vrot.lane.b32.xlu0 %v2830, 24
      %v2910 = vpop.permute.xlu0 %2909
      %2911 = vrot.lane.b32.xlu0 %v2831, 24
      %v2912 = vpop.permute.xlu0 %2911
      %2913 = vrot.lane.b32.xlu0 %v2832, 24
      %v2914 = vpop.permute.xlu0 %2913
      %2915 = vrot.lane.b32.xlu0 %v2833, 24
      %v2916 = vpop.permute.xlu0 %2915
      %2917 = vrot.lane.b32.xlu0 %v2834, 24
      %v2918 = vpop.permute.xlu0 %2917
      %2919 = vrot.lane.b32.xlu0 %v2835, 24
      %v2920 = vpop.permute.xlu0 %2919
      %2921 = vrot.lane.b32.xlu0 %v2836, 24
      %v2922 = vpop.permute.xlu0 %2921
      %2923 = vrot.lane.b32.xlu0 %v2837, 24
      %v2924 = vpop.permute.xlu0 %2923
      %2925 = vrot.lane.b32.xlu0 %v2838, 24
      %v2926 = vpop.permute.xlu0 %2925
      %2927 = vrot.lane.b32.xlu0 %v2839, 24
      %v2928 = vpop.permute.xlu0 %2927
      %2929 = vrot.lane.b32.xlu0 %v2840, 24
      %v2930 = vpop.permute.xlu0 %2929
      %2931 = vrot.lane.b32.xlu0 %v2841, 24
      %v2932 = vpop.permute.xlu0 %2931
      %2933 = vrot.lane.b32.xlu0 %v2842, 24
      %v2934 = vpop.permute.xlu0 %2933
      %2935 = vrot.lane.b32.xlu0 %v2843, 24
      %v2936 = vpop.permute.xlu0 %2935
      %2937 = vrot.lane.b32.xlu0 %v2844, 24
      %v2938 = vpop.permute.xlu0 %2937
      %2939 = vrot.lane.b32.xlu0 %v2845, 24
      %v2940 = vpop.permute.xlu0 %2939
      %2941 = vrot.lane.b32.xlu0 %v2846, 24
      %v2942 = vpop.permute.xlu0 %2941
      %vm2975 = vcmask 224448
      %2976 = vst.msk [vmem:[#allocation3] sm:$0xf] %vm2975, %v2880
      %2977 = vst.msk [vmem:[#allocation3 + $0x4] sm:$0xf] %vm2975, %v2882
      %2978 = vst.msk [vmem:[#allocation3 + $0x8] sm:$0xf] %vm2975, %v2884
      %2979 = vst.msk [vmem:[#allocation3 + $0xc] sm:$0xf] %vm2975, %v2886
      %2980 = vst.msk [vmem:[#allocation3 + $0x10] sm:$0xf] %vm2975, %v2888
      %2981 = vst.msk [vmem:[#allocation3 + $0x14] sm:$0xf] %vm2975, %v2890
      %2982 = vst.msk [vmem:[#allocation3 + $0x18] sm:$0xf] %vm2975, %v2892
      %2983 = vst.msk [vmem:[#allocation3 + $0x1c] sm:$0xf] %vm2975, %v2894
      %2984 = vst.msk [vmem:[#allocation3 + $0x20] sm:$0xf] %vm2975, %v2896
      %2985 = vst.msk [vmem:[#allocation3 + $0x24] sm:$0xf] %vm2975, %v2898
      %2986 = vst.msk [vmem:[#allocation3 + $0x28] sm:$0xf] %vm2975, %v2900
      %2987 = vst.msk [vmem:[#allocation3 + $0x2c] sm:$0xf] %vm2975, %v2902
      %2988 = vst.msk [vmem:[#allocation3 + $0x30] sm:$0xf] %vm2975, %v2904
      %2989 = vst.msk [vmem:[#allocation3 + $0x34] sm:$0xf] %vm2975, %v2906
      %2990 = vst.msk [vmem:[#allocation3 + $0x38] sm:$0xf] %vm2975, %v2908
      %2991 = vst.msk [vmem:[#allocation3 + $0x3c] sm:$0xf] %vm2975, %v2910
      %2992 = vst.msk [vmem:[#allocation3 + $0x40] sm:$0xf] %vm2975, %v2912
      %2993 = vst.msk [vmem:[#allocation3 + $0x44] sm:$0xf] %vm2975, %v2914
      %2994 = vst.msk [vmem:[#allocation3 + $0x48] sm:$0xf] %vm2975, %v2916
      %2995 = vst.msk [vmem:[#allocation3 + $0x4c] sm:$0xf] %vm2975, %v2918
      %2996 = vst.msk [vmem:[#allocation3 + $0x50] sm:$0xf] %vm2975, %v2920
      %2997 = vst.msk [vmem:[#allocation3 + $0x54] sm:$0xf] %vm2975, %v2922
      %2998 = vst.msk [vmem:[#allocation3 + $0x58] sm:$0xf] %vm2975, %v2924
      %2999 = vst.msk [vmem:[#allocation3 + $0x5c] sm:$0xf] %vm2975, %v2926
      %3000 = vst.msk [vmem:[#allocation3 + $0x60] sm:$0xf] %vm2975, %v2928
      %3001 = vst.msk [vmem:[#allocation3 + $0x64] sm:$0xf] %vm2975, %v2930
      %3002 = vst.msk [vmem:[#allocation3 + $0x68] sm:$0xf] %vm2975, %v2932
      %3003 = vst.msk [vmem:[#allocation3 + $0x6c] sm:$0xf] %vm2975, %v2934
      %3004 = vst.msk [vmem:[#allocation3 + $0x70] sm:$0xf] %vm2975, %v2936
      %3005 = vst.msk [vmem:[#allocation3 + $0x74] sm:$0xf] %vm2975, %v2938
      %3006 = vst.msk [vmem:[#allocation3 + $0x78] sm:$0xf] %vm2975, %v2940
      %3007 = vst.msk [vmem:[#allocation3 + $0x7c] sm:$0xf] %vm2975, %v2942
      %v3008 = vld [vmem:[%s2814] sm:$0xf]
      %v3009 = vld [vmem:[%s2814 + $0x4] sm:$0xf]
      %v3010 = vld [vmem:[%s2814 + $0x8] sm:$0x1]
      %v3011 = vld [vmem:[%s2814 + $0xc] sm:$0xf]
      %v3012 = vld [vmem:[%s2814 + $0x10] sm:$0xf]
      %v3013 = vld [vmem:[%s2814 + $0x14] sm:$0x1]
      %v3014 = vld [vmem:[%s2814 + $0x18] sm:$0xf]
      %v3015 = vld [vmem:[%s2814 + $0x1c] sm:$0xf]
      %v3016 = vld [vmem:[%s2814 + $0x20] sm:$0x1]
      %v3017 = vld [vmem:[%s2814 + $0x24] sm:$0xf]
      %v3018 = vld [vmem:[%s2814 + $0x28] sm:$0xf]
      %v3019 = vld [vmem:[%s2814 + $0x2c] sm:$0x1]
      %v3020 = vld [vmem:[%s2814 + $0x30] sm:$0xf]
      %v3021 = vld [vmem:[%s2814 + $0x34] sm:$0xf]
      %v3022 = vld [vmem:[%s2814 + $0x38] sm:$0x1]
      %v3023 = vld [vmem:[%s2814 + $0x3c] sm:$0xf]
      %v3024 = vld [vmem:[%s2814 + $0x40] sm:$0xf]
      %v3025 = vld [vmem:[%s2814 + $0x44] sm:$0x1]
      %v3026 = vld [vmem:[%s2814 + $0x48] sm:$0xf]
      %v3027 = vld [vmem:[%s2814 + $0x4c] sm:$0xf]
      %v3028 = vld [vmem:[%s2814 + $0x50] sm:$0x1]
      %v3029 = vld [vmem:[%s2814 + $0x54] sm:$0xf]
      %v3030 = vld [vmem:[%s2814 + $0x58] sm:$0xf]
      %v3031 = vld [vmem:[%s2814 + $0x5c] sm:$0x1]
      %v3032 = vld [vmem:[%s2814 + $0x60] sm:$0xf]
      %v3033 = vld [vmem:[%s2814 + $0x64] sm:$0xf]
      %v3034 = vld [vmem:[%s2814 + $0x68] sm:$0x1]
      %v3035 = vld [vmem:[%s2814 + $0x6c] sm:$0xf]
      %v3036 = vld [vmem:[%s2814 + $0x70] sm:$0xf]
      %v3037 = vld [vmem:[%s2814 + $0x74] sm:$0x1]
      %v3038 = vld [vmem:[%s2814 + $0x78] sm:$0xf]
      %v3039 = vld [vmem:[%s2814 + $0x7c] sm:$0xf]
      %v3040 = vld [vmem:[%s2814 + $0x80] sm:$0x1]
      %v3041 = vld [vmem:[%s2814 + $0x84] sm:$0xf]
      %v3042 = vld [vmem:[%s2814 + $0x88] sm:$0xf]
      %v3043 = vld [vmem:[%s2814 + $0x8c] sm:$0x1]
      %v3044 = vld [vmem:[%s2814 + $0x90] sm:$0xf]
      %v3045 = vld [vmem:[%s2814 + $0x94] sm:$0xf]
      %v3046 = vld [vmem:[%s2814 + $0x98] sm:$0x1]
      %v3047 = vld [vmem:[%s2814 + $0x9c] sm:$0xf]
      %v3048 = vld [vmem:[%s2814 + $0xa0] sm:$0xf]
      %v3049 = vld [vmem:[%s2814 + $0xa4] sm:$0x1]
      %v3050 = vld [vmem:[%s2814 + $0xa8] sm:$0xf]
      %v3051 = vld [vmem:[%s2814 + $0xac] sm:$0xf]
      %v3052 = vld [vmem:[%s2814 + $0xb0] sm:$0x1]
      %v3053 = vld [vmem:[%s2814 + $0xb4] sm:$0xf]
      %v3054 = vld [vmem:[%s2814 + $0xb8] sm:$0xf]
      %v3055 = vld [vmem:[%s2814 + $0xbc] sm:$0x1]
      %v3057 = vshrl.u32 %v3008, 16
      %v3059 = vrot.slane %v3057, 4
      %v3060 = vshll.u32 %v3008, 16
      %v3062 = vrot.slane %v3060, 5
      %v3063 = vor.u32 %v3059, %v3062
      %v3064 = vrot.slane %v3063, 4
      %v3066 = vshll.u32 %v3009, 16
      %v3068 = vrot.slane %v3066, 5
      %v3069 = vsel %vm869, %v3064, %v3068
      %v3070 = vshrl.u32 %v3009, 16
      %v3072 = vrot.slane %v3070, 4
      %v3073 = vor.u32 %v3072, %v3068
      %v3074 = vrot.slane %v3073, 4
      %v3076 = vshll.u32 %v3010, 16
      %v3078 = vrot.slane %v3076, 5
      %v3079 = vsel %vm869, %v3074, %v3078
      %v3081 = vshrl.u32 %v3011, 16
      %v3083 = vrot.slane %v3081, 4
      %v3084 = vshll.u32 %v3011, 16
      %v3086 = vrot.slane %v3084, 5
      %v3087 = vor.u32 %v3083, %v3086
      %v3088 = vrot.slane %v3087, 4
      %v3090 = vshll.u32 %v3012, 16
      %v3092 = vrot.slane %v3090, 5
      %v3093 = vsel %vm869, %v3088, %v3092
      %v3094 = vshrl.u32 %v3012, 16
      %v3096 = vrot.slane %v3094, 4
      %v3097 = vor.u32 %v3096, %v3092
      %v3098 = vrot.slane %v3097, 4
      %v3100 = vshll.u32 %v3013, 16
      %v3102 = vrot.slane %v3100, 5
      %v3103 = vsel %vm869, %v3098, %v3102
      %v3105 = vshrl.u32 %v3014, 16
      %v3107 = vrot.slane %v3105, 4
      %v3108 = vshll.u32 %v3014, 16
      %v3110 = vrot.slane %v3108, 5
      %v3111 = vor.u32 %v3107, %v3110
      %v3112 = vrot.slane %v3111, 4
      %v3114 = vshll.u32 %v3015, 16
      %v3116 = vrot.slane %v3114, 5
      %v3117 = vsel %vm869, %v3112, %v3116
      %v3118 = vshrl.u32 %v3015, 16
      %v3120 = vrot.slane %v3118, 4
      %v3121 = vor.u32 %v3120, %v3116
      %v3122 = vrot.slane %v3121, 4
      %v3124 = vshll.u32 %v3016, 16
      %v3126 = vrot.slane %v3124, 5
      %v3127 = vsel %vm869, %v3122, %v3126
      %v3129 = vshrl.u32 %v3017, 16
      %v3131 = vrot.slane %v3129, 4
      %v3132 = vshll.u32 %v3017, 16
      %v3134 = vrot.slane %v3132, 5
      %v3135 = vor.u32 %v3131, %v3134
      %v3136 = vrot.slane %v3135, 4
      %v3138 = vshll.u32 %v3018, 16
      %v3140 = vrot.slane %v3138, 5
      %v3141 = vsel %vm869, %v3136, %v3140
      %v3142 = vshrl.u32 %v3018, 16
      %v3144 = vrot.slane %v3142, 4
      %v3145 = vor.u32 %v3144, %v3140
      %v3146 = vrot.slane %v3145, 4
      %v3148 = vshll.u32 %v3019, 16
      %v3150 = vrot.slane %v3148, 5
      %v3151 = vsel %vm869, %v3146, %v3150
      %v3153 = vshrl.u32 %v3020, 16
      %v3155 = vrot.slane %v3153, 4
      %v3156 = vshll.u32 %v3020, 16
      %v3158 = vrot.slane %v3156, 5
      %v3159 = vor.u32 %v3155, %v3158
      %v3160 = vrot.slane %v3159, 4
      %v3162 = vshll.u32 %v3021, 16
      %v3164 = vrot.slane %v3162, 5
      %v3165 = vsel %vm869, %v3160, %v3164
      %v3166 = vshrl.u32 %v3021, 16
      %v3168 = vrot.slane %v3166, 4
      %v3169 = vor.u32 %v3168, %v3164
      %v3170 = vrot.slane %v3169, 4
      %v3172 = vshll.u32 %v3022, 16
      %v3174 = vrot.slane %v3172, 5
      %v3175 = vsel %vm869, %v3170, %v3174
      %v3177 = vshrl.u32 %v3023, 16
      %v3179 = vrot.slane %v3177, 4
      %v3180 = vshll.u32 %v3023, 16
      %v3182 = vrot.slane %v3180, 5
      %v3183 = vor.u32 %v3179, %v3182
      %v3184 = vrot.slane %v3183, 4
      %v3186 = vshll.u32 %v3024, 16
      %v3188 = vrot.slane %v3186, 5
      %v3189 = vsel %vm869, %v3184, %v3188
      %v3190 = vshrl.u32 %v3024, 16
      %v3192 = vrot.slane %v3190, 4
      %v3193 = vor.u32 %v3192, %v3188
      %v3194 = vrot.slane %v3193, 4
      %v3196 = vshll.u32 %v3025, 16
      %v3198 = vrot.slane %v3196, 5
      %v3199 = vsel %vm869, %v3194, %v3198
      %v3201 = vshrl.u32 %v3026, 16
      %v3203 = vrot.slane %v3201, 4
      %v3204 = vshll.u32 %v3026, 16
      %v3206 = vrot.slane %v3204, 5
      %v3207 = vor.u32 %v3203, %v3206
      %v3208 = vrot.slane %v3207, 4
      %v3210 = vshll.u32 %v3027, 16
      %v3212 = vrot.slane %v3210, 5
      %v3213 = vsel %vm869, %v3208, %v3212
      %v3214 = vshrl.u32 %v3027, 16
      %v3216 = vrot.slane %v3214, 4
      %v3217 = vor.u32 %v3216, %v3212
      %v3218 = vrot.slane %v3217, 4
      %v3220 = vshll.u32 %v3028, 16
      %v3222 = vrot.slane %v3220, 5
      %v3223 = vsel %vm869, %v3218, %v3222
      %v3225 = vshrl.u32 %v3029, 16
      %v3227 = vrot.slane %v3225, 4
      %v3228 = vshll.u32 %v3029, 16
      %v3230 = vrot.slane %v3228, 5
      %v3231 = vor.u32 %v3227, %v3230
      %v3232 = vrot.slane %v3231, 4
      %v3234 = vshll.u32 %v3030, 16
      %v3236 = vrot.slane %v3234, 5
      %v3237 = vsel %vm869, %v3232, %v3236
      %v3238 = vshrl.u32 %v3030, 16
      %v3240 = vrot.slane %v3238, 4
      %v3241 = vor.u32 %v3240, %v3236
      %v3242 = vrot.slane %v3241, 4
      %v3244 = vshll.u32 %v3031, 16
      %v3246 = vrot.slane %v3244, 5
      %v3247 = vsel %vm869, %v3242, %v3246
      %v3249 = vshrl.u32 %v3032, 16
      %v3251 = vrot.slane %v3249, 4
      %v3252 = vshll.u32 %v3032, 16
      %v3254 = vrot.slane %v3252, 5
      %v3255 = vor.u32 %v3251, %v3254
      %v3256 = vrot.slane %v3255, 4
      %v3258 = vshll.u32 %v3033, 16
      %v3260 = vrot.slane %v3258, 5
      %v3261 = vsel %vm869, %v3256, %v3260
      %v3262 = vshrl.u32 %v3033, 16
      %v3264 = vrot.slane %v3262, 4
      %v3265 = vor.u32 %v3264, %v3260
      %v3266 = vrot.slane %v3265, 4
      %v3268 = vshll.u32 %v3034, 16
      %v3270 = vrot.slane %v3268, 5
      %v3271 = vsel %vm869, %v3266, %v3270
      %v3273 = vshrl.u32 %v3035, 16
      %v3275 = vrot.slane %v3273, 4
      %v3276 = vshll.u32 %v3035, 16
      %v3278 = vrot.slane %v3276, 5
      %v3279 = vor.u32 %v3275, %v3278
      %v3280 = vrot.slane %v3279, 4
      %v3282 = vshll.u32 %v3036, 16
      %v3284 = vrot.slane %v3282, 5
      %v3285 = vsel %vm869, %v3280, %v3284
      %v3286 = vshrl.u32 %v3036, 16
      %v3288 = vrot.slane %v3286, 4
      %v3289 = vor.u32 %v3288, %v3284
      %v3290 = vrot.slane %v3289, 4
      %v3292 = vshll.u32 %v3037, 16
      %v3294 = vrot.slane %v3292, 5
      %v3295 = vsel %vm869, %v3290, %v3294
      %v3297 = vshrl.u32 %v3038, 16
      %v3299 = vrot.slane %v3297, 4
      %v3300 = vshll.u32 %v3038, 16
      %v3302 = vrot.slane %v3300, 5
      %v3303 = vor.u32 %v3299, %v3302
      %v3304 = vrot.slane %v3303, 4
      %v3306 = vshll.u32 %v3039, 16
      %v3308 = vrot.slane %v3306, 5
      %v3309 = vsel %vm869, %v3304, %v3308
      %v3310 = vshrl.u32 %v3039, 16
      %v3312 = vrot.slane %v3310, 4
      %v3313 = vor.u32 %v3312, %v3308
      %v3314 = vrot.slane %v3313, 4
      %v3316 = vshll.u32 %v3040, 16
      %v3318 = vrot.slane %v3316, 5
      %v3319 = vsel %vm869, %v3314, %v3318
      %v3321 = vshrl.u32 %v3041, 16
      %v3323 = vrot.slane %v3321, 4
      %v3324 = vshll.u32 %v3041, 16
      %v3326 = vrot.slane %v3324, 5
      %v3327 = vor.u32 %v3323, %v3326
      %v3328 = vrot.slane %v3327, 4
      %v3330 = vshll.u32 %v3042, 16
      %v3332 = vrot.slane %v3330, 5
      %v3333 = vsel %vm869, %v3328, %v3332
      %v3334 = vshrl.u32 %v3042, 16
      %v3336 = vrot.slane %v3334, 4
      %v3337 = vor.u32 %v3336, %v3332
      %v3338 = vrot.slane %v3337, 4
      %v3340 = vshll.u32 %v3043, 16
      %v3342 = vrot.slane %v3340, 5
      %v3343 = vsel %vm869, %v3338, %v3342
      %v3345 = vshrl.u32 %v3044, 16
      %v3347 = vrot.slane %v3345, 4
      %v3348 = vshll.u32 %v3044, 16
      %v3350 = vrot.slane %v3348, 5
      %v3351 = vor.u32 %v3347, %v3350
      %v3352 = vrot.slane %v3351, 4
      %v3354 = vshll.u32 %v3045, 16
      %v3356 = vrot.slane %v3354, 5
      %v3357 = vsel %vm869, %v3352, %v3356
      %v3358 = vshrl.u32 %v3045, 16
      %v3360 = vrot.slane %v3358, 4
      %v3361 = vor.u32 %v3360, %v3356
      %v3362 = vrot.slane %v3361, 4
      %v3364 = vshll.u32 %v3046, 16
      %v3366 = vrot.slane %v3364, 5
      %v3367 = vsel %vm869, %v3362, %v3366
      %v3369 = vshrl.u32 %v3047, 16
      %v3371 = vrot.slane %v3369, 4
      %v3372 = vshll.u32 %v3047, 16
      %v3374 = vrot.slane %v3372, 5
      %v3375 = vor.u32 %v3371, %v3374
      %v3376 = vrot.slane %v3375, 4
      %v3378 = vshll.u32 %v3048, 16
      %v3380 = vrot.slane %v3378, 5
      %v3381 = vsel %vm869, %v3376, %v3380
      %v3382 = vshrl.u32 %v3048, 16
      %v3384 = vrot.slane %v3382, 4
      %v3385 = vor.u32 %v3384, %v3380
      %v3386 = vrot.slane %v3385, 4
      %v3388 = vshll.u32 %v3049, 16
      %v3390 = vrot.slane %v3388, 5
      %v3391 = vsel %vm869, %v3386, %v3390
      %v3393 = vshrl.u32 %v3050, 16
      %v3395 = vrot.slane %v3393, 4
      %v3396 = vshll.u32 %v3050, 16
      %v3398 = vrot.slane %v3396, 5
      %v3399 = vor.u32 %v3395, %v3398
      %v3400 = vrot.slane %v3399, 4
      %v3402 = vshll.u32 %v3051, 16
      %v3404 = vrot.slane %v3402, 5
      %v3405 = vsel %vm869, %v3400, %v3404
      %v3406 = vshrl.u32 %v3051, 16
      %v3408 = vrot.slane %v3406, 4
      %v3409 = vor.u32 %v3408, %v3404
      %v3410 = vrot.slane %v3409, 4
      %v3412 = vshll.u32 %v3052, 16
      %v3414 = vrot.slane %v3412, 5
      %v3415 = vsel %vm869, %v3410, %v3414
      %v3417 = vshrl.u32 %v3053, 16
      %v3419 = vrot.slane %v3417, 4
      %v3420 = vshll.u32 %v3053, 16
      %v3422 = vrot.slane %v3420, 5
      %v3423 = vor.u32 %v3419, %v3422
      %v3424 = vrot.slane %v3423, 4
      %v3426 = vshll.u32 %v3054, 16
      %v3428 = vrot.slane %v3426, 5
      %v3429 = vsel %vm869, %v3424, %v3428
      %v3430 = vshrl.u32 %v3054, 16
      %v3432 = vrot.slane %v3430, 4
      %v3433 = vor.u32 %v3432, %v3428
      %v3434 = vrot.slane %v3433, 4
      %v3436 = vshll.u32 %v3055, 16
      %v3438 = vrot.slane %v3436, 5
      %v3439 = vsel %vm869, %v3434, %v3438
      %3440 = vrot.lane.b32.xlu0 %v3069, 28
      %v3441 = vpop.permute.xlu0 %3440
      %3442 = vrot.lane.b32.xlu0 %v3079, 28
      %v3443 = vpop.permute.xlu0 %3442
      %3444 = vrot.lane.b32.xlu0 %v3093, 28
      %v3445 = vpop.permute.xlu0 %3444
      %3446 = vrot.lane.b32.xlu0 %v3103, 28
      %v3447 = vpop.permute.xlu0 %3446
      %3448 = vrot.lane.b32.xlu0 %v3117, 28
      %v3449 = vpop.permute.xlu0 %3448
      %3450 = vrot.lane.b32.xlu0 %v3127, 28
      %v3451 = vpop.permute.xlu0 %3450
      %3452 = vrot.lane.b32.xlu0 %v3141, 28
      %v3453 = vpop.permute.xlu0 %3452
      %3454 = vrot.lane.b32.xlu0 %v3151, 28
      %v3455 = vpop.permute.xlu0 %3454
      %3456 = vrot.lane.b32.xlu0 %v3165, 28
      %v3457 = vpop.permute.xlu0 %3456
      %3458 = vrot.lane.b32.xlu0 %v3175, 28
      %v3459 = vpop.permute.xlu0 %3458
      %3460 = vrot.lane.b32.xlu0 %v3189, 28
      %v3461 = vpop.permute.xlu0 %3460
      %3462 = vrot.lane.b32.xlu0 %v3199, 28
      %v3463 = vpop.permute.xlu0 %3462
      %3464 = vrot.lane.b32.xlu0 %v3213, 28
      %v3465 = vpop.permute.xlu0 %3464
      %3466 = vrot.lane.b32.xlu0 %v3223, 28
      %v3467 = vpop.permute.xlu0 %3466
      %3468 = vrot.lane.b32.xlu0 %v3237, 28
      %v3469 = vpop.permute.xlu0 %3468
      %3470 = vrot.lane.b32.xlu0 %v3247, 28
      %v3471 = vpop.permute.xlu0 %3470
      %3472 = vrot.lane.b32.xlu0 %v3261, 28
      %v3473 = vpop.permute.xlu0 %3472
      %3474 = vrot.lane.b32.xlu0 %v3271, 28
      %v3475 = vpop.permute.xlu0 %3474
      %3476 = vrot.lane.b32.xlu0 %v3285, 28
      %v3477 = vpop.permute.xlu0 %3476
      %3478 = vrot.lane.b32.xlu0 %v3295, 28
      %v3479 = vpop.permute.xlu0 %3478
      %3480 = vrot.lane.b32.xlu0 %v3309, 28
      %v3481 = vpop.permute.xlu0 %3480
      %3482 = vrot.lane.b32.xlu0 %v3319, 28
      %v3483 = vpop.permute.xlu0 %3482
      %3484 = vrot.lane.b32.xlu0 %v3333, 28
      %v3485 = vpop.permute.xlu0 %3484
      %3486 = vrot.lane.b32.xlu0 %v3343, 28
      %v3487 = vpop.permute.xlu0 %3486
      %3488 = vrot.lane.b32.xlu0 %v3357, 28
      %v3489 = vpop.permute.xlu0 %3488
      %3490 = vrot.lane.b32.xlu0 %v3367, 28
      %v3491 = vpop.permute.xlu0 %3490
      %3492 = vrot.lane.b32.xlu0 %v3381, 28
      %v3493 = vpop.permute.xlu0 %3492
      %3494 = vrot.lane.b32.xlu0 %v3391, 28
      %v3495 = vpop.permute.xlu0 %3494
      %3496 = vrot.lane.b32.xlu0 %v3405, 28
      %v3497 = vpop.permute.xlu0 %3496
      %3498 = vrot.lane.b32.xlu0 %v3415, 28
      %v3499 = vpop.permute.xlu0 %3498
      %3500 = vrot.lane.b32.xlu0 %v3429, 28
      %v3501 = vpop.permute.xlu0 %3500
      %3502 = vrot.lane.b32.xlu0 %v3439, 28
      %v3503 = vpop.permute.xlu0 %3502
      %vm3536 = vcmask 257248
      %3537 = vst.msk [vmem:[#allocation3] sm:$0xf] %vm3536, %v3441
      %3538 = vst.msk [vmem:[#allocation3 + $0x4] sm:$0xf] %vm3536, %v3443
      %3539 = vst.msk [vmem:[#allocation3 + $0x8] sm:$0xf] %vm3536, %v3445
      %3540 = vst.msk [vmem:[#allocation3 + $0xc] sm:$0xf] %vm3536, %v3447
      %3541 = vst.msk [vmem:[#allocation3 + $0x10] sm:$0xf] %vm3536, %v3449
      %3542 = vst.msk [vmem:[#allocation3 + $0x14] sm:$0xf] %vm3536, %v3451
      %3543 = vst.msk [vmem:[#allocation3 + $0x18] sm:$0xf] %vm3536, %v3453
      %3544 = vst.msk [vmem:[#allocation3 + $0x1c] sm:$0xf] %vm3536, %v3455
      %3545 = vst.msk [vmem:[#allocation3 + $0x20] sm:$0xf] %vm3536, %v3457
      %3546 = vst.msk [vmem:[#allocation3 + $0x24] sm:$0xf] %vm3536, %v3459
      %3547 = vst.msk [vmem:[#allocation3 + $0x28] sm:$0xf] %vm3536, %v3461
      %3548 = vst.msk [vmem:[#allocation3 + $0x2c] sm:$0xf] %vm3536, %v3463
      %3549 = vst.msk [vmem:[#allocation3 + $0x30] sm:$0xf] %vm3536, %v3465
      %3550 = vst.msk [vmem:[#allocation3 + $0x34] sm:$0xf] %vm3536, %v3467
      %3551 = vst.msk [vmem:[#allocation3 + $0x38] sm:$0xf] %vm3536, %v3469
      %3552 = vst.msk [vmem:[#allocation3 + $0x3c] sm:$0xf] %vm3536, %v3471
      %3553 = vst.msk [vmem:[#allocation3 + $0x40] sm:$0xf] %vm3536, %v3473
      %3554 = vst.msk [vmem:[#allocation3 + $0x44] sm:$0xf] %vm3536, %v3475
      %3555 = vst.msk [vmem:[#allocation3 + $0x48] sm:$0xf] %vm3536, %v3477
      %3556 = vst.msk [vmem:[#allocation3 + $0x4c] sm:$0xf] %vm3536, %v3479
      %3557 = vst.msk [vmem:[#allocation3 + $0x50] sm:$0xf] %vm3536, %v3481
      %3558 = vst.msk [vmem:[#allocation3 + $0x54] sm:$0xf] %vm3536, %v3483
      %3559 = vst.msk [vmem:[#allocation3 + $0x58] sm:$0xf] %vm3536, %v3485
      %3560 = vst.msk [vmem:[#allocation3 + $0x5c] sm:$0xf] %vm3536, %v3487
      %3561 = vst.msk [vmem:[#allocation3 + $0x60] sm:$0xf] %vm3536, %v3489
      %3562 = vst.msk [vmem:[#allocation3 + $0x64] sm:$0xf] %vm3536, %v3491
      %3563 = vst.msk [vmem:[#allocation3 + $0x68] sm:$0xf] %vm3536, %v3493
      %3564 = vst.msk [vmem:[#allocation3 + $0x6c] sm:$0xf] %vm3536, %v3495
      %3565 = vst.msk [vmem:[#allocation3 + $0x70] sm:$0xf] %vm3536, %v3497
      %3566 = vst.msk [vmem:[#allocation3 + $0x74] sm:$0xf] %vm3536, %v3499
      %3567 = vst.msk [vmem:[#allocation3 + $0x78] sm:$0xf] %vm3536, %v3501
      %3568 = vst.msk [vmem:[#allocation3 + $0x7c] sm:$0xf] %vm3536, %v3503
      %v3569 = vld [vmem:[%s2814] sm:$0xe]
      %v3570 = vld [vmem:[%s2814 + $0x4] sm:$0xf]
      %v3571 = vld [vmem:[%s2814 + $0x8] sm:$0x1]
      %v3572 = vld [vmem:[%s2814 + $0xc] sm:$0xe]
      %v3573 = vld [vmem:[%s2814 + $0x10] sm:$0xf]
      %v3574 = vld [vmem:[%s2814 + $0x14] sm:$0x1]
      %v3575 = vld [vmem:[%s2814 + $0x18] sm:$0xe]
      %v3576 = vld [vmem:[%s2814 + $0x1c] sm:$0xf]
      %v3577 = vld [vmem:[%s2814 + $0x20] sm:$0x1]
      %v3578 = vld [vmem:[%s2814 + $0x24] sm:$0xe]
      %v3579 = vld [vmem:[%s2814 + $0x28] sm:$0xf]
      %v3580 = vld [vmem:[%s2814 + $0x2c] sm:$0x1]
      %v3581 = vld [vmem:[%s2814 + $0x30] sm:$0xe]
      %v3582 = vld [vmem:[%s2814 + $0x34] sm:$0xf]
      %v3583 = vld [vmem:[%s2814 + $0x38] sm:$0x1]
      %v3584 = vld [vmem:[%s2814 + $0x3c] sm:$0xe]
      %v3585 = vld [vmem:[%s2814 + $0x40] sm:$0xf]
      %v3586 = vld [vmem:[%s2814 + $0x44] sm:$0x1]
      %v3587 = vld [vmem:[%s2814 + $0x48] sm:$0xe]
      %v3588 = vld [vmem:[%s2814 + $0x4c] sm:$0xf]
      %v3589 = vld [vmem:[%s2814 + $0x50] sm:$0x1]
      %v3590 = vld [vmem:[%s2814 + $0x54] sm:$0xe]
      %v3591 = vld [vmem:[%s2814 + $0x58] sm:$0xf]
      %v3592 = vld [vmem:[%s2814 + $0x5c] sm:$0x1]
      %v3593 = vld [vmem:[%s2814 + $0x60] sm:$0xe]
      %v3594 = vld [vmem:[%s2814 + $0x64] sm:$0xf]
      %v3595 = vld [vmem:[%s2814 + $0x68] sm:$0x1]
      %v3596 = vld [vmem:[%s2814 + $0x6c] sm:$0xe]
      %v3597 = vld [vmem:[%s2814 + $0x70] sm:$0xf]
      %v3598 = vld [vmem:[%s2814 + $0x74] sm:$0x1]
      %v3599 = vld [vmem:[%s2814 + $0x78] sm:$0xe]
      %v3600 = vld [vmem:[%s2814 + $0x7c] sm:$0xf]
      %v3601 = vld [vmem:[%s2814 + $0x80] sm:$0x1]
      %v3602 = vld [vmem:[%s2814 + $0x84] sm:$0xe]
      %v3603 = vld [vmem:[%s2814 + $0x88] sm:$0xf]
      %v3604 = vld [vmem:[%s2814 + $0x8c] sm:$0x1]
      %v3605 = vld [vmem:[%s2814 + $0x90] sm:$0xe]
      %v3606 = vld [vmem:[%s2814 + $0x94] sm:$0xf]
      %v3607 = vld [vmem:[%s2814 + $0x98] sm:$0x1]
      %v3608 = vld [vmem:[%s2814 + $0x9c] sm:$0xe]
      %v3609 = vld [vmem:[%s2814 + $0xa0] sm:$0xf]
      %v3610 = vld [vmem:[%s2814 + $0xa4] sm:$0x1]
      %v3611 = vld [vmem:[%s2814 + $0xa8] sm:$0xe]
      %v3612 = vld [vmem:[%s2814 + $0xac] sm:$0xf]
      %v3613 = vld [vmem:[%s2814 + $0xb0] sm:$0x1]
      %v3614 = vld [vmem:[%s2814 + $0xb4] sm:$0xe]
      %v3615 = vld [vmem:[%s2814 + $0xb8] sm:$0xf]
      %v3616 = vld [vmem:[%s2814 + $0xbc] sm:$0x1]
      %v3665 = vrot.slane %v3569, 5
      %v3666 = vrot.slane %v3665, 4
      %v3667 = vrot.slane %v3570, 5
      %v3668 = vsel %vm1481, %v3666, %v3667
      %v3669 = vrot.slane %v3667, 4
      %v3670 = vrot.slane %v3571, 5
      %v3671 = vsel %vm1481, %v3669, %v3670
      %v3672 = vrot.slane %v3572, 5
      %v3673 = vrot.slane %v3672, 4
      %v3674 = vrot.slane %v3573, 5
      %v3675 = vsel %vm1481, %v3673, %v3674
      %v3676 = vrot.slane %v3674, 4
      %v3677 = vrot.slane %v3574, 5
      %v3678 = vsel %vm1481, %v3676, %v3677
      %v3679 = vrot.slane %v3575, 5
      %v3680 = vrot.slane %v3679, 4
      %v3681 = vrot.slane %v3576, 5
      %v3682 = vsel %vm1481, %v3680, %v3681
      %v3683 = vrot.slane %v3681, 4
      %v3684 = vrot.slane %v3577, 5
      %v3685 = vsel %vm1481, %v3683, %v3684
      %v3686 = vrot.slane %v3578, 5
      %v3687 = vrot.slane %v3686, 4
      %v3688 = vrot.slane %v3579, 5
      %v3689 = vsel %vm1481, %v3687, %v3688
      %v3690 = vrot.slane %v3688, 4
      %v3691 = vrot.slane %v3580, 5
      %v3692 = vsel %vm1481, %v3690, %v3691
      %v3693 = vrot.slane %v3581, 5
      %v3694 = vrot.slane %v3693, 4
      %v3695 = vrot.slane %v3582, 5
      %v3696 = vsel %vm1481, %v3694, %v3695
      %v3697 = vrot.slane %v3695, 4
      %v3698 = vrot.slane %v3583, 5
      %v3699 = vsel %vm1481, %v3697, %v3698
      %v3700 = vrot.slane %v3584, 5
      %v3701 = vrot.slane %v3700, 4
      %v3702 = vrot.slane %v3585, 5
      %v3703 = vsel %vm1481, %v3701, %v3702
      %v3704 = vrot.slane %v3702, 4
      %v3705 = vrot.slane %v3586, 5
      %v3706 = vsel %vm1481, %v3704, %v3705
      %v3707 = vrot.slane %v3587, 5
      %v3708 = vrot.slane %v3707, 4
      %v3709 = vrot.slane %v3588, 5
      %v3710 = vsel %vm1481, %v3708, %v3709
      %v3711 = vrot.slane %v3709, 4
      %v3712 = vrot.slane %v3589, 5
      %v3713 = vsel %vm1481, %v3711, %v3712
      %v3714 = vrot.slane %v3590, 5
      %v3715 = vrot.slane %v3714, 4
      %v3716 = vrot.slane %v3591, 5
      %v3717 = vsel %vm1481, %v3715, %v3716
      %v3718 = vrot.slane %v3716, 4
      %v3719 = vrot.slane %v3592, 5
      %v3720 = vsel %vm1481, %v3718, %v3719
      %v3721 = vrot.slane %v3593, 5
      %v3722 = vrot.slane %v3721, 4
      %v3723 = vrot.slane %v3594, 5
      %v3724 = vsel %vm1481, %v3722, %v3723
      %v3725 = vrot.slane %v3723, 4
      %v3726 = vrot.slane %v3595, 5
      %v3727 = vsel %vm1481, %v3725, %v3726
      %v3728 = vrot.slane %v3596, 5
      %v3729 = vrot.slane %v3728, 4
      %v3730 = vrot.slane %v3597, 5
      %v3731 = vsel %vm1481, %v3729, %v3730
      %v3732 = vrot.slane %v3730, 4
      %v3733 = vrot.slane %v3598, 5
      %v3734 = vsel %vm1481, %v3732, %v3733
      %v3735 = vrot.slane %v3599, 5
      %v3736 = vrot.slane %v3735, 4
      %v3737 = vrot.slane %v3600, 5
      %v3738 = vsel %vm1481, %v3736, %v3737
      %v3739 = vrot.slane %v3737, 4
      %v3740 = vrot.slane %v3601, 5
      %v3741 = vsel %vm1481, %v3739, %v3740
      %v3742 = vrot.slane %v3602, 5
      %v3743 = vrot.slane %v3742, 4
      %v3744 = vrot.slane %v3603, 5
      %v3745 = vsel %vm1481, %v3743, %v3744
      %v3746 = vrot.slane %v3744, 4
      %v3747 = vrot.slane %v3604, 5
      %v3748 = vsel %vm1481, %v3746, %v3747
      %v3749 = vrot.slane %v3605, 5
      %v3750 = vrot.slane %v3749, 4
      %v3751 = vrot.slane %v3606, 5
      %v3752 = vsel %vm1481, %v3750, %v3751
      %v3753 = vrot.slane %v3751, 4
      %v3754 = vrot.slane %v3607, 5
      %v3755 = vsel %vm1481, %v3753, %v3754
      %v3756 = vrot.slane %v3608, 5
      %v3757 = vrot.slane %v3756, 4
      %v3758 = vrot.slane %v3609, 5
      %v3759 = vsel %vm1481, %v3757, %v3758
      %v3760 = vrot.slane %v3758, 4
      %v3761 = vrot.slane %v3610, 5
      %v3762 = vsel %vm1481, %v3760, %v3761
      %v3763 = vrot.slane %v3611, 5
      %v3764 = vrot.slane %v3763, 4
      %v3765 = vrot.slane %v3612, 5
      %v3766 = vsel %vm1481, %v3764, %v3765
      %v3767 = vrot.slane %v3765, 4
      %v3768 = vrot.slane %v3613, 5
      %v3769 = vsel %vm1481, %v3767, %v3768
      %v3770 = vrot.slane %v3614, 5
      %v3771 = vrot.slane %v3770, 4
      %v3772 = vrot.slane %v3615, 5
      %v3773 = vsel %vm1481, %v3771, %v3772
      %v3774 = vrot.slane %v3772, 4
      %v3775 = vrot.slane %v3616, 5
      %v3776 = vsel %vm1481, %v3774, %v3775
      %3777 = vrot.lane.b32.xlu0 %v3668, 32
      %v3778 = vpop.permute.xlu0 %3777
      %3779 = vrot.lane.b32.xlu0 %v3671, 32
      %v3780 = vpop.permute.xlu0 %3779
      %3781 = vrot.lane.b32.xlu0 %v3675, 32
      %v3782 = vpop.permute.xlu0 %3781
      %3783 = vrot.lane.b32.xlu0 %v3678, 32
      %v3784 = vpop.permute.xlu0 %3783
      %3785 = vrot.lane.b32.xlu0 %v3682, 32
      %v3786 = vpop.permute.xlu0 %3785
      %3787 = vrot.lane.b32.xlu0 %v3685, 32
      %v3788 = vpop.permute.xlu0 %3787
      %3789 = vrot.lane.b32.xlu0 %v3689, 32
      %v3790 = vpop.permute.xlu0 %3789
      %3791 = vrot.lane.b32.xlu0 %v3692, 32
      %v3792 = vpop.permute.xlu0 %3791
      %3793 = vrot.lane.b32.xlu0 %v3696, 32
      %v3794 = vpop.permute.xlu0 %3793
      %3795 = vrot.lane.b32.xlu0 %v3699, 32
      %v3796 = vpop.permute.xlu0 %3795
      %3797 = vrot.lane.b32.xlu0 %v3703, 32
      %v3798 = vpop.permute.xlu0 %3797
      %3799 = vrot.lane.b32.xlu0 %v3706, 32
      %v3800 = vpop.permute.xlu0 %3799
      %3801 = vrot.lane.b32.xlu0 %v3710, 32
      %v3802 = vpop.permute.xlu0 %3801
      %3803 = vrot.lane.b32.xlu0 %v3713, 32
      %v3804 = vpop.permute.xlu0 %3803
      %3805 = vrot.lane.b32.xlu0 %v3717, 32
      %v3806 = vpop.permute.xlu0 %3805
      %3807 = vrot.lane.b32.xlu0 %v3720, 32
      %v3808 = vpop.permute.xlu0 %3807
      %3809 = vrot.lane.b32.xlu0 %v3724, 32
      %v3810 = vpop.permute.xlu0 %3809
      %3811 = vrot.lane.b32.xlu0 %v3727, 32
      %v3812 = vpop.permute.xlu0 %3811
      %3813 = vrot.lane.b32.xlu0 %v3731, 32
      %v3814 = vpop.permute.xlu0 %3813
      %3815 = vrot.lane.b32.xlu0 %v3734, 32
      %v3816 = vpop.permute.xlu0 %3815
      %3817 = vrot.lane.b32.xlu0 %v3738, 32
      %v3818 = vpop.permute.xlu0 %3817
      %3819 = vrot.lane.b32.xlu0 %v3741, 32
      %v3820 = vpop.permute.xlu0 %3819
      %3821 = vrot.lane.b32.xlu0 %v3745, 32
      %v3822 = vpop.permute.xlu0 %3821
      %3823 = vrot.lane.b32.xlu0 %v3748, 32
      %v3824 = vpop.permute.xlu0 %3823
      %3825 = vrot.lane.b32.xlu0 %v3752, 32
      %v3826 = vpop.permute.xlu0 %3825
      %3827 = vrot.lane.b32.xlu0 %v3755, 32
      %v3828 = vpop.permute.xlu0 %3827
      %3829 = vrot.lane.b32.xlu0 %v3759, 32
      %v3830 = vpop.permute.xlu0 %3829
      %3831 = vrot.lane.b32.xlu0 %v3762, 32
      %v3832 = vpop.permute.xlu0 %3831
      %3833 = vrot.lane.b32.xlu0 %v3766, 32
      %v3834 = vpop.permute.xlu0 %3833
      %3835 = vrot.lane.b32.xlu0 %v3769, 32
      %v3836 = vpop.permute.xlu0 %3835
      %3837 = vrot.lane.b32.xlu0 %v3773, 32
      %v3838 = vpop.permute.xlu0 %3837
      %3839 = vrot.lane.b32.xlu0 %v3776, 32
      %v3840 = vpop.permute.xlu0 %3839
      %vm3873 = vcmask 290048
      %3874 = vst.msk [vmem:[#allocation3] sm:$0xf] %vm3873, %v3778
      %3875 = vst.msk [vmem:[#allocation3 + $0x4] sm:$0xf] %vm3873, %v3780
      %3876 = vst.msk [vmem:[#allocation3 + $0x8] sm:$0xf] %vm3873, %v3782
      %3877 = vst.msk [vmem:[#allocation3 + $0xc] sm:$0xf] %vm3873, %v3784
      %3878 = vst.msk [vmem:[#allocation3 + $0x10] sm:$0xf] %vm3873, %v3786
      %3879 = vst.msk [vmem:[#allocation3 + $0x14] sm:$0xf] %vm3873, %v3788
      %3880 = vst.msk [vmem:[#allocation3 + $0x18] sm:$0xf] %vm3873, %v3790
      %3881 = vst.msk [vmem:[#allocation3 + $0x1c] sm:$0xf] %vm3873, %v3792
      %3882 = vst.msk [vmem:[#allocation3 + $0x20] sm:$0xf] %vm3873, %v3794
      %3883 = vst.msk [vmem:[#allocation3 + $0x24] sm:$0xf] %vm3873, %v3796
      %3884 = vst.msk [vmem:[#allocation3 + $0x28] sm:$0xf] %vm3873, %v3798
      %3885 = vst.msk [vmem:[#allocation3 + $0x2c] sm:$0xf] %vm3873, %v3800
      %3886 = vst.msk [vmem:[#allocation3 + $0x30] sm:$0xf] %vm3873, %v3802
      %3887 = vst.msk [vmem:[#allocation3 + $0x34] sm:$0xf] %vm3873, %v3804
      %3888 = vst.msk [vmem:[#allocation3 + $0x38] sm:$0xf] %vm3873, %v3806
      %3889 = vst.msk [vmem:[#allocation3 + $0x3c] sm:$0xf] %vm3873, %v3808
      %3890 = vst.msk [vmem:[#allocation3 + $0x40] sm:$0xf] %vm3873, %v3810
      %3891 = vst.msk [vmem:[#allocation3 + $0x44] sm:$0xf] %vm3873, %v3812
      %3892 = vst.msk [vmem:[#allocation3 + $0x48] sm:$0xf] %vm3873, %v3814
      %3893 = vst.msk [vmem:[#allocation3 + $0x4c] sm:$0xf] %vm3873, %v3816
      %3894 = vst.msk [vmem:[#allocation3 + $0x50] sm:$0xf] %vm3873, %v3818
      %3895 = vst.msk [vmem:[#allocation3 + $0x54] sm:$0xf] %vm3873, %v3820
      %3896 = vst.msk [vmem:[#allocation3 + $0x58] sm:$0xf] %vm3873, %v3822
      %3897 = vst.msk [vmem:[#allocation3 + $0x5c] sm:$0xf] %vm3873, %v3824
      %3898 = vst.msk [vmem:[#allocation3 + $0x60] sm:$0xf] %vm3873, %v3826
      %3899 = vst.msk [vmem:[#allocation3 + $0x64] sm:$0xf] %vm3873, %v3828
      %3900 = vst.msk [vmem:[#allocation3 + $0x68] sm:$0xf] %vm3873, %v3830
      %3901 = vst.msk [vmem:[#allocation3 + $0x6c] sm:$0xf] %vm3873, %v3832
      %3902 = vst.msk [vmem:[#allocation3 + $0x70] sm:$0xf] %vm3873, %v3834
      %3903 = vst.msk [vmem:[#allocation3 + $0x74] sm:$0xf] %vm3873, %v3836
      %3904 = vst.msk [vmem:[#allocation3 + $0x78] sm:$0xf] %vm3873, %v3838
      %3905 = vst.msk [vmem:[#allocation3 + $0x7c] sm:$0xf] %vm3873, %v3840
      %v3906 = vld [vmem:[#allocation3] sm:$0xf]
      %v3907 = vld [vmem:[#allocation3 + $0x4] sm:$0xf]
      %v3908 = vld [vmem:[#allocation3 + $0x8] sm:$0xf]
      %v3909 = vld [vmem:[#allocation3 + $0xc] sm:$0xf]
      %v3910 = vld [vmem:[#allocation3 + $0x10] sm:$0xf]
      %v3911 = vld [vmem:[#allocation3 + $0x14] sm:$0xf]
      %v3912 = vld [vmem:[#allocation3 + $0x18] sm:$0xf]
      %v3913 = vld [vmem:[#allocation3 + $0x1c] sm:$0xf]
      %v3914 = vld [vmem:[#allocation3 + $0x20] sm:$0xf]
      %v3915 = vld [vmem:[#allocation3 + $0x24] sm:$0xf]
      %v3916 = vld [vmem:[#allocation3 + $0x28] sm:$0xf]
      %v3917 = vld [vmem:[#allocation3 + $0x2c] sm:$0xf]
      %v3918 = vld [vmem:[#allocation3 + $0x30] sm:$0xf]
      %v3919 = vld [vmem:[#allocation3 + $0x34] sm:$0xf]
      %v3920 = vld [vmem:[#allocation3 + $0x38] sm:$0xf]
      %v3921 = vld [vmem:[#allocation3 + $0x3c] sm:$0xf]
      %v3922 = vld [vmem:[#allocation3 + $0x40] sm:$0xf]
      %v3923 = vld [vmem:[#allocation3 + $0x44] sm:$0xf]
      %v3924 = vld [vmem:[#allocation3 + $0x48] sm:$0xf]
      %v3925 = vld [vmem:[#allocation3 + $0x4c] sm:$0xf]
      %v3926 = vld [vmem:[#allocation3 + $0x50] sm:$0xf]
      %v3927 = vld [vmem:[#allocation3 + $0x54] sm:$0xf]
      %v3928 = vld [vmem:[#allocation3 + $0x58] sm:$0xf]
      %v3929 = vld [vmem:[#allocation3 + $0x5c] sm:$0xf]
      %v3930 = vld [vmem:[#allocation3 + $0x60] sm:$0xf]
      %v3931 = vld [vmem:[#allocation3 + $0x64] sm:$0xf]
      %v3932 = vld [vmem:[#allocation3 + $0x68] sm:$0xf]
      %v3933 = vld [vmem:[#allocation3 + $0x6c] sm:$0xf]
      %v3934 = vld [vmem:[#allocation3 + $0x70] sm:$0xf]
      %v3935 = vld [vmem:[#allocation3 + $0x74] sm:$0xf]
      %v3936 = vld [vmem:[#allocation3 + $0x78] sm:$0xf]
      %v3937 = vld [vmem:[#allocation3 + $0x7c] sm:$0xf]
      %v3938 = vld [vmem:[%s1] sm:$0xf]
      %v3939 = vld [vmem:[%s1 + $0x4] sm:$0xf]
      %v3940 = vld [vmem:[%s1 + $0x8] sm:$0xf]
      %v3941 = vld [vmem:[%s1 + $0xc] sm:$0xf]
      %v3942 = vld [vmem:[%s1 + $0x10] sm:$0x3]
      %v3943 = vld [vmem:[%s2] sm:$0x1]
      %v3945 = vperm.slane %v3943, 0
      %v3979 = vunpack.c.l.b16 %v3906
      %v3980 = vunpack.c.l.b16 %v3907
      %v3981 = vunpack.c.l.b16 %v3908
      %v3982 = vunpack.c.l.b16 %v3909
      %v3983 = vunpack.c.l.b16 %v3910
      %v3984 = vunpack.c.l.b16 %v3911
      %v3985 = vunpack.c.l.b16 %v3912
      %v3986 = vunpack.c.l.b16 %v3913
      %v3987 = vunpack.c.l.b16 %v3914
      %v3988 = vunpack.c.l.b16 %v3915
      %v3989 = vunpack.c.l.b16 %v3916
      %v3990 = vunpack.c.l.b16 %v3917
      %v3991 = vunpack.c.l.b16 %v3918
      %v3992 = vunpack.c.l.b16 %v3919
      %v3993 = vunpack.c.l.b16 %v3920
      %v3994 = vunpack.c.l.b16 %v3921
      %v3995 = vunpack.c.l.b16 %v3922
      %v3996 = vunpack.c.l.b16 %v3923
      %v3997 = vunpack.c.l.b16 %v3924
      %v3998 = vunpack.c.l.b16 %v3925
      %v3999 = vunpack.c.l.b16 %v3926
      %v4000 = vunpack.c.l.b16 %v3927
      %v4001 = vunpack.c.l.b16 %v3928
      %v4002 = vunpack.c.l.b16 %v3929
      %v4003 = vunpack.c.l.b16 %v3930
      %v4004 = vunpack.c.l.b16 %v3931
      %v4005 = vunpack.c.l.b16 %v3932
      %v4006 = vunpack.c.l.b16 %v3933
      %v4007 = vunpack.c.l.b16 %v3934
      %v4008 = vunpack.c.l.b16 %v3935
      %v4009 = vunpack.c.l.b16 %v3936
      %v4010 = vunpack.c.l.b16 %v3937
      %v4011 = vpack.c.b16 %v3980, %v3979
      %v4012 = vpack.c.b16 %v3982, %v3981
      %v4013 = vpack.c.b16 %v3984, %v3983
      %v4014 = vpack.c.b16 %v3986, %v3985
      %v4015 = vpack.c.b16 %v3988, %v3987
      %v4016 = vpack.c.b16 %v3990, %v3989
      %v4017 = vpack.c.b16 %v3992, %v3991
      %v4018 = vpack.c.b16 %v3994, %v3993
      %v4019 = vpack.c.b16 %v3996, %v3995
      %v4020 = vpack.c.b16 %v3998, %v3997
      %v4021 = vpack.c.b16 %v4000, %v3999
      %v4022 = vpack.c.b16 %v4002, %v4001
      %v4023 = vpack.c.b16 %v4004, %v4003
      %v4024 = vpack.c.b16 %v4006, %v4005
      %v4025 = vpack.c.b16 %v4008, %v4007
      %v4026 = vpack.c.b16 %v4010, %v4009
      %v4032 = vunpack.c.l.b16 %v3938
      %v4033 = vunpack.c.l.b16 %v3939
      %v4034 = vunpack.c.l.b16 %v3940
      %v4035 = vunpack.c.l.b16 %v3941
      %v4036 = vunpack.c.l.b16 %v3942
      %v4037 = vpack.c.b16 %v4033, %v4032
      %v4038 = vpack.c.b16 %v4035, %v4034
      %v4039 = vpack.c.b16 %v4036, %v4036
      %vm4042 = vcmask 293888
      %v4044 = vsel %vm4042, %v4011, 0
      %v4047 = vsel %vm4042, %v4012, 0
      %v4050 = vsel %vm4042, %v4013, 0
      %v4053 = vsel %vm4042, %v4014, 0
      %v4056 = vsel %vm4042, %v4015, 0
      %v4059 = vsel %vm4042, %v4016, 0
      %v4062 = vsel %vm4042, %v4017, 0
      %v4065 = vsel %vm4042, %v4018, 0
      %v4068 = vsel %vm4042, %v4019, 0
      %v4071 = vsel %vm4042, %v4020, 0
      %v4074 = vsel %vm4042, %v4021, 0
      %v4077 = vsel %vm4042, %v4022, 0
      %v4080 = vsel %vm4042, %v4023, 0
      %v4083 = vsel %vm4042, %v4024, 0
      %v4086 = vsel %vm4042, %v4025, 0
      %v4089 = vsel %vm4042, %v4026, 0
      %vm4091 = vcmask 1041408
      %v4093 = vsel %vm4091, %v4039, 0
      %4095 = vmatpush.bf16.msra.mxu0 0
      %4096 = vmatpush.bf16.msra.mxu0 0
      %4097 = vmatpush.bf16.msra.mxu0 0
      %4098 = vmatpush.bf16.msra.mxu0 0
      %4099 = vmatpush.bf16.msra.mxu0 0
      %4100 = vmatpush.bf16.msra.mxu0 %v4093
      %4101 = vmatpush.bf16.msra.mxu0 %v4038
      %4102 = vmatpush.bf16.msra.mxu0 %v4037
      %4103 = vmatmul.bf16.gmra.mxu0 %v4044
      %v4104 = vpop.f32.mrf.mxu0
      %v4105 = vadd.f32 %v3945, %v4104
      %v4106 = vpop.f32.mrf.mxu0
      %v4107 = vadd.f32 %v3945, %v4106
      %4108 = vmatmul.bf16.gmra.mxu0 %v4047
      %v4109 = vpop.f32.mrf.mxu0
      %v4110 = vadd.f32 %v3945, %v4109
      %v4111 = vpop.f32.mrf.mxu0
      %v4112 = vadd.f32 %v3945, %v4111
      %4113 = vmatmul.bf16.gmra.mxu0 %v4050
      %v4114 = vpop.f32.mrf.mxu0
      %v4115 = vadd.f32 %v3945, %v4114
      %v4116 = vpop.f32.mrf.mxu0
      %v4117 = vadd.f32 %v3945, %v4116
      %4118 = vmatmul.bf16.gmra.mxu0 %v4053
      %v4119 = vpop.f32.mrf.mxu0
      %v4120 = vadd.f32 %v3945, %v4119
      %v4121 = vpop.f32.mrf.mxu0
      %v4122 = vadd.f32 %v3945, %v4121
      %4123 = vmatmul.bf16.gmra.mxu0 %v4056
      %v4124 = vpop.f32.mrf.mxu0
      %v4125 = vadd.f32 %v3945, %v4124
      %v4126 = vpop.f32.mrf.mxu0
      %v4127 = vadd.f32 %v3945, %v4126
      %4128 = vmatmul.bf16.gmra.mxu0 %v4059
      %v4129 = vpop.f32.mrf.mxu0
      %v4130 = vadd.f32 %v3945, %v4129
      %v4131 = vpop.f32.mrf.mxu0
      %v4132 = vadd.f32 %v3945, %v4131
      %4133 = vmatmul.bf16.gmra.mxu0 %v4062
      %v4134 = vpop.f32.mrf.mxu0
      %v4135 = vadd.f32 %v3945, %v4134
      %v4136 = vpop.f32.mrf.mxu0
      %v4137 = vadd.f32 %v3945, %v4136
      %4138 = vmatmul.bf16.gmra.mxu0 %v4065
      %v4139 = vpop.f32.mrf.mxu0
      %v4140 = vadd.f32 %v3945, %v4139
      %v4141 = vpop.f32.mrf.mxu0
      %v4142 = vadd.f32 %v3945, %v4141
      %4143 = vmatmul.bf16.gmra.mxu0 %v4068
      %v4144 = vpop.f32.mrf.mxu0
      %v4145 = vadd.f32 %v3945, %v4144
      %v4146 = vpop.f32.mrf.mxu0
      %v4147 = vadd.f32 %v3945, %v4146
      %4148 = vmatmul.bf16.gmra.mxu0 %v4071
      %v4149 = vpop.f32.mrf.mxu0
      %v4150 = vadd.f32 %v3945, %v4149
      %v4151 = vpop.f32.mrf.mxu0
      %v4152 = vadd.f32 %v3945, %v4151
      %4153 = vmatmul.bf16.gmra.mxu0 %v4074
      %v4154 = vpop.f32.mrf.mxu0
      %v4155 = vadd.f32 %v3945, %v4154
      %v4156 = vpop.f32.mrf.mxu0
      %v4157 = vadd.f32 %v3945, %v4156
      %4158 = vmatmul.bf16.gmra.mxu0 %v4077
      %v4159 = vpop.f32.mrf.mxu0
      %v4160 = vadd.f32 %v3945, %v4159
      %v4161 = vpop.f32.mrf.mxu0
      %v4162 = vadd.f32 %v3945, %v4161
      %4163 = vmatmul.bf16.gmra.mxu0 %v4080
      %v4164 = vpop.f32.mrf.mxu0
      %v4165 = vadd.f32 %v3945, %v4164
      %v4166 = vpop.f32.mrf.mxu0
      %v4167 = vadd.f32 %v3945, %v4166
      %4168 = vmatmul.bf16.gmra.mxu0 %v4083
      %v4169 = vpop.f32.mrf.mxu0
      %v4170 = vadd.f32 %v3945, %v4169
      %v4171 = vpop.f32.mrf.mxu0
      %v4172 = vadd.f32 %v3945, %v4171
      %4173 = vmatmul.bf16.gmra.mxu0 %v4086
      %v4174 = vpop.f32.mrf.mxu0
      %v4175 = vadd.f32 %v3945, %v4174
      %v4176 = vpop.f32.mrf.mxu0
      %v4177 = vadd.f32 %v3945, %v4176
      %4178 = vmatmul.bf16.gmra.mxu0 %v4089
      %v4179 = vpop.f32.mrf.mxu0
      %v4180 = vadd.f32 %v3945, %v4179
      %v4181 = vpop.f32.mrf.mxu0
      %v4182 = vadd.f32 %v3945, %v4181
      %4183 = vdwg.mxu0
      %v4184 = vmax.f32 %v4105, 0.0
      %v4185 = vmax.f32 %v4107, 0.0
      %v4186 = vmax.f32 %v4110, 0.0
      %v4187 = vmax.f32 %v4112, 0.0
      %v4188 = vmax.f32 %v4115, 0.0
      %v4189 = vmax.f32 %v4117, 0.0
      %v4190 = vmax.f32 %v4120, 0.0
      %v4191 = vmax.f32 %v4122, 0.0
      %v4192 = vmax.f32 %v4125, 0.0
      %v4193 = vmax.f32 %v4127, 0.0
      %v4194 = vmax.f32 %v4130, 0.0
      %v4195 = vmax.f32 %v4132, 0.0
      %v4196 = vmax.f32 %v4135, 0.0
      %v4197 = vmax.f32 %v4137, 0.0
      %v4198 = vmax.f32 %v4140, 0.0
      %v4199 = vmax.f32 %v4142, 0.0
      %v4200 = vmax.f32 %v4145, 0.0
      %v4201 = vmax.f32 %v4147, 0.0
      %v4202 = vmax.f32 %v4150, 0.0
      %v4203 = vmax.f32 %v4152, 0.0
      %v4204 = vmax.f32 %v4155, 0.0
      %v4205 = vmax.f32 %v4157, 0.0
      %v4206 = vmax.f32 %v4160, 0.0
      %v4207 = vmax.f32 %v4162, 0.0
      %v4208 = vmax.f32 %v4165, 0.0
      %v4209 = vmax.f32 %v4167, 0.0
      %v4210 = vmax.f32 %v4170, 0.0
      %v4211 = vmax.f32 %v4172, 0.0
      %v4212 = vmax.f32 %v4175, 0.0
      %v4213 = vmax.f32 %v4177, 0.0
      %v4214 = vmax.f32 %v4180, 0.0
      %v4215 = vmax.f32 %v4182, 0.0
      %vm4216 = vcmask 60416
      %4217 = vst.msk [vmem:[#allocation4] sm:$0xf] %vm4216, 0
      %4218 = vst.msk [vmem:[#allocation4 + $0x4] sm:$0xf] %vm4216, 0
      %vm4219 = vcmask 57344
      %4220 = vst.msk [vmem:[#allocation4 + $0x8] sm:$0x1] %vm4219, 0
      %4221 = vst.msk [vmem:[#allocation4 + $0xc] sm:$0xf] %vm4216, 0
      %4222 = vst.msk [vmem:[#allocation4 + $0x10] sm:$0xf] %vm4216, 0
      %4223 = vst.msk [vmem:[#allocation4 + $0x14] sm:$0x1] %vm4219, 0
      %4224 = vst.msk [vmem:[#allocation4 + $0x18] sm:$0xf] %vm4216, 0
      %4225 = vst.msk [vmem:[#allocation4 + $0x1c] sm:$0xf] %vm4216, 0
      %4226 = vst.msk [vmem:[#allocation4 + $0x20] sm:$0x1] %vm4219, 0
      %4227 = vst.msk [vmem:[#allocation4 + $0x24] sm:$0xf] %vm4216, 0
      %4228 = vst.msk [vmem:[#allocation4 + $0x28] sm:$0xf] %vm4216, 0
      %4229 = vst.msk [vmem:[#allocation4 + $0x2c] sm:$0x1] %vm4219, 0
      %4230 = vst.msk [vmem:[#allocation4 + $0x30] sm:$0xf] %vm4216, 0
      %4231 = vst.msk [vmem:[#allocation4 + $0x34] sm:$0xf] %vm4216, 0
      %4232 = vst.msk [vmem:[#allocation4 + $0x38] sm:$0x1] %vm4219, 0
      %4233 = vst.msk [vmem:[#allocation4 + $0x3c] sm:$0xf] %vm4216, 0
      %4234 = vst.msk [vmem:[#allocation4 + $0x40] sm:$0xf] %vm4216, 0
      %4235 = vst.msk [vmem:[#allocation4 + $0x44] sm:$0x1] %vm4219, 0
      %4236 = vst.msk [vmem:[#allocation4 + $0x48] sm:$0xf] %vm4216, 0
      %4237 = vst.msk [vmem:[#allocation4 + $0x4c] sm:$0xf] %vm4216, 0
      %4238 = vst.msk [vmem:[#allocation4 + $0x50] sm:$0x1] %vm4219, 0
      %4239 = vst.msk [vmem:[#allocation4 + $0x54] sm:$0xf] %vm4216, 0
      %4240 = vst.msk [vmem:[#allocation4 + $0x58] sm:$0xf] %vm4216, 0
      %4241 = vst.msk [vmem:[#allocation4 + $0x5c] sm:$0x1] %vm4219, 0
      %4242 = vst.msk [vmem:[#allocation4 + $0x60] sm:$0xf] %vm4216, 0
      %4243 = vst.msk [vmem:[#allocation4 + $0x64] sm:$0xf] %vm4216, 0
      %4244 = vst.msk [vmem:[#allocation4 + $0x68] sm:$0x1] %vm4219, 0
      %4245 = vst.msk [vmem:[#allocation4 + $0x6c] sm:$0xf] %vm4216, 0
      %4246 = vst.msk [vmem:[#allocation4 + $0x70] sm:$0xf] %vm4216, 0
      %4247 = vst.msk [vmem:[#allocation4 + $0x74] sm:$0x1] %vm4219, 0
      %4248 = vst.msk [vmem:[#allocation4 + $0x78] sm:$0xf] %vm4216, 0
      %4249 = vst.msk [vmem:[#allocation4 + $0x7c] sm:$0xf] %vm4216, 0
      %4250 = vst.msk [vmem:[#allocation4 + $0x80] sm:$0x1] %vm4219, 0
      %4251 = vst.msk [vmem:[#allocation4 + $0x84] sm:$0xf] %vm4216, 0
      %4252 = vst.msk [vmem:[#allocation4 + $0x88] sm:$0xf] %vm4216, 0
      %4253 = vst.msk [vmem:[#allocation4 + $0x8c] sm:$0x1] %vm4219, 0
      %4254 = vst.msk [vmem:[#allocation4 + $0x90] sm:$0xf] %vm4216, 0
      %4255 = vst.msk [vmem:[#allocation4 + $0x94] sm:$0xf] %vm4216, 0
      %4256 = vst.msk [vmem:[#allocation4 + $0x98] sm:$0x1] %vm4219, 0
      %4257 = vst.msk [vmem:[#allocation4 + $0x9c] sm:$0xf] %vm4216, 0
      %4258 = vst.msk [vmem:[#allocation4 + $0xa0] sm:$0xf] %vm4216, 0
      %4259 = vst.msk [vmem:[#allocation4 + $0xa4] sm:$0x1] %vm4219, 0
      %4260 = vst.msk [vmem:[#allocation4 + $0xa8] sm:$0xf] %vm4216, 0
      %4261 = vst.msk [vmem:[#allocation4 + $0xac] sm:$0xf] %vm4216, 0
      %4262 = vst.msk [vmem:[#allocation4 + $0xb0] sm:$0x1] %vm4219, 0
      %4263 = vst.msk [vmem:[#allocation4 + $0xb4] sm:$0xf] %vm4216, 0
      %4264 = vst.msk [vmem:[#allocation4 + $0xb8] sm:$0xf] %vm4216, 0
      %4265 = vst.msk [vmem:[#allocation4 + $0xbc] sm:$0x1] %vm4219, 0
      %4266 = vst.msk [vmem:[#allocation4 + $0xc0] sm:$0xf] %vm4216, 0
      %4267 = vst.msk [vmem:[#allocation4 + $0xc4] sm:$0xf] %vm4216, 0
      %4268 = vst.msk [vmem:[#allocation4 + $0xc8] sm:$0x1] %vm4219, 0
      %4269 = vst.msk [vmem:[#allocation4 + $0xcc] sm:$0xf] %vm4216, 0
      %4270 = vst.msk [vmem:[#allocation4 + $0xd0] sm:$0xf] %vm4216, 0
      %4271 = vst.msk [vmem:[#allocation4 + $0xd4] sm:$0x1] %vm4219, 0
      %v4272 = vpack.c.bf16 %v4184, %v4184
      %v4273 = vpack.c.bf16 %v4185, %v4185
      %v4274 = vpack.c.bf16 %v4186, %v4186
      %v4275 = vpack.c.bf16 %v4187, %v4187
      %v4276 = vpack.c.bf16 %v4188, %v4188
      %v4277 = vpack.c.bf16 %v4189, %v4189
      %v4278 = vpack.c.bf16 %v4190, %v4190
      %v4279 = vpack.c.bf16 %v4191, %v4191
      %v4280 = vpack.c.bf16 %v4192, %v4192
      %v4281 = vpack.c.bf16 %v4193, %v4193
      %v4282 = vpack.c.bf16 %v4194, %v4194
      %v4283 = vpack.c.bf16 %v4195, %v4195
      %v4284 = vpack.c.bf16 %v4196, %v4196
      %v4285 = vpack.c.bf16 %v4197, %v4197
      %v4286 = vpack.c.bf16 %v4198, %v4198
      %v4287 = vpack.c.bf16 %v4199, %v4199
      %v4288 = vpack.c.bf16 %v4200, %v4200
      %v4289 = vpack.c.bf16 %v4201, %v4201
      %v4290 = vpack.c.bf16 %v4202, %v4202
      %v4291 = vpack.c.bf16 %v4203, %v4203
      %v4292 = vpack.c.bf16 %v4204, %v4204
      %v4293 = vpack.c.bf16 %v4205, %v4205
      %v4294 = vpack.c.bf16 %v4206, %v4206
      %v4295 = vpack.c.bf16 %v4207, %v4207
      %v4296 = vpack.c.bf16 %v4208, %v4208
      %v4297 = vpack.c.bf16 %v4209, %v4209
      %v4298 = vpack.c.bf16 %v4210, %v4210
      %v4299 = vpack.c.bf16 %v4211, %v4211
      %v4300 = vpack.c.bf16 %v4212, %v4212
      %v4301 = vpack.c.bf16 %v4213, %v4213
      %v4302 = vpack.c.bf16 %v4214, %v4214
      %v4303 = vpack.c.bf16 %v4215, %v4215
      %v4305 = vshrl.u32 %v4272, 16
      %v4307 = vrot.slane %v4305, 7
      %v4308 = vshll.u32 %v4272, 16
      %v4310 = vor.u32 %v4307, %v4308
      %v4311 = vrot.slane %v4307, 4
      %v4313 = vshrl.u32 %v4273, 16
      %v4315 = vrot.slane %v4313, 7
      %v4316 = vshll.u32 %v4273, 16
      %v4318 = vor.u32 %v4315, %v4316
      %v4319 = vsel %vm316, %v4311, %v4318
      %v4320 = vrot.slane %v4315, 4
      %v4322 = vshrl.u32 %v4274, 16
      %v4324 = vrot.slane %v4322, 7
      %v4325 = vshll.u32 %v4274, 16
      %v4327 = vor.u32 %v4324, %v4325
      %v4328 = vrot.slane %v4324, 4
      %v4330 = vshrl.u32 %v4275, 16
      %v4332 = vrot.slane %v4330, 7
      %v4333 = vshll.u32 %v4275, 16
      %v4335 = vor.u32 %v4332, %v4333
      %v4336 = vsel %vm316, %v4328, %v4335
      %v4337 = vrot.slane %v4332, 4
      %v4339 = vshrl.u32 %v4276, 16
      %v4341 = vrot.slane %v4339, 7
      %v4342 = vshll.u32 %v4276, 16
      %v4344 = vor.u32 %v4341, %v4342
      %v4345 = vrot.slane %v4341, 4
      %v4347 = vshrl.u32 %v4277, 16
      %v4349 = vrot.slane %v4347, 7
      %v4350 = vshll.u32 %v4277, 16
      %v4352 = vor.u32 %v4349, %v4350
      %v4353 = vsel %vm316, %v4345, %v4352
      %v4354 = vrot.slane %v4349, 4
      %v4356 = vshrl.u32 %v4278, 16
      %v4358 = vrot.slane %v4356, 7
      %v4359 = vshll.u32 %v4278, 16
      %v4361 = vor.u32 %v4358, %v4359
      %v4362 = vrot.slane %v4358, 4
      %v4364 = vshrl.u32 %v4279, 16
      %v4366 = vrot.slane %v4364, 7
      %v4367 = vshll.u32 %v4279, 16
      %v4369 = vor.u32 %v4366, %v4367
      %v4370 = vsel %vm316, %v4362, %v4369
      %v4371 = vrot.slane %v4366, 4
      %v4373 = vshrl.u32 %v4280, 16
      %v4375 = vrot.slane %v4373, 7
      %v4376 = vshll.u32 %v4280, 16
      %v4378 = vor.u32 %v4375, %v4376
      %v4379 = vrot.slane %v4375, 4
      %v4381 = vshrl.u32 %v4281, 16
      %v4383 = vrot.slane %v4381, 7
      %v4384 = vshll.u32 %v4281, 16
      %v4386 = vor.u32 %v4383, %v4384
      %v4387 = vsel %vm316, %v4379, %v4386
      %v4388 = vrot.slane %v4383, 4
      %v4390 = vshrl.u32 %v4282, 16
      %v4392 = vrot.slane %v4390, 7
      %v4393 = vshll.u32 %v4282, 16
      %v4395 = vor.u32 %v4392, %v4393
      %v4396 = vrot.slane %v4392, 4
      %v4398 = vshrl.u32 %v4283, 16
      %v4400 = vrot.slane %v4398, 7
      %v4401 = vshll.u32 %v4283, 16
      %v4403 = vor.u32 %v4400, %v4401
      %v4404 = vsel %vm316, %v4396, %v4403
      %v4405 = vrot.slane %v4400, 4
      %v4407 = vshrl.u32 %v4284, 16
      %v4409 = vrot.slane %v4407, 7
      %v4410 = vshll.u32 %v4284, 16
      %v4412 = vor.u32 %v4409, %v4410
      %v4413 = vrot.slane %v4409, 4
      %v4415 = vshrl.u32 %v4285, 16
      %v4417 = vrot.slane %v4415, 7
      %v4418 = vshll.u32 %v4285, 16
      %v4420 = vor.u32 %v4417, %v4418
      %v4421 = vsel %vm316, %v4413, %v4420
      %v4422 = vrot.slane %v4417, 4
      %v4424 = vshrl.u32 %v4286, 16
      %v4426 = vrot.slane %v4424, 7
      %v4427 = vshll.u32 %v4286, 16
      %v4429 = vor.u32 %v4426, %v4427
      %v4430 = vrot.slane %v4426, 4
      %v4432 = vshrl.u32 %v4287, 16
      %v4434 = vrot.slane %v4432, 7
      %v4435 = vshll.u32 %v4287, 16
      %v4437 = vor.u32 %v4434, %v4435
      %v4438 = vsel %vm316, %v4430, %v4437
      %v4439 = vrot.slane %v4434, 4
      %v4441 = vshrl.u32 %v4288, 16
      %v4443 = vrot.slane %v4441, 7
      %v4444 = vshll.u32 %v4288, 16
      %v4446 = vor.u32 %v4443, %v4444
      %v4447 = vrot.slane %v4443, 4
      %v4449 = vshrl.u32 %v4289, 16
      %v4451 = vrot.slane %v4449, 7
      %v4452 = vshll.u32 %v4289, 16
      %v4454 = vor.u32 %v4451, %v4452
      %v4455 = vsel %vm316, %v4447, %v4454
      %v4456 = vrot.slane %v4451, 4
      %v4458 = vshrl.u32 %v4290, 16
      %v4460 = vrot.slane %v4458, 7
      %v4461 = vshll.u32 %v4290, 16
      %v4463 = vor.u32 %v4460, %v4461
      %v4464 = vrot.slane %v4460, 4
      %v4466 = vshrl.u32 %v4291, 16
      %v4468 = vrot.slane %v4466, 7
      %v4469 = vshll.u32 %v4291, 16
      %v4471 = vor.u32 %v4468, %v4469
      %v4472 = vsel %vm316, %v4464, %v4471
      %v4473 = vrot.slane %v4468, 4
      %v4475 = vshrl.u32 %v4292, 16
      %v4477 = vrot.slane %v4475, 7
      %v4478 = vshll.u32 %v4292, 16
      %v4480 = vor.u32 %v4477, %v4478
      %v4481 = vrot.slane %v4477, 4
      %v4483 = vshrl.u32 %v4293, 16
      %v4485 = vrot.slane %v4483, 7
      %v4486 = vshll.u32 %v4293, 16
      %v4488 = vor.u32 %v4485, %v4486
      %v4489 = vsel %vm316, %v4481, %v4488
      %v4490 = vrot.slane %v4485, 4
      %v4492 = vshrl.u32 %v4294, 16
      %v4494 = vrot.slane %v4492, 7
      %v4495 = vshll.u32 %v4294, 16
      %v4497 = vor.u32 %v4494, %v4495
      %v4498 = vrot.slane %v4494, 4
      %v4500 = vshrl.u32 %v4295, 16
      %v4502 = vrot.slane %v4500, 7
      %v4503 = vshll.u32 %v4295, 16
      %v4505 = vor.u32 %v4502, %v4503
      %v4506 = vsel %vm316, %v4498, %v4505
      %v4507 = vrot.slane %v4502, 4
      %v4509 = vshrl.u32 %v4296, 16
      %v4511 = vrot.slane %v4509, 7
      %v4512 = vshll.u32 %v4296, 16
      %v4514 = vor.u32 %v4511, %v4512
      %v4515 = vrot.slane %v4511, 4
      %v4517 = vshrl.u32 %v4297, 16
      %v4519 = vrot.slane %v4517, 7
      %v4520 = vshll.u32 %v4297, 16
      %v4522 = vor.u32 %v4519, %v4520
      %v4523 = vsel %vm316, %v4515, %v4522
      %v4524 = vrot.slane %v4519, 4
      %v4526 = vshrl.u32 %v4298, 16
      %v4528 = vrot.slane %v4526, 7
      %v4529 = vshll.u32 %v4298, 16
      %v4531 = vor.u32 %v4528, %v4529
      %v4532 = vrot.slane %v4528, 4
      %v4534 = vshrl.u32 %v4299, 16
      %v4536 = vrot.slane %v4534, 7
      %v4537 = vshll.u32 %v4299, 16
      %v4539 = vor.u32 %v4536, %v4537
      %v4540 = vsel %vm316, %v4532, %v4539
      %v4541 = vrot.slane %v4536, 4
      %v4543 = vshrl.u32 %v4300, 16
      %v4545 = vrot.slane %v4543, 7
      %v4546 = vshll.u32 %v4300, 16
      %v4548 = vor.u32 %v4545, %v4546
      %v4549 = vrot.slane %v4545, 4
      %v4551 = vshrl.u32 %v4301, 16
      %v4553 = vrot.slane %v4551, 7
      %v4554 = vshll.u32 %v4301, 16
      %v4556 = vor.u32 %v4553, %v4554
      %v4557 = vsel %vm316, %v4549, %v4556
      %v4558 = vrot.slane %v4553, 4
      %v4560 = vshrl.u32 %v4302, 16
      %v4562 = vrot.slane %v4560, 7
      %v4563 = vshll.u32 %v4302, 16
      %v4565 = vor.u32 %v4562, %v4563
      %v4566 = vrot.slane %v4562, 4
      %v4568 = vshrl.u32 %v4303, 16
      %v4570 = vrot.slane %v4568, 7
      %v4571 = vshll.u32 %v4303, 16
      %v4573 = vor.u32 %v4570, %v4571
      %v4574 = vsel %vm316, %v4566, %v4573
      %v4575 = vrot.slane %v4570, 4
      %s4624 = scalar_lea.vmem [#allocation4], 12
      %vm4625 = vcmask 60416
      %vm4626 = vmand %vm4625, %vm639
      %v4627 = vld [vmem:[%s4624] sm:$0xf]
      %v4628 = vsel %vm4626, %v4310, %v4627
      %4629 = vst [vmem:[%s4624] sm:$0xf] %v4628
      %4630 = vst.msk [vmem:[%s4624 + $0x4] sm:$0xf] %vm4216, %v4319
      %vm4631 = vcmask 57344
      %vm4632 = vmand %vm4631, %vm314
      %v4633 = vld [vmem:[%s4624 + $0x8] sm:$0x1]
      %v4634 = vsel %vm4632, %v4320, %v4633
      %4635 = vst [vmem:[%s4624 + $0x8] sm:$0x1] %v4634
      %v4636 = vld [vmem:[%s4624 + $0xc] sm:$0xf]
      %v4637 = vsel %vm4626, %v4327, %v4636
      %4638 = vst [vmem:[%s4624 + $0xc] sm:$0xf] %v4637
      %4639 = vst.msk [vmem:[%s4624 + $0x10] sm:$0xf] %vm4216, %v4336
      %v4640 = vld [vmem:[%s4624 + $0x14] sm:$0x1]
      %v4641 = vsel %vm4632, %v4337, %v4640
      %4642 = vst [vmem:[%s4624 + $0x14] sm:$0x1] %v4641
      %v4643 = vld [vmem:[%s4624 + $0x18] sm:$0xf]
      %v4644 = vsel %vm4626, %v4344, %v4643
      %4645 = vst [vmem:[%s4624 + $0x18] sm:$0xf] %v4644
      %4646 = vst.msk [vmem:[%s4624 + $0x1c] sm:$0xf] %vm4216, %v4353
      %v4647 = vld [vmem:[%s4624 + $0x20] sm:$0x1]
      %v4648 = vsel %vm4632, %v4354, %v4647
      %4649 = vst [vmem:[%s4624 + $0x20] sm:$0x1] %v4648
      %v4650 = vld [vmem:[%s4624 + $0x24] sm:$0xf]
      %v4651 = vsel %vm4626, %v4361, %v4650
      %4652 = vst [vmem:[%s4624 + $0x24] sm:$0xf] %v4651
      %4653 = vst.msk [vmem:[%s4624 + $0x28] sm:$0xf] %vm4216, %v4370
      %v4654 = vld [vmem:[%s4624 + $0x2c] sm:$0x1]
      %v4655 = vsel %vm4632, %v4371, %v4654
      %4656 = vst [vmem:[%s4624 + $0x2c] sm:$0x1] %v4655
      %v4657 = vld [vmem:[%s4624 + $0x30] sm:$0xf]
      %v4658 = vsel %vm4626, %v4378, %v4657
      %4659 = vst [vmem:[%s4624 + $0x30] sm:$0xf] %v4658
      %4660 = vst.msk [vmem:[%s4624 + $0x34] sm:$0xf] %vm4216, %v4387
      %v4661 = vld [vmem:[%s4624 + $0x38] sm:$0x1]
      %v4662 = vsel %vm4632, %v4388, %v4661
      %4663 = vst [vmem:[%s4624 + $0x38] sm:$0x1] %v4662
      %v4664 = vld [vmem:[%s4624 + $0x3c] sm:$0xf]
      %v4665 = vsel %vm4626, %v4395, %v4664
      %4666 = vst [vmem:[%s4624 + $0x3c] sm:$0xf] %v4665
      %4667 = vst.msk [vmem:[%s4624 + $0x40] sm:$0xf] %vm4216, %v4404
      %v4668 = vld [vmem:[%s4624 + $0x44] sm:$0x1]
      %v4669 = vsel %vm4632, %v4405, %v4668
      %4670 = vst [vmem:[%s4624 + $0x44] sm:$0x1] %v4669
      %v4671 = vld [vmem:[%s4624 + $0x48] sm:$0xf]
      %v4672 = vsel %vm4626, %v4412, %v4671
      %4673 = vst [vmem:[%s4624 + $0x48] sm:$0xf] %v4672
      %4674 = vst.msk [vmem:[%s4624 + $0x4c] sm:$0xf] %vm4216, %v4421
      %v4675 = vld [vmem:[%s4624 + $0x50] sm:$0x1]
      %v4676 = vsel %vm4632, %v4422, %v4675
      %4677 = vst [vmem:[%s4624 + $0x50] sm:$0x1] %v4676
      %v4678 = vld [vmem:[%s4624 + $0x54] sm:$0xf]
      %v4679 = vsel %vm4626, %v4429, %v4678
      %4680 = vst [vmem:[%s4624 + $0x54] sm:$0xf] %v4679
      %4681 = vst.msk [vmem:[%s4624 + $0x58] sm:$0xf] %vm4216, %v4438
      %v4682 = vld [vmem:[%s4624 + $0x5c] sm:$0x1]
      %v4683 = vsel %vm4632, %v4439, %v4682
      %4684 = vst [vmem:[%s4624 + $0x5c] sm:$0x1] %v4683
      %v4685 = vld [vmem:[%s4624 + $0x60] sm:$0xf]
      %v4686 = vsel %vm4626, %v4446, %v4685
      %4687 = vst [vmem:[%s4624 + $0x60] sm:$0xf] %v4686
      %4688 = vst.msk [vmem:[%s4624 + $0x64] sm:$0xf] %vm4216, %v4455
      %v4689 = vld [vmem:[%s4624 + $0x68] sm:$0x1]
      %v4690 = vsel %vm4632, %v4456, %v4689
      %4691 = vst [vmem:[%s4624 + $0x68] sm:$0x1] %v4690
      %v4692 = vld [vmem:[%s4624 + $0x6c] sm:$0xf]
      %v4693 = vsel %vm4626, %v4463, %v4692
      %4694 = vst [vmem:[%s4624 + $0x6c] sm:$0xf] %v4693
      %4695 = vst.msk [vmem:[%s4624 + $0x70] sm:$0xf] %vm4216, %v4472
      %v4696 = vld [vmem:[%s4624 + $0x74] sm:$0x1]
      %v4697 = vsel %vm4632, %v4473, %v4696
      %4698 = vst [vmem:[%s4624 + $0x74] sm:$0x1] %v4697
      %v4699 = vld [vmem:[%s4624 + $0x78] sm:$0xf]
      %v4700 = vsel %vm4626, %v4480, %v4699
      %4701 = vst [vmem:[%s4624 + $0x78] sm:$0xf] %v4700
      %4702 = vst.msk [vmem:[%s4624 + $0x7c] sm:$0xf] %vm4216, %v4489
      %v4703 = vld [vmem:[%s4624 + $0x80] sm:$0x1]
      %v4704 = vsel %vm4632, %v4490, %v4703
      %4705 = vst [vmem:[%s4624 + $0x80] sm:$0x1] %v4704
      %v4706 = vld [vmem:[%s4624 + $0x84] sm:$0xf]
      %v4707 = vsel %vm4626, %v4497, %v4706
      %4708 = vst [vmem:[%s4624 + $0x84] sm:$0xf] %v4707
      %4709 = vst.msk [vmem:[%s4624 + $0x88] sm:$0xf] %vm4216, %v4506
      %v4710 = vld [vmem:[%s4624 + $0x8c] sm:$0x1]
      %v4711 = vsel %vm4632, %v4507, %v4710
      %4712 = vst [vmem:[%s4624 + $0x8c] sm:$0x1] %v4711
      %v4713 = vld [vmem:[%s4624 + $0x90] sm:$0xf]
      %v4714 = vsel %vm4626, %v4514, %v4713
      %4715 = vst [vmem:[%s4624 + $0x90] sm:$0xf] %v4714
      %4716 = vst.msk [vmem:[%s4624 + $0x94] sm:$0xf] %vm4216, %v4523
      %v4717 = vld [vmem:[%s4624 + $0x98] sm:$0x1]
      %v4718 = vsel %vm4632, %v4524, %v4717
      %4719 = vst [vmem:[%s4624 + $0x98] sm:$0x1] %v4718
      %v4720 = vld [vmem:[%s4624 + $0x9c] sm:$0xf]
      %v4721 = vsel %vm4626, %v4531, %v4720
      %4722 = vst [vmem:[%s4624 + $0x9c] sm:$0xf] %v4721
      %4723 = vst.msk [vmem:[%s4624 + $0xa0] sm:$0xf] %vm4216, %v4540
      %v4724 = vld [vmem:[%s4624 + $0xa4] sm:$0x1]
      %v4725 = vsel %vm4632, %v4541, %v4724
      %4726 = vst [vmem:[%s4624 + $0xa4] sm:$0x1] %v4725
      %v4727 = vld [vmem:[%s4624 + $0xa8] sm:$0xf]
      %v4728 = vsel %vm4626, %v4548, %v4727
      %4729 = vst [vmem:[%s4624 + $0xa8] sm:$0xf] %v4728
      %4730 = vst.msk [vmem:[%s4624 + $0xac] sm:$0xf] %vm4216, %v4557
      %v4731 = vld [vmem:[%s4624 + $0xb0] sm:$0x1]
      %v4732 = vsel %vm4632, %v4558, %v4731
      %4733 = vst [vmem:[%s4624 + $0xb0] sm:$0x1] %v4732
      %v4734 = vld [vmem:[%s4624 + $0xb4] sm:$0xf]
      %v4735 = vsel %vm4626, %v4565, %v4734
      %4736 = vst [vmem:[%s4624 + $0xb4] sm:$0xf] %v4735
      %4737 = vst.msk [vmem:[%s4624 + $0xb8] sm:$0xf] %vm4216, %v4574
      %v4738 = vld [vmem:[%s4624 + $0xbc] sm:$0x1]
      %v4739 = vsel %vm4632, %v4575, %v4738
      %4740 = vst [vmem:[%s4624 + $0xbc] sm:$0x1] %v4739
      %v4741 = vld [vmem:[#allocation4] sm:$0xf]
      %v4742 = vld [vmem:[#allocation4 + $0x4] sm:$0xf]
      %v4743 = vld [vmem:[#allocation4 + $0xc] sm:$0xf]
      %v4744 = vld [vmem:[#allocation4 + $0x10] sm:$0xf]
      %v4745 = vld [vmem:[#allocation4 + $0x18] sm:$0xf]
      %v4746 = vld [vmem:[#allocation4 + $0x1c] sm:$0xf]
      %v4747 = vld [vmem:[#allocation4 + $0x24] sm:$0xf]
      %v4748 = vld [vmem:[#allocation4 + $0x28] sm:$0xf]
      %v4749 = vld [vmem:[#allocation4 + $0x30] sm:$0xf]
      %v4750 = vld [vmem:[#allocation4 + $0x34] sm:$0xf]
      %v4751 = vld [vmem:[#allocation4 + $0x3c] sm:$0xf]
      %v4752 = vld [vmem:[#allocation4 + $0x40] sm:$0xf]
      %v4753 = vld [vmem:[#allocation4 + $0x48] sm:$0xf]
      %v4754 = vld [vmem:[#allocation4 + $0x4c] sm:$0xf]
      %v4755 = vld [vmem:[#allocation4 + $0x54] sm:$0xf]
      %v4756 = vld [vmem:[#allocation4 + $0x58] sm:$0xf]
      %v4757 = vld [vmem:[#allocation4 + $0x60] sm:$0xf]
      %v4758 = vld [vmem:[#allocation4 + $0x64] sm:$0xf]
      %v4759 = vld [vmem:[#allocation4 + $0x6c] sm:$0xf]
      %v4760 = vld [vmem:[#allocation4 + $0x70] sm:$0xf]
      %v4761 = vld [vmem:[#allocation4 + $0x78] sm:$0xf]
      %v4762 = vld [vmem:[#allocation4 + $0x7c] sm:$0xf]
      %v4763 = vld [vmem:[#allocation4 + $0x84] sm:$0xf]
      %v4764 = vld [vmem:[#allocation4 + $0x88] sm:$0xf]
      %v4765 = vld [vmem:[#allocation4 + $0x90] sm:$0xf]
      %v4766 = vld [vmem:[#allocation4 + $0x94] sm:$0xf]
      %v4767 = vld [vmem:[#allocation4 + $0x9c] sm:$0xf]
      %v4768 = vld [vmem:[#allocation4 + $0xa0] sm:$0xf]
      %v4769 = vld [vmem:[#allocation4 + $0xa8] sm:$0xf]
      %v4770 = vld [vmem:[#allocation4 + $0xac] sm:$0xf]
      %v4771 = vld [vmem:[#allocation4 + $0xb4] sm:$0xf]
      %v4772 = vld [vmem:[#allocation4 + $0xb8] sm:$0xf]
      %4773 = vst.msk [vmem:[#allocation5] sm:$0xf] %vm4216, %v4741
      %4774 = vst.msk [vmem:[#allocation5 + $0x4] sm:$0xf] %vm4216, %v4742
      %4775 = vst.msk [vmem:[#allocation5 + $0x8] sm:$0xf] %vm4216, %v4743
      %4776 = vst.msk [vmem:[#allocation5 + $0xc] sm:$0xf] %vm4216, %v4744
      %4777 = vst.msk [vmem:[#allocation5 + $0x10] sm:$0xf] %vm4216, %v4745
      %4778 = vst.msk [vmem:[#allocation5 + $0x14] sm:$0xf] %vm4216, %v4746
      %4779 = vst.msk [vmem:[#allocation5 + $0x18] sm:$0xf] %vm4216, %v4747
      %4780 = vst.msk [vmem:[#allocation5 + $0x1c] sm:$0xf] %vm4216, %v4748
      %4781 = vst.msk [vmem:[#allocation5 + $0x20] sm:$0xf] %vm4216, %v4749
      %4782 = vst.msk [vmem:[#allocation5 + $0x24] sm:$0xf] %vm4216, %v4750
      %4783 = vst.msk [vmem:[#allocation5 + $0x28] sm:$0xf] %vm4216, %v4751
      %4784 = vst.msk [vmem:[#allocation5 + $0x2c] sm:$0xf] %vm4216, %v4752
      %4785 = vst.msk [vmem:[#allocation5 + $0x30] sm:$0xf] %vm4216, %v4753
      %4786 = vst.msk [vmem:[#allocation5 + $0x34] sm:$0xf] %vm4216, %v4754
      %4787 = vst.msk [vmem:[#allocation5 + $0x38] sm:$0xf] %vm4216, %v4755
      %4788 = vst.msk [vmem:[#allocation5 + $0x3c] sm:$0xf] %vm4216, %v4756
      %4789 = vst.msk [vmem:[#allocation5 + $0x40] sm:$0xf] %vm4216, %v4757
      %4790 = vst.msk [vmem:[#allocation5 + $0x44] sm:$0xf] %vm4216, %v4758
      %4791 = vst.msk [vmem:[#allocation5 + $0x48] sm:$0xf] %vm4216, %v4759
      %4792 = vst.msk [vmem:[#allocation5 + $0x4c] sm:$0xf] %vm4216, %v4760
      %4793 = vst.msk [vmem:[#allocation5 + $0x50] sm:$0xf] %vm4216, %v4761
      %4794 = vst.msk [vmem:[#allocation5 + $0x54] sm:$0xf] %vm4216, %v4762
      %4795 = vst.msk [vmem:[#allocation5 + $0x58] sm:$0xf] %vm4216, %v4763
      %4796 = vst.msk [vmem:[#allocation5 + $0x5c] sm:$0xf] %vm4216, %v4764
      %4797 = vst.msk [vmem:[#allocation5 + $0x60] sm:$0xf] %vm4216, %v4765
      %4798 = vst.msk [vmem:[#allocation5 + $0x64] sm:$0xf] %vm4216, %v4766
      %4799 = vst.msk [vmem:[#allocation5 + $0x68] sm:$0xf] %vm4216, %v4767
      %4800 = vst.msk [vmem:[#allocation5 + $0x6c] sm:$0xf] %vm4216, %v4768
      %4801 = vst.msk [vmem:[#allocation5 + $0x70] sm:$0xf] %vm4216, %v4769
      %4802 = vst.msk [vmem:[#allocation5 + $0x74] sm:$0xf] %vm4216, %v4770
      %4803 = vst.msk [vmem:[#allocation5 + $0x78] sm:$0xf] %vm4216, %v4771
      %4804 = vst.msk [vmem:[#allocation5 + $0x7c] sm:$0xf] %vm4216, %v4772
      %v4805 = vld [vmem:[#allocation4] sm:$0xf]
      %v4806 = vld [vmem:[#allocation4 + $0x4] sm:$0xf]
      %v4807 = vld [vmem:[#allocation4 + $0x8] sm:$0x1]
      %v4808 = vld [vmem:[#allocation4 + $0xc] sm:$0xf]
      %v4809 = vld [vmem:[#allocation4 + $0x10] sm:$0xf]
      %v4810 = vld [vmem:[#allocation4 + $0x14] sm:$0x1]
      %v4811 = vld [vmem:[#allocation4 + $0x18] sm:$0xf]
      %v4812 = vld [vmem:[#allocation4 + $0x1c] sm:$0xf]
      %v4813 = vld [vmem:[#allocation4 + $0x20] sm:$0x1]
      %v4814 = vld [vmem:[#allocation4 + $0x24] sm:$0xf]
      %v4815 = vld [vmem:[#allocation4 + $0x28] sm:$0xf]
      %v4816 = vld [vmem:[#allocation4 + $0x2c] sm:$0x1]
      %v4817 = vld [vmem:[#allocation4 + $0x30] sm:$0xf]
      %v4818 = vld [vmem:[#allocation4 + $0x34] sm:$0xf]
      %v4819 = vld [vmem:[#allocation4 + $0x38] sm:$0x1]
      %v4820 = vld [vmem:[#allocation4 + $0x3c] sm:$0xf]
      %v4821 = vld [vmem:[#allocation4 + $0x40] sm:$0xf]
      %v4822 = vld [vmem:[#allocation4 + $0x44] sm:$0x1]
      %v4823 = vld [vmem:[#allocation4 + $0x48] sm:$0xf]
      %v4824 = vld [vmem:[#allocation4 + $0x4c] sm:$0xf]
      %v4825 = vld [vmem:[#allocation4 + $0x50] sm:$0x1]
      %v4826 = vld [vmem:[#allocation4 + $0x54] sm:$0xf]
      %v4827 = vld [vmem:[#allocation4 + $0x58] sm:$0xf]
      %v4828 = vld [vmem:[#allocation4 + $0x5c] sm:$0x1]
      %v4829 = vld [vmem:[#allocation4 + $0x60] sm:$0xf]
      %v4830 = vld [vmem:[#allocation4 + $0x64] sm:$0xf]
      %v4831 = vld [vmem:[#allocation4 + $0x68] sm:$0x1]
      %v4832 = vld [vmem:[#allocation4 + $0x6c] sm:$0xf]
      %v4833 = vld [vmem:[#allocation4 + $0x70] sm:$0xf]
      %v4834 = vld [vmem:[#allocation4 + $0x74] sm:$0x1]
      %v4835 = vld [vmem:[#allocation4 + $0x78] sm:$0xf]
      %v4836 = vld [vmem:[#allocation4 + $0x7c] sm:$0xf]
      %v4837 = vld [vmem:[#allocation4 + $0x80] sm:$0x1]
      %v4838 = vld [vmem:[#allocation4 + $0x84] sm:$0xf]
      %v4839 = vld [vmem:[#allocation4 + $0x88] sm:$0xf]
      %v4840 = vld [vmem:[#allocation4 + $0x8c] sm:$0x1]
      %v4841 = vld [vmem:[#allocation4 + $0x90] sm:$0xf]
      %v4842 = vld [vmem:[#allocation4 + $0x94] sm:$0xf]
      %v4843 = vld [vmem:[#allocation4 + $0x98] sm:$0x1]
      %v4844 = vld [vmem:[#allocation4 + $0x9c] sm:$0xf]
      %v4845 = vld [vmem:[#allocation4 + $0xa0] sm:$0xf]
      %v4846 = vld [vmem:[#allocation4 + $0xa4] sm:$0x1]
      %v4847 = vld [vmem:[#allocation4 + $0xa8] sm:$0xf]
      %v4848 = vld [vmem:[#allocation4 + $0xac] sm:$0xf]
      %v4849 = vld [vmem:[#allocation4 + $0xb0] sm:$0x1]
      %v4850 = vld [vmem:[#allocation4 + $0xb4] sm:$0xf]
      %v4851 = vld [vmem:[#allocation4 + $0xb8] sm:$0xf]
      %v4852 = vld [vmem:[#allocation4 + $0xbc] sm:$0x1]
      %v4854 = vshrl.u32 %v4805, 16
      %v4856 = vrot.slane %v4854, 4
      %v4857 = vshll.u32 %v4805, 16
      %v4859 = vrot.slane %v4857, 5
      %v4860 = vor.u32 %v4856, %v4859
      %v4861 = vrot.slane %v4860, 4
      %v4863 = vshll.u32 %v4806, 16
      %v4865 = vrot.slane %v4863, 5
      %v4866 = vsel %vm869, %v4861, %v4865
      %v4867 = vshrl.u32 %v4806, 16
      %v4869 = vrot.slane %v4867, 4
      %v4870 = vor.u32 %v4869, %v4865
      %v4871 = vrot.slane %v4870, 4
      %v4873 = vshll.u32 %v4807, 16
      %v4875 = vrot.slane %v4873, 5
      %v4876 = vsel %vm869, %v4871, %v4875
      %v4878 = vshrl.u32 %v4808, 16
      %v4880 = vrot.slane %v4878, 4
      %v4881 = vshll.u32 %v4808, 16
      %v4883 = vrot.slane %v4881, 5
      %v4884 = vor.u32 %v4880, %v4883
      %v4885 = vrot.slane %v4884, 4
      %v4887 = vshll.u32 %v4809, 16
      %v4889 = vrot.slane %v4887, 5
      %v4890 = vsel %vm869, %v4885, %v4889
      %v4891 = vshrl.u32 %v4809, 16
      %v4893 = vrot.slane %v4891, 4
      %v4894 = vor.u32 %v4893, %v4889
      %v4895 = vrot.slane %v4894, 4
      %v4897 = vshll.u32 %v4810, 16
      %v4899 = vrot.slane %v4897, 5
      %v4900 = vsel %vm869, %v4895, %v4899
      %v4902 = vshrl.u32 %v4811, 16
      %v4904 = vrot.slane %v4902, 4
      %v4905 = vshll.u32 %v4811, 16
      %v4907 = vrot.slane %v4905, 5
      %v4908 = vor.u32 %v4904, %v4907
      %v4909 = vrot.slane %v4908, 4
      %v4911 = vshll.u32 %v4812, 16
      %v4913 = vrot.slane %v4911, 5
      %v4914 = vsel %vm869, %v4909, %v4913
      %v4915 = vshrl.u32 %v4812, 16
      %v4917 = vrot.slane %v4915, 4
      %v4918 = vor.u32 %v4917, %v4913
      %v4919 = vrot.slane %v4918, 4
      %v4921 = vshll.u32 %v4813, 16
      %v4923 = vrot.slane %v4921, 5
      %v4924 = vsel %vm869, %v4919, %v4923
      %v4926 = vshrl.u32 %v4814, 16
      %v4928 = vrot.slane %v4926, 4
      %v4929 = vshll.u32 %v4814, 16
      %v4931 = vrot.slane %v4929, 5
      %v4932 = vor.u32 %v4928, %v4931
      %v4933 = vrot.slane %v4932, 4
      %v4935 = vshll.u32 %v4815, 16
      %v4937 = vrot.slane %v4935, 5
      %v4938 = vsel %vm869, %v4933, %v4937
      %v4939 = vshrl.u32 %v4815, 16
      %v4941 = vrot.slane %v4939, 4
      %v4942 = vor.u32 %v4941, %v4937
      %v4943 = vrot.slane %v4942, 4
      %v4945 = vshll.u32 %v4816, 16
      %v4947 = vrot.slane %v4945, 5
      %v4948 = vsel %vm869, %v4943, %v4947
      %v4950 = vshrl.u32 %v4817, 16
      %v4952 = vrot.slane %v4950, 4
      %v4953 = vshll.u32 %v4817, 16
      %v4955 = vrot.slane %v4953, 5
      %v4956 = vor.u32 %v4952, %v4955
      %v4957 = vrot.slane %v4956, 4
      %v4959 = vshll.u32 %v4818, 16
      %v4961 = vrot.slane %v4959, 5
      %v4962 = vsel %vm869, %v4957, %v4961
      %v4963 = vshrl.u32 %v4818, 16
      %v4965 = vrot.slane %v4963, 4
      %v4966 = vor.u32 %v4965, %v4961
      %v4967 = vrot.slane %v4966, 4
      %v4969 = vshll.u32 %v4819, 16
      %v4971 = vrot.slane %v4969, 5
      %v4972 = vsel %vm869, %v4967, %v4971
      %v4974 = vshrl.u32 %v4820, 16
      %v4976 = vrot.slane %v4974, 4
      %v4977 = vshll.u32 %v4820, 16
      %v4979 = vrot.slane %v4977, 5
      %v4980 = vor.u32 %v4976, %v4979
      %v4981 = vrot.slane %v4980, 4
      %v4983 = vshll.u32 %v4821, 16
      %v4985 = vrot.slane %v4983, 5
      %v4986 = vsel %vm869, %v4981, %v4985
      %v4987 = vshrl.u32 %v4821, 16
      %v4989 = vrot.slane %v4987, 4
      %v4990 = vor.u32 %v4989, %v4985
      %v4991 = vrot.slane %v4990, 4
      %v4993 = vshll.u32 %v4822, 16
      %v4995 = vrot.slane %v4993, 5
      %v4996 = vsel %vm869, %v4991, %v4995
      %v4998 = vshrl.u32 %v4823, 16
      %v5000 = vrot.slane %v4998, 4
      %v5001 = vshll.u32 %v4823, 16
      %v5003 = vrot.slane %v5001, 5
      %v5004 = vor.u32 %v5000, %v5003
      %v5005 = vrot.slane %v5004, 4
      %v5007 = vshll.u32 %v4824, 16
      %v5009 = vrot.slane %v5007, 5
      %v5010 = vsel %vm869, %v5005, %v5009
      %v5011 = vshrl.u32 %v4824, 16
      %v5013 = vrot.slane %v5011, 4
      %v5014 = vor.u32 %v5013, %v5009
      %v5015 = vrot.slane %v5014, 4
      %v5017 = vshll.u32 %v4825, 16
      %v5019 = vrot.slane %v5017, 5
      %v5020 = vsel %vm869, %v5015, %v5019
      %v5022 = vshrl.u32 %v4826, 16
      %v5024 = vrot.slane %v5022, 4
      %v5025 = vshll.u32 %v4826, 16
      %v5027 = vrot.slane %v5025, 5
      %v5028 = vor.u32 %v5024, %v5027
      %v5029 = vrot.slane %v5028, 4
      %v5031 = vshll.u32 %v4827, 16
      %v5033 = vrot.slane %v5031, 5
      %v5034 = vsel %vm869, %v5029, %v5033
      %v5035 = vshrl.u32 %v4827, 16
      %v5037 = vrot.slane %v5035, 4
      %v5038 = vor.u32 %v5037, %v5033
      %v5039 = vrot.slane %v5038, 4
      %v5041 = vshll.u32 %v4828, 16
      %v5043 = vrot.slane %v5041, 5
      %v5044 = vsel %vm869, %v5039, %v5043
      %v5046 = vshrl.u32 %v4829, 16
      %v5048 = vrot.slane %v5046, 4
      %v5049 = vshll.u32 %v4829, 16
      %v5051 = vrot.slane %v5049, 5
      %v5052 = vor.u32 %v5048, %v5051
      %v5053 = vrot.slane %v5052, 4
      %v5055 = vshll.u32 %v4830, 16
      %v5057 = vrot.slane %v5055, 5
      %v5058 = vsel %vm869, %v5053, %v5057
      %v5059 = vshrl.u32 %v4830, 16
      %v5061 = vrot.slane %v5059, 4
      %v5062 = vor.u32 %v5061, %v5057
      %v5063 = vrot.slane %v5062, 4
      %v5065 = vshll.u32 %v4831, 16
      %v5067 = vrot.slane %v5065, 5
      %v5068 = vsel %vm869, %v5063, %v5067
      %v5070 = vshrl.u32 %v4832, 16
      %v5072 = vrot.slane %v5070, 4
      %v5073 = vshll.u32 %v4832, 16
      %v5075 = vrot.slane %v5073, 5
      %v5076 = vor.u32 %v5072, %v5075
      %v5077 = vrot.slane %v5076, 4
      %v5079 = vshll.u32 %v4833, 16
      %v5081 = vrot.slane %v5079, 5
      %v5082 = vsel %vm869, %v5077, %v5081
      %v5083 = vshrl.u32 %v4833, 16
      %v5085 = vrot.slane %v5083, 4
      %v5086 = vor.u32 %v5085, %v5081
      %v5087 = vrot.slane %v5086, 4
      %v5089 = vshll.u32 %v4834, 16
      %v5091 = vrot.slane %v5089, 5
      %v5092 = vsel %vm869, %v5087, %v5091
      %v5094 = vshrl.u32 %v4835, 16
      %v5096 = vrot.slane %v5094, 4
      %v5097 = vshll.u32 %v4835, 16
      %v5099 = vrot.slane %v5097, 5
      %v5100 = vor.u32 %v5096, %v5099
      %v5101 = vrot.slane %v5100, 4
      %v5103 = vshll.u32 %v4836, 16
      %v5105 = vrot.slane %v5103, 5
      %v5106 = vsel %vm869, %v5101, %v5105
      %v5107 = vshrl.u32 %v4836, 16
      %v5109 = vrot.slane %v5107, 4
      %v5110 = vor.u32 %v5109, %v5105
      %v5111 = vrot.slane %v5110, 4
      %v5113 = vshll.u32 %v4837, 16
      %v5115 = vrot.slane %v5113, 5
      %v5116 = vsel %vm869, %v5111, %v5115
      %v5118 = vshrl.u32 %v4838, 16
      %v5120 = vrot.slane %v5118, 4
      %v5121 = vshll.u32 %v4838, 16
      %v5123 = vrot.slane %v5121, 5
      %v5124 = vor.u32 %v5120, %v5123
      %v5125 = vrot.slane %v5124, 4
      %v5127 = vshll.u32 %v4839, 16
      %v5129 = vrot.slane %v5127, 5
      %v5130 = vsel %vm869, %v5125, %v5129
      %v5131 = vshrl.u32 %v4839, 16
      %v5133 = vrot.slane %v5131, 4
      %v5134 = vor.u32 %v5133, %v5129
      %v5135 = vrot.slane %v5134, 4
      %v5137 = vshll.u32 %v4840, 16
      %v5139 = vrot.slane %v5137, 5
      %v5140 = vsel %vm869, %v5135, %v5139
      %v5142 = vshrl.u32 %v4841, 16
      %v5144 = vrot.slane %v5142, 4
      %v5145 = vshll.u32 %v4841, 16
      %v5147 = vrot.slane %v5145, 5
      %v5148 = vor.u32 %v5144, %v5147
      %v5149 = vrot.slane %v5148, 4
      %v5151 = vshll.u32 %v4842, 16
      %v5153 = vrot.slane %v5151, 5
      %v5154 = vsel %vm869, %v5149, %v5153
      %v5155 = vshrl.u32 %v4842, 16
      %v5157 = vrot.slane %v5155, 4
      %v5158 = vor.u32 %v5157, %v5153
      %v5159 = vrot.slane %v5158, 4
      %v5161 = vshll.u32 %v4843, 16
      %v5163 = vrot.slane %v5161, 5
      %v5164 = vsel %vm869, %v5159, %v5163
      %v5166 = vshrl.u32 %v4844, 16
      %v5168 = vrot.slane %v5166, 4
      %v5169 = vshll.u32 %v4844, 16
      %v5171 = vrot.slane %v5169, 5
      %v5172 = vor.u32 %v5168, %v5171
      %v5173 = vrot.slane %v5172, 4
      %v5175 = vshll.u32 %v4845, 16
      %v5177 = vrot.slane %v5175, 5
      %v5178 = vsel %vm869, %v5173, %v5177
      %v5179 = vshrl.u32 %v4845, 16
      %v5181 = vrot.slane %v5179, 4
      %v5182 = vor.u32 %v5181, %v5177
      %v5183 = vrot.slane %v5182, 4
      %v5185 = vshll.u32 %v4846, 16
      %v5187 = vrot.slane %v5185, 5
      %v5188 = vsel %vm869, %v5183, %v5187
      %v5190 = vshrl.u32 %v4847, 16
      %v5192 = vrot.slane %v5190, 4
      %v5193 = vshll.u32 %v4847, 16
      %v5195 = vrot.slane %v5193, 5
      %v5196 = vor.u32 %v5192, %v5195
      %v5197 = vrot.slane %v5196, 4
      %v5199 = vshll.u32 %v4848, 16
      %v5201 = vrot.slane %v5199, 5
      %v5202 = vsel %vm869, %v5197, %v5201
      %v5203 = vshrl.u32 %v4848, 16
      %v5205 = vrot.slane %v5203, 4
      %v5206 = vor.u32 %v5205, %v5201
      %v5207 = vrot.slane %v5206, 4
      %v5209 = vshll.u32 %v4849, 16
      %v5211 = vrot.slane %v5209, 5
      %v5212 = vsel %vm869, %v5207, %v5211
      %v5214 = vshrl.u32 %v4850, 16
      %v5216 = vrot.slane %v5214, 4
      %v5217 = vshll.u32 %v4850, 16
      %v5219 = vrot.slane %v5217, 5
      %v5220 = vor.u32 %v5216, %v5219
      %v5221 = vrot.slane %v5220, 4
      %v5223 = vshll.u32 %v4851, 16
      %v5225 = vrot.slane %v5223, 5
      %v5226 = vsel %vm869, %v5221, %v5225
      %v5227 = vshrl.u32 %v4851, 16
      %v5229 = vrot.slane %v5227, 4
      %v5230 = vor.u32 %v5229, %v5225
      %v5231 = vrot.slane %v5230, 4
      %v5233 = vshll.u32 %v4852, 16
      %v5235 = vrot.slane %v5233, 5
      %v5236 = vsel %vm869, %v5231, %v5235
      %5237 = vrot.lane.b32.xlu0 %v4866, 8
      %v5238 = vpop.permute.xlu0 %5237
      %5239 = vrot.lane.b32.xlu0 %v4876, 8
      %v5240 = vpop.permute.xlu0 %5239
      %5241 = vrot.lane.b32.xlu0 %v4890, 8
      %v5242 = vpop.permute.xlu0 %5241
      %5243 = vrot.lane.b32.xlu0 %v4900, 8
      %v5244 = vpop.permute.xlu0 %5243
      %5245 = vrot.lane.b32.xlu0 %v4914, 8
      %v5246 = vpop.permute.xlu0 %5245
      %5247 = vrot.lane.b32.xlu0 %v4924, 8
      %v5248 = vpop.permute.xlu0 %5247
      %5249 = vrot.lane.b32.xlu0 %v4938, 8
      %v5250 = vpop.permute.xlu0 %5249
      %5251 = vrot.lane.b32.xlu0 %v4948, 8
      %v5252 = vpop.permute.xlu0 %5251
      %5253 = vrot.lane.b32.xlu0 %v4962, 8
      %v5254 = vpop.permute.xlu0 %5253
      %5255 = vrot.lane.b32.xlu0 %v4972, 8
      %v5256 = vpop.permute.xlu0 %5255
      %5257 = vrot.lane.b32.xlu0 %v4986, 8
      %v5258 = vpop.permute.xlu0 %5257
      %5259 = vrot.lane.b32.xlu0 %v4996, 8
      %v5260 = vpop.permute.xlu0 %5259
      %5261 = vrot.lane.b32.xlu0 %v5010, 8
      %v5262 = vpop.permute.xlu0 %5261
      %5263 = vrot.lane.b32.xlu0 %v5020, 8
      %v5264 = vpop.permute.xlu0 %5263
      %5265 = vrot.lane.b32.xlu0 %v5034, 8
      %v5266 = vpop.permute.xlu0 %5265
      %5267 = vrot.lane.b32.xlu0 %v5044, 8
      %v5268 = vpop.permute.xlu0 %5267
      %5269 = vrot.lane.b32.xlu0 %v5058, 8
      %v5270 = vpop.permute.xlu0 %5269
      %5271 = vrot.lane.b32.xlu0 %v5068, 8
      %v5272 = vpop.permute.xlu0 %5271
      %5273 = vrot.lane.b32.xlu0 %v5082, 8
      %v5274 = vpop.permute.xlu0 %5273
      %5275 = vrot.lane.b32.xlu0 %v5092, 8
      %v5276 = vpop.permute.xlu0 %5275
      %5277 = vrot.lane.b32.xlu0 %v5106, 8
      %v5278 = vpop.permute.xlu0 %5277
      %5279 = vrot.lane.b32.xlu0 %v5116, 8
      %v5280 = vpop.permute.xlu0 %5279
      %5281 = vrot.lane.b32.xlu0 %v5130, 8
      %v5282 = vpop.permute.xlu0 %5281
      %5283 = vrot.lane.b32.xlu0 %v5140, 8
      %v5284 = vpop.permute.xlu0 %5283
      %5285 = vrot.lane.b32.xlu0 %v5154, 8
      %v5286 = vpop.permute.xlu0 %5285
      %5287 = vrot.lane.b32.xlu0 %v5164, 8
      %v5288 = vpop.permute.xlu0 %5287
      %5289 = vrot.lane.b32.xlu0 %v5178, 8
      %v5290 = vpop.permute.xlu0 %5289
      %5291 = vrot.lane.b32.xlu0 %v5188, 8
      %v5292 = vpop.permute.xlu0 %5291
      %5293 = vrot.lane.b32.xlu0 %v5202, 8
      %v5294 = vpop.permute.xlu0 %5293
      %5295 = vrot.lane.b32.xlu0 %v5212, 8
      %v5296 = vpop.permute.xlu0 %5295
      %5297 = vrot.lane.b32.xlu0 %v5226, 8
      %v5298 = vpop.permute.xlu0 %5297
      %5299 = vrot.lane.b32.xlu0 %v5236, 8
      %v5300 = vpop.permute.xlu0 %5299
      %vm5333 = vcmask 126016
      %5334 = vst.msk [vmem:[#allocation5] sm:$0xf] %vm5333, %v5238
      %5335 = vst.msk [vmem:[#allocation5 + $0x4] sm:$0xf] %vm5333, %v5240
      %5336 = vst.msk [vmem:[#allocation5 + $0x8] sm:$0xf] %vm5333, %v5242
      %5337 = vst.msk [vmem:[#allocation5 + $0xc] sm:$0xf] %vm5333, %v5244
      %5338 = vst.msk [vmem:[#allocation5 + $0x10] sm:$0xf] %vm5333, %v5246
      %5339 = vst.msk [vmem:[#allocation5 + $0x14] sm:$0xf] %vm5333, %v5248
      %5340 = vst.msk [vmem:[#allocation5 + $0x18] sm:$0xf] %vm5333, %v5250
      %5341 = vst.msk [vmem:[#allocation5 + $0x1c] sm:$0xf] %vm5333, %v5252
      %5342 = vst.msk [vmem:[#allocation5 + $0x20] sm:$0xf] %vm5333, %v5254
      %5343 = vst.msk [vmem:[#allocation5 + $0x24] sm:$0xf] %vm5333, %v5256
      %5344 = vst.msk [vmem:[#allocation5 + $0x28] sm:$0xf] %vm5333, %v5258
      %5345 = vst.msk [vmem:[#allocation5 + $0x2c] sm:$0xf] %vm5333, %v5260
      %5346 = vst.msk [vmem:[#allocation5 + $0x30] sm:$0xf] %vm5333, %v5262
      %5347 = vst.msk [vmem:[#allocation5 + $0x34] sm:$0xf] %vm5333, %v5264
      %5348 = vst.msk [vmem:[#allocation5 + $0x38] sm:$0xf] %vm5333, %v5266
      %5349 = vst.msk [vmem:[#allocation5 + $0x3c] sm:$0xf] %vm5333, %v5268
      %5350 = vst.msk [vmem:[#allocation5 + $0x40] sm:$0xf] %vm5333, %v5270
      %5351 = vst.msk [vmem:[#allocation5 + $0x44] sm:$0xf] %vm5333, %v5272
      %5352 = vst.msk [vmem:[#allocation5 + $0x48] sm:$0xf] %vm5333, %v5274
      %5353 = vst.msk [vmem:[#allocation5 + $0x4c] sm:$0xf] %vm5333, %v5276
      %5354 = vst.msk [vmem:[#allocation5 + $0x50] sm:$0xf] %vm5333, %v5278
      %5355 = vst.msk [vmem:[#allocation5 + $0x54] sm:$0xf] %vm5333, %v5280
      %5356 = vst.msk [vmem:[#allocation5 + $0x58] sm:$0xf] %vm5333, %v5282
      %5357 = vst.msk [vmem:[#allocation5 + $0x5c] sm:$0xf] %vm5333, %v5284
      %5358 = vst.msk [vmem:[#allocation5 + $0x60] sm:$0xf] %vm5333, %v5286
      %5359 = vst.msk [vmem:[#allocation5 + $0x64] sm:$0xf] %vm5333, %v5288
      %5360 = vst.msk [vmem:[#allocation5 + $0x68] sm:$0xf] %vm5333, %v5290
      %5361 = vst.msk [vmem:[#allocation5 + $0x6c] sm:$0xf] %vm5333, %v5292
      %5362 = vst.msk [vmem:[#allocation5 + $0x70] sm:$0xf] %vm5333, %v5294
      %5363 = vst.msk [vmem:[#allocation5 + $0x74] sm:$0xf] %vm5333, %v5296
      %5364 = vst.msk [vmem:[#allocation5 + $0x78] sm:$0xf] %vm5333, %v5298
      %5365 = vst.msk [vmem:[#allocation5 + $0x7c] sm:$0xf] %vm5333, %v5300
      %v5366 = vld [vmem:[#allocation4] sm:$0xe]
      %v5367 = vld [vmem:[#allocation4 + $0x4] sm:$0xf]
      %v5368 = vld [vmem:[#allocation4 + $0x8] sm:$0x1]
      %v5369 = vld [vmem:[#allocation4 + $0xc] sm:$0xe]
      %v5370 = vld [vmem:[#allocation4 + $0x10] sm:$0xf]
      %v5371 = vld [vmem:[#allocation4 + $0x14] sm:$0x1]
      %v5372 = vld [vmem:[#allocation4 + $0x18] sm:$0xe]
      %v5373 = vld [vmem:[#allocation4 + $0x1c] sm:$0xf]
      %v5374 = vld [vmem:[#allocation4 + $0x20] sm:$0x1]
      %v5375 = vld [vmem:[#allocation4 + $0x24] sm:$0xe]
      %v5376 = vld [vmem:[#allocation4 + $0x28] sm:$0xf]
      %v5377 = vld [vmem:[#allocation4 + $0x2c] sm:$0x1]
      %v5378 = vld [vmem:[#allocation4 + $0x30] sm:$0xe]
      %v5379 = vld [vmem:[#allocation4 + $0x34] sm:$0xf]
      %v5380 = vld [vmem:[#allocation4 + $0x38] sm:$0x1]
      %v5381 = vld [vmem:[#allocation4 + $0x3c] sm:$0xe]
      %v5382 = vld [vmem:[#allocation4 + $0x40] sm:$0xf]
      %v5383 = vld [vmem:[#allocation4 + $0x44] sm:$0x1]
      %v5384 = vld [vmem:[#allocation4 + $0x48] sm:$0xe]
      %v5385 = vld [vmem:[#allocation4 + $0x4c] sm:$0xf]
      %v5386 = vld [vmem:[#allocation4 + $0x50] sm:$0x1]
      %v5387 = vld [vmem:[#allocation4 + $0x54] sm:$0xe]
      %v5388 = vld [vmem:[#allocation4 + $0x58] sm:$0xf]
      %v5389 = vld [vmem:[#allocation4 + $0x5c] sm:$0x1]
      %v5390 = vld [vmem:[#allocation4 + $0x60] sm:$0xe]
      %v5391 = vld [vmem:[#allocation4 + $0x64] sm:$0xf]
      %v5392 = vld [vmem:[#allocation4 + $0x68] sm:$0x1]
      %v5393 = vld [vmem:[#allocation4 + $0x6c] sm:$0xe]
      %v5394 = vld [vmem:[#allocation4 + $0x70] sm:$0xf]
      %v5395 = vld [vmem:[#allocation4 + $0x74] sm:$0x1]
      %v5396 = vld [vmem:[#allocation4 + $0x78] sm:$0xe]
      %v5397 = vld [vmem:[#allocation4 + $0x7c] sm:$0xf]
      %v5398 = vld [vmem:[#allocation4 + $0x80] sm:$0x1]
      %v5399 = vld [vmem:[#allocation4 + $0x84] sm:$0xe]
      %v5400 = vld [vmem:[#allocation4 + $0x88] sm:$0xf]
      %v5401 = vld [vmem:[#allocation4 + $0x8c] sm:$0x1]
      %v5402 = vld [vmem:[#allocation4 + $0x90] sm:$0xe]
      %v5403 = vld [vmem:[#allocation4 + $0x94] sm:$0xf]
      %v5404 = vld [vmem:[#allocation4 + $0x98] sm:$0x1]
      %v5405 = vld [vmem:[#allocation4 + $0x9c] sm:$0xe]
      %v5406 = vld [vmem:[#allocation4 + $0xa0] sm:$0xf]
      %v5407 = vld [vmem:[#allocation4 + $0xa4] sm:$0x1]
      %v5408 = vld [vmem:[#allocation4 + $0xa8] sm:$0xe]
      %v5409 = vld [vmem:[#allocation4 + $0xac] sm:$0xf]
      %v5410 = vld [vmem:[#allocation4 + $0xb0] sm:$0x1]
      %v5411 = vld [vmem:[#allocation4 + $0xb4] sm:$0xe]
      %v5412 = vld [vmem:[#allocation4 + $0xb8] sm:$0xf]
      %v5413 = vld [vmem:[#allocation4 + $0xbc] sm:$0x1]
      %v5462 = vrot.slane %v5366, 5
      %v5463 = vrot.slane %v5462, 4
      %v5464 = vrot.slane %v5367, 5
      %v5465 = vsel %vm1481, %v5463, %v5464
      %v5466 = vrot.slane %v5464, 4
      %v5467 = vrot.slane %v5368, 5
      %v5468 = vsel %vm1481, %v5466, %v5467
      %v5469 = vrot.slane %v5369, 5
      %v5470 = vrot.slane %v5469, 4
      %v5471 = vrot.slane %v5370, 5
      %v5472 = vsel %vm1481, %v5470, %v5471
      %v5473 = vrot.slane %v5471, 4
      %v5474 = vrot.slane %v5371, 5
      %v5475 = vsel %vm1481, %v5473, %v5474
      %v5476 = vrot.slane %v5372, 5
      %v5477 = vrot.slane %v5476, 4
      %v5478 = vrot.slane %v5373, 5
      %v5479 = vsel %vm1481, %v5477, %v5478
      %v5480 = vrot.slane %v5478, 4
      %v5481 = vrot.slane %v5374, 5
      %v5482 = vsel %vm1481, %v5480, %v5481
      %v5483 = vrot.slane %v5375, 5
      %v5484 = vrot.slane %v5483, 4
      %v5485 = vrot.slane %v5376, 5
      %v5486 = vsel %vm1481, %v5484, %v5485
      %v5487 = vrot.slane %v5485, 4
      %v5488 = vrot.slane %v5377, 5
      %v5489 = vsel %vm1481, %v5487, %v5488
      %v5490 = vrot.slane %v5378, 5
      %v5491 = vrot.slane %v5490, 4
      %v5492 = vrot.slane %v5379, 5
      %v5493 = vsel %vm1481, %v5491, %v5492
      %v5494 = vrot.slane %v5492, 4
      %v5495 = vrot.slane %v5380, 5
      %v5496 = vsel %vm1481, %v5494, %v5495
      %v5497 = vrot.slane %v5381, 5
      %v5498 = vrot.slane %v5497, 4
      %v5499 = vrot.slane %v5382, 5
      %v5500 = vsel %vm1481, %v5498, %v5499
      %v5501 = vrot.slane %v5499, 4
      %v5502 = vrot.slane %v5383, 5
      %v5503 = vsel %vm1481, %v5501, %v5502
      %v5504 = vrot.slane %v5384, 5
      %v5505 = vrot.slane %v5504, 4
      %v5506 = vrot.slane %v5385, 5
      %v5507 = vsel %vm1481, %v5505, %v5506
      %v5508 = vrot.slane %v5506, 4
      %v5509 = vrot.slane %v5386, 5
      %v5510 = vsel %vm1481, %v5508, %v5509
      %v5511 = vrot.slane %v5387, 5
      %v5512 = vrot.slane %v5511, 4
      %v5513 = vrot.slane %v5388, 5
      %v5514 = vsel %vm1481, %v5512, %v5513
      %v5515 = vrot.slane %v5513, 4
      %v5516 = vrot.slane %v5389, 5
      %v5517 = vsel %vm1481, %v5515, %v5516
      %v5518 = vrot.slane %v5390, 5
      %v5519 = vrot.slane %v5518, 4
      %v5520 = vrot.slane %v5391, 5
      %v5521 = vsel %vm1481, %v5519, %v5520
      %v5522 = vrot.slane %v5520, 4
      %v5523 = vrot.slane %v5392, 5
      %v5524 = vsel %vm1481, %v5522, %v5523
      %v5525 = vrot.slane %v5393, 5
      %v5526 = vrot.slane %v5525, 4
      %v5527 = vrot.slane %v5394, 5
      %v5528 = vsel %vm1481, %v5526, %v5527
      %v5529 = vrot.slane %v5527, 4
      %v5530 = vrot.slane %v5395, 5
      %v5531 = vsel %vm1481, %v5529, %v5530
      %v5532 = vrot.slane %v5396, 5
      %v5533 = vrot.slane %v5532, 4
      %v5534 = vrot.slane %v5397, 5
      %v5535 = vsel %vm1481, %v5533, %v5534
      %v5536 = vrot.slane %v5534, 4
      %v5537 = vrot.slane %v5398, 5
      %v5538 = vsel %vm1481, %v5536, %v5537
      %v5539 = vrot.slane %v5399, 5
      %v5540 = vrot.slane %v5539, 4
      %v5541 = vrot.slane %v5400, 5
      %v5542 = vsel %vm1481, %v5540, %v5541
      %v5543 = vrot.slane %v5541, 4
      %v5544 = vrot.slane %v5401, 5
      %v5545 = vsel %vm1481, %v5543, %v5544
      %v5546 = vrot.slane %v5402, 5
      %v5547 = vrot.slane %v5546, 4
      %v5548 = vrot.slane %v5403, 5
      %v5549 = vsel %vm1481, %v5547, %v5548
      %v5550 = vrot.slane %v5548, 4
      %v5551 = vrot.slane %v5404, 5
      %v5552 = vsel %vm1481, %v5550, %v5551
      %v5553 = vrot.slane %v5405, 5
      %v5554 = vrot.slane %v5553, 4
      %v5555 = vrot.slane %v5406, 5
      %v5556 = vsel %vm1481, %v5554, %v5555
      %v5557 = vrot.slane %v5555, 4
      %v5558 = vrot.slane %v5407, 5
      %v5559 = vsel %vm1481, %v5557, %v5558
      %v5560 = vrot.slane %v5408, 5
      %v5561 = vrot.slane %v5560, 4
      %v5562 = vrot.slane %v5409, 5
      %v5563 = vsel %vm1481, %v5561, %v5562
      %v5564 = vrot.slane %v5562, 4
      %v5565 = vrot.slane %v5410, 5
      %v5566 = vsel %vm1481, %v5564, %v5565
      %v5567 = vrot.slane %v5411, 5
      %v5568 = vrot.slane %v5567, 4
      %v5569 = vrot.slane %v5412, 5
      %v5570 = vsel %vm1481, %v5568, %v5569
      %v5571 = vrot.slane %v5569, 4
      %v5572 = vrot.slane %v5413, 5
      %v5573 = vsel %vm1481, %v5571, %v5572
      %5574 = vrot.lane.b32.xlu0 %v5465, 16
      %v5575 = vpop.permute.xlu0 %5574
      %5576 = vrot.lane.b32.xlu0 %v5468, 16
      %v5577 = vpop.permute.xlu0 %5576
      %5578 = vrot.lane.b32.xlu0 %v5472, 16
      %v5579 = vpop.permute.xlu0 %5578
      %5580 = vrot.lane.b32.xlu0 %v5475, 16
      %v5581 = vpop.permute.xlu0 %5580
      %5582 = vrot.lane.b32.xlu0 %v5479, 16
      %v5583 = vpop.permute.xlu0 %5582
      %5584 = vrot.lane.b32.xlu0 %v5482, 16
      %v5585 = vpop.permute.xlu0 %5584
      %5586 = vrot.lane.b32.xlu0 %v5486, 16
      %v5587 = vpop.permute.xlu0 %5586
      %5588 = vrot.lane.b32.xlu0 %v5489, 16
      %v5589 = vpop.permute.xlu0 %5588
      %5590 = vrot.lane.b32.xlu0 %v5493, 16
      %v5591 = vpop.permute.xlu0 %5590
      %5592 = vrot.lane.b32.xlu0 %v5496, 16
      %v5593 = vpop.permute.xlu0 %5592
      %5594 = vrot.lane.b32.xlu0 %v5500, 16
      %v5595 = vpop.permute.xlu0 %5594
      %5596 = vrot.lane.b32.xlu0 %v5503, 16
      %v5597 = vpop.permute.xlu0 %5596
      %5598 = vrot.lane.b32.xlu0 %v5507, 16
      %v5599 = vpop.permute.xlu0 %5598
      %5600 = vrot.lane.b32.xlu0 %v5510, 16
      %v5601 = vpop.permute.xlu0 %5600
      %5602 = vrot.lane.b32.xlu0 %v5514, 16
      %v5603 = vpop.permute.xlu0 %5602
      %5604 = vrot.lane.b32.xlu0 %v5517, 16
      %v5605 = vpop.permute.xlu0 %5604
      %5606 = vrot.lane.b32.xlu0 %v5521, 16
      %v5607 = vpop.permute.xlu0 %5606
      %5608 = vrot.lane.b32.xlu0 %v5524, 16
      %v5609 = vpop.permute.xlu0 %5608
      %5610 = vrot.lane.b32.xlu0 %v5528, 16
      %v5611 = vpop.permute.xlu0 %5610
      %5612 = vrot.lane.b32.xlu0 %v5531, 16
      %v5613 = vpop.permute.xlu0 %5612
      %5614 = vrot.lane.b32.xlu0 %v5535, 16
      %v5615 = vpop.permute.xlu0 %5614
      %5616 = vrot.lane.b32.xlu0 %v5538, 16
      %v5617 = vpop.permute.xlu0 %5616
      %5618 = vrot.lane.b32.xlu0 %v5542, 16
      %v5619 = vpop.permute.xlu0 %5618
      %5620 = vrot.lane.b32.xlu0 %v5545, 16
      %v5621 = vpop.permute.xlu0 %5620
      %5622 = vrot.lane.b32.xlu0 %v5549, 16
      %v5623 = vpop.permute.xlu0 %5622
      %5624 = vrot.lane.b32.xlu0 %v5552, 16
      %v5625 = vpop.permute.xlu0 %5624
      %5626 = vrot.lane.b32.xlu0 %v5556, 16
      %v5627 = vpop.permute.xlu0 %5626
      %5628 = vrot.lane.b32.xlu0 %v5559, 16
      %v5629 = vpop.permute.xlu0 %5628
      %5630 = vrot.lane.b32.xlu0 %v5563, 16
      %v5631 = vpop.permute.xlu0 %5630
      %5632 = vrot.lane.b32.xlu0 %v5566, 16
      %v5633 = vpop.permute.xlu0 %5632
      %5634 = vrot.lane.b32.xlu0 %v5570, 16
      %v5635 = vpop.permute.xlu0 %5634
      %5636 = vrot.lane.b32.xlu0 %v5573, 16
      %v5637 = vpop.permute.xlu0 %5636
      %vm5670 = vcmask 191616
      %5671 = vst.msk [vmem:[#allocation5] sm:$0xf] %vm5670, %v5575
      %5672 = vst.msk [vmem:[#allocation5 + $0x4] sm:$0xf] %vm5670, %v5577
      %5673 = vst.msk [vmem:[#allocation5 + $0x8] sm:$0xf] %vm5670, %v5579
      %5674 = vst.msk [vmem:[#allocation5 + $0xc] sm:$0xf] %vm5670, %v5581
      %5675 = vst.msk [vmem:[#allocation5 + $0x10] sm:$0xf] %vm5670, %v5583
      %5676 = vst.msk [vmem:[#allocation5 + $0x14] sm:$0xf] %vm5670, %v5585
      %5677 = vst.msk [vmem:[#allocation5 + $0x18] sm:$0xf] %vm5670, %v5587
      %5678 = vst.msk [vmem:[#allocation5 + $0x1c] sm:$0xf] %vm5670, %v5589
      %5679 = vst.msk [vmem:[#allocation5 + $0x20] sm:$0xf] %vm5670, %v5591
      %5680 = vst.msk [vmem:[#allocation5 + $0x24] sm:$0xf] %vm5670, %v5593
      %5681 = vst.msk [vmem:[#allocation5 + $0x28] sm:$0xf] %vm5670, %v5595
      %5682 = vst.msk [vmem:[#allocation5 + $0x2c] sm:$0xf] %vm5670, %v5597
      %5683 = vst.msk [vmem:[#allocation5 + $0x30] sm:$0xf] %vm5670, %v5599
      %5684 = vst.msk [vmem:[#allocation5 + $0x34] sm:$0xf] %vm5670, %v5601
      %5685 = vst.msk [vmem:[#allocation5 + $0x38] sm:$0xf] %vm5670, %v5603
      %5686 = vst.msk [vmem:[#allocation5 + $0x3c] sm:$0xf] %vm5670, %v5605
      %5687 = vst.msk [vmem:[#allocation5 + $0x40] sm:$0xf] %vm5670, %v5607
      %5688 = vst.msk [vmem:[#allocation5 + $0x44] sm:$0xf] %vm5670, %v5609
      %5689 = vst.msk [vmem:[#allocation5 + $0x48] sm:$0xf] %vm5670, %v5611
      %5690 = vst.msk [vmem:[#allocation5 + $0x4c] sm:$0xf] %vm5670, %v5613
      %5691 = vst.msk [vmem:[#allocation5 + $0x50] sm:$0xf] %vm5670, %v5615
      %5692 = vst.msk [vmem:[#allocation5 + $0x54] sm:$0xf] %vm5670, %v5617
      %5693 = vst.msk [vmem:[#allocation5 + $0x58] sm:$0xf] %vm5670, %v5619
      %5694 = vst.msk [vmem:[#allocation5 + $0x5c] sm:$0xf] %vm5670, %v5621
      %5695 = vst.msk [vmem:[#allocation5 + $0x60] sm:$0xf] %vm5670, %v5623
      %5696 = vst.msk [vmem:[#allocation5 + $0x64] sm:$0xf] %vm5670, %v5625
      %5697 = vst.msk [vmem:[#allocation5 + $0x68] sm:$0xf] %vm5670, %v5627
      %5698 = vst.msk [vmem:[#allocation5 + $0x6c] sm:$0xf] %vm5670, %v5629
      %5699 = vst.msk [vmem:[#allocation5 + $0x70] sm:$0xf] %vm5670, %v5631
      %5700 = vst.msk [vmem:[#allocation5 + $0x74] sm:$0xf] %vm5670, %v5633
      %5701 = vst.msk [vmem:[#allocation5 + $0x78] sm:$0xf] %vm5670, %v5635
      %5702 = vst.msk [vmem:[#allocation5 + $0x7c] sm:$0xf] %vm5670, %v5637
      %v5703 = vld [vmem:[%s4624] sm:$0xf]
      %v5704 = vld [vmem:[%s4624 + $0x4] sm:$0xf]
      %v5705 = vld [vmem:[%s4624 + $0xc] sm:$0xf]
      %v5706 = vld [vmem:[%s4624 + $0x10] sm:$0xf]
      %v5707 = vld [vmem:[%s4624 + $0x18] sm:$0xf]
      %v5708 = vld [vmem:[%s4624 + $0x1c] sm:$0xf]
      %v5709 = vld [vmem:[%s4624 + $0x24] sm:$0xf]
      %v5710 = vld [vmem:[%s4624 + $0x28] sm:$0xf]
      %v5711 = vld [vmem:[%s4624 + $0x30] sm:$0xf]
      %v5712 = vld [vmem:[%s4624 + $0x34] sm:$0xf]
      %v5713 = vld [vmem:[%s4624 + $0x3c] sm:$0xf]
      %v5714 = vld [vmem:[%s4624 + $0x40] sm:$0xf]
      %v5715 = vld [vmem:[%s4624 + $0x48] sm:$0xf]
      %v5716 = vld [vmem:[%s4624 + $0x4c] sm:$0xf]
      %v5717 = vld [vmem:[%s4624 + $0x54] sm:$0xf]
      %v5718 = vld [vmem:[%s4624 + $0x58] sm:$0xf]
      %v5719 = vld [vmem:[%s4624 + $0x60] sm:$0xf]
      %v5720 = vld [vmem:[%s4624 + $0x64] sm:$0xf]
      %v5721 = vld [vmem:[%s4624 + $0x6c] sm:$0xf]
      %v5722 = vld [vmem:[%s4624 + $0x70] sm:$0xf]
      %v5723 = vld [vmem:[%s4624 + $0x78] sm:$0xf]
      %v5724 = vld [vmem:[%s4624 + $0x7c] sm:$0xf]
      %v5725 = vld [vmem:[%s4624 + $0x84] sm:$0xf]
      %v5726 = vld [vmem:[%s4624 + $0x88] sm:$0xf]
      %v5727 = vld [vmem:[%s4624 + $0x90] sm:$0xf]
      %v5728 = vld [vmem:[%s4624 + $0x94] sm:$0xf]
      %v5729 = vld [vmem:[%s4624 + $0x9c] sm:$0xf]
      %v5730 = vld [vmem:[%s4624 + $0xa0] sm:$0xf]
      %v5731 = vld [vmem:[%s4624 + $0xa8] sm:$0xf]
      %v5732 = vld [vmem:[%s4624 + $0xac] sm:$0xf]
      %v5733 = vld [vmem:[%s4624 + $0xb4] sm:$0xf]
      %v5734 = vld [vmem:[%s4624 + $0xb8] sm:$0xf]
      %5767 = vrot.lane.b32.xlu0 %v5703, 24
      %v5768 = vpop.permute.xlu0 %5767
      %5769 = vrot.lane.b32.xlu0 %v5704, 24
      %v5770 = vpop.permute.xlu0 %5769
      %5771 = vrot.lane.b32.xlu0 %v5705, 24
      %v5772 = vpop.permute.xlu0 %5771
      %5773 = vrot.lane.b32.xlu0 %v5706, 24
      %v5774 = vpop.permute.xlu0 %5773
      %5775 = vrot.lane.b32.xlu0 %v5707, 24
      %v5776 = vpop.permute.xlu0 %5775
      %5777 = vrot.lane.b32.xlu0 %v5708, 24
      %v5778 = vpop.permute.xlu0 %5777
      %5779 = vrot.lane.b32.xlu0 %v5709, 24
      %v5780 = vpop.permute.xlu0 %5779
      %5781 = vrot.lane.b32.xlu0 %v5710, 24
      %v5782 = vpop.permute.xlu0 %5781
      %5783 = vrot.lane.b32.xlu0 %v5711, 24
      %v5784 = vpop.permute.xlu0 %5783
      %5785 = vrot.lane.b32.xlu0 %v5712, 24
      %v5786 = vpop.permute.xlu0 %5785
      %5787 = vrot.lane.b32.xlu0 %v5713, 24
      %v5788 = vpop.permute.xlu0 %5787
      %5789 = vrot.lane.b32.xlu0 %v5714, 24
      %v5790 = vpop.permute.xlu0 %5789
      %5791 = vrot.lane.b32.xlu0 %v5715, 24
      %v5792 = vpop.permute.xlu0 %5791
      %5793 = vrot.lane.b32.xlu0 %v5716, 24
      %v5794 = vpop.permute.xlu0 %5793
      %5795 = vrot.lane.b32.xlu0 %v5717, 24
      %v5796 = vpop.permute.xlu0 %5795
      %5797 = vrot.lane.b32.xlu0 %v5718, 24
      %v5798 = vpop.permute.xlu0 %5797
      %5799 = vrot.lane.b32.xlu0 %v5719, 24
      %v5800 = vpop.permute.xlu0 %5799
      %5801 = vrot.lane.b32.xlu0 %v5720, 24
      %v5802 = vpop.permute.xlu0 %5801
      %5803 = vrot.lane.b32.xlu0 %v5721, 24
      %v5804 = vpop.permute.xlu0 %5803
      %5805 = vrot.lane.b32.xlu0 %v5722, 24
      %v5806 = vpop.permute.xlu0 %5805
      %5807 = vrot.lane.b32.xlu0 %v5723, 24
      %v5808 = vpop.permute.xlu0 %5807
      %5809 = vrot.lane.b32.xlu0 %v5724, 24
      %v5810 = vpop.permute.xlu0 %5809
      %5811 = vrot.lane.b32.xlu0 %v5725, 24
      %v5812 = vpop.permute.xlu0 %5811
      %5813 = vrot.lane.b32.xlu0 %v5726, 24
      %v5814 = vpop.permute.xlu0 %5813
      %5815 = vrot.lane.b32.xlu0 %v5727, 24
      %v5816 = vpop.permute.xlu0 %5815
      %5817 = vrot.lane.b32.xlu0 %v5728, 24
      %v5818 = vpop.permute.xlu0 %5817
      %5819 = vrot.lane.b32.xlu0 %v5729, 24
      %v5820 = vpop.permute.xlu0 %5819
      %5821 = vrot.lane.b32.xlu0 %v5730, 24
      %v5822 = vpop.permute.xlu0 %5821
      %5823 = vrot.lane.b32.xlu0 %v5731, 24
      %v5824 = vpop.permute.xlu0 %5823
      %5825 = vrot.lane.b32.xlu0 %v5732, 24
      %v5826 = vpop.permute.xlu0 %5825
      %5827 = vrot.lane.b32.xlu0 %v5733, 24
      %v5828 = vpop.permute.xlu0 %5827
      %5829 = vrot.lane.b32.xlu0 %v5734, 24
      %v5830 = vpop.permute.xlu0 %5829
      %vm5863 = vcmask 257216
      %5864 = vst.msk [vmem:[#allocation5] sm:$0xf] %vm5863, %v5768
      %5865 = vst.msk [vmem:[#allocation5 + $0x4] sm:$0xf] %vm5863, %v5770
      %5866 = vst.msk [vmem:[#allocation5 + $0x8] sm:$0xf] %vm5863, %v5772
      %5867 = vst.msk [vmem:[#allocation5 + $0xc] sm:$0xf] %vm5863, %v5774
      %5868 = vst.msk [vmem:[#allocation5 + $0x10] sm:$0xf] %vm5863, %v5776
      %5869 = vst.msk [vmem:[#allocation5 + $0x14] sm:$0xf] %vm5863, %v5778
      %5870 = vst.msk [vmem:[#allocation5 + $0x18] sm:$0xf] %vm5863, %v5780
      %5871 = vst.msk [vmem:[#allocation5 + $0x1c] sm:$0xf] %vm5863, %v5782
      %5872 = vst.msk [vmem:[#allocation5 + $0x20] sm:$0xf] %vm5863, %v5784
      %5873 = vst.msk [vmem:[#allocation5 + $0x24] sm:$0xf] %vm5863, %v5786
      %5874 = vst.msk [vmem:[#allocation5 + $0x28] sm:$0xf] %vm5863, %v5788
      %5875 = vst.msk [vmem:[#allocation5 + $0x2c] sm:$0xf] %vm5863, %v5790
      %5876 = vst.msk [vmem:[#allocation5 + $0x30] sm:$0xf] %vm5863, %v5792
      %5877 = vst.msk [vmem:[#allocation5 + $0x34] sm:$0xf] %vm5863, %v5794
      %5878 = vst.msk [vmem:[#allocation5 + $0x38] sm:$0xf] %vm5863, %v5796
      %5879 = vst.msk [vmem:[#allocation5 + $0x3c] sm:$0xf] %vm5863, %v5798
      %5880 = vst.msk [vmem:[#allocation5 + $0x40] sm:$0xf] %vm5863, %v5800
      %5881 = vst.msk [vmem:[#allocation5 + $0x44] sm:$0xf] %vm5863, %v5802
      %5882 = vst.msk [vmem:[#allocation5 + $0x48] sm:$0xf] %vm5863, %v5804
      %5883 = vst.msk [vmem:[#allocation5 + $0x4c] sm:$0xf] %vm5863, %v5806
      %5884 = vst.msk [vmem:[#allocation5 + $0x50] sm:$0xf] %vm5863, %v5808
      %5885 = vst.msk [vmem:[#allocation5 + $0x54] sm:$0xf] %vm5863, %v5810
      %5886 = vst.msk [vmem:[#allocation5 + $0x58] sm:$0xf] %vm5863, %v5812
      %5887 = vst.msk [vmem:[#allocation5 + $0x5c] sm:$0xf] %vm5863, %v5814
      %5888 = vst.msk [vmem:[#allocation5 + $0x60] sm:$0xf] %vm5863, %v5816
      %5889 = vst.msk [vmem:[#allocation5 + $0x64] sm:$0xf] %vm5863, %v5818
      %5890 = vst.msk [vmem:[#allocation5 + $0x68] sm:$0xf] %vm5863, %v5820
      %5891 = vst.msk [vmem:[#allocation5 + $0x6c] sm:$0xf] %vm5863, %v5822
      %5892 = vst.msk [vmem:[#allocation5 + $0x70] sm:$0xf] %vm5863, %v5824
      %5893 = vst.msk [vmem:[#allocation5 + $0x74] sm:$0xf] %vm5863, %v5826
      %5894 = vst.msk [vmem:[#allocation5 + $0x78] sm:$0xf] %vm5863, %v5828
      %5895 = vst.msk [vmem:[#allocation5 + $0x7c] sm:$0xf] %vm5863, %v5830
      %v5896 = vld [vmem:[%s4624] sm:$0xf]
      %v5897 = vld [vmem:[%s4624 + $0x4] sm:$0xf]
      %v5898 = vld [vmem:[%s4624 + $0x8] sm:$0x1]
      %v5899 = vld [vmem:[%s4624 + $0xc] sm:$0xf]
      %v5900 = vld [vmem:[%s4624 + $0x10] sm:$0xf]
      %v5901 = vld [vmem:[%s4624 + $0x14] sm:$0x1]
      %v5902 = vld [vmem:[%s4624 + $0x18] sm:$0xf]
      %v5903 = vld [vmem:[%s4624 + $0x1c] sm:$0xf]
      %v5904 = vld [vmem:[%s4624 + $0x20] sm:$0x1]
      %v5905 = vld [vmem:[%s4624 + $0x24] sm:$0xf]
      %v5906 = vld [vmem:[%s4624 + $0x28] sm:$0xf]
      %v5907 = vld [vmem:[%s4624 + $0x2c] sm:$0x1]
      %v5908 = vld [vmem:[%s4624 + $0x30] sm:$0xf]
      %v5909 = vld [vmem:[%s4624 + $0x34] sm:$0xf]
      %v5910 = vld [vmem:[%s4624 + $0x38] sm:$0x1]
      %v5911 = vld [vmem:[%s4624 + $0x3c] sm:$0xf]
      %v5912 = vld [vmem:[%s4624 + $0x40] sm:$0xf]
      %v5913 = vld [vmem:[%s4624 + $0x44] sm:$0x1]
      %v5914 = vld [vmem:[%s4624 + $0x48] sm:$0xf]
      %v5915 = vld [vmem:[%s4624 + $0x4c] sm:$0xf]
      %v5916 = vld [vmem:[%s4624 + $0x50] sm:$0x1]
      %v5917 = vld [vmem:[%s4624 + $0x54] sm:$0xf]
      %v5918 = vld [vmem:[%s4624 + $0x58] sm:$0xf]
      %v5919 = vld [vmem:[%s4624 + $0x5c] sm:$0x1]
      %v5920 = vld [vmem:[%s4624 + $0x60] sm:$0xf]
      %v5921 = vld [vmem:[%s4624 + $0x64] sm:$0xf]
      %v5922 = vld [vmem:[%s4624 + $0x68] sm:$0x1]
      %v5923 = vld [vmem:[%s4624 + $0x6c] sm:$0xf]
      %v5924 = vld [vmem:[%s4624 + $0x70] sm:$0xf]
      %v5925 = vld [vmem:[%s4624 + $0x74] sm:$0x1]
      %v5926 = vld [vmem:[%s4624 + $0x78] sm:$0xf]
      %v5927 = vld [vmem:[%s4624 + $0x7c] sm:$0xf]
      %v5928 = vld [vmem:[%s4624 + $0x80] sm:$0x1]
      %v5929 = vld [vmem:[%s4624 + $0x84] sm:$0xf]
      %v5930 = vld [vmem:[%s4624 + $0x88] sm:$0xf]
      %v5931 = vld [vmem:[%s4624 + $0x8c] sm:$0x1]
      %v5932 = vld [vmem:[%s4624 + $0x90] sm:$0xf]
      %v5933 = vld [vmem:[%s4624 + $0x94] sm:$0xf]
      %v5934 = vld [vmem:[%s4624 + $0x98] sm:$0x1]
      %v5935 = vld [vmem:[%s4624 + $0x9c] sm:$0xf]
      %v5936 = vld [vmem:[%s4624 + $0xa0] sm:$0xf]
      %v5937 = vld [vmem:[%s4624 + $0xa4] sm:$0x1]
      %v5938 = vld [vmem:[%s4624 + $0xa8] sm:$0xf]
      %v5939 = vld [vmem:[%s4624 + $0xac] sm:$0xf]
      %v5940 = vld [vmem:[%s4624 + $0xb0] sm:$0x1]
      %v5941 = vld [vmem:[%s4624 + $0xb4] sm:$0xf]
      %v5942 = vld [vmem:[%s4624 + $0xb8] sm:$0xf]
      %v5943 = vld [vmem:[%s4624 + $0xbc] sm:$0x1]
      %v5945 = vshrl.u32 %v5896, 16
      %v5947 = vrot.slane %v5945, 4
      %v5948 = vshll.u32 %v5896, 16
      %v5950 = vrot.slane %v5948, 5
      %v5951 = vor.u32 %v5947, %v5950
      %v5952 = vrot.slane %v5951, 4
      %v5954 = vshll.u32 %v5897, 16
      %v5956 = vrot.slane %v5954, 5
      %v5957 = vsel %vm869, %v5952, %v5956
      %v5958 = vshrl.u32 %v5897, 16
      %v5960 = vrot.slane %v5958, 4
      %v5961 = vor.u32 %v5960, %v5956
      %v5962 = vrot.slane %v5961, 4
      %v5964 = vshll.u32 %v5898, 16
      %v5966 = vrot.slane %v5964, 5
      %v5967 = vsel %vm869, %v5962, %v5966
      %v5969 = vshrl.u32 %v5899, 16
      %v5971 = vrot.slane %v5969, 4
      %v5972 = vshll.u32 %v5899, 16
      %v5974 = vrot.slane %v5972, 5
      %v5975 = vor.u32 %v5971, %v5974
      %v5976 = vrot.slane %v5975, 4
      %v5978 = vshll.u32 %v5900, 16
      %v5980 = vrot.slane %v5978, 5
      %v5981 = vsel %vm869, %v5976, %v5980
      %v5982 = vshrl.u32 %v5900, 16
      %v5984 = vrot.slane %v5982, 4
      %v5985 = vor.u32 %v5984, %v5980
      %v5986 = vrot.slane %v5985, 4
      %v5988 = vshll.u32 %v5901, 16
      %v5990 = vrot.slane %v5988, 5
      %v5991 = vsel %vm869, %v5986, %v5990
      %v5993 = vshrl.u32 %v5902, 16
      %v5995 = vrot.slane %v5993, 4
      %v5996 = vshll.u32 %v5902, 16
      %v5998 = vrot.slane %v5996, 5
      %v5999 = vor.u32 %v5995, %v5998
      %v6000 = vrot.slane %v5999, 4
      %v6002 = vshll.u32 %v5903, 16
      %v6004 = vrot.slane %v6002, 5
      %v6005 = vsel %vm869, %v6000, %v6004
      %v6006 = vshrl.u32 %v5903, 16
      %v6008 = vrot.slane %v6006, 4
      %v6009 = vor.u32 %v6008, %v6004
      %v6010 = vrot.slane %v6009, 4
      %v6012 = vshll.u32 %v5904, 16
      %v6014 = vrot.slane %v6012, 5
      %v6015 = vsel %vm869, %v6010, %v6014
      %v6017 = vshrl.u32 %v5905, 16
      %v6019 = vrot.slane %v6017, 4
      %v6020 = vshll.u32 %v5905, 16
      %v6022 = vrot.slane %v6020, 5
      %v6023 = vor.u32 %v6019, %v6022
      %v6024 = vrot.slane %v6023, 4
      %v6026 = vshll.u32 %v5906, 16
      %v6028 = vrot.slane %v6026, 5
      %v6029 = vsel %vm869, %v6024, %v6028
      %v6030 = vshrl.u32 %v5906, 16
      %v6032 = vrot.slane %v6030, 4
      %v6033 = vor.u32 %v6032, %v6028
      %v6034 = vrot.slane %v6033, 4
      %v6036 = vshll.u32 %v5907, 16
      %v6038 = vrot.slane %v6036, 5
      %v6039 = vsel %vm869, %v6034, %v6038
      %v6041 = vshrl.u32 %v5908, 16
      %v6043 = vrot.slane %v6041, 4
      %v6044 = vshll.u32 %v5908, 16
      %v6046 = vrot.slane %v6044, 5
      %v6047 = vor.u32 %v6043, %v6046
      %v6048 = vrot.slane %v6047, 4
      %v6050 = vshll.u32 %v5909, 16
      %v6052 = vrot.slane %v6050, 5
      %v6053 = vsel %vm869, %v6048, %v6052
      %v6054 = vshrl.u32 %v5909, 16
      %v6056 = vrot.slane %v6054, 4
      %v6057 = vor.u32 %v6056, %v6052
      %v6058 = vrot.slane %v6057, 4
      %v6060 = vshll.u32 %v5910, 16
      %v6062 = vrot.slane %v6060, 5
      %v6063 = vsel %vm869, %v6058, %v6062
      %v6065 = vshrl.u32 %v5911, 16
      %v6067 = vrot.slane %v6065, 4
      %v6068 = vshll.u32 %v5911, 16
      %v6070 = vrot.slane %v6068, 5
      %v6071 = vor.u32 %v6067, %v6070
      %v6072 = vrot.slane %v6071, 4
      %v6074 = vshll.u32 %v5912, 16
      %v6076 = vrot.slane %v6074, 5
      %v6077 = vsel %vm869, %v6072, %v6076
      %v6078 = vshrl.u32 %v5912, 16
      %v6080 = vrot.slane %v6078, 4
      %v6081 = vor.u32 %v6080, %v6076
      %v6082 = vrot.slane %v6081, 4
      %v6084 = vshll.u32 %v5913, 16
      %v6086 = vrot.slane %v6084, 5
      %v6087 = vsel %vm869, %v6082, %v6086
      %v6089 = vshrl.u32 %v5914, 16
      %v6091 = vrot.slane %v6089, 4
      %v6092 = vshll.u32 %v5914, 16
      %v6094 = vrot.slane %v6092, 5
      %v6095 = vor.u32 %v6091, %v6094
      %v6096 = vrot.slane %v6095, 4
      %v6098 = vshll.u32 %v5915, 16
      %v6100 = vrot.slane %v6098, 5
      %v6101 = vsel %vm869, %v6096, %v6100
      %v6102 = vshrl.u32 %v5915, 16
      %v6104 = vrot.slane %v6102, 4
      %v6105 = vor.u32 %v6104, %v6100
      %v6106 = vrot.slane %v6105, 4
      %v6108 = vshll.u32 %v5916, 16
      %v6110 = vrot.slane %v6108, 5
      %v6111 = vsel %vm869, %v6106, %v6110
      %v6113 = vshrl.u32 %v5917, 16
      %v6115 = vrot.slane %v6113, 4
      %v6116 = vshll.u32 %v5917, 16
      %v6118 = vrot.slane %v6116, 5
      %v6119 = vor.u32 %v6115, %v6118
      %v6120 = vrot.slane %v6119, 4
      %v6122 = vshll.u32 %v5918, 16
      %v6124 = vrot.slane %v6122, 5
      %v6125 = vsel %vm869, %v6120, %v6124
      %v6126 = vshrl.u32 %v5918, 16
      %v6128 = vrot.slane %v6126, 4
      %v6129 = vor.u32 %v6128, %v6124
      %v6130 = vrot.slane %v6129, 4
      %v6132 = vshll.u32 %v5919, 16
      %v6134 = vrot.slane %v6132, 5
      %v6135 = vsel %vm869, %v6130, %v6134
      %v6137 = vshrl.u32 %v5920, 16
      %v6139 = vrot.slane %v6137, 4
      %v6140 = vshll.u32 %v5920, 16
      %v6142 = vrot.slane %v6140, 5
      %v6143 = vor.u32 %v6139, %v6142
      %v6144 = vrot.slane %v6143, 4
      %v6146 = vshll.u32 %v5921, 16
      %v6148 = vrot.slane %v6146, 5
      %v6149 = vsel %vm869, %v6144, %v6148
      %v6150 = vshrl.u32 %v5921, 16
      %v6152 = vrot.slane %v6150, 4
      %v6153 = vor.u32 %v6152, %v6148
      %v6154 = vrot.slane %v6153, 4
      %v6156 = vshll.u32 %v5922, 16
      %v6158 = vrot.slane %v6156, 5
      %v6159 = vsel %vm869, %v6154, %v6158
      %v6161 = vshrl.u32 %v5923, 16
      %v6163 = vrot.slane %v6161, 4
      %v6164 = vshll.u32 %v5923, 16
      %v6166 = vrot.slane %v6164, 5
      %v6167 = vor.u32 %v6163, %v6166
      %v6168 = vrot.slane %v6167, 4
      %v6170 = vshll.u32 %v5924, 16
      %v6172 = vrot.slane %v6170, 5
      %v6173 = vsel %vm869, %v6168, %v6172
      %v6174 = vshrl.u32 %v5924, 16
      %v6176 = vrot.slane %v6174, 4
      %v6177 = vor.u32 %v6176, %v6172
      %v6178 = vrot.slane %v6177, 4
      %v6180 = vshll.u32 %v5925, 16
      %v6182 = vrot.slane %v6180, 5
      %v6183 = vsel %vm869, %v6178, %v6182
      %v6185 = vshrl.u32 %v5926, 16
      %v6187 = vrot.slane %v6185, 4
      %v6188 = vshll.u32 %v5926, 16
      %v6190 = vrot.slane %v6188, 5
      %v6191 = vor.u32 %v6187, %v6190
      %v6192 = vrot.slane %v6191, 4
      %v6194 = vshll.u32 %v5927, 16
      %v6196 = vrot.slane %v6194, 5
      %v6197 = vsel %vm869, %v6192, %v6196
      %v6198 = vshrl.u32 %v5927, 16
      %v6200 = vrot.slane %v6198, 4
      %v6201 = vor.u32 %v6200, %v6196
      %v6202 = vrot.slane %v6201, 4
      %v6204 = vshll.u32 %v5928, 16
      %v6206 = vrot.slane %v6204, 5
      %v6207 = vsel %vm869, %v6202, %v6206
      %v6209 = vshrl.u32 %v5929, 16
      %v6211 = vrot.slane %v6209, 4
      %v6212 = vshll.u32 %v5929, 16
      %v6214 = vrot.slane %v6212, 5
      %v6215 = vor.u32 %v6211, %v6214
      %v6216 = vrot.slane %v6215, 4
      %v6218 = vshll.u32 %v5930, 16
      %v6220 = vrot.slane %v6218, 5
      %v6221 = vsel %vm869, %v6216, %v6220
      %v6222 = vshrl.u32 %v5930, 16
      %v6224 = vrot.slane %v6222, 4
      %v6225 = vor.u32 %v6224, %v6220
      %v6226 = vrot.slane %v6225, 4
      %v6228 = vshll.u32 %v5931, 16
      %v6230 = vrot.slane %v6228, 5
      %v6231 = vsel %vm869, %v6226, %v6230
      %v6233 = vshrl.u32 %v5932, 16
      %v6235 = vrot.slane %v6233, 4
      %v6236 = vshll.u32 %v5932, 16
      %v6238 = vrot.slane %v6236, 5
      %v6239 = vor.u32 %v6235, %v6238
      %v6240 = vrot.slane %v6239, 4
      %v6242 = vshll.u32 %v5933, 16
      %v6244 = vrot.slane %v6242, 5
      %v6245 = vsel %vm869, %v6240, %v6244
      %v6246 = vshrl.u32 %v5933, 16
      %v6248 = vrot.slane %v6246, 4
      %v6249 = vor.u32 %v6248, %v6244
      %v6250 = vrot.slane %v6249, 4
      %v6252 = vshll.u32 %v5934, 16
      %v6254 = vrot.slane %v6252, 5
      %v6255 = vsel %vm869, %v6250, %v6254
      %v6257 = vshrl.u32 %v5935, 16
      %v6259 = vrot.slane %v6257, 4
      %v6260 = vshll.u32 %v5935, 16
      %v6262 = vrot.slane %v6260, 5
      %v6263 = vor.u32 %v6259, %v6262
      %v6264 = vrot.slane %v6263, 4
      %v6266 = vshll.u32 %v5936, 16
      %v6268 = vrot.slane %v6266, 5
      %v6269 = vsel %vm869, %v6264, %v6268
      %v6270 = vshrl.u32 %v5936, 16
      %v6272 = vrot.slane %v6270, 4
      %v6273 = vor.u32 %v6272, %v6268
      %v6274 = vrot.slane %v6273, 4
      %v6276 = vshll.u32 %v5937, 16
      %v6278 = vrot.slane %v6276, 5
      %v6279 = vsel %vm869, %v6274, %v6278
      %v6281 = vshrl.u32 %v5938, 16
      %v6283 = vrot.slane %v6281, 4
      %v6284 = vshll.u32 %v5938, 16
      %v6286 = vrot.slane %v6284, 5
      %v6287 = vor.u32 %v6283, %v6286
      %v6288 = vrot.slane %v6287, 4
      %v6290 = vshll.u32 %v5939, 16
      %v6292 = vrot.slane %v6290, 5
      %v6293 = vsel %vm869, %v6288, %v6292
      %v6294 = vshrl.u32 %v5939, 16
      %v6296 = vrot.slane %v6294, 4
      %v6297 = vor.u32 %v6296, %v6292
      %v6298 = vrot.slane %v6297, 4
      %v6300 = vshll.u32 %v5940, 16
      %v6302 = vrot.slane %v6300, 5
      %v6303 = vsel %vm869, %v6298, %v6302
      %v6305 = vshrl.u32 %v5941, 16
      %v6307 = vrot.slane %v6305, 4
      %v6308 = vshll.u32 %v5941, 16
      %v6310 = vrot.slane %v6308, 5
      %v6311 = vor.u32 %v6307, %v6310
      %v6312 = vrot.slane %v6311, 4
      %v6314 = vshll.u32 %v5942, 16
      %v6316 = vrot.slane %v6314, 5
      %v6317 = vsel %vm869, %v6312, %v6316
      %v6318 = vshrl.u32 %v5942, 16
      %v6320 = vrot.slane %v6318, 4
      %v6321 = vor.u32 %v6320, %v6316
      %v6322 = vrot.slane %v6321, 4
      %v6324 = vshll.u32 %v5943, 16
      %v6326 = vrot.slane %v6324, 5
      %v6327 = vsel %vm869, %v6322, %v6326
      %6328 = vrot.lane.b32.xlu0 %v5957, 32
      %v6329 = vpop.permute.xlu0 %6328
      %6330 = vrot.lane.b32.xlu0 %v5967, 32
      %v6331 = vpop.permute.xlu0 %6330
      %6332 = vrot.lane.b32.xlu0 %v5981, 32
      %v6333 = vpop.permute.xlu0 %6332
      %6334 = vrot.lane.b32.xlu0 %v5991, 32
      %v6335 = vpop.permute.xlu0 %6334
      %6336 = vrot.lane.b32.xlu0 %v6005, 32
      %v6337 = vpop.permute.xlu0 %6336
      %6338 = vrot.lane.b32.xlu0 %v6015, 32
      %v6339 = vpop.permute.xlu0 %6338
      %6340 = vrot.lane.b32.xlu0 %v6029, 32
      %v6341 = vpop.permute.xlu0 %6340
      %6342 = vrot.lane.b32.xlu0 %v6039, 32
      %v6343 = vpop.permute.xlu0 %6342
      %6344 = vrot.lane.b32.xlu0 %v6053, 32
      %v6345 = vpop.permute.xlu0 %6344
      %6346 = vrot.lane.b32.xlu0 %v6063, 32
      %v6347 = vpop.permute.xlu0 %6346
      %6348 = vrot.lane.b32.xlu0 %v6077, 32
      %v6349 = vpop.permute.xlu0 %6348
      %6350 = vrot.lane.b32.xlu0 %v6087, 32
      %v6351 = vpop.permute.xlu0 %6350
      %6352 = vrot.lane.b32.xlu0 %v6101, 32
      %v6353 = vpop.permute.xlu0 %6352
      %6354 = vrot.lane.b32.xlu0 %v6111, 32
      %v6355 = vpop.permute.xlu0 %6354
      %6356 = vrot.lane.b32.xlu0 %v6125, 32
      %v6357 = vpop.permute.xlu0 %6356
      %6358 = vrot.lane.b32.xlu0 %v6135, 32
      %v6359 = vpop.permute.xlu0 %6358
      %6360 = vrot.lane.b32.xlu0 %v6149, 32
      %v6361 = vpop.permute.xlu0 %6360
      %6362 = vrot.lane.b32.xlu0 %v6159, 32
      %v6363 = vpop.permute.xlu0 %6362
      %6364 = vrot.lane.b32.xlu0 %v6173, 32
      %v6365 = vpop.permute.xlu0 %6364
      %6366 = vrot.lane.b32.xlu0 %v6183, 32
      %v6367 = vpop.permute.xlu0 %6366
      %6368 = vrot.lane.b32.xlu0 %v6197, 32
      %v6369 = vpop.permute.xlu0 %6368
      %6370 = vrot.lane.b32.xlu0 %v6207, 32
      %v6371 = vpop.permute.xlu0 %6370
      %6372 = vrot.lane.b32.xlu0 %v6221, 32
      %v6373 = vpop.permute.xlu0 %6372
      %6374 = vrot.lane.b32.xlu0 %v6231, 32
      %v6375 = vpop.permute.xlu0 %6374
      %6376 = vrot.lane.b32.xlu0 %v6245, 32
      %v6377 = vpop.permute.xlu0 %6376
      %6378 = vrot.lane.b32.xlu0 %v6255, 32
      %v6379 = vpop.permute.xlu0 %6378
      %6380 = vrot.lane.b32.xlu0 %v6269, 32
      %v6381 = vpop.permute.xlu0 %6380
      %6382 = vrot.lane.b32.xlu0 %v6279, 32
      %v6383 = vpop.permute.xlu0 %6382
      %6384 = vrot.lane.b32.xlu0 %v6293, 32
      %v6385 = vpop.permute.xlu0 %6384
      %6386 = vrot.lane.b32.xlu0 %v6303, 32
      %v6387 = vpop.permute.xlu0 %6386
      %6388 = vrot.lane.b32.xlu0 %v6317, 32
      %v6389 = vpop.permute.xlu0 %6388
      %6390 = vrot.lane.b32.xlu0 %v6327, 32
      %v6391 = vpop.permute.xlu0 %6390
      %vm6424 = vcmask 322816
      %6425 = vst.msk [vmem:[#allocation5] sm:$0xf] %vm6424, %v6329
      %6426 = vst.msk [vmem:[#allocation5 + $0x4] sm:$0xf] %vm6424, %v6331
      %6427 = vst.msk [vmem:[#allocation5 + $0x8] sm:$0xf] %vm6424, %v6333
      %6428 = vst.msk [vmem:[#allocation5 + $0xc] sm:$0xf] %vm6424, %v6335
      %6429 = vst.msk [vmem:[#allocation5 + $0x10] sm:$0xf] %vm6424, %v6337
      %6430 = vst.msk [vmem:[#allocation5 + $0x14] sm:$0xf] %vm6424, %v6339
      %6431 = vst.msk [vmem:[#allocation5 + $0x18] sm:$0xf] %vm6424, %v6341
      %6432 = vst.msk [vmem:[#allocation5 + $0x1c] sm:$0xf] %vm6424, %v6343
      %6433 = vst.msk [vmem:[#allocation5 + $0x20] sm:$0xf] %vm6424, %v6345
      %6434 = vst.msk [vmem:[#allocation5 + $0x24] sm:$0xf] %vm6424, %v6347
      %6435 = vst.msk [vmem:[#allocation5 + $0x28] sm:$0xf] %vm6424, %v6349
      %6436 = vst.msk [vmem:[#allocation5 + $0x2c] sm:$0xf] %vm6424, %v6351
      %6437 = vst.msk [vmem:[#allocation5 + $0x30] sm:$0xf] %vm6424, %v6353
      %6438 = vst.msk [vmem:[#allocation5 + $0x34] sm:$0xf] %vm6424, %v6355
      %6439 = vst.msk [vmem:[#allocation5 + $0x38] sm:$0xf] %vm6424, %v6357
      %6440 = vst.msk [vmem:[#allocation5 + $0x3c] sm:$0xf] %vm6424, %v6359
      %6441 = vst.msk [vmem:[#allocation5 + $0x40] sm:$0xf] %vm6424, %v6361
      %6442 = vst.msk [vmem:[#allocation5 + $0x44] sm:$0xf] %vm6424, %v6363
      %6443 = vst.msk [vmem:[#allocation5 + $0x48] sm:$0xf] %vm6424, %v6365
      %6444 = vst.msk [vmem:[#allocation5 + $0x4c] sm:$0xf] %vm6424, %v6367
      %6445 = vst.msk [vmem:[#allocation5 + $0x50] sm:$0xf] %vm6424, %v6369
      %6446 = vst.msk [vmem:[#allocation5 + $0x54] sm:$0xf] %vm6424, %v6371
      %6447 = vst.msk [vmem:[#allocation5 + $0x58] sm:$0xf] %vm6424, %v6373
      %6448 = vst.msk [vmem:[#allocation5 + $0x5c] sm:$0xf] %vm6424, %v6375
      %6449 = vst.msk [vmem:[#allocation5 + $0x60] sm:$0xf] %vm6424, %v6377
      %6450 = vst.msk [vmem:[#allocation5 + $0x64] sm:$0xf] %vm6424, %v6379
      %6451 = vst.msk [vmem:[#allocation5 + $0x68] sm:$0xf] %vm6424, %v6381
      %6452 = vst.msk [vmem:[#allocation5 + $0x6c] sm:$0xf] %vm6424, %v6383
      %6453 = vst.msk [vmem:[#allocation5 + $0x70] sm:$0xf] %vm6424, %v6385
      %6454 = vst.msk [vmem:[#allocation5 + $0x74] sm:$0xf] %vm6424, %v6387
      %6455 = vst.msk [vmem:[#allocation5 + $0x78] sm:$0xf] %vm6424, %v6389
      %6456 = vst.msk [vmem:[#allocation5 + $0x7c] sm:$0xf] %vm6424, %v6391
      %v6457 = vld [vmem:[%s4624] sm:$0xe]
      %v6458 = vld [vmem:[%s4624 + $0x4] sm:$0xf]
      %v6459 = vld [vmem:[%s4624 + $0x8] sm:$0x1]
      %v6460 = vld [vmem:[%s4624 + $0xc] sm:$0xe]
      %v6461 = vld [vmem:[%s4624 + $0x10] sm:$0xf]
      %v6462 = vld [vmem:[%s4624 + $0x14] sm:$0x1]
      %v6463 = vld [vmem:[%s4624 + $0x18] sm:$0xe]
      %v6464 = vld [vmem:[%s4624 + $0x1c] sm:$0xf]
      %v6465 = vld [vmem:[%s4624 + $0x20] sm:$0x1]
      %v6466 = vld [vmem:[%s4624 + $0x24] sm:$0xe]
      %v6467 = vld [vmem:[%s4624 + $0x28] sm:$0xf]
      %v6468 = vld [vmem:[%s4624 + $0x2c] sm:$0x1]
      %v6469 = vld [vmem:[%s4624 + $0x30] sm:$0xe]
      %v6470 = vld [vmem:[%s4624 + $0x34] sm:$0xf]
      %v6471 = vld [vmem:[%s4624 + $0x38] sm:$0x1]
      %v6472 = vld [vmem:[%s4624 + $0x3c] sm:$0xe]
      %v6473 = vld [vmem:[%s4624 + $0x40] sm:$0xf]
      %v6474 = vld [vmem:[%s4624 + $0x44] sm:$0x1]
      %v6475 = vld [vmem:[%s4624 + $0x48] sm:$0xe]
      %v6476 = vld [vmem:[%s4624 + $0x4c] sm:$0xf]
      %v6477 = vld [vmem:[%s4624 + $0x50] sm:$0x1]
      %v6478 = vld [vmem:[%s4624 + $0x54] sm:$0xe]
      %v6479 = vld [vmem:[%s4624 + $0x58] sm:$0xf]
      %v6480 = vld [vmem:[%s4624 + $0x5c] sm:$0x1]
      %v6481 = vld [vmem:[%s4624 + $0x60] sm:$0xe]
      %v6482 = vld [vmem:[%s4624 + $0x64] sm:$0xf]
      %v6483 = vld [vmem:[%s4624 + $0x68] sm:$0x1]
      %v6484 = vld [vmem:[%s4624 + $0x6c] sm:$0xe]
      %v6485 = vld [vmem:[%s4624 + $0x70] sm:$0xf]
      %v6486 = vld [vmem:[%s4624 + $0x74] sm:$0x1]
      %v6487 = vld [vmem:[%s4624 + $0x78] sm:$0xe]
      %v6488 = vld [vmem:[%s4624 + $0x7c] sm:$0xf]
      %v6489 = vld [vmem:[%s4624 + $0x80] sm:$0x1]
      %v6490 = vld [vmem:[%s4624 + $0x84] sm:$0xe]
      %v6491 = vld [vmem:[%s4624 + $0x88] sm:$0xf]
      %v6492 = vld [vmem:[%s4624 + $0x8c] sm:$0x1]
      %v6493 = vld [vmem:[%s4624 + $0x90] sm:$0xe]
      %v6494 = vld [vmem:[%s4624 + $0x94] sm:$0xf]
      %v6495 = vld [vmem:[%s4624 + $0x98] sm:$0x1]
      %v6496 = vld [vmem:[%s4624 + $0x9c] sm:$0xe]
      %v6497 = vld [vmem:[%s4624 + $0xa0] sm:$0xf]
      %v6498 = vld [vmem:[%s4624 + $0xa4] sm:$0x1]
      %v6499 = vld [vmem:[%s4624 + $0xa8] sm:$0xe]
      %v6500 = vld [vmem:[%s4624 + $0xac] sm:$0xf]
      %v6501 = vld [vmem:[%s4624 + $0xb0] sm:$0x1]
      %v6502 = vld [vmem:[%s4624 + $0xb4] sm:$0xe]
      %v6503 = vld [vmem:[%s4624 + $0xb8] sm:$0xf]
      %v6504 = vld [vmem:[%s4624 + $0xbc] sm:$0x1]
      %v6553 = vrot.slane %v6457, 5
      %v6554 = vrot.slane %v6553, 4
      %v6555 = vrot.slane %v6458, 5
      %v6556 = vsel %vm1481, %v6554, %v6555
      %v6557 = vrot.slane %v6555, 4
      %v6558 = vrot.slane %v6459, 5
      %v6559 = vsel %vm1481, %v6557, %v6558
      %v6560 = vrot.slane %v6460, 5
      %v6561 = vrot.slane %v6560, 4
      %v6562 = vrot.slane %v6461, 5
      %v6563 = vsel %vm1481, %v6561, %v6562
      %v6564 = vrot.slane %v6562, 4
      %v6565 = vrot.slane %v6462, 5
      %v6566 = vsel %vm1481, %v6564, %v6565
      %v6567 = vrot.slane %v6463, 5
      %v6568 = vrot.slane %v6567, 4
      %v6569 = vrot.slane %v6464, 5
      %v6570 = vsel %vm1481, %v6568, %v6569
      %v6571 = vrot.slane %v6569, 4
      %v6572 = vrot.slane %v6465, 5
      %v6573 = vsel %vm1481, %v6571, %v6572
      %v6574 = vrot.slane %v6466, 5
      %v6575 = vrot.slane %v6574, 4
      %v6576 = vrot.slane %v6467, 5
      %v6577 = vsel %vm1481, %v6575, %v6576
      %v6578 = vrot.slane %v6576, 4
      %v6579 = vrot.slane %v6468, 5
      %v6580 = vsel %vm1481, %v6578, %v6579
      %v6581 = vrot.slane %v6469, 5
      %v6582 = vrot.slane %v6581, 4
      %v6583 = vrot.slane %v6470, 5
      %v6584 = vsel %vm1481, %v6582, %v6583
      %v6585 = vrot.slane %v6583, 4
      %v6586 = vrot.slane %v6471, 5
      %v6587 = vsel %vm1481, %v6585, %v6586
      %v6588 = vrot.slane %v6472, 5
      %v6589 = vrot.slane %v6588, 4
      %v6590 = vrot.slane %v6473, 5
      %v6591 = vsel %vm1481, %v6589, %v6590
      %v6592 = vrot.slane %v6590, 4
      %v6593 = vrot.slane %v6474, 5
      %v6594 = vsel %vm1481, %v6592, %v6593
      %v6595 = vrot.slane %v6475, 5
      %v6596 = vrot.slane %v6595, 4
      %v6597 = vrot.slane %v6476, 5
      %v6598 = vsel %vm1481, %v6596, %v6597
      %v6599 = vrot.slane %v6597, 4
      %v6600 = vrot.slane %v6477, 5
      %v6601 = vsel %vm1481, %v6599, %v6600
      %v6602 = vrot.slane %v6478, 5
      %v6603 = vrot.slane %v6602, 4
      %v6604 = vrot.slane %v6479, 5
      %v6605 = vsel %vm1481, %v6603, %v6604
      %v6606 = vrot.slane %v6604, 4
      %v6607 = vrot.slane %v6480, 5
      %v6608 = vsel %vm1481, %v6606, %v6607
      %v6609 = vrot.slane %v6481, 5
      %v6610 = vrot.slane %v6609, 4
      %v6611 = vrot.slane %v6482, 5
      %v6612 = vsel %vm1481, %v6610, %v6611
      %v6613 = vrot.slane %v6611, 4
      %v6614 = vrot.slane %v6483, 5
      %v6615 = vsel %vm1481, %v6613, %v6614
      %v6616 = vrot.slane %v6484, 5
      %v6617 = vrot.slane %v6616, 4
      %v6618 = vrot.slane %v6485, 5
      %v6619 = vsel %vm1481, %v6617, %v6618
      %v6620 = vrot.slane %v6618, 4
      %v6621 = vrot.slane %v6486, 5
      %v6622 = vsel %vm1481, %v6620, %v6621
      %v6623 = vrot.slane %v6487, 5
      %v6624 = vrot.slane %v6623, 4
      %v6625 = vrot.slane %v6488, 5
      %v6626 = vsel %vm1481, %v6624, %v6625
      %v6627 = vrot.slane %v6625, 4
      %v6628 = vrot.slane %v6489, 5
      %v6629 = vsel %vm1481, %v6627, %v6628
      %v6630 = vrot.slane %v6490, 5
      %v6631 = vrot.slane %v6630, 4
      %v6632 = vrot.slane %v6491, 5
      %v6633 = vsel %vm1481, %v6631, %v6632
      %v6634 = vrot.slane %v6632, 4
      %v6635 = vrot.slane %v6492, 5
      %v6636 = vsel %vm1481, %v6634, %v6635
      %v6637 = vrot.slane %v6493, 5
      %v6638 = vrot.slane %v6637, 4
      %v6639 = vrot.slane %v6494, 5
      %v6640 = vsel %vm1481, %v6638, %v6639
      %v6641 = vrot.slane %v6639, 4
      %v6642 = vrot.slane %v6495, 5
      %v6643 = vsel %vm1481, %v6641, %v6642
      %v6644 = vrot.slane %v6496, 5
      %v6645 = vrot.slane %v6644, 4
      %v6646 = vrot.slane %v6497, 5
      %v6647 = vsel %vm1481, %v6645, %v6646
      %v6648 = vrot.slane %v6646, 4
      %v6649 = vrot.slane %v6498, 5
      %v6650 = vsel %vm1481, %v6648, %v6649
      %v6651 = vrot.slane %v6499, 5
      %v6652 = vrot.slane %v6651, 4
      %v6653 = vrot.slane %v6500, 5
      %v6654 = vsel %vm1481, %v6652, %v6653
      %v6655 = vrot.slane %v6653, 4
      %v6656 = vrot.slane %v6501, 5
      %v6657 = vsel %vm1481, %v6655, %v6656
      %v6658 = vrot.slane %v6502, 5
      %v6659 = vrot.slane %v6658, 4
      %v6660 = vrot.slane %v6503, 5
      %v6661 = vsel %vm1481, %v6659, %v6660
      %v6662 = vrot.slane %v6660, 4
      %v6663 = vrot.slane %v6504, 5
      %v6664 = vsel %vm1481, %v6662, %v6663
      %6665 = vrot.lane.b32.xlu0 %v6556, 40
      %v6666 = vpop.permute.xlu0 %6665
      %6667 = vrot.lane.b32.xlu0 %v6559, 40
      %v6668 = vpop.permute.xlu0 %6667
      %6669 = vrot.lane.b32.xlu0 %v6563, 40
      %v6670 = vpop.permute.xlu0 %6669
      %6671 = vrot.lane.b32.xlu0 %v6566, 40
      %v6672 = vpop.permute.xlu0 %6671
      %6673 = vrot.lane.b32.xlu0 %v6570, 40
      %v6674 = vpop.permute.xlu0 %6673
      %6675 = vrot.lane.b32.xlu0 %v6573, 40
      %v6676 = vpop.permute.xlu0 %6675
      %6677 = vrot.lane.b32.xlu0 %v6577, 40
      %v6678 = vpop.permute.xlu0 %6677
      %6679 = vrot.lane.b32.xlu0 %v6580, 40
      %v6680 = vpop.permute.xlu0 %6679
      %6681 = vrot.lane.b32.xlu0 %v6584, 40
      %v6682 = vpop.permute.xlu0 %6681
      %6683 = vrot.lane.b32.xlu0 %v6587, 40
      %v6684 = vpop.permute.xlu0 %6683
      %6685 = vrot.lane.b32.xlu0 %v6591, 40
      %v6686 = vpop.permute.xlu0 %6685
      %6687 = vrot.lane.b32.xlu0 %v6594, 40
      %v6688 = vpop.permute.xlu0 %6687
      %6689 = vrot.lane.b32.xlu0 %v6598, 40
      %v6690 = vpop.permute.xlu0 %6689
      %6691 = vrot.lane.b32.xlu0 %v6601, 40
      %v6692 = vpop.permute.xlu0 %6691
      %6693 = vrot.lane.b32.xlu0 %v6605, 40
      %v6694 = vpop.permute.xlu0 %6693
      %6695 = vrot.lane.b32.xlu0 %v6608, 40
      %v6696 = vpop.permute.xlu0 %6695
      %6697 = vrot.lane.b32.xlu0 %v6612, 40
      %v6698 = vpop.permute.xlu0 %6697
      %6699 = vrot.lane.b32.xlu0 %v6615, 40
      %v6700 = vpop.permute.xlu0 %6699
      %6701 = vrot.lane.b32.xlu0 %v6619, 40
      %v6702 = vpop.permute.xlu0 %6701
      %6703 = vrot.lane.b32.xlu0 %v6622, 40
      %v6704 = vpop.permute.xlu0 %6703
      %6705 = vrot.lane.b32.xlu0 %v6626, 40
      %v6706 = vpop.permute.xlu0 %6705
      %6707 = vrot.lane.b32.xlu0 %v6629, 40
      %v6708 = vpop.permute.xlu0 %6707
      %6709 = vrot.lane.b32.xlu0 %v6633, 40
      %v6710 = vpop.permute.xlu0 %6709
      %6711 = vrot.lane.b32.xlu0 %v6636, 40
      %v6712 = vpop.permute.xlu0 %6711
      %6713 = vrot.lane.b32.xlu0 %v6640, 40
      %v6714 = vpop.permute.xlu0 %6713
      %6715 = vrot.lane.b32.xlu0 %v6643, 40
      %v6716 = vpop.permute.xlu0 %6715
      %6717 = vrot.lane.b32.xlu0 %v6647, 40
      %v6718 = vpop.permute.xlu0 %6717
      %6719 = vrot.lane.b32.xlu0 %v6650, 40
      %v6720 = vpop.permute.xlu0 %6719
      %6721 = vrot.lane.b32.xlu0 %v6654, 40
      %v6722 = vpop.permute.xlu0 %6721
      %6723 = vrot.lane.b32.xlu0 %v6657, 40
      %v6724 = vpop.permute.xlu0 %6723
      %6725 = vrot.lane.b32.xlu0 %v6661, 40
      %v6726 = vpop.permute.xlu0 %6725
      %6727 = vrot.lane.b32.xlu0 %v6664, 40
      %v6728 = vpop.permute.xlu0 %6727
      %vm6761 = vcmask 388416
      %6762 = vst.msk [vmem:[#allocation5] sm:$0xf] %vm6761, %v6666
      %6763 = vst.msk [vmem:[#allocation5 + $0x4] sm:$0xf] %vm6761, %v6668
      %6764 = vst.msk [vmem:[#allocation5 + $0x8] sm:$0xf] %vm6761, %v6670
      %6765 = vst.msk [vmem:[#allocation5 + $0xc] sm:$0xf] %vm6761, %v6672
      %6766 = vst.msk [vmem:[#allocation5 + $0x10] sm:$0xf] %vm6761, %v6674
      %6767 = vst.msk [vmem:[#allocation5 + $0x14] sm:$0xf] %vm6761, %v6676
      %6768 = vst.msk [vmem:[#allocation5 + $0x18] sm:$0xf] %vm6761, %v6678
      %6769 = vst.msk [vmem:[#allocation5 + $0x1c] sm:$0xf] %vm6761, %v6680
      %6770 = vst.msk [vmem:[#allocation5 + $0x20] sm:$0xf] %vm6761, %v6682
      %6771 = vst.msk [vmem:[#allocation5 + $0x24] sm:$0xf] %vm6761, %v6684
      %6772 = vst.msk [vmem:[#allocation5 + $0x28] sm:$0xf] %vm6761, %v6686
      %6773 = vst.msk [vmem:[#allocation5 + $0x2c] sm:$0xf] %vm6761, %v6688
      %6774 = vst.msk [vmem:[#allocation5 + $0x30] sm:$0xf] %vm6761, %v6690
      %6775 = vst.msk [vmem:[#allocation5 + $0x34] sm:$0xf] %vm6761, %v6692
      %6776 = vst.msk [vmem:[#allocation5 + $0x38] sm:$0xf] %vm6761, %v6694
      %6777 = vst.msk [vmem:[#allocation5 + $0x3c] sm:$0xf] %vm6761, %v6696
      %6778 = vst.msk [vmem:[#allocation5 + $0x40] sm:$0xf] %vm6761, %v6698
      %6779 = vst.msk [vmem:[#allocation5 + $0x44] sm:$0xf] %vm6761, %v6700
      %6780 = vst.msk [vmem:[#allocation5 + $0x48] sm:$0xf] %vm6761, %v6702
      %6781 = vst.msk [vmem:[#allocation5 + $0x4c] sm:$0xf] %vm6761, %v6704
      %6782 = vst.msk [vmem:[#allocation5 + $0x50] sm:$0xf] %vm6761, %v6706
      %6783 = vst.msk [vmem:[#allocation5 + $0x54] sm:$0xf] %vm6761, %v6708
      %6784 = vst.msk [vmem:[#allocation5 + $0x58] sm:$0xf] %vm6761, %v6710
      %6785 = vst.msk [vmem:[#allocation5 + $0x5c] sm:$0xf] %vm6761, %v6712
      %6786 = vst.msk [vmem:[#allocation5 + $0x60] sm:$0xf] %vm6761, %v6714
      %6787 = vst.msk [vmem:[#allocation5 + $0x64] sm:$0xf] %vm6761, %v6716
      %6788 = vst.msk [vmem:[#allocation5 + $0x68] sm:$0xf] %vm6761, %v6718
      %6789 = vst.msk [vmem:[#allocation5 + $0x6c] sm:$0xf] %vm6761, %v6720
      %6790 = vst.msk [vmem:[#allocation5 + $0x70] sm:$0xf] %vm6761, %v6722
      %6791 = vst.msk [vmem:[#allocation5 + $0x74] sm:$0xf] %vm6761, %v6724
      %6792 = vst.msk [vmem:[#allocation5 + $0x78] sm:$0xf] %vm6761, %v6726
      %6793 = vst.msk [vmem:[#allocation5 + $0x7c] sm:$0xf] %vm6761, %v6728
      %s6794 = scalar_lea.vmem [#allocation4], 24
      %v6795 = vld [vmem:[%s6794] sm:$0xf]
      %v6796 = vld [vmem:[%s6794 + $0x4] sm:$0xf]
      %v6797 = vld [vmem:[%s6794 + $0xc] sm:$0xf]
      %v6798 = vld [vmem:[%s6794 + $0x10] sm:$0xf]
      %v6799 = vld [vmem:[%s6794 + $0x18] sm:$0xf]
      %v6800 = vld [vmem:[%s6794 + $0x1c] sm:$0xf]
      %v6801 = vld [vmem:[%s6794 + $0x24] sm:$0xf]
      %v6802 = vld [vmem:[%s6794 + $0x28] sm:$0xf]
      %v6803 = vld [vmem:[%s6794 + $0x30] sm:$0xf]
      %v6804 = vld [vmem:[%s6794 + $0x34] sm:$0xf]
      %v6805 = vld [vmem:[%s6794 + $0x3c] sm:$0xf]
      %v6806 = vld [vmem:[%s6794 + $0x40] sm:$0xf]
      %v6807 = vld [vmem:[%s6794 + $0x48] sm:$0xf]
      %v6808 = vld [vmem:[%s6794 + $0x4c] sm:$0xf]
      %v6809 = vld [vmem:[%s6794 + $0x54] sm:$0xf]
      %v6810 = vld [vmem:[%s6794 + $0x58] sm:$0xf]
      %v6811 = vld [vmem:[%s6794 + $0x60] sm:$0xf]
      %v6812 = vld [vmem:[%s6794 + $0x64] sm:$0xf]
      %v6813 = vld [vmem:[%s6794 + $0x6c] sm:$0xf]
      %v6814 = vld [vmem:[%s6794 + $0x70] sm:$0xf]
      %v6815 = vld [vmem:[%s6794 + $0x78] sm:$0xf]
      %v6816 = vld [vmem:[%s6794 + $0x7c] sm:$0xf]
      %v6817 = vld [vmem:[%s6794 + $0x84] sm:$0xf]
      %v6818 = vld [vmem:[%s6794 + $0x88] sm:$0xf]
      %v6819 = vld [vmem:[%s6794 + $0x90] sm:$0xf]
      %v6820 = vld [vmem:[%s6794 + $0x94] sm:$0xf]
      %v6821 = vld [vmem:[%s6794 + $0x9c] sm:$0xf]
      %v6822 = vld [vmem:[%s6794 + $0xa0] sm:$0xf]
      %v6823 = vld [vmem:[%s6794 + $0xa8] sm:$0xf]
      %v6824 = vld [vmem:[%s6794 + $0xac] sm:$0xf]
      %v6825 = vld [vmem:[%s6794 + $0xb4] sm:$0xf]
      %v6826 = vld [vmem:[%s6794 + $0xb8] sm:$0xf]
      %6859 = vrot.lane.b32.xlu0 %v6795, 48
      %v6860 = vpop.permute.xlu0 %6859
      %6861 = vrot.lane.b32.xlu0 %v6796, 48
      %v6862 = vpop.permute.xlu0 %6861
      %6863 = vrot.lane.b32.xlu0 %v6797, 48
      %v6864 = vpop.permute.xlu0 %6863
      %6865 = vrot.lane.b32.xlu0 %v6798, 48
      %v6866 = vpop.permute.xlu0 %6865
      %6867 = vrot.lane.b32.xlu0 %v6799, 48
      %v6868 = vpop.permute.xlu0 %6867
      %6869 = vrot.lane.b32.xlu0 %v6800, 48
      %v6870 = vpop.permute.xlu0 %6869
      %6871 = vrot.lane.b32.xlu0 %v6801, 48
      %v6872 = vpop.permute.xlu0 %6871
      %6873 = vrot.lane.b32.xlu0 %v6802, 48
      %v6874 = vpop.permute.xlu0 %6873
      %6875 = vrot.lane.b32.xlu0 %v6803, 48
      %v6876 = vpop.permute.xlu0 %6875
      %6877 = vrot.lane.b32.xlu0 %v6804, 48
      %v6878 = vpop.permute.xlu0 %6877
      %6879 = vrot.lane.b32.xlu0 %v6805, 48
      %v6880 = vpop.permute.xlu0 %6879
      %6881 = vrot.lane.b32.xlu0 %v6806, 48
      %v6882 = vpop.permute.xlu0 %6881
      %6883 = vrot.lane.b32.xlu0 %v6807, 48
      %v6884 = vpop.permute.xlu0 %6883
      %6885 = vrot.lane.b32.xlu0 %v6808, 48
      %v6886 = vpop.permute.xlu0 %6885
      %6887 = vrot.lane.b32.xlu0 %v6809, 48
      %v6888 = vpop.permute.xlu0 %6887
      %6889 = vrot.lane.b32.xlu0 %v6810, 48
      %v6890 = vpop.permute.xlu0 %6889
      %6891 = vrot.lane.b32.xlu0 %v6811, 48
      %v6892 = vpop.permute.xlu0 %6891
      %6893 = vrot.lane.b32.xlu0 %v6812, 48
      %v6894 = vpop.permute.xlu0 %6893
      %6895 = vrot.lane.b32.xlu0 %v6813, 48
      %v6896 = vpop.permute.xlu0 %6895
      %6897 = vrot.lane.b32.xlu0 %v6814, 48
      %v6898 = vpop.permute.xlu0 %6897
      %6899 = vrot.lane.b32.xlu0 %v6815, 48
      %v6900 = vpop.permute.xlu0 %6899
      %6901 = vrot.lane.b32.xlu0 %v6816, 48
      %v6902 = vpop.permute.xlu0 %6901
      %6903 = vrot.lane.b32.xlu0 %v6817, 48
      %v6904 = vpop.permute.xlu0 %6903
      %6905 = vrot.lane.b32.xlu0 %v6818, 48
      %v6906 = vpop.permute.xlu0 %6905
      %6907 = vrot.lane.b32.xlu0 %v6819, 48
      %v6908 = vpop.permute.xlu0 %6907
      %6909 = vrot.lane.b32.xlu0 %v6820, 48
      %v6910 = vpop.permute.xlu0 %6909
      %6911 = vrot.lane.b32.xlu0 %v6821, 48
      %v6912 = vpop.permute.xlu0 %6911
      %6913 = vrot.lane.b32.xlu0 %v6822, 48
      %v6914 = vpop.permute.xlu0 %6913
      %6915 = vrot.lane.b32.xlu0 %v6823, 48
      %v6916 = vpop.permute.xlu0 %6915
      %6917 = vrot.lane.b32.xlu0 %v6824, 48
      %v6918 = vpop.permute.xlu0 %6917
      %6919 = vrot.lane.b32.xlu0 %v6825, 48
      %v6920 = vpop.permute.xlu0 %6919
      %6921 = vrot.lane.b32.xlu0 %v6826, 48
      %v6922 = vpop.permute.xlu0 %6921
      %vm6955 = vcmask 454016
      %6956 = vst.msk [vmem:[#allocation5] sm:$0xf] %vm6955, %v6860
      %6957 = vst.msk [vmem:[#allocation5 + $0x4] sm:$0xf] %vm6955, %v6862
      %6958 = vst.msk [vmem:[#allocation5 + $0x8] sm:$0xf] %vm6955, %v6864
      %6959 = vst.msk [vmem:[#allocation5 + $0xc] sm:$0xf] %vm6955, %v6866
      %6960 = vst.msk [vmem:[#allocation5 + $0x10] sm:$0xf] %vm6955, %v6868
      %6961 = vst.msk [vmem:[#allocation5 + $0x14] sm:$0xf] %vm6955, %v6870
      %6962 = vst.msk [vmem:[#allocation5 + $0x18] sm:$0xf] %vm6955, %v6872
      %6963 = vst.msk [vmem:[#allocation5 + $0x1c] sm:$0xf] %vm6955, %v6874
      %6964 = vst.msk [vmem:[#allocation5 + $0x20] sm:$0xf] %vm6955, %v6876
      %6965 = vst.msk [vmem:[#allocation5 + $0x24] sm:$0xf] %vm6955, %v6878
      %6966 = vst.msk [vmem:[#allocation5 + $0x28] sm:$0xf] %vm6955, %v6880
      %6967 = vst.msk [vmem:[#allocation5 + $0x2c] sm:$0xf] %vm6955, %v6882
      %6968 = vst.msk [vmem:[#allocation5 + $0x30] sm:$0xf] %vm6955, %v6884
      %6969 = vst.msk [vmem:[#allocation5 + $0x34] sm:$0xf] %vm6955, %v6886
      %6970 = vst.msk [vmem:[#allocation5 + $0x38] sm:$0xf] %vm6955, %v6888
      %6971 = vst.msk [vmem:[#allocation5 + $0x3c] sm:$0xf] %vm6955, %v6890
      %6972 = vst.msk [vmem:[#allocation5 + $0x40] sm:$0xf] %vm6955, %v6892
      %6973 = vst.msk [vmem:[#allocation5 + $0x44] sm:$0xf] %vm6955, %v6894
      %6974 = vst.msk [vmem:[#allocation5 + $0x48] sm:$0xf] %vm6955, %v6896
      %6975 = vst.msk [vmem:[#allocation5 + $0x4c] sm:$0xf] %vm6955, %v6898
      %6976 = vst.msk [vmem:[#allocation5 + $0x50] sm:$0xf] %vm6955, %v6900
      %6977 = vst.msk [vmem:[#allocation5 + $0x54] sm:$0xf] %vm6955, %v6902
      %6978 = vst.msk [vmem:[#allocation5 + $0x58] sm:$0xf] %vm6955, %v6904
      %6979 = vst.msk [vmem:[#allocation5 + $0x5c] sm:$0xf] %vm6955, %v6906
      %6980 = vst.msk [vmem:[#allocation5 + $0x60] sm:$0xf] %vm6955, %v6908
      %6981 = vst.msk [vmem:[#allocation5 + $0x64] sm:$0xf] %vm6955, %v6910
      %6982 = vst.msk [vmem:[#allocation5 + $0x68] sm:$0xf] %vm6955, %v6912
      %6983 = vst.msk [vmem:[#allocation5 + $0x6c] sm:$0xf] %vm6955, %v6914
      %6984 = vst.msk [vmem:[#allocation5 + $0x70] sm:$0xf] %vm6955, %v6916
      %6985 = vst.msk [vmem:[#allocation5 + $0x74] sm:$0xf] %vm6955, %v6918
      %6986 = vst.msk [vmem:[#allocation5 + $0x78] sm:$0xf] %vm6955, %v6920
      %6987 = vst.msk [vmem:[#allocation5 + $0x7c] sm:$0xf] %vm6955, %v6922
      %v6988 = vld [vmem:[%s6794] sm:$0xf]
      %v6989 = vld [vmem:[%s6794 + $0x4] sm:$0xf]
      %v6990 = vld [vmem:[%s6794 + $0x8] sm:$0x1]
      %v6991 = vld [vmem:[%s6794 + $0xc] sm:$0xf]
      %v6992 = vld [vmem:[%s6794 + $0x10] sm:$0xf]
      %v6993 = vld [vmem:[%s6794 + $0x14] sm:$0x1]
      %v6994 = vld [vmem:[%s6794 + $0x18] sm:$0xf]
      %v6995 = vld [vmem:[%s6794 + $0x1c] sm:$0xf]
      %v6996 = vld [vmem:[%s6794 + $0x20] sm:$0x1]
      %v6997 = vld [vmem:[%s6794 + $0x24] sm:$0xf]
      %v6998 = vld [vmem:[%s6794 + $0x28] sm:$0xf]
      %v6999 = vld [vmem:[%s6794 + $0x2c] sm:$0x1]
      %v7000 = vld [vmem:[%s6794 + $0x30] sm:$0xf]
      %v7001 = vld [vmem:[%s6794 + $0x34] sm:$0xf]
      %v7002 = vld [vmem:[%s6794 + $0x38] sm:$0x1]
      %v7003 = vld [vmem:[%s6794 + $0x3c] sm:$0xf]
      %v7004 = vld [vmem:[%s6794 + $0x40] sm:$0xf]
      %v7005 = vld [vmem:[%s6794 + $0x44] sm:$0x1]
      %v7006 = vld [vmem:[%s6794 + $0x48] sm:$0xf]
      %v7007 = vld [vmem:[%s6794 + $0x4c] sm:$0xf]
      %v7008 = vld [vmem:[%s6794 + $0x50] sm:$0x1]
      %v7009 = vld [vmem:[%s6794 + $0x54] sm:$0xf]
      %v7010 = vld [vmem:[%s6794 + $0x58] sm:$0xf]
      %v7011 = vld [vmem:[%s6794 + $0x5c] sm:$0x1]
      %v7012 = vld [vmem:[%s6794 + $0x60] sm:$0xf]
      %v7013 = vld [vmem:[%s6794 + $0x64] sm:$0xf]
      %v7014 = vld [vmem:[%s6794 + $0x68] sm:$0x1]
      %v7015 = vld [vmem:[%s6794 + $0x6c] sm:$0xf]
      %v7016 = vld [vmem:[%s6794 + $0x70] sm:$0xf]
      %v7017 = vld [vmem:[%s6794 + $0x74] sm:$0x1]
      %v7018 = vld [vmem:[%s6794 + $0x78] sm:$0xf]
      %v7019 = vld [vmem:[%s6794 + $0x7c] sm:$0xf]
      %v7020 = vld [vmem:[%s6794 + $0x80] sm:$0x1]
      %v7021 = vld [vmem:[%s6794 + $0x84] sm:$0xf]
      %v7022 = vld [vmem:[%s6794 + $0x88] sm:$0xf]
      %v7023 = vld [vmem:[%s6794 + $0x8c] sm:$0x1]
      %v7024 = vld [vmem:[%s6794 + $0x90] sm:$0xf]
      %v7025 = vld [vmem:[%s6794 + $0x94] sm:$0xf]
      %v7026 = vld [vmem:[%s6794 + $0x98] sm:$0x1]
      %v7027 = vld [vmem:[%s6794 + $0x9c] sm:$0xf]
      %v7028 = vld [vmem:[%s6794 + $0xa0] sm:$0xf]
      %v7029 = vld [vmem:[%s6794 + $0xa4] sm:$0x1]
      %v7030 = vld [vmem:[%s6794 + $0xa8] sm:$0xf]
      %v7031 = vld [vmem:[%s6794 + $0xac] sm:$0xf]
      %v7032 = vld [vmem:[%s6794 + $0xb0] sm:$0x1]
      %v7033 = vld [vmem:[%s6794 + $0xb4] sm:$0xf]
      %v7034 = vld [vmem:[%s6794 + $0xb8] sm:$0xf]
      %v7035 = vld [vmem:[%s6794 + $0xbc] sm:$0x1]
      %v7037 = vshrl.u32 %v6988, 16
      %v7039 = vrot.slane %v7037, 4
      %v7040 = vshll.u32 %v6988, 16
      %v7042 = vrot.slane %v7040, 5
      %v7043 = vor.u32 %v7039, %v7042
      %v7044 = vrot.slane %v7043, 4
      %v7046 = vshll.u32 %v6989, 16
      %v7048 = vrot.slane %v7046, 5
      %v7049 = vsel %vm869, %v7044, %v7048
      %v7050 = vshrl.u32 %v6989, 16
      %v7052 = vrot.slane %v7050, 4
      %v7053 = vor.u32 %v7052, %v7048
      %v7054 = vrot.slane %v7053, 4
      %v7056 = vshll.u32 %v6990, 16
      %v7058 = vrot.slane %v7056, 5
      %v7059 = vsel %vm869, %v7054, %v7058
      %v7061 = vshrl.u32 %v6991, 16
      %v7063 = vrot.slane %v7061, 4
      %v7064 = vshll.u32 %v6991, 16
      %v7066 = vrot.slane %v7064, 5
      %v7067 = vor.u32 %v7063, %v7066
      %v7068 = vrot.slane %v7067, 4
      %v7070 = vshll.u32 %v6992, 16
      %v7072 = vrot.slane %v7070, 5
      %v7073 = vsel %vm869, %v7068, %v7072
      %v7074 = vshrl.u32 %v6992, 16
      %v7076 = vrot.slane %v7074, 4
      %v7077 = vor.u32 %v7076, %v7072
      %v7078 = vrot.slane %v7077, 4
      %v7080 = vshll.u32 %v6993, 16
      %v7082 = vrot.slane %v7080, 5
      %v7083 = vsel %vm869, %v7078, %v7082
      %v7085 = vshrl.u32 %v6994, 16
      %v7087 = vrot.slane %v7085, 4
      %v7088 = vshll.u32 %v6994, 16
      %v7090 = vrot.slane %v7088, 5
      %v7091 = vor.u32 %v7087, %v7090
      %v7092 = vrot.slane %v7091, 4
      %v7094 = vshll.u32 %v6995, 16
      %v7096 = vrot.slane %v7094, 5
      %v7097 = vsel %vm869, %v7092, %v7096
      %v7098 = vshrl.u32 %v6995, 16
      %v7100 = vrot.slane %v7098, 4
      %v7101 = vor.u32 %v7100, %v7096
      %v7102 = vrot.slane %v7101, 4
      %v7104 = vshll.u32 %v6996, 16
      %v7106 = vrot.slane %v7104, 5
      %v7107 = vsel %vm869, %v7102, %v7106
      %v7109 = vshrl.u32 %v6997, 16
      %v7111 = vrot.slane %v7109, 4
      %v7112 = vshll.u32 %v6997, 16
      %v7114 = vrot.slane %v7112, 5
      %v7115 = vor.u32 %v7111, %v7114
      %v7116 = vrot.slane %v7115, 4
      %v7118 = vshll.u32 %v6998, 16
      %v7120 = vrot.slane %v7118, 5
      %v7121 = vsel %vm869, %v7116, %v7120
      %v7122 = vshrl.u32 %v6998, 16
      %v7124 = vrot.slane %v7122, 4
      %v7125 = vor.u32 %v7124, %v7120
      %v7126 = vrot.slane %v7125, 4
      %v7128 = vshll.u32 %v6999, 16
      %v7130 = vrot.slane %v7128, 5
      %v7131 = vsel %vm869, %v7126, %v7130
      %v7133 = vshrl.u32 %v7000, 16
      %v7135 = vrot.slane %v7133, 4
      %v7136 = vshll.u32 %v7000, 16
      %v7138 = vrot.slane %v7136, 5
      %v7139 = vor.u32 %v7135, %v7138
      %v7140 = vrot.slane %v7139, 4
      %v7142 = vshll.u32 %v7001, 16
      %v7144 = vrot.slane %v7142, 5
      %v7145 = vsel %vm869, %v7140, %v7144
      %v7146 = vshrl.u32 %v7001, 16
      %v7148 = vrot.slane %v7146, 4
      %v7149 = vor.u32 %v7148, %v7144
      %v7150 = vrot.slane %v7149, 4
      %v7152 = vshll.u32 %v7002, 16
      %v7154 = vrot.slane %v7152, 5
      %v7155 = vsel %vm869, %v7150, %v7154
      %v7157 = vshrl.u32 %v7003, 16
      %v7159 = vrot.slane %v7157, 4
      %v7160 = vshll.u32 %v7003, 16
      %v7162 = vrot.slane %v7160, 5
      %v7163 = vor.u32 %v7159, %v7162
      %v7164 = vrot.slane %v7163, 4
      %v7166 = vshll.u32 %v7004, 16
      %v7168 = vrot.slane %v7166, 5
      %v7169 = vsel %vm869, %v7164, %v7168
      %v7170 = vshrl.u32 %v7004, 16
      %v7172 = vrot.slane %v7170, 4
      %v7173 = vor.u32 %v7172, %v7168
      %v7174 = vrot.slane %v7173, 4
      %v7176 = vshll.u32 %v7005, 16
      %v7178 = vrot.slane %v7176, 5
      %v7179 = vsel %vm869, %v7174, %v7178
      %v7181 = vshrl.u32 %v7006, 16
      %v7183 = vrot.slane %v7181, 4
      %v7184 = vshll.u32 %v7006, 16
      %v7186 = vrot.slane %v7184, 5
      %v7187 = vor.u32 %v7183, %v7186
      %v7188 = vrot.slane %v7187, 4
      %v7190 = vshll.u32 %v7007, 16
      %v7192 = vrot.slane %v7190, 5
      %v7193 = vsel %vm869, %v7188, %v7192
      %v7194 = vshrl.u32 %v7007, 16
      %v7196 = vrot.slane %v7194, 4
      %v7197 = vor.u32 %v7196, %v7192
      %v7198 = vrot.slane %v7197, 4
      %v7200 = vshll.u32 %v7008, 16
      %v7202 = vrot.slane %v7200, 5
      %v7203 = vsel %vm869, %v7198, %v7202
      %v7205 = vshrl.u32 %v7009, 16
      %v7207 = vrot.slane %v7205, 4
      %v7208 = vshll.u32 %v7009, 16
      %v7210 = vrot.slane %v7208, 5
      %v7211 = vor.u32 %v7207, %v7210
      %v7212 = vrot.slane %v7211, 4
      %v7214 = vshll.u32 %v7010, 16
      %v7216 = vrot.slane %v7214, 5
      %v7217 = vsel %vm869, %v7212, %v7216
      %v7218 = vshrl.u32 %v7010, 16
      %v7220 = vrot.slane %v7218, 4
      %v7221 = vor.u32 %v7220, %v7216
      %v7222 = vrot.slane %v7221, 4
      %v7224 = vshll.u32 %v7011, 16
      %v7226 = vrot.slane %v7224, 5
      %v7227 = vsel %vm869, %v7222, %v7226
      %v7229 = vshrl.u32 %v7012, 16
      %v7231 = vrot.slane %v7229, 4
      %v7232 = vshll.u32 %v7012, 16
      %v7234 = vrot.slane %v7232, 5
      %v7235 = vor.u32 %v7231, %v7234
      %v7236 = vrot.slane %v7235, 4
      %v7238 = vshll.u32 %v7013, 16
      %v7240 = vrot.slane %v7238, 5
      %v7241 = vsel %vm869, %v7236, %v7240
      %v7242 = vshrl.u32 %v7013, 16
      %v7244 = vrot.slane %v7242, 4
      %v7245 = vor.u32 %v7244, %v7240
      %v7246 = vrot.slane %v7245, 4
      %v7248 = vshll.u32 %v7014, 16
      %v7250 = vrot.slane %v7248, 5
      %v7251 = vsel %vm869, %v7246, %v7250
      %v7253 = vshrl.u32 %v7015, 16
      %v7255 = vrot.slane %v7253, 4
      %v7256 = vshll.u32 %v7015, 16
      %v7258 = vrot.slane %v7256, 5
      %v7259 = vor.u32 %v7255, %v7258
      %v7260 = vrot.slane %v7259, 4
      %v7262 = vshll.u32 %v7016, 16
      %v7264 = vrot.slane %v7262, 5
      %v7265 = vsel %vm869, %v7260, %v7264
      %v7266 = vshrl.u32 %v7016, 16
      %v7268 = vrot.slane %v7266, 4
      %v7269 = vor.u32 %v7268, %v7264
      %v7270 = vrot.slane %v7269, 4
      %v7272 = vshll.u32 %v7017, 16
      %v7274 = vrot.slane %v7272, 5
      %v7275 = vsel %vm869, %v7270, %v7274
      %v7277 = vshrl.u32 %v7018, 16
      %v7279 = vrot.slane %v7277, 4
      %v7280 = vshll.u32 %v7018, 16
      %v7282 = vrot.slane %v7280, 5
      %v7283 = vor.u32 %v7279, %v7282
      %v7284 = vrot.slane %v7283, 4
      %v7286 = vshll.u32 %v7019, 16
      %v7288 = vrot.slane %v7286, 5
      %v7289 = vsel %vm869, %v7284, %v7288
      %v7290 = vshrl.u32 %v7019, 16
      %v7292 = vrot.slane %v7290, 4
      %v7293 = vor.u32 %v7292, %v7288
      %v7294 = vrot.slane %v7293, 4
      %v7296 = vshll.u32 %v7020, 16
      %v7298 = vrot.slane %v7296, 5
      %v7299 = vsel %vm869, %v7294, %v7298
      %v7301 = vshrl.u32 %v7021, 16
      %v7303 = vrot.slane %v7301, 4
      %v7304 = vshll.u32 %v7021, 16
      %v7306 = vrot.slane %v7304, 5
      %v7307 = vor.u32 %v7303, %v7306
      %v7308 = vrot.slane %v7307, 4
      %v7310 = vshll.u32 %v7022, 16
      %v7312 = vrot.slane %v7310, 5
      %v7313 = vsel %vm869, %v7308, %v7312
      %v7314 = vshrl.u32 %v7022, 16
      %v7316 = vrot.slane %v7314, 4
      %v7317 = vor.u32 %v7316, %v7312
      %v7318 = vrot.slane %v7317, 4
      %v7320 = vshll.u32 %v7023, 16
      %v7322 = vrot.slane %v7320, 5
      %v7323 = vsel %vm869, %v7318, %v7322
      %v7325 = vshrl.u32 %v7024, 16
      %v7327 = vrot.slane %v7325, 4
      %v7328 = vshll.u32 %v7024, 16
      %v7330 = vrot.slane %v7328, 5
      %v7331 = vor.u32 %v7327, %v7330
      %v7332 = vrot.slane %v7331, 4
      %v7334 = vshll.u32 %v7025, 16
      %v7336 = vrot.slane %v7334, 5
      %v7337 = vsel %vm869, %v7332, %v7336
      %v7338 = vshrl.u32 %v7025, 16
      %v7340 = vrot.slane %v7338, 4
      %v7341 = vor.u32 %v7340, %v7336
      %v7342 = vrot.slane %v7341, 4
      %v7344 = vshll.u32 %v7026, 16
      %v7346 = vrot.slane %v7344, 5
      %v7347 = vsel %vm869, %v7342, %v7346
      %v7349 = vshrl.u32 %v7027, 16
      %v7351 = vrot.slane %v7349, 4
      %v7352 = vshll.u32 %v7027, 16
      %v7354 = vrot.slane %v7352, 5
      %v7355 = vor.u32 %v7351, %v7354
      %v7356 = vrot.slane %v7355, 4
      %v7358 = vshll.u32 %v7028, 16
      %v7360 = vrot.slane %v7358, 5
      %v7361 = vsel %vm869, %v7356, %v7360
      %v7362 = vshrl.u32 %v7028, 16
      %v7364 = vrot.slane %v7362, 4
      %v7365 = vor.u32 %v7364, %v7360
      %v7366 = vrot.slane %v7365, 4
      %v7368 = vshll.u32 %v7029, 16
      %v7370 = vrot.slane %v7368, 5
      %v7371 = vsel %vm869, %v7366, %v7370
      %v7373 = vshrl.u32 %v7030, 16
      %v7375 = vrot.slane %v7373, 4
      %v7376 = vshll.u32 %v7030, 16
      %v7378 = vrot.slane %v7376, 5
      %v7379 = vor.u32 %v7375, %v7378
      %v7380 = vrot.slane %v7379, 4
      %v7382 = vshll.u32 %v7031, 16
      %v7384 = vrot.slane %v7382, 5
      %v7385 = vsel %vm869, %v7380, %v7384
      %v7386 = vshrl.u32 %v7031, 16
      %v7388 = vrot.slane %v7386, 4
      %v7389 = vor.u32 %v7388, %v7384
      %v7390 = vrot.slane %v7389, 4
      %v7392 = vshll.u32 %v7032, 16
      %v7394 = vrot.slane %v7392, 5
      %v7395 = vsel %vm869, %v7390, %v7394
      %v7397 = vshrl.u32 %v7033, 16
      %v7399 = vrot.slane %v7397, 4
      %v7400 = vshll.u32 %v7033, 16
      %v7402 = vrot.slane %v7400, 5
      %v7403 = vor.u32 %v7399, %v7402
      %v7404 = vrot.slane %v7403, 4
      %v7406 = vshll.u32 %v7034, 16
      %v7408 = vrot.slane %v7406, 5
      %v7409 = vsel %vm869, %v7404, %v7408
      %v7410 = vshrl.u32 %v7034, 16
      %v7412 = vrot.slane %v7410, 4
      %v7413 = vor.u32 %v7412, %v7408
      %v7414 = vrot.slane %v7413, 4
      %v7416 = vshll.u32 %v7035, 16
      %v7418 = vrot.slane %v7416, 5
      %v7419 = vsel %vm869, %v7414, %v7418
      %7420 = vrot.lane.b32.xlu0 %v7049, 56
      %v7421 = vpop.permute.xlu0 %7420
      %7422 = vrot.lane.b32.xlu0 %v7059, 56
      %v7423 = vpop.permute.xlu0 %7422
      %7424 = vrot.lane.b32.xlu0 %v7073, 56
      %v7425 = vpop.permute.xlu0 %7424
      %7426 = vrot.lane.b32.xlu0 %v7083, 56
      %v7427 = vpop.permute.xlu0 %7426
      %7428 = vrot.lane.b32.xlu0 %v7097, 56
      %v7429 = vpop.permute.xlu0 %7428
      %7430 = vrot.lane.b32.xlu0 %v7107, 56
      %v7431 = vpop.permute.xlu0 %7430
      %7432 = vrot.lane.b32.xlu0 %v7121, 56
      %v7433 = vpop.permute.xlu0 %7432
      %7434 = vrot.lane.b32.xlu0 %v7131, 56
      %v7435 = vpop.permute.xlu0 %7434
      %7436 = vrot.lane.b32.xlu0 %v7145, 56
      %v7437 = vpop.permute.xlu0 %7436
      %7438 = vrot.lane.b32.xlu0 %v7155, 56
      %v7439 = vpop.permute.xlu0 %7438
      %7440 = vrot.lane.b32.xlu0 %v7169, 56
      %v7441 = vpop.permute.xlu0 %7440
      %7442 = vrot.lane.b32.xlu0 %v7179, 56
      %v7443 = vpop.permute.xlu0 %7442
      %7444 = vrot.lane.b32.xlu0 %v7193, 56
      %v7445 = vpop.permute.xlu0 %7444
      %7446 = vrot.lane.b32.xlu0 %v7203, 56
      %v7447 = vpop.permute.xlu0 %7446
      %7448 = vrot.lane.b32.xlu0 %v7217, 56
      %v7449 = vpop.permute.xlu0 %7448
      %7450 = vrot.lane.b32.xlu0 %v7227, 56
      %v7451 = vpop.permute.xlu0 %7450
      %7452 = vrot.lane.b32.xlu0 %v7241, 56
      %v7453 = vpop.permute.xlu0 %7452
      %7454 = vrot.lane.b32.xlu0 %v7251, 56
      %v7455 = vpop.permute.xlu0 %7454
      %7456 = vrot.lane.b32.xlu0 %v7265, 56
      %v7457 = vpop.permute.xlu0 %7456
      %7458 = vrot.lane.b32.xlu0 %v7275, 56
      %v7459 = vpop.permute.xlu0 %7458
      %7460 = vrot.lane.b32.xlu0 %v7289, 56
      %v7461 = vpop.permute.xlu0 %7460
      %7462 = vrot.lane.b32.xlu0 %v7299, 56
      %v7463 = vpop.permute.xlu0 %7462
      %7464 = vrot.lane.b32.xlu0 %v7313, 56
      %v7465 = vpop.permute.xlu0 %7464
      %7466 = vrot.lane.b32.xlu0 %v7323, 56
      %v7467 = vpop.permute.xlu0 %7466
      %7468 = vrot.lane.b32.xlu0 %v7337, 56
      %v7469 = vpop.permute.xlu0 %7468
      %7470 = vrot.lane.b32.xlu0 %v7347, 56
      %v7471 = vpop.permute.xlu0 %7470
      %7472 = vrot.lane.b32.xlu0 %v7361, 56
      %v7473 = vpop.permute.xlu0 %7472
      %7474 = vrot.lane.b32.xlu0 %v7371, 56
      %v7475 = vpop.permute.xlu0 %7474
      %7476 = vrot.lane.b32.xlu0 %v7385, 56
      %v7477 = vpop.permute.xlu0 %7476
      %7478 = vrot.lane.b32.xlu0 %v7395, 56
      %v7479 = vpop.permute.xlu0 %7478
      %7480 = vrot.lane.b32.xlu0 %v7409, 56
      %v7481 = vpop.permute.xlu0 %7480
      %7482 = vrot.lane.b32.xlu0 %v7419, 56
      %v7483 = vpop.permute.xlu0 %7482
      %vm7516 = vcmask 519616
      %7517 = vst.msk [vmem:[#allocation5] sm:$0xf] %vm7516, %v7421
      %7518 = vst.msk [vmem:[#allocation5 + $0x4] sm:$0xf] %vm7516, %v7423
      %7519 = vst.msk [vmem:[#allocation5 + $0x8] sm:$0xf] %vm7516, %v7425
      %7520 = vst.msk [vmem:[#allocation5 + $0xc] sm:$0xf] %vm7516, %v7427
      %7521 = vst.msk [vmem:[#allocation5 + $0x10] sm:$0xf] %vm7516, %v7429
      %7522 = vst.msk [vmem:[#allocation5 + $0x14] sm:$0xf] %vm7516, %v7431
      %7523 = vst.msk [vmem:[#allocation5 + $0x18] sm:$0xf] %vm7516, %v7433
      %7524 = vst.msk [vmem:[#allocation5 + $0x1c] sm:$0xf] %vm7516, %v7435
      %7525 = vst.msk [vmem:[#allocation5 + $0x20] sm:$0xf] %vm7516, %v7437
      %7526 = vst.msk [vmem:[#allocation5 + $0x24] sm:$0xf] %vm7516, %v7439
      %7527 = vst.msk [vmem:[#allocation5 + $0x28] sm:$0xf] %vm7516, %v7441
      %7528 = vst.msk [vmem:[#allocation5 + $0x2c] sm:$0xf] %vm7516, %v7443
      %7529 = vst.msk [vmem:[#allocation5 + $0x30] sm:$0xf] %vm7516, %v7445
      %7530 = vst.msk [vmem:[#allocation5 + $0x34] sm:$0xf] %vm7516, %v7447
      %7531 = vst.msk [vmem:[#allocation5 + $0x38] sm:$0xf] %vm7516, %v7449
      %7532 = vst.msk [vmem:[#allocation5 + $0x3c] sm:$0xf] %vm7516, %v7451
      %7533 = vst.msk [vmem:[#allocation5 + $0x40] sm:$0xf] %vm7516, %v7453
      %7534 = vst.msk [vmem:[#allocation5 + $0x44] sm:$0xf] %vm7516, %v7455
      %7535 = vst.msk [vmem:[#allocation5 + $0x48] sm:$0xf] %vm7516, %v7457
      %7536 = vst.msk [vmem:[#allocation5 + $0x4c] sm:$0xf] %vm7516, %v7459
      %7537 = vst.msk [vmem:[#allocation5 + $0x50] sm:$0xf] %vm7516, %v7461
      %7538 = vst.msk [vmem:[#allocation5 + $0x54] sm:$0xf] %vm7516, %v7463
      %7539 = vst.msk [vmem:[#allocation5 + $0x58] sm:$0xf] %vm7516, %v7465
      %7540 = vst.msk [vmem:[#allocation5 + $0x5c] sm:$0xf] %vm7516, %v7467
      %7541 = vst.msk [vmem:[#allocation5 + $0x60] sm:$0xf] %vm7516, %v7469
      %7542 = vst.msk [vmem:[#allocation5 + $0x64] sm:$0xf] %vm7516, %v7471
      %7543 = vst.msk [vmem:[#allocation5 + $0x68] sm:$0xf] %vm7516, %v7473
      %7544 = vst.msk [vmem:[#allocation5 + $0x6c] sm:$0xf] %vm7516, %v7475
      %7545 = vst.msk [vmem:[#allocation5 + $0x70] sm:$0xf] %vm7516, %v7477
      %7546 = vst.msk [vmem:[#allocation5 + $0x74] sm:$0xf] %vm7516, %v7479
      %7547 = vst.msk [vmem:[#allocation5 + $0x78] sm:$0xf] %vm7516, %v7481
      %7548 = vst.msk [vmem:[#allocation5 + $0x7c] sm:$0xf] %vm7516, %v7483
      %v7549 = vld [vmem:[%s6794] sm:$0xe]
      %v7550 = vld [vmem:[%s6794 + $0x4] sm:$0xf]
      %v7551 = vld [vmem:[%s6794 + $0x8] sm:$0x1]
      %v7552 = vld [vmem:[%s6794 + $0xc] sm:$0xe]
      %v7553 = vld [vmem:[%s6794 + $0x10] sm:$0xf]
      %v7554 = vld [vmem:[%s6794 + $0x14] sm:$0x1]
      %v7555 = vld [vmem:[%s6794 + $0x18] sm:$0xe]
      %v7556 = vld [vmem:[%s6794 + $0x1c] sm:$0xf]
      %v7557 = vld [vmem:[%s6794 + $0x20] sm:$0x1]
      %v7558 = vld [vmem:[%s6794 + $0x24] sm:$0xe]
      %v7559 = vld [vmem:[%s6794 + $0x28] sm:$0xf]
      %v7560 = vld [vmem:[%s6794 + $0x2c] sm:$0x1]
      %v7561 = vld [vmem:[%s6794 + $0x30] sm:$0xe]
      %v7562 = vld [vmem:[%s6794 + $0x34] sm:$0xf]
      %v7563 = vld [vmem:[%s6794 + $0x38] sm:$0x1]
      %v7564 = vld [vmem:[%s6794 + $0x3c] sm:$0xe]
      %v7565 = vld [vmem:[%s6794 + $0x40] sm:$0xf]
      %v7566 = vld [vmem:[%s6794 + $0x44] sm:$0x1]
      %v7567 = vld [vmem:[%s6794 + $0x48] sm:$0xe]
      %v7568 = vld [vmem:[%s6794 + $0x4c] sm:$0xf]
      %v7569 = vld [vmem:[%s6794 + $0x50] sm:$0x1]
      %v7570 = vld [vmem:[%s6794 + $0x54] sm:$0xe]
      %v7571 = vld [vmem:[%s6794 + $0x58] sm:$0xf]
      %v7572 = vld [vmem:[%s6794 + $0x5c] sm:$0x1]
      %v7573 = vld [vmem:[%s6794 + $0x60] sm:$0xe]
      %v7574 = vld [vmem:[%s6794 + $0x64] sm:$0xf]
      %v7575 = vld [vmem:[%s6794 + $0x68] sm:$0x1]
      %v7576 = vld [vmem:[%s6794 + $0x6c] sm:$0xe]
      %v7577 = vld [vmem:[%s6794 + $0x70] sm:$0xf]
      %v7578 = vld [vmem:[%s6794 + $0x74] sm:$0x1]
      %v7579 = vld [vmem:[%s6794 + $0x78] sm:$0xe]
      %v7580 = vld [vmem:[%s6794 + $0x7c] sm:$0xf]
      %v7581 = vld [vmem:[%s6794 + $0x80] sm:$0x1]
      %v7582 = vld [vmem:[%s6794 + $0x84] sm:$0xe]
      %v7583 = vld [vmem:[%s6794 + $0x88] sm:$0xf]
      %v7584 = vld [vmem:[%s6794 + $0x8c] sm:$0x1]
      %v7585 = vld [vmem:[%s6794 + $0x90] sm:$0xe]
      %v7586 = vld [vmem:[%s6794 + $0x94] sm:$0xf]
      %v7587 = vld [vmem:[%s6794 + $0x98] sm:$0x1]
      %v7588 = vld [vmem:[%s6794 + $0x9c] sm:$0xe]
      %v7589 = vld [vmem:[%s6794 + $0xa0] sm:$0xf]
      %v7590 = vld [vmem:[%s6794 + $0xa4] sm:$0x1]
      %v7591 = vld [vmem:[%s6794 + $0xa8] sm:$0xe]
      %v7592 = vld [vmem:[%s6794 + $0xac] sm:$0xf]
      %v7593 = vld [vmem:[%s6794 + $0xb0] sm:$0x1]
      %v7594 = vld [vmem:[%s6794 + $0xb4] sm:$0xe]
      %v7595 = vld [vmem:[%s6794 + $0xb8] sm:$0xf]
      %v7596 = vld [vmem:[%s6794 + $0xbc] sm:$0x1]
      %v7645 = vrot.slane %v7549, 5
      %v7646 = vrot.slane %v7645, 4
      %v7647 = vrot.slane %v7550, 5
      %v7648 = vsel %vm1481, %v7646, %v7647
      %v7649 = vrot.slane %v7647, 4
      %v7650 = vrot.slane %v7551, 5
      %v7651 = vsel %vm1481, %v7649, %v7650
      %v7652 = vrot.slane %v7552, 5
      %v7653 = vrot.slane %v7652, 4
      %v7654 = vrot.slane %v7553, 5
      %v7655 = vsel %vm1481, %v7653, %v7654
      %v7656 = vrot.slane %v7654, 4
      %v7657 = vrot.slane %v7554, 5
      %v7658 = vsel %vm1481, %v7656, %v7657
      %v7659 = vrot.slane %v7555, 5
      %v7660 = vrot.slane %v7659, 4
      %v7661 = vrot.slane %v7556, 5
      %v7662 = vsel %vm1481, %v7660, %v7661
      %v7663 = vrot.slane %v7661, 4
      %v7664 = vrot.slane %v7557, 5
      %v7665 = vsel %vm1481, %v7663, %v7664
      %v7666 = vrot.slane %v7558, 5
      %v7667 = vrot.slane %v7666, 4
      %v7668 = vrot.slane %v7559, 5
      %v7669 = vsel %vm1481, %v7667, %v7668
      %v7670 = vrot.slane %v7668, 4
      %v7671 = vrot.slane %v7560, 5
      %v7672 = vsel %vm1481, %v7670, %v7671
      %v7673 = vrot.slane %v7561, 5
      %v7674 = vrot.slane %v7673, 4
      %v7675 = vrot.slane %v7562, 5
      %v7676 = vsel %vm1481, %v7674, %v7675
      %v7677 = vrot.slane %v7675, 4
      %v7678 = vrot.slane %v7563, 5
      %v7679 = vsel %vm1481, %v7677, %v7678
      %v7680 = vrot.slane %v7564, 5
      %v7681 = vrot.slane %v7680, 4
      %v7682 = vrot.slane %v7565, 5
      %v7683 = vsel %vm1481, %v7681, %v7682
      %v7684 = vrot.slane %v7682, 4
      %v7685 = vrot.slane %v7566, 5
      %v7686 = vsel %vm1481, %v7684, %v7685
      %v7687 = vrot.slane %v7567, 5
      %v7688 = vrot.slane %v7687, 4
      %v7689 = vrot.slane %v7568, 5
      %v7690 = vsel %vm1481, %v7688, %v7689
      %v7691 = vrot.slane %v7689, 4
      %v7692 = vrot.slane %v7569, 5
      %v7693 = vsel %vm1481, %v7691, %v7692
      %v7694 = vrot.slane %v7570, 5
      %v7695 = vrot.slane %v7694, 4
      %v7696 = vrot.slane %v7571, 5
      %v7697 = vsel %vm1481, %v7695, %v7696
      %v7698 = vrot.slane %v7696, 4
      %v7699 = vrot.slane %v7572, 5
      %v7700 = vsel %vm1481, %v7698, %v7699
      %v7701 = vrot.slane %v7573, 5
      %v7702 = vrot.slane %v7701, 4
      %v7703 = vrot.slane %v7574, 5
      %v7704 = vsel %vm1481, %v7702, %v7703
      %v7705 = vrot.slane %v7703, 4
      %v7706 = vrot.slane %v7575, 5
      %v7707 = vsel %vm1481, %v7705, %v7706
      %v7708 = vrot.slane %v7576, 5
      %v7709 = vrot.slane %v7708, 4
      %v7710 = vrot.slane %v7577, 5
      %v7711 = vsel %vm1481, %v7709, %v7710
      %v7712 = vrot.slane %v7710, 4
      %v7713 = vrot.slane %v7578, 5
      %v7714 = vsel %vm1481, %v7712, %v7713
      %v7715 = vrot.slane %v7579, 5
      %v7716 = vrot.slane %v7715, 4
      %v7717 = vrot.slane %v7580, 5
      %v7718 = vsel %vm1481, %v7716, %v7717
      %v7719 = vrot.slane %v7717, 4
      %v7720 = vrot.slane %v7581, 5
      %v7721 = vsel %vm1481, %v7719, %v7720
      %v7722 = vrot.slane %v7582, 5
      %v7723 = vrot.slane %v7722, 4
      %v7724 = vrot.slane %v7583, 5
      %v7725 = vsel %vm1481, %v7723, %v7724
      %v7726 = vrot.slane %v7724, 4
      %v7727 = vrot.slane %v7584, 5
      %v7728 = vsel %vm1481, %v7726, %v7727
      %v7729 = vrot.slane %v7585, 5
      %v7730 = vrot.slane %v7729, 4
      %v7731 = vrot.slane %v7586, 5
      %v7732 = vsel %vm1481, %v7730, %v7731
      %v7733 = vrot.slane %v7731, 4
      %v7734 = vrot.slane %v7587, 5
      %v7735 = vsel %vm1481, %v7733, %v7734
      %v7736 = vrot.slane %v7588, 5
      %v7737 = vrot.slane %v7736, 4
      %v7738 = vrot.slane %v7589, 5
      %v7739 = vsel %vm1481, %v7737, %v7738
      %v7740 = vrot.slane %v7738, 4
      %v7741 = vrot.slane %v7590, 5
      %v7742 = vsel %vm1481, %v7740, %v7741
      %v7743 = vrot.slane %v7591, 5
      %v7744 = vrot.slane %v7743, 4
      %v7745 = vrot.slane %v7592, 5
      %v7746 = vsel %vm1481, %v7744, %v7745
      %v7747 = vrot.slane %v7745, 4
      %v7748 = vrot.slane %v7593, 5
      %v7749 = vsel %vm1481, %v7747, %v7748
      %v7750 = vrot.slane %v7594, 5
      %v7751 = vrot.slane %v7750, 4
      %v7752 = vrot.slane %v7595, 5
      %v7753 = vsel %vm1481, %v7751, %v7752
      %v7754 = vrot.slane %v7752, 4
      %v7755 = vrot.slane %v7596, 5
      %v7756 = vsel %vm1481, %v7754, %v7755
      %7757 = vrot.lane.b32.xlu0 %v7648, 64
      %v7758 = vpop.permute.xlu0 %7757
      %7759 = vrot.lane.b32.xlu0 %v7651, 64
      %v7760 = vpop.permute.xlu0 %7759
      %7761 = vrot.lane.b32.xlu0 %v7655, 64
      %v7762 = vpop.permute.xlu0 %7761
      %7763 = vrot.lane.b32.xlu0 %v7658, 64
      %v7764 = vpop.permute.xlu0 %7763
      %7765 = vrot.lane.b32.xlu0 %v7662, 64
      %v7766 = vpop.permute.xlu0 %7765
      %7767 = vrot.lane.b32.xlu0 %v7665, 64
      %v7768 = vpop.permute.xlu0 %7767
      %7769 = vrot.lane.b32.xlu0 %v7669, 64
      %v7770 = vpop.permute.xlu0 %7769
      %7771 = vrot.lane.b32.xlu0 %v7672, 64
      %v7772 = vpop.permute.xlu0 %7771
      %7773 = vrot.lane.b32.xlu0 %v7676, 64
      %v7774 = vpop.permute.xlu0 %7773
      %7775 = vrot.lane.b32.xlu0 %v7679, 64
      %v7776 = vpop.permute.xlu0 %7775
      %7777 = vrot.lane.b32.xlu0 %v7683, 64
      %v7778 = vpop.permute.xlu0 %7777
      %7779 = vrot.lane.b32.xlu0 %v7686, 64
      %v7780 = vpop.permute.xlu0 %7779
      %7781 = vrot.lane.b32.xlu0 %v7690, 64
      %v7782 = vpop.permute.xlu0 %7781
      %7783 = vrot.lane.b32.xlu0 %v7693, 64
      %v7784 = vpop.permute.xlu0 %7783
      %7785 = vrot.lane.b32.xlu0 %v7697, 64
      %v7786 = vpop.permute.xlu0 %7785
      %7787 = vrot.lane.b32.xlu0 %v7700, 64
      %v7788 = vpop.permute.xlu0 %7787
      %7789 = vrot.lane.b32.xlu0 %v7704, 64
      %v7790 = vpop.permute.xlu0 %7789
      %7791 = vrot.lane.b32.xlu0 %v7707, 64
      %v7792 = vpop.permute.xlu0 %7791
      %7793 = vrot.lane.b32.xlu0 %v7711, 64
      %v7794 = vpop.permute.xlu0 %7793
      %7795 = vrot.lane.b32.xlu0 %v7714, 64
      %v7796 = vpop.permute.xlu0 %7795
      %7797 = vrot.lane.b32.xlu0 %v7718, 64
      %v7798 = vpop.permute.xlu0 %7797
      %7799 = vrot.lane.b32.xlu0 %v7721, 64
      %v7800 = vpop.permute.xlu0 %7799
      %7801 = vrot.lane.b32.xlu0 %v7725, 64
      %v7802 = vpop.permute.xlu0 %7801
      %7803 = vrot.lane.b32.xlu0 %v7728, 64
      %v7804 = vpop.permute.xlu0 %7803
      %7805 = vrot.lane.b32.xlu0 %v7732, 64
      %v7806 = vpop.permute.xlu0 %7805
      %7807 = vrot.lane.b32.xlu0 %v7735, 64
      %v7808 = vpop.permute.xlu0 %7807
      %7809 = vrot.lane.b32.xlu0 %v7739, 64
      %v7810 = vpop.permute.xlu0 %7809
      %7811 = vrot.lane.b32.xlu0 %v7742, 64
      %v7812 = vpop.permute.xlu0 %7811
      %7813 = vrot.lane.b32.xlu0 %v7746, 64
      %v7814 = vpop.permute.xlu0 %7813
      %7815 = vrot.lane.b32.xlu0 %v7749, 64
      %v7816 = vpop.permute.xlu0 %7815
      %7817 = vrot.lane.b32.xlu0 %v7753, 64
      %v7818 = vpop.permute.xlu0 %7817
      %7819 = vrot.lane.b32.xlu0 %v7756, 64
      %v7820 = vpop.permute.xlu0 %7819
      %vm7853 = vcmask 585216
      %7854 = vst.msk [vmem:[#allocation5] sm:$0xf] %vm7853, %v7758
      %7855 = vst.msk [vmem:[#allocation5 + $0x4] sm:$0xf] %vm7853, %v7760
      %7856 = vst.msk [vmem:[#allocation5 + $0x8] sm:$0xf] %vm7853, %v7762
      %7857 = vst.msk [vmem:[#allocation5 + $0xc] sm:$0xf] %vm7853, %v7764
      %7858 = vst.msk [vmem:[#allocation5 + $0x10] sm:$0xf] %vm7853, %v7766
      %7859 = vst.msk [vmem:[#allocation5 + $0x14] sm:$0xf] %vm7853, %v7768
      %7860 = vst.msk [vmem:[#allocation5 + $0x18] sm:$0xf] %vm7853, %v7770
      %7861 = vst.msk [vmem:[#allocation5 + $0x1c] sm:$0xf] %vm7853, %v7772
      %7862 = vst.msk [vmem:[#allocation5 + $0x20] sm:$0xf] %vm7853, %v7774
      %7863 = vst.msk [vmem:[#allocation5 + $0x24] sm:$0xf] %vm7853, %v7776
      %7864 = vst.msk [vmem:[#allocation5 + $0x28] sm:$0xf] %vm7853, %v7778
      %7865 = vst.msk [vmem:[#allocation5 + $0x2c] sm:$0xf] %vm7853, %v7780
      %7866 = vst.msk [vmem:[#allocation5 + $0x30] sm:$0xf] %vm7853, %v7782
      %7867 = vst.msk [vmem:[#allocation5 + $0x34] sm:$0xf] %vm7853, %v7784
      %7868 = vst.msk [vmem:[#allocation5 + $0x38] sm:$0xf] %vm7853, %v7786
      %7869 = vst.msk [vmem:[#allocation5 + $0x3c] sm:$0xf] %vm7853, %v7788
      %7870 = vst.msk [vmem:[#allocation5 + $0x40] sm:$0xf] %vm7853, %v7790
      %7871 = vst.msk [vmem:[#allocation5 + $0x44] sm:$0xf] %vm7853, %v7792
      %7872 = vst.msk [vmem:[#allocation5 + $0x48] sm:$0xf] %vm7853, %v7794
      %7873 = vst.msk [vmem:[#allocation5 + $0x4c] sm:$0xf] %vm7853, %v7796
      %7874 = vst.msk [vmem:[#allocation5 + $0x50] sm:$0xf] %vm7853, %v7798
      %7875 = vst.msk [vmem:[#allocation5 + $0x54] sm:$0xf] %vm7853, %v7800
      %7876 = vst.msk [vmem:[#allocation5 + $0x58] sm:$0xf] %vm7853, %v7802
      %7877 = vst.msk [vmem:[#allocation5 + $0x5c] sm:$0xf] %vm7853, %v7804
      %7878 = vst.msk [vmem:[#allocation5 + $0x60] sm:$0xf] %vm7853, %v7806
      %7879 = vst.msk [vmem:[#allocation5 + $0x64] sm:$0xf] %vm7853, %v7808
      %7880 = vst.msk [vmem:[#allocation5 + $0x68] sm:$0xf] %vm7853, %v7810
      %7881 = vst.msk [vmem:[#allocation5 + $0x6c] sm:$0xf] %vm7853, %v7812
      %7882 = vst.msk [vmem:[#allocation5 + $0x70] sm:$0xf] %vm7853, %v7814
      %7883 = vst.msk [vmem:[#allocation5 + $0x74] sm:$0xf] %vm7853, %v7816
      %7884 = vst.msk [vmem:[#allocation5 + $0x78] sm:$0xf] %vm7853, %v7818
      %7885 = vst.msk [vmem:[#allocation5 + $0x7c] sm:$0xf] %vm7853, %v7820
      %v7886 = vld [vmem:[#allocation5] sm:$0xf]
      %v7887 = vld [vmem:[#allocation5 + $0x4] sm:$0xf]
      %v7888 = vld [vmem:[#allocation5 + $0x8] sm:$0xf]
      %v7889 = vld [vmem:[#allocation5 + $0xc] sm:$0xf]
      %v7890 = vld [vmem:[#allocation5 + $0x10] sm:$0xf]
      %v7891 = vld [vmem:[#allocation5 + $0x14] sm:$0xf]
      %v7892 = vld [vmem:[#allocation5 + $0x18] sm:$0xf]
      %v7893 = vld [vmem:[#allocation5 + $0x1c] sm:$0xf]
      %v7894 = vld [vmem:[#allocation5 + $0x20] sm:$0xf]
      %v7895 = vld [vmem:[#allocation5 + $0x24] sm:$0xf]
      %v7896 = vld [vmem:[#allocation5 + $0x28] sm:$0xf]
      %v7897 = vld [vmem:[#allocation5 + $0x2c] sm:$0xf]
      %v7898 = vld [vmem:[#allocation5 + $0x30] sm:$0xf]
      %v7899 = vld [vmem:[#allocation5 + $0x34] sm:$0xf]
      %v7900 = vld [vmem:[#allocation5 + $0x38] sm:$0xf]
      %v7901 = vld [vmem:[#allocation5 + $0x3c] sm:$0xf]
      %v7902 = vld [vmem:[#allocation5 + $0x40] sm:$0xf]
      %v7903 = vld [vmem:[#allocation5 + $0x44] sm:$0xf]
      %v7904 = vld [vmem:[#allocation5 + $0x48] sm:$0xf]
      %v7905 = vld [vmem:[#allocation5 + $0x4c] sm:$0xf]
      %v7906 = vld [vmem:[#allocation5 + $0x50] sm:$0xf]
      %v7907 = vld [vmem:[#allocation5 + $0x54] sm:$0xf]
      %v7908 = vld [vmem:[#allocation5 + $0x58] sm:$0xf]
      %v7909 = vld [vmem:[#allocation5 + $0x5c] sm:$0xf]
      %v7910 = vld [vmem:[#allocation5 + $0x60] sm:$0xf]
      %v7911 = vld [vmem:[#allocation5 + $0x64] sm:$0xf]
      %v7912 = vld [vmem:[#allocation5 + $0x68] sm:$0xf]
      %v7913 = vld [vmem:[#allocation5 + $0x6c] sm:$0xf]
      %v7914 = vld [vmem:[#allocation5 + $0x70] sm:$0xf]
      %v7915 = vld [vmem:[#allocation5 + $0x74] sm:$0xf]
      %v7916 = vld [vmem:[#allocation5 + $0x78] sm:$0xf]
      %v7917 = vld [vmem:[#allocation5 + $0x7c] sm:$0xf]
      %v7918 = vld [vmem:[%s3] sm:$0xf]
      %v7919 = vld [vmem:[%s3 + $0x4] sm:$0xf]
      %v7920 = vld [vmem:[%s3 + $0x8] sm:$0xf]
      %v7921 = vld [vmem:[%s3 + $0xc] sm:$0xf]
      %v7922 = vld [vmem:[%s3 + $0x10] sm:$0xf]
      %v7923 = vld [vmem:[%s3 + $0x14] sm:$0xf]
      %v7924 = vld [vmem:[%s3 + $0x18] sm:$0xf]
      %v7925 = vld [vmem:[%s3 + $0x1c] sm:$0xf]
      %v7926 = vld [vmem:[%s3 + $0x20] sm:$0xf]
      %v7927 = vld [vmem:[%s4] sm:$0x1]
      %v7929 = vperm.slane %v7927, 0
      %v7963 = vunpack.c.l.b16 %v7886
      %v7964 = vunpack.c.l.b16 %v7887
      %v7965 = vunpack.c.l.b16 %v7888
      %v7966 = vunpack.c.l.b16 %v7889
      %v7967 = vunpack.c.l.b16 %v7890
      %v7968 = vunpack.c.l.b16 %v7891
      %v7969 = vunpack.c.l.b16 %v7892
      %v7970 = vunpack.c.l.b16 %v7893
      %v7971 = vunpack.c.l.b16 %v7894
      %v7972 = vunpack.c.l.b16 %v7895
      %v7973 = vunpack.c.l.b16 %v7896
      %v7974 = vunpack.c.l.b16 %v7897
      %v7975 = vunpack.c.l.b16 %v7898
      %v7976 = vunpack.c.l.b16 %v7899
      %v7977 = vunpack.c.l.b16 %v7900
      %v7978 = vunpack.c.l.b16 %v7901
      %v7979 = vunpack.c.l.b16 %v7902
      %v7980 = vunpack.c.l.b16 %v7903
      %v7981 = vunpack.c.l.b16 %v7904
      %v7982 = vunpack.c.l.b16 %v7905
      %v7983 = vunpack.c.l.b16 %v7906
      %v7984 = vunpack.c.l.b16 %v7907
      %v7985 = vunpack.c.l.b16 %v7908
      %v7986 = vunpack.c.l.b16 %v7909
      %v7987 = vunpack.c.l.b16 %v7910
      %v7988 = vunpack.c.l.b16 %v7911
      %v7989 = vunpack.c.l.b16 %v7912
      %v7990 = vunpack.c.l.b16 %v7913
      %v7991 = vunpack.c.l.b16 %v7914
      %v7992 = vunpack.c.l.b16 %v7915
      %v7993 = vunpack.c.l.b16 %v7916
      %v7994 = vunpack.c.l.b16 %v7917
      %v7995 = vpack.c.b16 %v7964, %v7963
      %v7996 = vpack.c.b16 %v7966, %v7965
      %v7997 = vpack.c.b16 %v7968, %v7967
      %v7998 = vpack.c.b16 %v7970, %v7969
      %v7999 = vpack.c.b16 %v7972, %v7971
      %v8000 = vpack.c.b16 %v7974, %v7973
      %v8001 = vpack.c.b16 %v7976, %v7975
      %v8002 = vpack.c.b16 %v7978, %v7977
      %v8003 = vpack.c.b16 %v7980, %v7979
      %v8004 = vpack.c.b16 %v7982, %v7981
      %v8005 = vpack.c.b16 %v7984, %v7983
      %v8006 = vpack.c.b16 %v7986, %v7985
      %v8007 = vpack.c.b16 %v7988, %v7987
      %v8008 = vpack.c.b16 %v7990, %v7989
      %v8009 = vpack.c.b16 %v7992, %v7991
      %v8010 = vpack.c.b16 %v7994, %v7993
      %v8020 = vunpack.c.l.b16 %v7918
      %v8021 = vunpack.c.l.b16 %v7919
      %v8022 = vunpack.c.l.b16 %v7920
      %v8023 = vunpack.c.l.b16 %v7921
      %v8024 = vunpack.c.l.b16 %v7922
      %v8025 = vunpack.c.l.b16 %v7923
      %v8026 = vunpack.c.l.b16 %v7924
      %v8027 = vunpack.c.l.b16 %v7925
      %v8028 = vunpack.c.l.b16 %v7926
      %v8029 = vpack.c.b16 %v8021, %v8020
      %v8030 = vpack.c.b16 %v8023, %v8022
      %v8031 = vpack.c.b16 %v8025, %v8024
      %v8032 = vpack.c.b16 %v8027, %v8026
      %v8033 = vpack.c.b16 %v8028, %v8028
      %vm8038 = vcmask 588800
      %v8040 = vsel %vm8038, %v7995, 0
      %v8043 = vsel %vm8038, %v7996, 0
      %v8046 = vsel %vm8038, %v7997, 0
      %v8049 = vsel %vm8038, %v7998, 0
      %v8052 = vsel %vm8038, %v7999, 0
      %v8055 = vsel %vm8038, %v8000, 0
      %v8058 = vsel %vm8038, %v8001, 0
      %v8061 = vsel %vm8038, %v8002, 0
      %v8064 = vsel %vm8038, %v8003, 0
      %v8067 = vsel %vm8038, %v8004, 0
      %v8070 = vsel %vm8038, %v8005, 0
      %v8073 = vsel %vm8038, %v8006, 0
      %v8076 = vsel %vm8038, %v8007, 0
      %v8079 = vsel %vm8038, %v8008, 0
      %v8082 = vsel %vm8038, %v8009, 0
      %v8085 = vsel %vm8038, %v8010, 0
      %vm8087 = vcmask 1043456
      %v8089 = vsel %vm8087, %v8033, 0
      %8091 = vmatpush.bf16.msra.mxu0 0
      %8092 = vmatpush.bf16.msra.mxu0 0
      %8093 = vmatpush.bf16.msra.mxu0 0
      %8094 = vmatpush.bf16.msra.mxu0 %v8089
      %8095 = vmatpush.bf16.msra.mxu0 %v8032
      %8096 = vmatpush.bf16.msra.mxu0 %v8031
      %8097 = vmatpush.bf16.msra.mxu0 %v8030
      %8098 = vmatpush.bf16.msra.mxu0 %v8029
      %8099 = vmatmul.bf16.gmra.mxu0 %v8040
      %v8100 = vpop.f32.mrf.mxu0
      %v8101 = vadd.f32 %v7929, %v8100
      %v8102 = vpop.f32.mrf.mxu0
      %v8103 = vadd.f32 %v7929, %v8102
      %8104 = vmatmul.bf16.gmra.mxu0 %v8043
      %v8105 = vpop.f32.mrf.mxu0
      %v8106 = vadd.f32 %v7929, %v8105
      %v8107 = vpop.f32.mrf.mxu0
      %v8108 = vadd.f32 %v7929, %v8107
      %8109 = vmatmul.bf16.gmra.mxu0 %v8046
      %v8110 = vpop.f32.mrf.mxu0
      %v8111 = vadd.f32 %v7929, %v8110
      %v8112 = vpop.f32.mrf.mxu0
      %v8113 = vadd.f32 %v7929, %v8112
      %8114 = vmatmul.bf16.gmra.mxu0 %v8049
      %v8115 = vpop.f32.mrf.mxu0
      %v8116 = vadd.f32 %v7929, %v8115
      %v8117 = vpop.f32.mrf.mxu0
      %v8118 = vadd.f32 %v7929, %v8117
      %8119 = vmatmul.bf16.gmra.mxu0 %v8052
      %v8120 = vpop.f32.mrf.mxu0
      %v8121 = vadd.f32 %v7929, %v8120
      %v8122 = vpop.f32.mrf.mxu0
      %v8123 = vadd.f32 %v7929, %v8122
      %8124 = vmatmul.bf16.gmra.mxu0 %v8055
      %v8125 = vpop.f32.mrf.mxu0
      %v8126 = vadd.f32 %v7929, %v8125
      %v8127 = vpop.f32.mrf.mxu0
      %v8128 = vadd.f32 %v7929, %v8127
      %8129 = vmatmul.bf16.gmra.mxu0 %v8058
      %v8130 = vpop.f32.mrf.mxu0
      %v8131 = vadd.f32 %v7929, %v8130
      %v8132 = vpop.f32.mrf.mxu0
      %v8133 = vadd.f32 %v7929, %v8132
      %8134 = vmatmul.bf16.gmra.mxu0 %v8061
      %v8135 = vpop.f32.mrf.mxu0
      %v8136 = vadd.f32 %v7929, %v8135
      %v8137 = vpop.f32.mrf.mxu0
      %v8138 = vadd.f32 %v7929, %v8137
      %8139 = vmatmul.bf16.gmra.mxu0 %v8064
      %v8140 = vpop.f32.mrf.mxu0
      %v8141 = vadd.f32 %v7929, %v8140
      %v8142 = vpop.f32.mrf.mxu0
      %v8143 = vadd.f32 %v7929, %v8142
      %8144 = vmatmul.bf16.gmra.mxu0 %v8067
      %v8145 = vpop.f32.mrf.mxu0
      %v8146 = vadd.f32 %v7929, %v8145
      %v8147 = vpop.f32.mrf.mxu0
      %v8148 = vadd.f32 %v7929, %v8147
      %8149 = vmatmul.bf16.gmra.mxu0 %v8070
      %v8150 = vpop.f32.mrf.mxu0
      %v8151 = vadd.f32 %v7929, %v8150
      %v8152 = vpop.f32.mrf.mxu0
      %v8153 = vadd.f32 %v7929, %v8152
      %8154 = vmatmul.bf16.gmra.mxu0 %v8073
      %v8155 = vpop.f32.mrf.mxu0
      %v8156 = vadd.f32 %v7929, %v8155
      %v8157 = vpop.f32.mrf.mxu0
      %v8158 = vadd.f32 %v7929, %v8157
      %8159 = vmatmul.bf16.gmra.mxu0 %v8076
      %v8160 = vpop.f32.mrf.mxu0
      %v8161 = vadd.f32 %v7929, %v8160
      %v8162 = vpop.f32.mrf.mxu0
      %v8163 = vadd.f32 %v7929, %v8162
      %8164 = vmatmul.bf16.gmra.mxu0 %v8079
      %v8165 = vpop.f32.mrf.mxu0
      %v8166 = vadd.f32 %v7929, %v8165
      %v8167 = vpop.f32.mrf.mxu0
      %v8168 = vadd.f32 %v7929, %v8167
      %8169 = vmatmul.bf16.gmra.mxu0 %v8082
      %v8170 = vpop.f32.mrf.mxu0
      %v8171 = vadd.f32 %v7929, %v8170
      %v8172 = vpop.f32.mrf.mxu0
      %v8173 = vadd.f32 %v7929, %v8172
      %8174 = vmatmul.bf16.gmra.mxu0 %v8085
      %v8175 = vpop.f32.mrf.mxu0
      %v8176 = vadd.f32 %v7929, %v8175
      %v8177 = vpop.f32.mrf.mxu0
      %v8178 = vadd.f32 %v7929, %v8177
      %8179 = vdwg.mxu0
      %v8180 = vmax.f32 %v8101, 0.0
      %v8181 = vmax.f32 %v8103, 0.0
      %v8182 = vmax.f32 %v8106, 0.0
      %v8183 = vmax.f32 %v8108, 0.0
      %v8184 = vmax.f32 %v8111, 0.0
      %v8185 = vmax.f32 %v8113, 0.0
      %v8186 = vmax.f32 %v8116, 0.0
      %v8187 = vmax.f32 %v8118, 0.0
      %v8188 = vmax.f32 %v8121, 0.0
      %v8189 = vmax.f32 %v8123, 0.0
      %v8190 = vmax.f32 %v8126, 0.0
      %v8191 = vmax.f32 %v8128, 0.0
      %v8192 = vmax.f32 %v8131, 0.0
      %v8193 = vmax.f32 %v8133, 0.0
      %v8194 = vmax.f32 %v8136, 0.0
      %v8195 = vmax.f32 %v8138, 0.0
      %v8196 = vmax.f32 %v8141, 0.0
      %v8197 = vmax.f32 %v8143, 0.0
      %v8198 = vmax.f32 %v8146, 0.0
      %v8199 = vmax.f32 %v8148, 0.0
      %v8200 = vmax.f32 %v8151, 0.0
      %v8201 = vmax.f32 %v8153, 0.0
      %v8202 = vmax.f32 %v8156, 0.0
      %v8203 = vmax.f32 %v8158, 0.0
      %v8204 = vmax.f32 %v8161, 0.0
      %v8205 = vmax.f32 %v8163, 0.0
      %v8206 = vmax.f32 %v8166, 0.0
      %v8207 = vmax.f32 %v8168, 0.0
      %v8208 = vmax.f32 %v8171, 0.0
      %v8209 = vmax.f32 %v8173, 0.0
      %v8210 = vmax.f32 %v8176, 0.0
      %v8211 = vmax.f32 %v8178, 0.0
      %vm8212 = vcmask 64512
      %8213 = vst.msk [vmem:[%s224] sm:$0xff] %vm8212, %v8180
      %8214 = vst.msk [vmem:[%s224 + $0x8] sm:$0xff] %vm8212, %v8181
      %8215 = vst.msk [vmem:[%s224 + $0x10] sm:$0xff] %vm8212, %v8182
      %8216 = vst.msk [vmem:[%s224 + $0x18] sm:$0xff] %vm8212, %v8183
      %8217 = vst.msk [vmem:[%s224 + $0x20] sm:$0xff] %vm8212, %v8184
      %8218 = vst.msk [vmem:[%s224 + $0x28] sm:$0xff] %vm8212, %v8185
      %8219 = vst.msk [vmem:[%s224 + $0x30] sm:$0xff] %vm8212, %v8186
      %8220 = vst.msk [vmem:[%s224 + $0x38] sm:$0xff] %vm8212, %v8187
      %8221 = vst.msk [vmem:[%s224 + $0x40] sm:$0xff] %vm8212, %v8188
      %8222 = vst.msk [vmem:[%s224 + $0x48] sm:$0xff] %vm8212, %v8189
      %8223 = vst.msk [vmem:[%s224 + $0x50] sm:$0xff] %vm8212, %v8190
      %8224 = vst.msk [vmem:[%s224 + $0x58] sm:$0xff] %vm8212, %v8191
      %8225 = vst.msk [vmem:[%s224 + $0x60] sm:$0xff] %vm8212, %v8192
      %8226 = vst.msk [vmem:[%s224 + $0x68] sm:$0xff] %vm8212, %v8193
      %8227 = vst.msk [vmem:[%s224 + $0x70] sm:$0xff] %vm8212, %v8194
      %8228 = vst.msk [vmem:[%s224 + $0x78] sm:$0xff] %vm8212, %v8195
      %8229 = vst.msk [vmem:[%s224 + $0x80] sm:$0xff] %vm8212, %v8196
      %8230 = vst.msk [vmem:[%s224 + $0x88] sm:$0xff] %vm8212, %v8197
      %8231 = vst.msk [vmem:[%s224 + $0x90] sm:$0xff] %vm8212, %v8198
      %8232 = vst.msk [vmem:[%s224 + $0x98] sm:$0xff] %vm8212, %v8199
      %8233 = vst.msk [vmem:[%s224 + $0xa0] sm:$0xff] %vm8212, %v8200
      %8234 = vst.msk [vmem:[%s224 + $0xa8] sm:$0xff] %vm8212, %v8201
      %8235 = vst.msk [vmem:[%s224 + $0xb0] sm:$0xff] %vm8212, %v8202
      %8236 = vst.msk [vmem:[%s224 + $0xb8] sm:$0xff] %vm8212, %v8203
      %8237 = vst.msk [vmem:[%s224 + $0xc0] sm:$0xff] %vm8212, %v8204
      %8238 = vst.msk [vmem:[%s224 + $0xc8] sm:$0xff] %vm8212, %v8205
      %8239 = vst.msk [vmem:[%s224 + $0xd0] sm:$0xff] %vm8212, %v8206
      %8240 = vst.msk [vmem:[%s224 + $0xd8] sm:$0xff] %vm8212, %v8207
      %8241 = vst.msk [vmem:[%s224 + $0xe0] sm:$0xff] %vm8212, %v8208
      %8242 = vst.msk [vmem:[%s224 + $0xe8] sm:$0xff] %vm8212, %v8209
      %8243 = vst.msk [vmem:[%s224 + $0xf0] sm:$0xff] %vm8212, %v8210
      %8244 = vst.msk [vmem:[%s224 + $0xf8] sm:$0xff] %vm8212, %v8211
      %p8245 = scmp.lt.s32.totalorder %s16, 1
      %s8246 = scalar_select %p8245, %s16, 1
      %s8247 = smul.addr %s8246, 32
      %s8248 = smul.addr %s8247, 8
      %s8249 = scalar_lea.vmem %s5, %s8248
      // Predicated region
      $region41: #{double_conv.1} parent=39 // pred_check
        %p8250 = pneg %p144
      $region42: #{double_conv.1} parent=39 // pred_check_branch
        %8252 = sbr.rel (%p8250) target = $region44
      $region43: #{double_conv.1} parent=39 // pred_region
        _
      $region44: #{double_conv.1} parent=39 // pred_fallthru
        _
    $region40: #{double_conv.1} parent=5 // pred_fallthru
      _
    %p8253 = scmp.le.s32.totalorder 2, %s11
    // Predicated region
    $region45: #{double_conv.1} parent=5 // pred_check
      %p8254 = pneg %p8253
    $region46: #{double_conv.1} parent=5 // pred_check_branch
      %8256 = sbr.rel (%p8254) target = $region48
    $region47: #{double_conv.1} parent=5 // pred_region
      %s8257 = ssub.s32 %s11, 2
      // Predicated region
      $region49: #{double_conv.1} parent=47 // pred_check
        %p8258 = pneg %p150
      $region50: #{double_conv.1} parent=47 // pred_check_branch
        %8260 = sbr.rel (%p8258) target = $region52
      $region51: #{double_conv.1} parent=47 // pred_region
        %p8261 = scmp.lt.s32.totalorder %s17, 1
        %s8262 = scalar_select %p8261, %s17, 1
        %s8263 = smul.addr %s8262, 32
        %s8264 = smul.addr %s8263, 8
        %s8265 = scalar_lea.vmem %s5, %s8264
      $region52: #{double_conv.1} parent=47 // pred_fallthru
        _
    $region48: #{double_conv.1} parent=5 // pred_fallthru
      _
  $region6: #{double_conv.1} parent=0 // loop_footer
    %s15 = sadd.s32 1, %s11
  $region7: #{double_conv.1} parent=0 // loop_footer_branch
    %10 = sbr.rel target = $region3
  $region8: #{double_conv.1} parent=0 // loop_exit
    _

</llo_original>
